<compile_context>
chip_gen: v7x
topology: tpu7x:2x2x1
jax: 0.10.0
libtpu: 0.0.40
codegen_flags: <defaults>
</compile_context>

<pallas_src>
import functools

import jax
import jax.numpy as jnp
from jax.experimental import pallas as pl
from jax.experimental.pallas import tpu as pltpu


def _shift_rows(a, s):
    """b[m] = a[m + s] if 0 <= m + s < rows(a) else 0   (s is a static int)."""
    if s == 0:
        return a
    m = a.shape[0]
    pad = jnp.zeros((abs(s),) + a.shape[1:], a.dtype)
    if s > 0:
        return jnp.concatenate([a[s:], pad], axis=0)
    return jnp.concatenate([pad, a[: m + s]], axis=0)


def _fused_kernel(
    H, W,
    # ---- inputs -------------------------------------------------------------
    x_ref,                       # (H*W, 32) f32: input pixel broadcast on lanes
    w1_ref, s1_ref, b1_ref,      # (9, 32) f32, (1, 32) f32, (1, 32) f32
    w2_ref, s2_ref, b2_ref,      # (288, 64) bf16, (1, 64) f32, (1, 64) f32
    w3_ref, s3_ref, b3_ref,      # (576, 128) bf16, ...
    w4_hbm_ref, s4_ref, b4_ref,  # (1152, 256) bf16 (HBM, manual DMA), ...
    wh1_ref, bh1_ref,            # (256, 128) f32, (1, 128) f32
    wh2_ref, bh2_ref,            # (128, E) f32,  (1, E) f32
    # ---- outputs ------------------------------------------------------------
    o_ref,                       # (1, 1, E) f32
    # ---- scratch ------------------------------------------------------------
    w4_vmem,                     # (1152, 256) bf16
    w4_sem,                      # DMA semaphore
):
    M = H * W

    # Kick off the conv4 weight DMA now; it is only consumed after conv1..3.
    w4_copy = pltpu.make_async_copy(w4_hbm_ref, w4_vmem, w4_sem)
    w4_copy.start()

    # Left / right image-border row masks (x == 0 / x == W-1), shared by layers.
    row = jax.lax.broadcasted_iota(jnp.int32, (M, 1), 0)
    xpos = row % W
    at_x0 = xpos == 0
    at_xW = xpos == (W - 1)

    def taps(act):
        """9 spatially shifted, border-masked copies of `act`; tap order (dy,dx)
        matches the (3, 3, Cin, Cout) -> (9*Cin, Cout) weight reshape."""
        out = []
        for dy in range(3):
            for dx in range(3):
                s = (dy - 1) * W + (dx - 1)
                t = _shift_rows(act, s)          # zero fill = top/bottom border
                if dx == 0:
                    t = jnp.where(at_x0, 0.0, t)
                elif dx == 2:
                    t = jnp.where(at_xW, 0.0, t)
                out.append(t)
        return out

    # ---- layer 1 (Cin=1 -> 32): 9 broadcast MACs on the VPU -----------------
    xb = x_ref[...]                              # (M, 32) f32, lanes are copies
    acc1 = jnp.zeros((M, xb.shape[1]), jnp.float32)
    for k, t in enumerate(taps(xb)):
        acc1 = acc1 + t * w1_ref[k:k + 1, :]
    a1 = jnp.maximum(acc1 * s1_ref[...] + b1_ref[...], 0.0)          # (M, 32)

    # ---- layers 2..4: shifted-im2col -> one K=9*Cin bf16 MXU dot per layer --
    def conv3x3_bn_relu(act, w, scale, bias):
        cols = [t.astype(jnp.bfloat16) for t in taps(act)]
        lhs = jnp.concatenate(cols, axis=-1)     # (M, 9*Cin) bf16
        acc = jnp.dot(lhs, w, preferred_element_type=jnp.float32)
        return jnp.maximum(acc * scale + bias, 0.0)                  # (M, Cout)

    a2 = conv3x3_bn_relu(a1, w2_ref[...], s2_ref[...], b2_ref[...])  # (M, 64)
    a3 = conv3x3_bn_relu(a2, w3_ref[...], s3_ref[...], b3_ref[...])  # (M, 128)
    w4_copy.wait()
    a4 = conv3x3_bn_relu(a3, w4_vmem[...], s4_ref[...], b4_ref[...])  # (M, 256)

    # ---- head: global avg-pool -> Linear(256,128) -> ReLU -> Linear(128,E) --
    pooled = jnp.mean(a4, axis=0, keepdims=True)                     # (1, 256)
    h = jnp.dot(pooled, wh1_ref[...], preferred_element_type=jnp.float32)
    h = jnp.maximum(h + bh1_ref[...], 0.0)
    # TODO(synk): nn.Dropout is identity in eval mode; training-mode dropout not implemented.
    out = jnp.dot(h, wh2_ref[...], preferred_element_type=jnp.float32)
    o_ref[0] = out + bh2_ref[...]


# ----------------------------------------------------------------------------
# Wrapper
# ----------------------------------------------------------------------------
def _const_spec(arr):
    nd = arr.ndim
    return pl.BlockSpec(arr.shape, lambda b, _nd=nd: (0,) * _nd)


@jax.jit
def occupancy_map_embedding(x_nchw, params):
    """x_nchw: (B, 1, H, W) float32 -> (B, embedding_dim) float32."""
    B, C, H, W = x_nchw.shape
    assert C == 1
    E = params["wh2"].shape[-1]
    C1 = params["s1"].shape[-1]
    M = H * W

    # Single input channel: flatten and broadcast to C1 lanes so the kernel
    # never needs a 1-lane column or a lane<->sublane reshape.
    x_b = jnp.broadcast_to(
        x_nchw.astype(jnp.float32).reshape(B * M, 1), (B * M, C1))

    args = (
        x_b,
        params["w1"], params["s1"], params["b1"],
        params["w2"], params["s2"], params["b2"],
        params["w3"], params["s3"], params["b3"],
        params["w4"], params["s4"], params["b4"],
        params["wh1"], params["bh1"], params["wh2"], params["bh2"],
    )

    in_specs = [pl.BlockSpec((M, C1), lambda b: (b, 0))]
    for name in ("w1", "s1", "b1", "w2", "s2", "b2", "w3", "s3", "b3"):
        in_specs.append(_const_spec(params[name]))
    in_specs.append(pl.BlockSpec(memory_space=pl.ANY))   # w4 stays in HBM
    for name in ("s4", "b4", "wh1", "bh1", "wh2", "bh2"):
        in_specs.append(_const_spec(params[name]))

    out = pl.pallas_call(
        functools.partial(_fused_kernel, H, W),
        out_shape=jax.ShapeDtypeStruct((B, 1, E), jnp.float32),
        grid=(B,),
        in_specs=in_specs,
        out_specs=pl.BlockSpec((1, 1, E), lambda b: (b, 0, 0)),
        scratch_shapes=[
            pltpu.VMEM(params["w4"].shape, jnp.bfloat16),
            pltpu.SemaphoreType.DMA(()),
        ],
        compiler_params=pltpu.CompilerParams(
            dimension_semantics=("parallel",),
        ),
    )(*args)
    return out.reshape(B, E)


# ----------------------------------------------------------------------------
# Parameter construction (deterministic, synthetic; BN folded for eval)
# ----------------------------------------------------------------------------
def make_params(embedding_dim: int, key):
    channels = [1, 32, 64, 128, 256]
    eps = 1e-5
    p = {}
    for i in range(4):
        cin, cout = channels[i], channels[i + 1]
        key, kw, kb, kg, kbe, km, kv = jax.random.split(key, 7)
        w = jax.random.normal(kw, (3, 3, cin, cout), jnp.float32) * 0.1   # HWIO
        b_conv = jax.random.normal(kb, (cout,), jnp.float32) * 0.05
        gamma = 1.0 + 0.1 * jax.random.normal(kg, (cout,), jnp.float32)
        beta = 0.1 * jax.random.normal(kbe, (cout,), jnp.float32)
        mean = 0.05 * jax.random.normal(km, (cout,), jnp.float32)
        var = 0.5 + jnp.abs(jax.random.normal(kv, (cout,), jnp.float32))

        # Fold conv bias + BatchNorm (eval) into per-channel scale/bias (f32).
        scale = gamma / jnp.sqrt(var + eps)
        bias = (b_conv - mean) * scale + beta

        wk = w.reshape(9 * cin, cout)  # K ordered as (dy, dx, cin) == tap order
        idx = i + 1
        if i == 0:
            p["w1"] = wk                                   # f32, used on the VPU
        else:
            p[f"w{idx}"] = wk.astype(jnp.bfloat16)         # bf16 for the MXU
        p[f"s{idx}"] = scale.reshape(1, cout)
        p[f"b{idx}"] = bias.reshape(1, cout)

    key, k1, kb1, k2, kb2 = jax.random.split(key, 5)
    p["wh1"] = jax.random.normal(k1, (256, 128), jnp.float32) * 0.05
    p["bh1"] = (0.05 * jax.random.normal(kb1, (128,), jnp.float32)).reshape(1, 128)
    p["wh2"] = jax.random.normal(k2, (128, embedding_dim), jnp.float32) * 0.05
    p["bh2"] = (0.05 * jax.random.normal(kb2, (embedding_dim,), jnp.float32)
                ).reshape(1, embedding_dim)
    return p


# ----------------------------------------------------------------------------
# Pure-JAX reference of the same folded math (for a sanity cross-check)
# ----------------------------------------------------------------------------
def _reference_forward(x_nchw, params):
    B, _, H, W = x_nchw.shape
    x = x_nchw.astype(jnp.float32).reshape(B, H, W, 1)
    cfg = [("w1", "s1", "b1", 1, 32), ("w2", "s2", "b2", 32, 64),
           ("w3", "s3", "b3", 64, 128), ("w4", "s4", "b4", 128, 256)]
    for wname, sname, bname, cin, cout in cfg:
        w = params[wname].astype(jnp.float32).reshape(3, 3, cin, cout)
        x = jax.lax.conv_general_dilated(
            x, w, window_strides=(1, 1), padding="SAME",
            dimension_numbers=("NHWC", "HWIO", "NHWC"))
        x = jnp.maximum(x * params[sname].reshape(1, 1, 1, cout)
                        + params[bname].reshape(1, 1, 1, cout), 0.0)
    pooled = jnp.mean(x, axis=(1, 2))
    h = jnp.maximum(pooled @ params["wh1"] + params["bh1"], 0.0)
    return h @ params["wh2"] + params["bh2"]


if __name__ == "__main__":
    root = jax.random.PRNGKey(0)
    k_x, k_p = jax.random.split(root)

    B, H, W = 2, 16, 16
    embedding_dim = 64

    # Occupancy map input in the PyTorch NCHW convention: (B, 1, H, W)
    x = jax.random.uniform(k_x, (B, 1, H, W), jnp.float32)
    params = make_params(embedding_dim, k_p)

    out = occupancy_map_embedding(x, params)
    out = jax.block_until_ready(out)

    assert out.shape == (B, embedding_dim), out.shape
    assert out.dtype == jnp.float32, out.dtype

    # Sanity check against the f32 XLA reference (bf16 matmul inputs in the
    # kernel give small, bounded differences).
    ref = _reference_forward(x, params)
    err = float(jnp.max(jnp.abs(out - ref)))
    assert err < 5e-2, f"max abs error vs reference: {err}"

    print("KERNEL_OK")
</pallas_src>

<mosaic_0001>
module attributes {stable_mosaic.version = 11 : i64} {
  func.func @_fused_kernel(%arg0: i32, %arg1: memref<256x32xf32, #tpu.memory_space<vmem>>, %arg2: memref<9x32xf32, #tpu.memory_space<vmem>>, %arg3: memref<1x32xf32, #tpu.memory_space<vmem>>, %arg4: memref<1x32xf32, #tpu.memory_space<vmem>>, %arg5: memref<288x64xbf16, #tpu.memory_space<vmem>>, %arg6: memref<1x64xf32, #tpu.memory_space<vmem>>, %arg7: memref<1x64xf32, #tpu.memory_space<vmem>>, %arg8: memref<576x128xbf16, #tpu.memory_space<vmem>>, %arg9: memref<1x128xf32, #tpu.memory_space<vmem>>, %arg10: memref<1x128xf32, #tpu.memory_space<vmem>>, %arg11: memref<1152x256xbf16, #tpu.memory_space<any>>, %arg12: memref<1x256xf32, #tpu.memory_space<vmem>>, %arg13: memref<1x256xf32, #tpu.memory_space<vmem>>, %arg14: memref<256x128xf32, #tpu.memory_space<vmem>>, %arg15: memref<1x128xf32, #tpu.memory_space<vmem>>, %arg16: memref<128x64xf32, #tpu.memory_space<vmem>>, %arg17: memref<1x64xf32, #tpu.memory_space<vmem>>, %arg18: memref<1x1x64xf32, #tpu.memory_space<vmem>>, %arg19: memref<1152x256xbf16, #tpu.memory_space<vmem>>, %arg20: memref<!tpu.dma_semaphore, #tpu.memory_space<semaphore_mem>>) attributes {dimension_semantics = [#tpu.dimension_semantics<parallel>], iteration_bounds = array<i64: 2>, scalar_prefetch = 0 : i64, scratch_operands = 2 : i64, tpu.core_type = #tpu.core_type<tc>, window_params = [{transform_indices = @transform_0, window_bounds = array<i64: 256, 32>}, {pipeline_mode = #tpu.pipeline_mode<synchronous>, transform_indices = @transform_1, window_bounds = array<i64: 9, 32>}, {pipeline_mode = #tpu.pipeline_mode<synchronous>, transform_indices = @transform_2, window_bounds = array<i64: 1, 32>}, {pipeline_mode = #tpu.pipeline_mode<synchronous>, transform_indices = @transform_3, window_bounds = array<i64: 1, 32>}, {pipeline_mode = #tpu.pipeline_mode<synchronous>, transform_indices = @transform_4, window_bounds = array<i64: 288, 64>}, {pipeline_mode = #tpu.pipeline_mode<synchronous>, transform_indices = @transform_5, window_bounds = array<i64: 1, 64>}, {pipeline_mode = #tpu.pipeline_mode<synchronous>, transform_indices = @transform_6, window_bounds = array<i64: 1, 64>}, {pipeline_mode = #tpu.pipeline_mode<synchronous>, transform_indices = @transform_7, window_bounds = array<i64: 576, 128>}, {pipeline_mode = #tpu.pipeline_mode<synchronous>, transform_indices = @transform_8, window_bounds = array<i64: 1, 128>}, {pipeline_mode = #tpu.pipeline_mode<synchronous>, transform_indices = @transform_9, window_bounds = array<i64: 1, 128>}, {}, {pipeline_mode = #tpu.pipeline_mode<synchronous>, transform_indices = @transform_11, window_bounds = array<i64: 1, 256>}, {pipeline_mode = #tpu.pipeline_mode<synchronous>, transform_indices = @transform_12, window_bounds = array<i64: 1, 256>}, {pipeline_mode = #tpu.pipeline_mode<synchronous>, transform_indices = @transform_13, window_bounds = array<i64: 256, 128>}, {pipeline_mode = #tpu.pipeline_mode<synchronous>, transform_indices = @transform_14, window_bounds = array<i64: 1, 128>}, {pipeline_mode = #tpu.pipeline_mode<synchronous>, transform_indices = @transform_15, window_bounds = array<i64: 128, 64>}, {pipeline_mode = #tpu.pipeline_mode<synchronous>, transform_indices = @transform_16, window_bounds = array<i64: 1, 64>}, {transform_indices = @transform_17, window_bounds = array<i64: 1, 1, 64>}]} {
    tpu.enqueue_dma source(%arg11 : memref<1152x256xbf16, #tpu.memory_space<any>>) target(%arg19 : memref<1152x256xbf16, #tpu.memory_space<vmem>>) target_semaphore(%arg20 : memref<!tpu.dma_semaphore, #tpu.memory_space<semaphore_mem>>)
    %0 = tpu.iota {dimensions = array<i32: 0>} : vector<256x1xi32>
    %c16_i32 = arith.constant 16 : i32
    %c0_i32 = arith.constant 0 : i32
    %1 = arith.cmpi eq, %c16_i32, %c0_i32 : i32
    %c1_i32 = arith.constant 1 : i32
    %2 = arith.select %1, %c1_i32, %c16_i32 : i32
    %3 = vector.broadcast %2 : i32 to vector<256x1xi32>
    %4 = arith.remsi %0, %3 : vector<256x1xi32>
    %c0_i32_0 = arith.constant 0 : i32
    %5 = vector.broadcast %c0_i32_0 : i32 to vector<256x1xi32>
    %6 = arith.cmpi ne, %4, %5 : vector<256x1xi32>
    %c0_i32_1 = arith.constant 0 : i32
    %7 = vector.broadcast %c0_i32_1 : i32 to vector<256x1xi32>
    %8 = arith.cmpi slt, %4, %7 : vector<256x1xi32>
    %c0_i32_2 = arith.constant 0 : i32
    %9 = arith.cmpi slt, %2, %c0_i32_2 : i32
    %10 = vector.broadcast %9 : i1 to vector<256x1xi1>
    %11 = vector.broadcast %10 : vector<256x1xi1> to vector<256x1xi1>
    %12 = arith.xori %8, %11 : vector<256x1xi1>
    %13 = arith.andi %12, %6 : vector<256x1xi1>
    %14 = vector.broadcast %2 : i32 to vector<256x1xi32>
    %15 = arith.addi %4, %14 : vector<256x1xi32>
    %16 = arith.select %13, %15, %4 : vector<256x1xi1>, vector<256x1xi32>
    %c0_i32_3 = arith.constant 0 : i32
    %17 = vector.broadcast %c0_i32_3 : i32 to vector<256x1xi32>
    %18 = arith.cmpi eq, %16, %17 : vector<256x1xi32>
    %c15_i32 = arith.constant 15 : i32
    %19 = vector.broadcast %c15_i32 : i32 to vector<256x1xi32>
    %20 = arith.cmpi eq, %16, %19 : vector<256x1xi32>
    %c0 = arith.constant 0 : index
    %c0_4 = arith.constant 0 : index
    %21 = vector.load %arg1[%c0, %c0_4] : memref<256x32xf32, #tpu.memory_space<vmem>>, vector<256x32xf32>
    %cst = arith.constant 0.000000e+00 : f32
    %22 = vector.broadcast %cst : f32 to vector<256x32xf32>
    %cst_5 = arith.constant 0.000000e+00 : f32
    %23 = vector.broadcast %cst_5 : f32 to vector<17x32xf32>
    %24 = vector.extract_strided_slice %21 {offsets = [0, 0], sizes = [239, 32], strides = [1, 1]} : vector<256x32xf32> to vector<239x32xf32>
    %25 = tpu.concatenate %23, %24 in 0 : vector<17x32xf32>, vector<239x32xf32> -> vector<256x32xf32>
    %cst_6 = arith.constant 0.000000e+00 : f32
    %26 = vector.shape_cast %18 : vector<256x1xi1> to vector<256x1xi1>
    %27 = vector.broadcast %26 : vector<256x1xi1> to vector<256x32xi1>
    %28 = vector.broadcast %cst_6 : f32 to vector<256x32xf32>
    %29 = arith.select %27, %28, %25 : vector<256x32xi1>, vector<256x32xf32>
    %cst_7 = arith.constant 0.000000e+00 : f32
    %30 = vector.broadcast %cst_7 : f32 to vector<16x32xf32>
    %31 = vector.extract_strided_slice %21 {offsets = [0, 0], sizes = [240, 32], strides = [1, 1]} : vector<256x32xf32> to vector<240x32xf32>
    %32 = tpu.concatenate %30, %31 in 0 : vector<16x32xf32>, vector<240x32xf32> -> vector<256x32xf32>
    %cst_8 = arith.constant 0.000000e+00 : f32
    %33 = vector.broadcast %cst_8 : f32 to vector<15x32xf32>
    %34 = vector.extract_strided_slice %21 {offsets = [0, 0], sizes = [241, 32], strides = [1, 1]} : vector<256x32xf32> to vector<241x32xf32>
    %35 = tpu.concatenate %33, %34 in 0 : vector<15x32xf32>, vector<241x32xf32> -> vector<256x32xf32>
    %cst_9 = arith.constant 0.000000e+00 : f32
    %36 = vector.shape_cast %20 : vector<256x1xi1> to vector<256x1xi1>
    %37 = vector.broadcast %36 : vector<256x1xi1> to vector<256x32xi1>
    %38 = vector.broadcast %cst_9 : f32 to vector<256x32xf32>
    %39 = arith.select %37, %38, %35 : vector<256x32xi1>, vector<256x32xf32>
    %cst_10 = arith.constant 0.000000e+00 : f32
    %40 = vector.broadcast %cst_10 : f32 to vector<1x32xf32>
    %41 = vector.extract_strided_slice %21 {offsets = [0, 0], sizes = [255, 32], strides = [1, 1]} : vector<256x32xf32> to vector<255x32xf32>
    %42 = tpu.concatenate %40, %41 in 0 : vector<1x32xf32>, vector<255x32xf32> -> vector<256x32xf32>
    %cst_11 = arith.constant 0.000000e+00 : f32
    %43 = vector.shape_cast %18 : vector<256x1xi1> to vector<256x1xi1>
    %44 = vector.broadcast %43 : vector<256x1xi1> to vector<256x32xi1>
    %45 = vector.broadcast %cst_11 : f32 to vector<256x32xf32>
    %46 = arith.select %44, %45, %42 : vector<256x32xi1>, vector<256x32xf32>
    %cst_12 = arith.constant 0.000000e+00 : f32
    %47 = vector.broadcast %cst_12 : f32 to vector<1x32xf32>
    %48 = vector.extract_strided_slice %21 {offsets = [1, 0], sizes = [255, 32], strides = [1, 1]} : vector<256x32xf32> to vector<255x32xf32>
    %49 = tpu.concatenate %48, %47 in 0 : vector<255x32xf32>, vector<1x32xf32> -> vector<256x32xf32>
    %cst_13 = arith.constant 0.000000e+00 : f32
    %50 = vector.shape_cast %20 : vector<256x1xi1> to vector<256x1xi1>
    %51 = vector.broadcast %50 : vector<256x1xi1> to vector<256x32xi1>
    %52 = vector.broadcast %cst_13 : f32 to vector<256x32xf32>
    %53 = arith.select %51, %52, %49 : vector<256x32xi1>, vector<256x32xf32>
    %cst_14 = arith.constant 0.000000e+00 : f32
    %54 = vector.broadcast %cst_14 : f32 to vector<15x32xf32>
    %55 = vector.extract_strided_slice %21 {offsets = [15, 0], sizes = [241, 32], strides = [1, 1]} : vector<256x32xf32> to vector<241x32xf32>
    %56 = tpu.concatenate %55, %54 in 0 : vector<241x32xf32>, vector<15x32xf32> -> vector<256x32xf32>
    %cst_15 = arith.constant 0.000000e+00 : f32
    %57 = vector.shape_cast %18 : vector<256x1xi1> to vector<256x1xi1>
    %58 = vector.broadcast %57 : vector<256x1xi1> to vector<256x32xi1>
    %59 = vector.broadcast %cst_15 : f32 to vector<256x32xf32>
    %60 = arith.select %58, %59, %56 : vector<256x32xi1>, vector<256x32xf32>
    %cst_16 = arith.constant 0.000000e+00 : f32
    %61 = vector.broadcast %cst_16 : f32 to vector<16x32xf32>
    %62 = vector.extract_strided_slice %21 {offsets = [16, 0], sizes = [240, 32], strides = [1, 1]} : vector<256x32xf32> to vector<240x32xf32>
    %63 = tpu.concatenate %62, %61 in 0 : vector<240x32xf32>, vector<16x32xf32> -> vector<256x32xf32>
    %cst_17 = arith.constant 0.000000e+00 : f32
    %64 = vector.broadcast %cst_17 : f32 to vector<17x32xf32>
    %65 = vector.extract_strided_slice %21 {offsets = [17, 0], sizes = [239, 32], strides = [1, 1]} : vector<256x32xf32> to vector<239x32xf32>
    %66 = tpu.concatenate %65, %64 in 0 : vector<239x32xf32>, vector<17x32xf32> -> vector<256x32xf32>
    %cst_18 = arith.constant 0.000000e+00 : f32
    %67 = vector.shape_cast %20 : vector<256x1xi1> to vector<256x1xi1>
    %68 = vector.broadcast %67 : vector<256x1xi1> to vector<256x32xi1>
    %69 = vector.broadcast %cst_18 : f32 to vector<256x32xf32>
    %70 = arith.select %68, %69, %66 : vector<256x32xi1>, vector<256x32xf32>
    %c0_19 = arith.constant 0 : index
    %c0_20 = arith.constant 0 : index
    %71 = vector.load %arg2[%c0_19, %c0_20] : memref<9x32xf32, #tpu.memory_space<vmem>>, vector<1x32xf32>
    %72 = vector.broadcast %71 : vector<1x32xf32> to vector<256x32xf32>
    %73 = arith.mulf %29, %72 : vector<256x32xf32>
    %74 = arith.addf %22, %73 : vector<256x32xf32>
    %c1 = arith.constant 1 : index
    %c0_21 = arith.constant 0 : index
    %75 = vector.load %arg2[%c1, %c0_21] : memref<9x32xf32, #tpu.memory_space<vmem>>, vector<1x32xf32>
    %76 = vector.broadcast %75 : vector<1x32xf32> to vector<256x32xf32>
    %77 = arith.mulf %32, %76 : vector<256x32xf32>
    %78 = arith.addf %74, %77 : vector<256x32xf32>
    %c2 = arith.constant 2 : index
    %c0_22 = arith.constant 0 : index
    %79 = vector.load %arg2[%c2, %c0_22] : memref<9x32xf32, #tpu.memory_space<vmem>>, vector<1x32xf32>
    %80 = vector.broadcast %79 : vector<1x32xf32> to vector<256x32xf32>
    %81 = arith.mulf %39, %80 : vector<256x32xf32>
    %82 = arith.addf %78, %81 : vector<256x32xf32>
    %c3 = arith.constant 3 : index
    %c0_23 = arith.constant 0 : index
    %83 = vector.load %arg2[%c3, %c0_23] : memref<9x32xf32, #tpu.memory_space<vmem>>, vector<1x32xf32>
    %84 = vector.broadcast %83 : vector<1x32xf32> to vector<256x32xf32>
    %85 = arith.mulf %46, %84 : vector<256x32xf32>
    %86 = arith.addf %82, %85 : vector<256x32xf32>
    %c4 = arith.constant 4 : index
    %c0_24 = arith.constant 0 : index
    %87 = vector.load %arg2[%c4, %c0_24] : memref<9x32xf32, #tpu.memory_space<vmem>>, vector<1x32xf32>
    %88 = vector.broadcast %87 : vector<1x32xf32> to vector<256x32xf32>
    %89 = arith.mulf %21, %88 : vector<256x32xf32>
    %90 = arith.addf %86, %89 : vector<256x32xf32>
    %c5 = arith.constant 5 : index
    %c0_25 = arith.constant 0 : index
    %91 = vector.load %arg2[%c5, %c0_25] : memref<9x32xf32, #tpu.memory_space<vmem>>, vector<1x32xf32>
    %92 = vector.broadcast %91 : vector<1x32xf32> to vector<256x32xf32>
    %93 = arith.mulf %53, %92 : vector<256x32xf32>
    %94 = arith.addf %90, %93 : vector<256x32xf32>
    %c6 = arith.constant 6 : index
    %c0_26 = arith.constant 0 : index
    %95 = vector.load %arg2[%c6, %c0_26] : memref<9x32xf32, #tpu.memory_space<vmem>>, vector<1x32xf32>
    %96 = vector.broadcast %95 : vector<1x32xf32> to vector<256x32xf32>
    %97 = arith.mulf %60, %96 : vector<256x32xf32>
    %98 = arith.addf %94, %97 : vector<256x32xf32>
    %c7 = arith.constant 7 : index
    %c0_27 = arith.constant 0 : index
    %99 = vector.load %arg2[%c7, %c0_27] : memref<9x32xf32, #tpu.memory_space<vmem>>, vector<1x32xf32>
    %100 = vector.broadcast %99 : vector<1x32xf32> to vector<256x32xf32>
    %101 = arith.mulf %63, %100 : vector<256x32xf32>
    %102 = arith.addf %98, %101 : vector<256x32xf32>
    %c8 = arith.constant 8 : index
    %c0_28 = arith.constant 0 : index
    %103 = vector.load %arg2[%c8, %c0_28] : memref<9x32xf32, #tpu.memory_space<vmem>>, vector<1x32xf32>
    %104 = vector.broadcast %103 : vector<1x32xf32> to vector<256x32xf32>
    %105 = arith.mulf %70, %104 : vector<256x32xf32>
    %106 = arith.addf %102, %105 : vector<256x32xf32>
    %c0_29 = arith.constant 0 : index
    %c0_30 = arith.constant 0 : index
    %107 = vector.load %arg3[%c0_29, %c0_30] : memref<1x32xf32, #tpu.memory_space<vmem>>, vector<1x32xf32>
    %108 = vector.broadcast %107 : vector<1x32xf32> to vector<256x32xf32>
    %109 = arith.mulf %106, %108 : vector<256x32xf32>
    %c0_31 = arith.constant 0 : index
    %c0_32 = arith.constant 0 : index
    %110 = vector.load %arg4[%c0_31, %c0_32] : memref<1x32xf32, #tpu.memory_space<vmem>>, vector<1x32xf32>
    %111 = vector.broadcast %110 : vector<1x32xf32> to vector<256x32xf32>
    %112 = arith.addf %109, %111 : vector<256x32xf32>
    %cst_33 = arith.constant 0.000000e+00 : f32
    %113 = vector.broadcast %cst_33 : f32 to vector<256x32xf32>
    %114 = arith.maximumf %112, %113 : vector<256x32xf32>
    %c0_34 = arith.constant 0 : index
    %c0_35 = arith.constant 0 : index
    %115 = vector.load %arg5[%c0_34, %c0_35] : memref<288x64xbf16, #tpu.memory_space<vmem>>, vector<288x64xbf16>
    %c0_36 = arith.constant 0 : index
    %c0_37 = arith.constant 0 : index
    %116 = vector.load %arg6[%c0_36, %c0_37] : memref<1x64xf32, #tpu.memory_space<vmem>>, vector<1x64xf32>
    %c0_38 = arith.constant 0 : index
    %c0_39 = arith.constant 0 : index
    %117 = vector.load %arg7[%c0_38, %c0_39] : memref<1x64xf32, #tpu.memory_space<vmem>>, vector<1x64xf32>
    %cst_40 = arith.constant 0.000000e+00 : f32
    %118 = vector.broadcast %cst_40 : f32 to vector<17x32xf32>
    %119 = vector.extract_strided_slice %114 {offsets = [0, 0], sizes = [239, 32], strides = [1, 1]} : vector<256x32xf32> to vector<239x32xf32>
    %120 = tpu.concatenate %118, %119 in 0 : vector<17x32xf32>, vector<239x32xf32> -> vector<256x32xf32>
    %cst_41 = arith.constant 0.000000e+00 : f32
    %121 = vector.shape_cast %18 : vector<256x1xi1> to vector<256x1xi1>
    %122 = vector.broadcast %121 : vector<256x1xi1> to vector<256x32xi1>
    %123 = vector.broadcast %cst_41 : f32 to vector<256x32xf32>
    %124 = arith.select %122, %123, %120 : vector<256x32xi1>, vector<256x32xf32>
    %cst_42 = arith.constant 0.000000e+00 : f32
    %125 = vector.broadcast %cst_42 : f32 to vector<16x32xf32>
    %126 = vector.extract_strided_slice %114 {offsets = [0, 0], sizes = [240, 32], strides = [1, 1]} : vector<256x32xf32> to vector<240x32xf32>
    %127 = tpu.concatenate %125, %126 in 0 : vector<16x32xf32>, vector<240x32xf32> -> vector<256x32xf32>
    %cst_43 = arith.constant 0.000000e+00 : f32
    %128 = vector.broadcast %cst_43 : f32 to vector<15x32xf32>
    %129 = vector.extract_strided_slice %114 {offsets = [0, 0], sizes = [241, 32], strides = [1, 1]} : vector<256x32xf32> to vector<241x32xf32>
    %130 = tpu.concatenate %128, %129 in 0 : vector<15x32xf32>, vector<241x32xf32> -> vector<256x32xf32>
    %cst_44 = arith.constant 0.000000e+00 : f32
    %131 = vector.shape_cast %20 : vector<256x1xi1> to vector<256x1xi1>
    %132 = vector.broadcast %131 : vector<256x1xi1> to vector<256x32xi1>
    %133 = vector.broadcast %cst_44 : f32 to vector<256x32xf32>
    %134 = arith.select %132, %133, %130 : vector<256x32xi1>, vector<256x32xf32>
    %cst_45 = arith.constant 0.000000e+00 : f32
    %135 = vector.broadcast %cst_45 : f32 to vector<1x32xf32>
    %136 = vector.extract_strided_slice %114 {offsets = [0, 0], sizes = [255, 32], strides = [1, 1]} : vector<256x32xf32> to vector<255x32xf32>
    %137 = tpu.concatenate %135, %136 in 0 : vector<1x32xf32>, vector<255x32xf32> -> vector<256x32xf32>
    %cst_46 = arith.constant 0.000000e+00 : f32
    %138 = vector.shape_cast %18 : vector<256x1xi1> to vector<256x1xi1>
    %139 = vector.broadcast %138 : vector<256x1xi1> to vector<256x32xi1>
    %140 = vector.broadcast %cst_46 : f32 to vector<256x32xf32>
    %141 = arith.select %139, %140, %137 : vector<256x32xi1>, vector<256x32xf32>
    %cst_47 = arith.constant 0.000000e+00 : f32
    %142 = vector.broadcast %cst_47 : f32 to vector<1x32xf32>
    %143 = vector.extract_strided_slice %114 {offsets = [1, 0], sizes = [255, 32], strides = [1, 1]} : vector<256x32xf32> to vector<255x32xf32>
    %144 = tpu.concatenate %143, %142 in 0 : vector<255x32xf32>, vector<1x32xf32> -> vector<256x32xf32>
    %cst_48 = arith.constant 0.000000e+00 : f32
    %145 = vector.shape_cast %20 : vector<256x1xi1> to vector<256x1xi1>
    %146 = vector.broadcast %145 : vector<256x1xi1> to vector<256x32xi1>
    %147 = vector.broadcast %cst_48 : f32 to vector<256x32xf32>
    %148 = arith.select %146, %147, %144 : vector<256x32xi1>, vector<256x32xf32>
    %cst_49 = arith.constant 0.000000e+00 : f32
    %149 = vector.broadcast %cst_49 : f32 to vector<15x32xf32>
    %150 = vector.extract_strided_slice %114 {offsets = [15, 0], sizes = [241, 32], strides = [1, 1]} : vector<256x32xf32> to vector<241x32xf32>
    %151 = tpu.concatenate %150, %149 in 0 : vector<241x32xf32>, vector<15x32xf32> -> vector<256x32xf32>
    %cst_50 = arith.constant 0.000000e+00 : f32
    %152 = vector.shape_cast %18 : vector<256x1xi1> to vector<256x1xi1>
    %153 = vector.broadcast %152 : vector<256x1xi1> to vector<256x32xi1>
    %154 = vector.broadcast %cst_50 : f32 to vector<256x32xf32>
    %155 = arith.select %153, %154, %151 : vector<256x32xi1>, vector<256x32xf32>
    %cst_51 = arith.constant 0.000000e+00 : f32
    %156 = vector.broadcast %cst_51 : f32 to vector<16x32xf32>
    %157 = vector.extract_strided_slice %114 {offsets = [16, 0], sizes = [240, 32], strides = [1, 1]} : vector<256x32xf32> to vector<240x32xf32>
    %158 = tpu.concatenate %157, %156 in 0 : vector<240x32xf32>, vector<16x32xf32> -> vector<256x32xf32>
    %cst_52 = arith.constant 0.000000e+00 : f32
    %159 = vector.broadcast %cst_52 : f32 to vector<17x32xf32>
    %160 = vector.extract_strided_slice %114 {offsets = [17, 0], sizes = [239, 32], strides = [1, 1]} : vector<256x32xf32> to vector<239x32xf32>
    %161 = tpu.concatenate %160, %159 in 0 : vector<239x32xf32>, vector<17x32xf32> -> vector<256x32xf32>
    %cst_53 = arith.constant 0.000000e+00 : f32
    %162 = vector.shape_cast %20 : vector<256x1xi1> to vector<256x1xi1>
    %163 = vector.broadcast %162 : vector<256x1xi1> to vector<256x32xi1>
    %164 = vector.broadcast %cst_53 : f32 to vector<256x32xf32>
    %165 = arith.select %163, %164, %161 : vector<256x32xi1>, vector<256x32xf32>
    %166 = arith.truncf %124 : vector<256x32xf32> to vector<256x32xbf16>
    %167 = arith.truncf %127 : vector<256x32xf32> to vector<256x32xbf16>
    %168 = arith.truncf %134 : vector<256x32xf32> to vector<256x32xbf16>
    %169 = arith.truncf %141 : vector<256x32xf32> to vector<256x32xbf16>
    %170 = arith.truncf %114 : vector<256x32xf32> to vector<256x32xbf16>
    %171 = arith.truncf %148 : vector<256x32xf32> to vector<256x32xbf16>
    %172 = arith.truncf %155 : vector<256x32xf32> to vector<256x32xbf16>
    %173 = arith.truncf %158 : vector<256x32xf32> to vector<256x32xbf16>
    %174 = arith.truncf %165 : vector<256x32xf32> to vector<256x32xbf16>
    %175 = tpu.concatenate %166, %167, %168, %169, %170, %171, %172, %173, %174 in 1 : vector<256x32xbf16>, vector<256x32xbf16>, vector<256x32xbf16>, vector<256x32xbf16>, vector<256x32xbf16>, vector<256x32xbf16>, vector<256x32xbf16>, vector<256x32xbf16>, vector<256x32xbf16> -> vector<256x288xbf16>
    %cst_54 = arith.constant dense<0.000000e+00> : vector<256x64xf32>
    %176 = tpu.matmul %175, %115, %cst_54 {dimension_numbers = #tpu.dot_dimension_numbers<[1], [0], [0], [1], [0, 0, 1, 1], [], []>} : vector<256x288xbf16>, vector<288x64xbf16>, vector<256x64xf32> -> vector<256x64xf32>
    %177 = vector.broadcast %116 : vector<1x64xf32> to vector<256x64xf32>
    %178 = arith.mulf %176, %177 : vector<256x64xf32>
    %179 = vector.broadcast %117 : vector<1x64xf32> to vector<256x64xf32>
    %180 = arith.addf %178, %179 : vector<256x64xf32>
    %cst_55 = arith.constant 0.000000e+00 : f32
    %181 = vector.broadcast %cst_55 : f32 to vector<256x64xf32>
    %182 = arith.maximumf %180, %181 : vector<256x64xf32>
    %c0_56 = arith.constant 0 : index
    %c0_57 = arith.constant 0 : index
    %183 = vector.load %arg8[%c0_56, %c0_57] : memref<576x128xbf16, #tpu.memory_space<vmem>>, vector<576x128xbf16>
    %c0_58 = arith.constant 0 : index
    %c0_59 = arith.constant 0 : index
    %184 = vector.load %arg9[%c0_58, %c0_59] : memref<1x128xf32, #tpu.memory_space<vmem>>, vector<1x128xf32>
    %c0_60 = arith.constant 0 : index
    %c0_61 = arith.constant 0 : index
    %185 = vector.load %arg10[%c0_60, %c0_61] : memref<1x128xf32, #tpu.memory_space<vmem>>, vector<1x128xf32>
    %cst_62 = arith.constant 0.000000e+00 : f32
    %186 = vector.broadcast %cst_62 : f32 to vector<17x64xf32>
    %187 = vector.extract_strided_slice %182 {offsets = [0, 0], sizes = [239, 64], strides = [1, 1]} : vector<256x64xf32> to vector<239x64xf32>
    %188 = tpu.concatenate %186, %187 in 0 : vector<17x64xf32>, vector<239x64xf32> -> vector<256x64xf32>
    %cst_63 = arith.constant 0.000000e+00 : f32
    %189 = vector.shape_cast %18 : vector<256x1xi1> to vector<256x1xi1>
    %190 = vector.broadcast %189 : vector<256x1xi1> to vector<256x64xi1>
    %191 = vector.broadcast %cst_63 : f32 to vector<256x64xf32>
    %192 = arith.select %190, %191, %188 : vector<256x64xi1>, vector<256x64xf32>
    %cst_64 = arith.constant 0.000000e+00 : f32
    %193 = vector.broadcast %cst_64 : f32 to vector<16x64xf32>
    %194 = vector.extract_strided_slice %182 {offsets = [0, 0], sizes = [240, 64], strides = [1, 1]} : vector<256x64xf32> to vector<240x64xf32>
    %195 = tpu.concatenate %193, %194 in 0 : vector<16x64xf32>, vector<240x64xf32> -> vector<256x64xf32>
    %cst_65 = arith.constant 0.000000e+00 : f32
    %196 = vector.broadcast %cst_65 : f32 to vector<15x64xf32>
    %197 = vector.extract_strided_slice %182 {offsets = [0, 0], sizes = [241, 64], strides = [1, 1]} : vector<256x64xf32> to vector<241x64xf32>
    %198 = tpu.concatenate %196, %197 in 0 : vector<15x64xf32>, vector<241x64xf32> -> vector<256x64xf32>
    %cst_66 = arith.constant 0.000000e+00 : f32
    %199 = vector.shape_cast %20 : vector<256x1xi1> to vector<256x1xi1>
    %200 = vector.broadcast %199 : vector<256x1xi1> to vector<256x64xi1>
    %201 = vector.broadcast %cst_66 : f32 to vector<256x64xf32>
    %202 = arith.select %200, %201, %198 : vector<256x64xi1>, vector<256x64xf32>
    %cst_67 = arith.constant 0.000000e+00 : f32
    %203 = vector.broadcast %cst_67 : f32 to vector<1x64xf32>
    %204 = vector.extract_strided_slice %182 {offsets = [0, 0], sizes = [255, 64], strides = [1, 1]} : vector<256x64xf32> to vector<255x64xf32>
    %205 = tpu.concatenate %203, %204 in 0 : vector<1x64xf32>, vector<255x64xf32> -> vector<256x64xf32>
    %cst_68 = arith.constant 0.000000e+00 : f32
    %206 = vector.shape_cast %18 : vector<256x1xi1> to vector<256x1xi1>
    %207 = vector.broadcast %206 : vector<256x1xi1> to vector<256x64xi1>
    %208 = vector.broadcast %cst_68 : f32 to vector<256x64xf32>
    %209 = arith.select %207, %208, %205 : vector<256x64xi1>, vector<256x64xf32>
    %cst_69 = arith.constant 0.000000e+00 : f32
    %210 = vector.broadcast %cst_69 : f32 to vector<1x64xf32>
    %211 = vector.extract_strided_slice %182 {offsets = [1, 0], sizes = [255, 64], strides = [1, 1]} : vector<256x64xf32> to vector<255x64xf32>
    %212 = tpu.concatenate %211, %210 in 0 : vector<255x64xf32>, vector<1x64xf32> -> vector<256x64xf32>
    %cst_70 = arith.constant 0.000000e+00 : f32
    %213 = vector.shape_cast %20 : vector<256x1xi1> to vector<256x1xi1>
    %214 = vector.broadcast %213 : vector<256x1xi1> to vector<256x64xi1>
    %215 = vector.broadcast %cst_70 : f32 to vector<256x64xf32>
    %216 = arith.select %214, %215, %212 : vector<256x64xi1>, vector<256x64xf32>
    %cst_71 = arith.constant 0.000000e+00 : f32
    %217 = vector.broadcast %cst_71 : f32 to vector<15x64xf32>
    %218 = vector.extract_strided_slice %182 {offsets = [15, 0], sizes = [241, 64], strides = [1, 1]} : vector<256x64xf32> to vector<241x64xf32>
    %219 = tpu.concatenate %218, %217 in 0 : vector<241x64xf32>, vector<15x64xf32> -> vector<256x64xf32>
    %cst_72 = arith.constant 0.000000e+00 : f32
    %220 = vector.shape_cast %18 : vector<256x1xi1> to vector<256x1xi1>
    %221 = vector.broadcast %220 : vector<256x1xi1> to vector<256x64xi1>
    %222 = vector.broadcast %cst_72 : f32 to vector<256x64xf32>
    %223 = arith.select %221, %222, %219 : vector<256x64xi1>, vector<256x64xf32>
    %cst_73 = arith.constant 0.000000e+00 : f32
    %224 = vector.broadcast %cst_73 : f32 to vector<16x64xf32>
    %225 = vector.extract_strided_slice %182 {offsets = [16, 0], sizes = [240, 64], strides = [1, 1]} : vector<256x64xf32> to vector<240x64xf32>
    %226 = tpu.concatenate %225, %224 in 0 : vector<240x64xf32>, vector<16x64xf32> -> vector<256x64xf32>
    %cst_74 = arith.constant 0.000000e+00 : f32
    %227 = vector.broadcast %cst_74 : f32 to vector<17x64xf32>
    %228 = vector.extract_strided_slice %182 {offsets = [17, 0], sizes = [239, 64], strides = [1, 1]} : vector<256x64xf32> to vector<239x64xf32>
    %229 = tpu.concatenate %228, %227 in 0 : vector<239x64xf32>, vector<17x64xf32> -> vector<256x64xf32>
    %cst_75 = arith.constant 0.000000e+00 : f32
    %230 = vector.shape_cast %20 : vector<256x1xi1> to vector<256x1xi1>
    %231 = vector.broadcast %230 : vector<256x1xi1> to vector<256x64xi1>
    %232 = vector.broadcast %cst_75 : f32 to vector<256x64xf32>
    %233 = arith.select %231, %232, %229 : vector<256x64xi1>, vector<256x64xf32>
    %234 = arith.truncf %192 : vector<256x64xf32> to vector<256x64xbf16>
    %235 = arith.truncf %195 : vector<256x64xf32> to vector<256x64xbf16>
    %236 = arith.truncf %202 : vector<256x64xf32> to vector<256x64xbf16>
    %237 = arith.truncf %209 : vector<256x64xf32> to vector<256x64xbf16>
    %238 = arith.truncf %182 : vector<256x64xf32> to vector<256x64xbf16>
    %239 = arith.truncf %216 : vector<256x64xf32> to vector<256x64xbf16>
    %240 = arith.truncf %223 : vector<256x64xf32> to vector<256x64xbf16>
    %241 = arith.truncf %226 : vector<256x64xf32> to vector<256x64xbf16>
    %242 = arith.truncf %233 : vector<256x64xf32> to vector<256x64xbf16>
    %243 = tpu.concatenate %234, %235, %236, %237, %238, %239, %240, %241, %242 in 1 : vector<256x64xbf16>, vector<256x64xbf16>, vector<256x64xbf16>, vector<256x64xbf16>, vector<256x64xbf16>, vector<256x64xbf16>, vector<256x64xbf16>, vector<256x64xbf16>, vector<256x64xbf16> -> vector<256x576xbf16>
    %cst_76 = arith.constant dense<0.000000e+00> : vector<256x128xf32>
    %244 = tpu.matmul %243, %183, %cst_76 {dimension_numbers = #tpu.dot_dimension_numbers<[1], [0], [0], [1], [0, 0, 1, 1], [], []>} : vector<256x576xbf16>, vector<576x128xbf16>, vector<256x128xf32> -> vector<256x128xf32>
    %245 = vector.broadcast %184 : vector<1x128xf32> to vector<256x128xf32>
    %246 = arith.mulf %244, %245 : vector<256x128xf32>
    %247 = vector.broadcast %185 : vector<1x128xf32> to vector<256x128xf32>
    %248 = arith.addf %246, %247 : vector<256x128xf32>
    %cst_77 = arith.constant 0.000000e+00 : f32
    %249 = vector.broadcast %cst_77 : f32 to vector<256x128xf32>
    %250 = arith.maximumf %248, %249 : vector<256x128xf32>
    tpu.wait_dma2 semaphore(%arg20 : memref<!tpu.dma_semaphore, #tpu.memory_space<semaphore_mem>>) src(%arg11 : memref<1152x256xbf16, #tpu.memory_space<any>>) dst(%arg19 : memref<1152x256xbf16, #tpu.memory_space<vmem>>)
    %c0_78 = arith.constant 0 : index
    %c0_79 = arith.constant 0 : index
    %251 = vector.load %arg19[%c0_78, %c0_79] : memref<1152x256xbf16, #tpu.memory_space<vmem>>, vector<1152x256xbf16>
    %c0_80 = arith.constant 0 : index
    %c0_81 = arith.constant 0 : index
    %252 = vector.load %arg12[%c0_80, %c0_81] : memref<1x256xf32, #tpu.memory_space<vmem>>, vector<1x256xf32>
    %c0_82 = arith.constant 0 : index
    %c0_83 = arith.constant 0 : index
    %253 = vector.load %arg13[%c0_82, %c0_83] : memref<1x256xf32, #tpu.memory_space<vmem>>, vector<1x256xf32>
    %cst_84 = arith.constant 0.000000e+00 : f32
    %254 = vector.broadcast %cst_84 : f32 to vector<17x128xf32>
    %255 = vector.extract_strided_slice %250 {offsets = [0, 0], sizes = [239, 128], strides = [1, 1]} : vector<256x128xf32> to vector<239x128xf32>
    %256 = tpu.concatenate %254, %255 in 0 : vector<17x128xf32>, vector<239x128xf32> -> vector<256x128xf32>
    %cst_85 = arith.constant 0.000000e+00 : f32
    %257 = vector.shape_cast %18 : vector<256x1xi1> to vector<256x1xi1>
    %258 = vector.broadcast %257 : vector<256x1xi1> to vector<256x128xi1>
    %259 = vector.broadcast %cst_85 : f32 to vector<256x128xf32>
    %260 = arith.select %258, %259, %256 : vector<256x128xi1>, vector<256x128xf32>
    %cst_86 = arith.constant 0.000000e+00 : f32
    %261 = vector.broadcast %cst_86 : f32 to vector<16x128xf32>
    %262 = vector.extract_strided_slice %250 {offsets = [0, 0], sizes = [240, 128], strides = [1, 1]} : vector<256x128xf32> to vector<240x128xf32>
    %263 = tpu.concatenate %261, %262 in 0 : vector<16x128xf32>, vector<240x128xf32> -> vector<256x128xf32>
    %cst_87 = arith.constant 0.000000e+00 : f32
    %264 = vector.broadcast %cst_87 : f32 to vector<15x128xf32>
    %265 = vector.extract_strided_slice %250 {offsets = [0, 0], sizes = [241, 128], strides = [1, 1]} : vector<256x128xf32> to vector<241x128xf32>
    %266 = tpu.concatenate %264, %265 in 0 : vector<15x128xf32>, vector<241x128xf32> -> vector<256x128xf32>
    %cst_88 = arith.constant 0.000000e+00 : f32
    %267 = vector.shape_cast %20 : vector<256x1xi1> to vector<256x1xi1>
    %268 = vector.broadcast %267 : vector<256x1xi1> to vector<256x128xi1>
    %269 = vector.broadcast %cst_88 : f32 to vector<256x128xf32>
    %270 = arith.select %268, %269, %266 : vector<256x128xi1>, vector<256x128xf32>
    %cst_89 = arith.constant 0.000000e+00 : f32
    %271 = vector.broadcast %cst_89 : f32 to vector<1x128xf32>
    %272 = vector.extract_strided_slice %250 {offsets = [0, 0], sizes = [255, 128], strides = [1, 1]} : vector<256x128xf32> to vector<255x128xf32>
    %273 = tpu.concatenate %271, %272 in 0 : vector<1x128xf32>, vector<255x128xf32> -> vector<256x128xf32>
    %cst_90 = arith.constant 0.000000e+00 : f32
    %274 = vector.shape_cast %18 : vector<256x1xi1> to vector<256x1xi1>
    %275 = vector.broadcast %274 : vector<256x1xi1> to vector<256x128xi1>
    %276 = vector.broadcast %cst_90 : f32 to vector<256x128xf32>
    %277 = arith.select %275, %276, %273 : vector<256x128xi1>, vector<256x128xf32>
    %cst_91 = arith.constant 0.000000e+00 : f32
    %278 = vector.broadcast %cst_91 : f32 to vector<1x128xf32>
    %279 = vector.extract_strided_slice %250 {offsets = [1, 0], sizes = [255, 128], strides = [1, 1]} : vector<256x128xf32> to vector<255x128xf32>
    %280 = tpu.concatenate %279, %278 in 0 : vector<255x128xf32>, vector<1x128xf32> -> vector<256x128xf32>
    %cst_92 = arith.constant 0.000000e+00 : f32
    %281 = vector.shape_cast %20 : vector<256x1xi1> to vector<256x1xi1>
    %282 = vector.broadcast %281 : vector<256x1xi1> to vector<256x128xi1>
    %283 = vector.broadcast %cst_92 : f32 to vector<256x128xf32>
    %284 = arith.select %282, %283, %280 : vector<256x128xi1>, vector<256x128xf32>
    %cst_93 = arith.constant 0.000000e+00 : f32
    %285 = vector.broadcast %cst_93 : f32 to vector<15x128xf32>
    %286 = vector.extract_strided_slice %250 {offsets = [15, 0], sizes = [241, 128], strides = [1, 1]} : vector<256x128xf32> to vector<241x128xf32>
    %287 = tpu.concatenate %286, %285 in 0 : vector<241x128xf32>, vector<15x128xf32> -> vector<256x128xf32>
    %cst_94 = arith.constant 0.000000e+00 : f32
    %288 = vector.shape_cast %18 : vector<256x1xi1> to vector<256x1xi1>
    %289 = vector.broadcast %288 : vector<256x1xi1> to vector<256x128xi1>
    %290 = vector.broadcast %cst_94 : f32 to vector<256x128xf32>
    %291 = arith.select %289, %290, %287 : vector<256x128xi1>, vector<256x128xf32>
    %cst_95 = arith.constant 0.000000e+00 : f32
    %292 = vector.broadcast %cst_95 : f32 to vector<16x128xf32>
    %293 = vector.extract_strided_slice %250 {offsets = [16, 0], sizes = [240, 128], strides = [1, 1]} : vector<256x128xf32> to vector<240x128xf32>
    %294 = tpu.concatenate %293, %292 in 0 : vector<240x128xf32>, vector<16x128xf32> -> vector<256x128xf32>
    %cst_96 = arith.constant 0.000000e+00 : f32
    %295 = vector.broadcast %cst_96 : f32 to vector<17x128xf32>
    %296 = vector.extract_strided_slice %250 {offsets = [17, 0], sizes = [239, 128], strides = [1, 1]} : vector<256x128xf32> to vector<239x128xf32>
    %297 = tpu.concatenate %296, %295 in 0 : vector<239x128xf32>, vector<17x128xf32> -> vector<256x128xf32>
    %cst_97 = arith.constant 0.000000e+00 : f32
    %298 = vector.shape_cast %20 : vector<256x1xi1> to vector<256x1xi1>
    %299 = vector.broadcast %298 : vector<256x1xi1> to vector<256x128xi1>
    %300 = vector.broadcast %cst_97 : f32 to vector<256x128xf32>
    %301 = arith.select %299, %300, %297 : vector<256x128xi1>, vector<256x128xf32>
    %302 = arith.truncf %260 : vector<256x128xf32> to vector<256x128xbf16>
    %303 = arith.truncf %263 : vector<256x128xf32> to vector<256x128xbf16>
    %304 = arith.truncf %270 : vector<256x128xf32> to vector<256x128xbf16>
    %305 = arith.truncf %277 : vector<256x128xf32> to vector<256x128xbf16>
    %306 = arith.truncf %250 : vector<256x128xf32> to vector<256x128xbf16>
    %307 = arith.truncf %284 : vector<256x128xf32> to vector<256x128xbf16>
    %308 = arith.truncf %291 : vector<256x128xf32> to vector<256x128xbf16>
    %309 = arith.truncf %294 : vector<256x128xf32> to vector<256x128xbf16>
    %310 = arith.truncf %301 : vector<256x128xf32> to vector<256x128xbf16>
    %311 = tpu.concatenate %302, %303, %304, %305, %306, %307, %308, %309, %310 in 1 : vector<256x128xbf16>, vector<256x128xbf16>, vector<256x128xbf16>, vector<256x128xbf16>, vector<256x128xbf16>, vector<256x128xbf16>, vector<256x128xbf16>, vector<256x128xbf16>, vector<256x128xbf16> -> vector<256x1152xbf16>
    %cst_98 = arith.constant dense<0.000000e+00> : vector<256x256xf32>
    %312 = tpu.matmul %311, %251, %cst_98 {dimension_numbers = #tpu.dot_dimension_numbers<[1], [0], [0], [1], [0, 0, 1, 1], [], []>} : vector<256x1152xbf16>, vector<1152x256xbf16>, vector<256x256xf32> -> vector<256x256xf32>
    %313 = vector.broadcast %252 : vector<1x256xf32> to vector<256x256xf32>
    %314 = arith.mulf %312, %313 : vector<256x256xf32>
    %315 = vector.broadcast %253 : vector<1x256xf32> to vector<256x256xf32>
    %316 = arith.addf %314, %315 : vector<256x256xf32>
    %cst_99 = arith.constant 0.000000e+00 : f32
    %317 = vector.broadcast %cst_99 : f32 to vector<256x256xf32>
    %318 = arith.maximumf %316, %317 : vector<256x256xf32>
    %cst_100 = arith.constant dense<0.000000e+00> : vector<256xf32>
    %319 = vector.multi_reduction <add>, %318, %cst_100 [0] : vector<256x256xf32> to vector<256xf32>
    %320 = vector.shape_cast %319 : vector<256xf32> to vector<1x256xf32>
    %cst_101 = arith.constant 2.560000e+02 : f32
    %321 = vector.broadcast %cst_101 : f32 to vector<1x256xf32>
    %322 = arith.divf %320, %321 : vector<1x256xf32>
    %c0_102 = arith.constant 0 : index
    %c0_103 = arith.constant 0 : index
    %323 = vector.load %arg14[%c0_102, %c0_103] : memref<256x128xf32, #tpu.memory_space<vmem>>, vector<256x128xf32>
    %cst_104 = arith.constant dense<0.000000e+00> : vector<1x128xf32>
    %324 = tpu.matmul %322, %323, %cst_104 {dimension_numbers = #tpu.dot_dimension_numbers<[1], [0], [0], [1], [0, 0, 1, 1], [], []>} : vector<1x256xf32>, vector<256x128xf32>, vector<1x128xf32> -> vector<1x128xf32>
    %c0_105 = arith.constant 0 : index
    %c0_106 = arith.constant 0 : index
    %325 = vector.load %arg15[%c0_105, %c0_106] : memref<1x128xf32, #tpu.memory_space<vmem>>, vector<1x128xf32>
    %326 = arith.addf %324, %325 : vector<1x128xf32>
    %cst_107 = arith.constant 0.000000e+00 : f32
    %327 = vector.broadcast %cst_107 : f32 to vector<1x128xf32>
    %328 = arith.maximumf %326, %327 : vector<1x128xf32>
    %c0_108 = arith.constant 0 : index
    %c0_109 = arith.constant 0 : index
    %329 = vector.load %arg16[%c0_108, %c0_109] : memref<128x64xf32, #tpu.memory_space<vmem>>, vector<128x64xf32>
    %cst_110 = arith.constant dense<0.000000e+00> : vector<1x64xf32>
    %330 = tpu.matmul %328, %329, %cst_110 {dimension_numbers = #tpu.dot_dimension_numbers<[1], [0], [0], [1], [0, 0, 1, 1], [], []>} : vector<1x128xf32>, vector<128x64xf32>, vector<1x64xf32> -> vector<1x64xf32>
    %c0_111 = arith.constant 0 : index
    %c0_112 = arith.constant 0 : index
    %331 = vector.load %arg17[%c0_111, %c0_112] : memref<1x64xf32, #tpu.memory_space<vmem>>, vector<1x64xf32>
    %332 = arith.addf %330, %331 : vector<1x64xf32>
    %c0_113 = arith.constant 0 : index
    %c0_114 = arith.constant 0 : index
    %c0_115 = arith.constant 0 : index
    %333 = vector.load %arg18[%c0_113, %c0_114, %c0_115] : memref<1x1x64xf32, #tpu.memory_space<vmem>>, vector<1x1x64xf32>
    %334 = vector.shape_cast %333 : vector<1x1x64xf32> to vector<1x64xf32>
    %335 = vector.shape_cast %332 : vector<1x64xf32> to vector<1x1x64xf32>
    tpu.vector_store %arg18[%c0_113, %c0_114, %c0_115], %335 {strides = array<i32>} : memref<1x1x64xf32, #tpu.memory_space<vmem>>, vector<1x1x64xf32>,
    return
  }
  func.func @transform_0(%arg0: i32) -> (i32, i32) {
    %c0_i32 = arith.constant 0 : i32
    %c0_i32_0 = arith.constant 0 : i32
    return %arg0, %c0_i32 : i32, i32
  }
  func.func @transform_1(%arg0: i32) -> (i32, i32) {
    %c0_i32 = arith.constant 0 : i32
    %c0_i32_0 = arith.constant 0 : i32
    %c0_i32_1 = arith.constant 0 : i32
    return %c0_i32, %c0_i32_0 : i32, i32
  }
  func.func @transform_2(%arg0: i32) -> (i32, i32) {
    %c0_i32 = arith.constant 0 : i32
    %c0_i32_0 = arith.constant 0 : i32
    %c0_i32_1 = arith.constant 0 : i32
    return %c0_i32, %c0_i32_0 : i32, i32
  }
  func.func @transform_3(%arg0: i32) -> (i32, i32) {
    %c0_i32 = arith.constant 0 : i32
    %c0_i32_0 = arith.constant 0 : i32
    %c0_i32_1 = arith.constant 0 : i32
    return %c0_i32, %c0_i32_0 : i32, i32
  }
  func.func @transform_4(%arg0: i32) -> (i32, i32) {
    %c0_i32 = arith.constant 0 : i32
    %c0_i32_0 = arith.constant 0 : i32
    %c0_i32_1 = arith.constant 0 : i32
    return %c0_i32, %c0_i32_0 : i32, i32
  }
  func.func @transform_5(%arg0: i32) -> (i32, i32) {
    %c0_i32 = arith.constant 0 : i32
    %c0_i32_0 = arith.constant 0 : i32
    %c0_i32_1 = arith.constant 0 : i32
    return %c0_i32, %c0_i32_0 : i32, i32
  }
  func.func @transform_6(%arg0: i32) -> (i32, i32) {
    %c0_i32 = arith.constant 0 : i32
    %c0_i32_0 = arith.constant 0 : i32
    %c0_i32_1 = arith.constant 0 : i32
    return %c0_i32, %c0_i32_0 : i32, i32
  }
  func.func @transform_7(%arg0: i32) -> (i32, i32) {
    %c0_i32 = arith.constant 0 : i32
    %c0_i32_0 = arith.constant 0 : i32
    %c0_i32_1 = arith.constant 0 : i32
    return %c0_i32, %c0_i32_0 : i32, i32
  }
  func.func @transform_8(%arg0: i32) -> (i32, i32) {
    %c0_i32 = arith.constant 0 : i32
    %c0_i32_0 = arith.constant 0 : i32
    %c0_i32_1 = arith.constant 0 : i32
    return %c0_i32, %c0_i32_0 : i32, i32
  }
  func.func @transform_9(%arg0: i32) -> (i32, i32) {
    %c0_i32 = arith.constant 0 : i32
    %c0_i32_0 = arith.constant 0 : i32
    %c0_i32_1 = arith.constant 0 : i32
    return %c0_i32, %c0_i32_0 : i32, i32
  }
  func.func @transform_11(%arg0: i32) -> (i32, i32) {
    %c0_i32 = arith.constant 0 : i32
    %c0_i32_0 = arith.constant 0 : i32
    %c0_i32_1 = arith.constant 0 : i32
    return %c0_i32, %c0_i32_0 : i32, i32
  }
  func.func @transform_12(%arg0: i32) -> (i32, i32) {
    %c0_i32 = arith.constant 0 : i32
    %c0_i32_0 = arith.constant 0 : i32
    %c0_i32_1 = arith.constant 0 : i32
    return %c0_i32, %c0_i32_0 : i32, i32
  }
  func.func @transform_13(%arg0: i32) -> (i32, i32) {
    %c0_i32 = arith.constant 0 : i32
    %c0_i32_0 = arith.constant 0 : i32
    %c0_i32_1 = arith.constant 0 : i32
    return %c0_i32, %c0_i32_0 : i32, i32
  }
  func.func @transform_14(%arg0: i32) -> (i32, i32) {
    %c0_i32 = arith.constant 0 : i32
    %c0_i32_0 = arith.constant 0 : i32
    %c0_i32_1 = arith.constant 0 : i32
    return %c0_i32, %c0_i32_0 : i32, i32
  }
  func.func @transform_15(%arg0: i32) -> (i32, i32) {
    %c0_i32 = arith.constant 0 : i32
    %c0_i32_0 = arith.constant 0 : i32
    %c0_i32_1 = arith.constant 0 : i32
    return %c0_i32, %c0_i32_0 : i32, i32
  }
  func.func @transform_16(%arg0: i32) -> (i32, i32) {
    %c0_i32 = arith.constant 0 : i32
    %c0_i32_0 = arith.constant 0 : i32
    %c0_i32_1 = arith.constant 0 : i32
    return %c0_i32, %c0_i32_0 : i32, i32
  }
  func.func @transform_17(%arg0: i32) -> (i32, i32, i32) {
    %c0_i32 = arith.constant 0 : i32
    %c0_i32_0 = arith.constant 0 : i32
    %c0_i32_1 = arith.constant 0 : i32
    return %arg0, %c0_i32, %c0_i32_0 : i32, i32, i32
  }
}

</mosaic_0001>

<llo_original>
// kernel: occupancy_map_embedding.1
$region0: #{occupancy_map_embedding.1}
  #allocation0 [shape = 'u32[]', space=smem, size = 0x4, offset = 0x4, fixed_abs, tag = 'smem constant byte address 0x4 - core index']
  #allocation1 [shape = 'u32[144,128]{1,0:T(1,128)}', space=vmem, size = 0x12000, scoped, tag = 'internal scratch']
  #allocation2 [shape = 'bf16[1152,256]{1,0:T(16,128)(2,1)}', space=vmem, size = 0x90000, scoped, tag = 'scratch operand']
  #allocation3 [shape = 's32[1]{0}', space=sflag, size = 0x4, scoped, tag = 'scratch operand']
  #allocation6 [shape = 's32[]', space=sflag, size = 0x4, offset = 0, fixed_abs, tag = 'sflag constant byte address 0x0 - dummy sync flag']
  %s0 = inlined_call_operand.vmem [shape: f32[512,32], index: 0, kind: input, shape index: {}]
  %s1 = inlined_call_operand.vmem [shape: f32[9,32], index: 1, kind: input, shape index: {}]
  %s2 = inlined_call_operand.vmem [shape: f32[1,32], index: 2, kind: input, shape index: {}]
  %s3 = inlined_call_operand.vmem [shape: f32[1,32], index: 3, kind: input, shape index: {}]
  %s4 = inlined_call_operand.vmem [shape: bf16[288,64], index: 4, kind: input, shape index: {}]
  %s5 = inlined_call_operand.vmem [shape: f32[1,64], index: 5, kind: input, shape index: {}]
  %s6 = inlined_call_operand.vmem [shape: f32[1,64], index: 6, kind: input, shape index: {}]
  %s7 = inlined_call_operand.vmem [shape: bf16[576,128], index: 7, kind: input, shape index: {}]
  %s8 = inlined_call_operand.vmem [shape: f32[1,128], index: 8, kind: input, shape index: {}]
  %s9 = inlined_call_operand.vmem [shape: f32[1,128], index: 9, kind: input, shape index: {}]
  %s10 = inlined_call_operand.hbm [shape: bf16[1152,256], index: 10, kind: input, shape index: {}]
  %s11 = inlined_call_operand.vmem [shape: f32[1,256], index: 11, kind: input, shape index: {}]
  %s12 = inlined_call_operand.vmem [shape: f32[1,256], index: 12, kind: input, shape index: {}]
  %s13 = inlined_call_operand.vmem [shape: f32[256,128], index: 13, kind: input, shape index: {}]
  %s14 = inlined_call_operand.vmem [shape: f32[1,128], index: 14, kind: input, shape index: {}]
  %s15 = inlined_call_operand.vmem [shape: f32[128,64], index: 15, kind: input, shape index: {}]
  %s16 = inlined_call_operand.vmem [shape: f32[1,64], index: 16, kind: input, shape index: {}]
  %s17 = inlined_call_operand.hbm [shape: f32[2,1,64], index: 17, kind: output, shape index: {}]
  %s18 = sld [smem:[#allocation0]]
  $region97: #{occupancy_map_embedding.1} parent=0
    _
  %s20 = ssub.s32 1, %s18
  %s21 = scalar_select 0, %s20, %s18
  $region1: #{occupancy_map_embedding.1} parent=0
    #allocation4 [shape = 'u8[1024]{0}', space=vmem, size = 0x400, scoped, tag = 'output window, operand 0']
    #allocation5 [shape = 's32[2]{0}', space=sflag, size = 0x8, scoped, tag = 'scoped memory for occupancy_map_embedding.1']
    %22 = vsyncpa [#allocation5], 0
    %s23 = scalar_lea.sflag [#allocation5], 1
    %24 = vsyncpa %s23, 0
    loop: start=0, step=1, limit=4
    $region2: #{occupancy_map_embedding.1} parent=1 // loop_pre_header
      _
    $region3: #{occupancy_map_embedding.1} parent=1 // loop_header
      %s26 = sphi 0, %s30
      %p27 = scmp.ge.s32.totalorder %s26, 4
      %s36 = sphi 0, %s38
      %s39 = sphi 0, %s36
      %s40 = sphi 0, %s39
      %s56 = sphi 0, %s40
      %s60 = sphi 0, %s60
      %s62 = sphi 0, %s60
      %s63 = sphi 0, %s62
      %s77 = sphi 0, %s63
      %s81 = sphi 0, %s81
      %s83 = sphi 0, %s81
      %s84 = sphi 0, %s83
      %s98 = sphi 0, %s84
      %s102 = sphi 0, %s102
      %s104 = sphi 0, %s102
      %s105 = sphi 0, %s104
      %s119 = sphi 0, %s105
      %s123 = sphi 0, %s123
      %s125 = sphi 0, %s123
      %s126 = sphi 0, %s125
      %s140 = sphi 0, %s126
      %s144 = sphi 0, %s144
      %s146 = sphi 0, %s144
      %s147 = sphi 0, %s146
      %s161 = sphi 0, %s147
      %s165 = sphi 0, %s165
      %s167 = sphi 0, %s165
      %s168 = sphi 0, %s167
      %s182 = sphi 0, %s168
      %s186 = sphi 0, %s186
      %s188 = sphi 0, %s186
      %s189 = sphi 0, %s188
      %s203 = sphi 0, %s189
      %s207 = sphi 0, %s207
      %s209 = sphi 0, %s207
      %s210 = sphi 0, %s209
      %s224 = sphi 0, %s210
      %s228 = sphi 0, %s228
      %s230 = sphi 0, %s228
      %s231 = sphi 0, %s230
      %s245 = sphi 0, %s231
      %s249 = sphi 0, %s249
      %s251 = sphi 0, %s249
      %s252 = sphi 0, %s251
      %s266 = sphi 0, %s252
      %s270 = sphi 0, %s270
      %s272 = sphi 0, %s270
      %s273 = sphi 0, %s272
      %s287 = sphi 0, %s273
      %s291 = sphi 0, %s291
      %s293 = sphi 0, %s291
      %s294 = sphi 0, %s293
      %s308 = sphi 0, %s294
      %s312 = sphi 0, %s312
      %s314 = sphi 0, %s312
      %s315 = sphi 0, %s314
      %s329 = sphi 0, %s315
      %s333 = sphi 0, %s333
      %s335 = sphi 0, %s333
      %s336 = sphi 0, %s335
      %s350 = sphi 0, %s336
      %s354 = sphi 0, %s354
      %s356 = sphi 0, %s354
      %s357 = sphi 0, %s356
      %s371 = sphi 0, %s357
      %s377 = sphi 0, %s379
      %s380 = sphi 0, %s377
      %s381 = sphi 0, %s380
      %s397 = sphi 0, %s381
    $region4: #{occupancy_map_embedding.1} parent=1 // loop_header_branch
      %29 = sbr.rel (%p27) target = $region8
    $region5: #{occupancy_map_embedding.1} parent=1 // loop_body
      %s31 = ssub.s32 %s26, 1
      %s32 = ssub.s32 %s26, 2
      %s33 = sadd.s32 %s26, 1
      %s34 = ssub.s32 %s26, %s33
      %p35 = scmp.eq.s32.totalorder %s34, 0
      %s37 = sadd.s32 %s36, 1
      %s38 = scalar_select %p35, %s36, %s37
      %p41 = pneg %p35
      %p42 = scmp.eq.s32.totalorder %s26, 1
      %p43 = por %p41, %p42
      %p44 = scmp.ne.s32.totalorder %s36, %s39
      %p45 = scmp.eq.s32.totalorder %s26, 0
      %p46 = por %p44, %p45
      %p47 = scmp.ne.s32.totalorder %s36, %s39
      %p48 = scmp.eq.s32.totalorder %s31, 1
      %p49 = por %p47, %p48
      %p50 = scmp.ne.s32.totalorder %s39, %s40
      %p51 = scmp.eq.s32.totalorder %s31, 0
      %p52 = por %p50, %p51
      %p53 = scmp.ne.s32.totalorder %s39, %s40
      %p54 = scmp.eq.s32.totalorder %s32, 1
      %p55 = por %p53, %p54
      %p57 = scmp.ne.s32.totalorder %s40, %s56
      %p58 = scmp.eq.s32.totalorder %s32, 0
      %p59 = por %p57, %p58
      %s61 = sadd.s32 %s60, 1
      %p64 = scmp.eq.s32.totalorder %s26, 1
      %p65 = scmp.ne.s32.totalorder %s60, %s62
      %p66 = scmp.eq.s32.totalorder %s26, 0
      %p67 = por %p65, %p66
      %p68 = scmp.ne.s32.totalorder %s60, %s62
      %p69 = scmp.eq.s32.totalorder %s31, 1
      %p70 = por %p68, %p69
      %p71 = scmp.ne.s32.totalorder %s62, %s63
      %p72 = scmp.eq.s32.totalorder %s31, 0
      %p73 = por %p71, %p72
      %p74 = scmp.ne.s32.totalorder %s62, %s63
      %p75 = scmp.eq.s32.totalorder %s32, 1
      %p76 = por %p74, %p75
      %p78 = scmp.ne.s32.totalorder %s63, %s77
      %p79 = scmp.eq.s32.totalorder %s32, 0
      %p80 = por %p78, %p79
      %s82 = sadd.s32 %s81, 1
      %p85 = scmp.eq.s32.totalorder %s26, 1
      %p86 = scmp.ne.s32.totalorder %s81, %s83
      %p87 = scmp.eq.s32.totalorder %s26, 0
      %p88 = por %p86, %p87
      %p89 = scmp.ne.s32.totalorder %s81, %s83
      %p90 = scmp.eq.s32.totalorder %s31, 1
      %p91 = por %p89, %p90
      %p92 = scmp.ne.s32.totalorder %s83, %s84
      %p93 = scmp.eq.s32.totalorder %s31, 0
      %p94 = por %p92, %p93
      %p95 = scmp.ne.s32.totalorder %s83, %s84
      %p96 = scmp.eq.s32.totalorder %s32, 1
      %p97 = por %p95, %p96
      %p99 = scmp.ne.s32.totalorder %s84, %s98
      %p100 = scmp.eq.s32.totalorder %s32, 0
      %p101 = por %p99, %p100
      %s103 = sadd.s32 %s102, 1
      %p106 = scmp.eq.s32.totalorder %s26, 1
      %p107 = scmp.ne.s32.totalorder %s102, %s104
      %p108 = scmp.eq.s32.totalorder %s26, 0
      %p109 = por %p107, %p108
      %p110 = scmp.ne.s32.totalorder %s102, %s104
      %p111 = scmp.eq.s32.totalorder %s31, 1
      %p112 = por %p110, %p111
      %p113 = scmp.ne.s32.totalorder %s104, %s105
      %p114 = scmp.eq.s32.totalorder %s31, 0
      %p115 = por %p113, %p114
      %p116 = scmp.ne.s32.totalorder %s104, %s105
      %p117 = scmp.eq.s32.totalorder %s32, 1
      %p118 = por %p116, %p117
      %p120 = scmp.ne.s32.totalorder %s105, %s119
      %p121 = scmp.eq.s32.totalorder %s32, 0
      %p122 = por %p120, %p121
      %s124 = sadd.s32 %s123, 1
      %p127 = scmp.eq.s32.totalorder %s26, 1
      %p128 = scmp.ne.s32.totalorder %s123, %s125
      %p129 = scmp.eq.s32.totalorder %s26, 0
      %p130 = por %p128, %p129
      %p131 = scmp.ne.s32.totalorder %s123, %s125
      %p132 = scmp.eq.s32.totalorder %s31, 1
      %p133 = por %p131, %p132
      %p134 = scmp.ne.s32.totalorder %s125, %s126
      %p135 = scmp.eq.s32.totalorder %s31, 0
      %p136 = por %p134, %p135
      %p137 = scmp.ne.s32.totalorder %s125, %s126
      %p138 = scmp.eq.s32.totalorder %s32, 1
      %p139 = por %p137, %p138
      %p141 = scmp.ne.s32.totalorder %s126, %s140
      %p142 = scmp.eq.s32.totalorder %s32, 0
      %p143 = por %p141, %p142
      %s145 = sadd.s32 %s144, 1
      %p148 = scmp.eq.s32.totalorder %s26, 1
      %p149 = scmp.ne.s32.totalorder %s144, %s146
      %p150 = scmp.eq.s32.totalorder %s26, 0
      %p151 = por %p149, %p150
      %p152 = scmp.ne.s32.totalorder %s144, %s146
      %p153 = scmp.eq.s32.totalorder %s31, 1
      %p154 = por %p152, %p153
      %p155 = scmp.ne.s32.totalorder %s146, %s147
      %p156 = scmp.eq.s32.totalorder %s31, 0
      %p157 = por %p155, %p156
      %p158 = scmp.ne.s32.totalorder %s146, %s147
      %p159 = scmp.eq.s32.totalorder %s32, 1
      %p160 = por %p158, %p159
      %p162 = scmp.ne.s32.totalorder %s147, %s161
      %p163 = scmp.eq.s32.totalorder %s32, 0
      %p164 = por %p162, %p163
      %s166 = sadd.s32 %s165, 1
      %p169 = scmp.eq.s32.totalorder %s26, 1
      %p170 = scmp.ne.s32.totalorder %s165, %s167
      %p171 = scmp.eq.s32.totalorder %s26, 0
      %p172 = por %p170, %p171
      %p173 = scmp.ne.s32.totalorder %s165, %s167
      %p174 = scmp.eq.s32.totalorder %s31, 1
      %p175 = por %p173, %p174
      %p176 = scmp.ne.s32.totalorder %s167, %s168
      %p177 = scmp.eq.s32.totalorder %s31, 0
      %p178 = por %p176, %p177
      %p179 = scmp.ne.s32.totalorder %s167, %s168
      %p180 = scmp.eq.s32.totalorder %s32, 1
      %p181 = por %p179, %p180
      %p183 = scmp.ne.s32.totalorder %s168, %s182
      %p184 = scmp.eq.s32.totalorder %s32, 0
      %p185 = por %p183, %p184
      %s187 = sadd.s32 %s186, 1
      %p190 = scmp.eq.s32.totalorder %s26, 1
      %p191 = scmp.ne.s32.totalorder %s186, %s188
      %p192 = scmp.eq.s32.totalorder %s26, 0
      %p193 = por %p191, %p192
      %p194 = scmp.ne.s32.totalorder %s186, %s188
      %p195 = scmp.eq.s32.totalorder %s31, 1
      %p196 = por %p194, %p195
      %p197 = scmp.ne.s32.totalorder %s188, %s189
      %p198 = scmp.eq.s32.totalorder %s31, 0
      %p199 = por %p197, %p198
      %p200 = scmp.ne.s32.totalorder %s188, %s189
      %p201 = scmp.eq.s32.totalorder %s32, 1
      %p202 = por %p200, %p201
      %p204 = scmp.ne.s32.totalorder %s189, %s203
      %p205 = scmp.eq.s32.totalorder %s32, 0
      %p206 = por %p204, %p205
      %s208 = sadd.s32 %s207, 1
      %p211 = scmp.eq.s32.totalorder %s26, 1
      %p212 = scmp.ne.s32.totalorder %s207, %s209
      %p213 = scmp.eq.s32.totalorder %s26, 0
      %p214 = por %p212, %p213
      %p215 = scmp.ne.s32.totalorder %s207, %s209
      %p216 = scmp.eq.s32.totalorder %s31, 1
      %p217 = por %p215, %p216
      %p218 = scmp.ne.s32.totalorder %s209, %s210
      %p219 = scmp.eq.s32.totalorder %s31, 0
      %p220 = por %p218, %p219
      %p221 = scmp.ne.s32.totalorder %s209, %s210
      %p222 = scmp.eq.s32.totalorder %s32, 1
      %p223 = por %p221, %p222
      %p225 = scmp.ne.s32.totalorder %s210, %s224
      %p226 = scmp.eq.s32.totalorder %s32, 0
      %p227 = por %p225, %p226
      %s229 = sadd.s32 %s228, 1
      %p232 = scmp.eq.s32.totalorder %s26, 1
      %p233 = scmp.ne.s32.totalorder %s228, %s230
      %p234 = scmp.eq.s32.totalorder %s26, 0
      %p235 = por %p233, %p234
      %p236 = scmp.ne.s32.totalorder %s228, %s230
      %p237 = scmp.eq.s32.totalorder %s31, 1
      %p238 = por %p236, %p237
      %p239 = scmp.ne.s32.totalorder %s230, %s231
      %p240 = scmp.eq.s32.totalorder %s31, 0
      %p241 = por %p239, %p240
      %p242 = scmp.ne.s32.totalorder %s230, %s231
      %p243 = scmp.eq.s32.totalorder %s32, 1
      %p244 = por %p242, %p243
      %p246 = scmp.ne.s32.totalorder %s231, %s245
      %p247 = scmp.eq.s32.totalorder %s32, 0
      %p248 = por %p246, %p247
      %s250 = sadd.s32 %s249, 1
      %p253 = scmp.eq.s32.totalorder %s26, 1
      %p254 = scmp.ne.s32.totalorder %s249, %s251
      %p255 = scmp.eq.s32.totalorder %s26, 0
      %p256 = por %p254, %p255
      %p257 = scmp.ne.s32.totalorder %s249, %s251
      %p258 = scmp.eq.s32.totalorder %s31, 1
      %p259 = por %p257, %p258
      %p260 = scmp.ne.s32.totalorder %s251, %s252
      %p261 = scmp.eq.s32.totalorder %s31, 0
      %p262 = por %p260, %p261
      %p263 = scmp.ne.s32.totalorder %s251, %s252
      %p264 = scmp.eq.s32.totalorder %s32, 1
      %p265 = por %p263, %p264
      %p267 = scmp.ne.s32.totalorder %s252, %s266
      %p268 = scmp.eq.s32.totalorder %s32, 0
      %p269 = por %p267, %p268
      %s271 = sadd.s32 %s270, 1
      %p274 = scmp.eq.s32.totalorder %s26, 1
      %p275 = scmp.ne.s32.totalorder %s270, %s272
      %p276 = scmp.eq.s32.totalorder %s26, 0
      %p277 = por %p275, %p276
      %p278 = scmp.ne.s32.totalorder %s270, %s272
      %p279 = scmp.eq.s32.totalorder %s31, 1
      %p280 = por %p278, %p279
      %p281 = scmp.ne.s32.totalorder %s272, %s273
      %p282 = scmp.eq.s32.totalorder %s31, 0
      %p283 = por %p281, %p282
      %p284 = scmp.ne.s32.totalorder %s272, %s273
      %p285 = scmp.eq.s32.totalorder %s32, 1
      %p286 = por %p284, %p285
      %p288 = scmp.ne.s32.totalorder %s273, %s287
      %p289 = scmp.eq.s32.totalorder %s32, 0
      %p290 = por %p288, %p289
      %s292 = sadd.s32 %s291, 1
      %p295 = scmp.eq.s32.totalorder %s26, 1
      %p296 = scmp.ne.s32.totalorder %s291, %s293
      %p297 = scmp.eq.s32.totalorder %s26, 0
      %p298 = por %p296, %p297
      %p299 = scmp.ne.s32.totalorder %s291, %s293
      %p300 = scmp.eq.s32.totalorder %s31, 1
      %p301 = por %p299, %p300
      %p302 = scmp.ne.s32.totalorder %s293, %s294
      %p303 = scmp.eq.s32.totalorder %s31, 0
      %p304 = por %p302, %p303
      %p305 = scmp.ne.s32.totalorder %s293, %s294
      %p306 = scmp.eq.s32.totalorder %s32, 1
      %p307 = por %p305, %p306
      %p309 = scmp.ne.s32.totalorder %s294, %s308
      %p310 = scmp.eq.s32.totalorder %s32, 0
      %p311 = por %p309, %p310
      %s313 = sadd.s32 %s312, 1
      %p316 = scmp.eq.s32.totalorder %s26, 1
      %p317 = scmp.ne.s32.totalorder %s312, %s314
      %p318 = scmp.eq.s32.totalorder %s26, 0
      %p319 = por %p317, %p318
      %p320 = scmp.ne.s32.totalorder %s312, %s314
      %p321 = scmp.eq.s32.totalorder %s31, 1
      %p322 = por %p320, %p321
      %p323 = scmp.ne.s32.totalorder %s314, %s315
      %p324 = scmp.eq.s32.totalorder %s31, 0
      %p325 = por %p323, %p324
      %p326 = scmp.ne.s32.totalorder %s314, %s315
      %p327 = scmp.eq.s32.totalorder %s32, 1
      %p328 = por %p326, %p327
      %p330 = scmp.ne.s32.totalorder %s315, %s329
      %p331 = scmp.eq.s32.totalorder %s32, 0
      %p332 = por %p330, %p331
      %s334 = sadd.s32 %s333, 1
      %p337 = scmp.eq.s32.totalorder %s26, 1
      %p338 = scmp.ne.s32.totalorder %s333, %s335
      %p339 = scmp.eq.s32.totalorder %s26, 0
      %p340 = por %p338, %p339
      %p341 = scmp.ne.s32.totalorder %s333, %s335
      %p342 = scmp.eq.s32.totalorder %s31, 1
      %p343 = por %p341, %p342
      %p344 = scmp.ne.s32.totalorder %s335, %s336
      %p345 = scmp.eq.s32.totalorder %s31, 0
      %p346 = por %p344, %p345
      %p347 = scmp.ne.s32.totalorder %s335, %s336
      %p348 = scmp.eq.s32.totalorder %s32, 1
      %p349 = por %p347, %p348
      %p351 = scmp.ne.s32.totalorder %s336, %s350
      %p352 = scmp.eq.s32.totalorder %s32, 0
      %p353 = por %p351, %p352
      %s355 = sadd.s32 %s354, 1
      %p358 = scmp.eq.s32.totalorder %s26, 1
      %p359 = scmp.ne.s32.totalorder %s354, %s356
      %p360 = scmp.eq.s32.totalorder %s26, 0
      %p361 = por %p359, %p360
      %p362 = scmp.ne.s32.totalorder %s354, %s356
      %p363 = scmp.eq.s32.totalorder %s31, 1
      %p364 = por %p362, %p363
      %p365 = scmp.ne.s32.totalorder %s356, %s357
      %p366 = scmp.eq.s32.totalorder %s31, 0
      %p367 = por %p365, %p366
      %p368 = scmp.ne.s32.totalorder %s356, %s357
      %p369 = scmp.eq.s32.totalorder %s32, 1
      %p370 = por %p368, %p369
      %p372 = scmp.ne.s32.totalorder %s357, %s371
      %p373 = scmp.eq.s32.totalorder %s32, 0
      %p374 = por %p372, %p373
      %s375 = ssub.s32 %s26, %s33
      %p376 = scmp.eq.s32.totalorder %s375, 0
      %s378 = sadd.s32 %s377, 1
      %s379 = scalar_select %p376, %s377, %s378
      %p382 = pneg %p376
      %p383 = scmp.eq.s32.totalorder %s26, 1
      %p384 = por %p382, %p383
      %p385 = scmp.ne.s32.totalorder %s377, %s380
      %p386 = scmp.eq.s32.totalorder %s26, 0
      %p387 = por %p385, %p386
      %p388 = scmp.ne.s32.totalorder %s377, %s380
      %p389 = scmp.eq.s32.totalorder %s31, 1
      %p390 = por %p388, %p389
      %p391 = scmp.ne.s32.totalorder %s380, %s381
      %p392 = scmp.eq.s32.totalorder %s31, 0
      %p393 = por %p391, %p392
      %p394 = scmp.ne.s32.totalorder %s380, %s381
      %p395 = scmp.eq.s32.totalorder %s32, 1
      %p396 = por %p394, %p395
      %p398 = scmp.ne.s32.totalorder %s381, %s397
      %p399 = scmp.eq.s32.totalorder %s32, 0
      %p400 = por %p398, %p399
      %p401 = scmp.le.s32.totalorder 1, %s26
      %p402 = scmp.lt.s32.totalorder %s26, 3
      %p403 = pnand %p401, %p402
      %p404 = pneg %p403
      // Predicated region
      $region9: #{occupancy_map_embedding.1} parent=5 // pred_check
        _
      $region10: #{occupancy_map_embedding.1} parent=5 // pred_check_branch
        %406 = sbr.rel (%p403) target = $region12
      $region11: #{occupancy_map_embedding.1} parent=5 // pred_region
        %s407 = ssub.s32 %s26, 1
        // Predicated region
        $region13: #{occupancy_map_embedding.1} parent=11 // pred_check
          %p408 = pneg %p73
        $region14: #{occupancy_map_embedding.1} parent=11 // pred_check_branch
          %410 = sbr.rel (%p408) target = $region16
        $region15: #{occupancy_map_embedding.1} parent=11 // pred_region
          _
        $region16: #{occupancy_map_embedding.1} parent=11 // pred_fallthru
          _
        // Predicated region
        $region17: #{occupancy_map_embedding.1} parent=11 // pred_check
          %p411 = pneg %p94
        $region18: #{occupancy_map_embedding.1} parent=11 // pred_check_branch
          %413 = sbr.rel (%p411) target = $region20
        $region19: #{occupancy_map_embedding.1} parent=11 // pred_region
          _
        $region20: #{occupancy_map_embedding.1} parent=11 // pred_fallthru
          _
        // Predicated region
        $region21: #{occupancy_map_embedding.1} parent=11 // pred_check
          %p414 = pneg %p115
        $region22: #{occupancy_map_embedding.1} parent=11 // pred_check_branch
          %416 = sbr.rel (%p414) target = $region24
        $region23: #{occupancy_map_embedding.1} parent=11 // pred_region
          _
        $region24: #{occupancy_map_embedding.1} parent=11 // pred_fallthru
          _
        // Predicated region
        $region25: #{occupancy_map_embedding.1} parent=11 // pred_check
          %p417 = pneg %p136
        $region26: #{occupancy_map_embedding.1} parent=11 // pred_check_branch
          %419 = sbr.rel (%p417) target = $region28
        $region27: #{occupancy_map_embedding.1} parent=11 // pred_region
          _
        $region28: #{occupancy_map_embedding.1} parent=11 // pred_fallthru
          _
        // Predicated region
        $region29: #{occupancy_map_embedding.1} parent=11 // pred_check
          %p420 = pneg %p157
        $region30: #{occupancy_map_embedding.1} parent=11 // pred_check_branch
          %422 = sbr.rel (%p420) target = $region32
        $region31: #{occupancy_map_embedding.1} parent=11 // pred_region
          _
        $region32: #{occupancy_map_embedding.1} parent=11 // pred_fallthru
          _
        // Predicated region
        $region33: #{occupancy_map_embedding.1} parent=11 // pred_check
          %p423 = pneg %p178
        $region34: #{occupancy_map_embedding.1} parent=11 // pred_check_branch
          %425 = sbr.rel (%p423) target = $region36
        $region35: #{occupancy_map_embedding.1} parent=11 // pred_region
          _
        $region36: #{occupancy_map_embedding.1} parent=11 // pred_fallthru
          _
        // Predicated region
        $region37: #{occupancy_map_embedding.1} parent=11 // pred_check
          %p426 = pneg %p199
        $region38: #{occupancy_map_embedding.1} parent=11 // pred_check_branch
          %428 = sbr.rel (%p426) target = $region40
        $region39: #{occupancy_map_embedding.1} parent=11 // pred_region
          _
        $region40: #{occupancy_map_embedding.1} parent=11 // pred_fallthru
          _
        // Predicated region
        $region41: #{occupancy_map_embedding.1} parent=11 // pred_check
          %p429 = pneg %p220
        $region42: #{occupancy_map_embedding.1} parent=11 // pred_check_branch
          %431 = sbr.rel (%p429) target = $region44
        $region43: #{occupancy_map_embedding.1} parent=11 // pred_region
          _
        $region44: #{occupancy_map_embedding.1} parent=11 // pred_fallthru
          _
        // Predicated region
        $region45: #{occupancy_map_embedding.1} parent=11 // pred_check
          %p432 = pneg %p241
        $region46: #{occupancy_map_embedding.1} parent=11 // pred_check_branch
          %434 = sbr.rel (%p432) target = $region48
        $region47: #{occupancy_map_embedding.1} parent=11 // pred_region
          _
        $region48: #{occupancy_map_embedding.1} parent=11 // pred_fallthru
          _
        // Predicated region
        $region49: #{occupancy_map_embedding.1} parent=11 // pred_check
          %p435 = pneg %p262
        $region50: #{occupancy_map_embedding.1} parent=11 // pred_check_branch
          %437 = sbr.rel (%p435) target = $region52
        $region51: #{occupancy_map_embedding.1} parent=11 // pred_region
          _
        $region52: #{occupancy_map_embedding.1} parent=11 // pred_fallthru
          _
        // Predicated region
        $region53: #{occupancy_map_embedding.1} parent=11 // pred_check
          %p438 = pneg %p283
        $region54: #{occupancy_map_embedding.1} parent=11 // pred_check_branch
          %440 = sbr.rel (%p438) target = $region56
        $region55: #{occupancy_map_embedding.1} parent=11 // pred_region
          _
        $region56: #{occupancy_map_embedding.1} parent=11 // pred_fallthru
          _
        // Predicated region
        $region57: #{occupancy_map_embedding.1} parent=11 // pred_check
          %p441 = pneg %p304
        $region58: #{occupancy_map_embedding.1} parent=11 // pred_check_branch
          %443 = sbr.rel (%p441) target = $region60
        $region59: #{occupancy_map_embedding.1} parent=11 // pred_region
          _
        $region60: #{occupancy_map_embedding.1} parent=11 // pred_fallthru
          _
        // Predicated region
        $region61: #{occupancy_map_embedding.1} parent=11 // pred_check
          %p444 = pneg %p325
        $region62: #{occupancy_map_embedding.1} parent=11 // pred_check_branch
          %446 = sbr.rel (%p444) target = $region64
        $region63: #{occupancy_map_embedding.1} parent=11 // pred_region
          _
        $region64: #{occupancy_map_embedding.1} parent=11 // pred_fallthru
          _
        // Predicated region
        $region65: #{occupancy_map_embedding.1} parent=11 // pred_check
          %p447 = pneg %p346
        $region66: #{occupancy_map_embedding.1} parent=11 // pred_check_branch
          %449 = sbr.rel (%p447) target = $region68
        $region67: #{occupancy_map_embedding.1} parent=11 // pred_region
          _
        $region68: #{occupancy_map_embedding.1} parent=11 // pred_fallthru
          _
        // Predicated region
        $region69: #{occupancy_map_embedding.1} parent=11 // pred_check
          %p450 = pneg %p367
        $region70: #{occupancy_map_embedding.1} parent=11 // pred_check_branch
          %452 = sbr.rel (%p450) target = $region72
        $region71: #{occupancy_map_embedding.1} parent=11 // pred_region
          _
        $region72: #{occupancy_map_embedding.1} parent=11 // pred_fallthru
          _
      $region12: #{occupancy_map_embedding.1} parent=5 // pred_fallthru
        _
      %p453 = scmp.lt.s32.totalorder %s26, 2
      // Predicated region
      $region73: #{occupancy_map_embedding.1} parent=5 // pred_check
        %p454 = pneg %p453
      $region74: #{occupancy_map_embedding.1} parent=5 // pred_check_branch
        %456 = sbr.rel (%p454) target = $region76
      $region75: #{occupancy_map_embedding.1} parent=5 // pred_region
        // Predicated region
        $region77: #{occupancy_map_embedding.1} parent=75 // pred_check
          %p457 = pneg %p46
        $region78: #{occupancy_map_embedding.1} parent=75 // pred_check_branch
          %459 = sbr.rel (%p457) target = $region80
        $region79: #{occupancy_map_embedding.1} parent=75 // pred_region
          %s460 = smul.u32 32, %s26
          %p461 = scmp.lt.s32.totalorder %s460, 63
          %s462 = scalar_select %p461, %s460, 63
          %s463 = smul.addr %s462, 8
          %s464 = scalar_lea.vmem %s0, %s463
          %s465 = smul.u32 32, %s26
        $region80: #{occupancy_map_embedding.1} parent=75 // pred_fallthru
          _
      $region76: #{occupancy_map_embedding.1} parent=5 // pred_fallthru
        _
      %p466 = scmp.le.s32.totalorder 1, %s26
      %p467 = scmp.lt.s32.totalorder %s26, 3
      %p468 = pnand %p466, %p467
      %p469 = pneg %p468
      // Predicated region
      $region81: #{occupancy_map_embedding.1} parent=5 // pred_check
        _
      $region82: #{occupancy_map_embedding.1} parent=5 // pred_check_branch
        %471 = sbr.rel (%p468) target = $region84
      $region83: #{occupancy_map_embedding.1} parent=5 // pred_region
        #allocation7 [shape = 'u32[9]{0}', space=smem, size = 0x24, scoped, tag = 'DMA stride descriptor']
        %s472 = ssub.s32 %s26, 1
        %s473 = smul.u32 32, %s31
        %p474 = scmp.lt.s32.totalorder %s473, 63
        %s475 = scalar_select %p474, %s473, 63
        %s476 = smul.addr %s475, 8
        %s477 = scalar_lea.vmem %s0, %s476
        %p478 = pneg %p52
        %p479 = pneg %p49
        %p480 = pneg %p73
        %p481 = pneg %p70
        %p482 = pneg %p94
        %p483 = pneg %p91
        %p484 = pneg %p115
        %p485 = pneg %p112
        %p486 = pneg %p136
        %p487 = pneg %p133
        %p488 = pneg %p157
        %p489 = pneg %p154
        %p490 = pneg %p178
        %p491 = pneg %p175
        %p492 = pneg %p199
        %p493 = pneg %p196
        %p494 = pneg %p220
        %p495 = pneg %p217
        %p496 = pneg %p241
        %p497 = pneg %p238
        %p498 = pneg %p262
        %p499 = pneg %p259
        %p500 = pneg %p283
        %p501 = pneg %p280
        %p502 = pneg %p304
        %p503 = pneg %p301
        %p504 = pneg %p325
        %p505 = pneg %p322
        %p506 = pneg %p346
        %p507 = pneg %p343
        %p508 = pneg %p367
        %p509 = pneg %p364
        %p510 = pneg %p393
        %p511 = pneg %p390
        %s512 = sand.u32 %s380, 1
        %s513 = scalar_lea.sflag [#allocation5], %s512
        %s514 = sand.u32 %s380, 1
        %s515 = scalar_lea.vmem [#allocation4], %s514
        %s516 = smul.u32 32, %s31
        %p517 = scmp.lt.s32.totalorder %s516, 63
        %s518 = scalar_select %p517, %s516, 63
        %s519 = smul.addr %s518, 8
        %s520 = scalar_lea.vmem %s0, %s519
        %s521 = smul.u32 32, %s31
        %s524 = sshll.u32 1, 14
        %s525 = sxor.u32 4294967295, %s524
        %s527 = sld [smem:[#allocation0]]
        %s528 = sadd.s32 2, %s527
        %s530 = sshll.u32 7, 26
        %s531 = sxor.u32 4294967295, %s530
        %s532 = sand.u32 0, %s531
        %s533 = sshll.u32 %s528, 26
        %s534 = sor.u32 %s532, %s533
        %s535 = sshll.u32 [#allocation2], 4
        %s536 = int_to_ptr.vmem [resolvable:$true] %s535
        %539 = sst [smem:[#allocation7]] 256
        %s540 = scalar_lea.smem [#allocation7], 1
        %541 = sst [smem:[%s540]] 256
        %s542 = scalar_lea.smem [#allocation7], 2
        %543 = sst [smem:[%s542]] 2
        %s544 = scalar_lea.smem [#allocation7], 3
        %545 = sst [smem:[%s544]] 64
        %s546 = scalar_lea.smem [#allocation7], 4
        %547 = sst [smem:[%s546]] 128
        %s548 = scalar_lea.smem [#allocation7], 5
        %549 = sst [smem:[%s548]] 2
        %s550 = scalar_lea.smem [#allocation7], 6
        %551 = sst [smem:[%s550]] 128
        %s552 = scalar_lea.smem [#allocation7], 7
        %553 = sst [smem:[%s552]] 64
        %s554 = scalar_lea.smem [#allocation7], 8
        %555 = sst [smem:[%s554]] 4
        %557 = dma.general %s10, 18432, %s536, [#allocation3], [#allocation6], [#allocation7], %s534, 0
        %v558 = vlaneseq
        %v559 = vshrl.u32 %v558, 7
        %v560 = vadd.s32 %v559, 8
        %v561 = vadd.s32 %v559, 16
        %v562 = vadd.s32 %v559, 24
        %v563 = vadd.s32 %v559, 32
        %v564 = vadd.s32 %v559, 40
        %v565 = vadd.s32 %v559, 48
        %v566 = vadd.s32 %v559, 56
        %v567 = vadd.s32 %v559, 64
        %v568 = vadd.s32 %v559, 72
        %v569 = vadd.s32 %v559, 80
        %v570 = vadd.s32 %v559, 88
        %v571 = vadd.s32 %v559, 96
        %v572 = vadd.s32 %v559, 104
        %v573 = vadd.s32 %v559, 112
        %v574 = vadd.s32 %v559, 120
        %v575 = vadd.s32 %v559, 128
        %v576 = vadd.s32 %v559, 136
        %v577 = vadd.s32 %v559, 144
        %v578 = vadd.s32 %v559, 152
        %v579 = vadd.s32 %v559, 160
        %v580 = vadd.s32 %v559, 168
        %v581 = vadd.s32 %v559, 176
        %v582 = vadd.s32 %v559, 184
        %v583 = vadd.s32 %v559, 192
        %v584 = vadd.s32 %v559, 200
        %v585 = vadd.s32 %v559, 208
        %v586 = vadd.s32 %v559, 216
        %v587 = vadd.s32 %v559, 224
        %v588 = vadd.s32 %v559, 232
        %v589 = vadd.s32 %v559, 240
        %v590 = vadd.s32 %v559, 248
        %vm591 = vcmp.lt.s32.totalorder %v559, 0
        %v592 = vsub.s32 0, %v559
        %v593 = vsel %vm591, %v592, %v559
        %v594 = vshrl.u32 %v593, 4
        %v595 = vand.u32 %v593, 15
        %v596 = vsub.s32 0, %v595
        %v597 = vsel %vm591, %v596, %v595
        %vm598 = vcmp.lt.s32.totalorder %v560, 0
        %v599 = vsub.s32 0, %v560
        %v600 = vsel %vm598, %v599, %v560
        %v601 = vshrl.u32 %v600, 4
        %v602 = vand.u32 %v600, 15
        %v603 = vsub.s32 0, %v602
        %v604 = vsel %vm598, %v603, %v602
        %vm605 = vcmp.lt.s32.totalorder %v561, 0
        %v606 = vsub.s32 0, %v561
        %v607 = vsel %vm605, %v606, %v561
        %v608 = vshrl.u32 %v607, 4
        %v609 = vand.u32 %v607, 15
        %v610 = vsub.s32 0, %v609
        %v611 = vsel %vm605, %v610, %v609
        %vm612 = vcmp.lt.s32.totalorder %v562, 0
        %v613 = vsub.s32 0, %v562
        %v614 = vsel %vm612, %v613, %v562
        %v615 = vshrl.u32 %v614, 4
        %v616 = vand.u32 %v614, 15
        %v617 = vsub.s32 0, %v616
        %v618 = vsel %vm612, %v617, %v616
        %vm619 = vcmp.lt.s32.totalorder %v563, 0
        %v620 = vsub.s32 0, %v563
        %v621 = vsel %vm619, %v620, %v563
        %v622 = vshrl.u32 %v621, 4
        %v623 = vand.u32 %v621, 15
        %v624 = vsub.s32 0, %v623
        %v625 = vsel %vm619, %v624, %v623
        %vm626 = vcmp.lt.s32.totalorder %v564, 0
        %v627 = vsub.s32 0, %v564
        %v628 = vsel %vm626, %v627, %v564
        %v629 = vshrl.u32 %v628, 4
        %v630 = vand.u32 %v628, 15
        %v631 = vsub.s32 0, %v630
        %v632 = vsel %vm626, %v631, %v630
        %vm633 = vcmp.lt.s32.totalorder %v565, 0
        %v634 = vsub.s32 0, %v565
        %v635 = vsel %vm633, %v634, %v565
        %v636 = vshrl.u32 %v635, 4
        %v637 = vand.u32 %v635, 15
        %v638 = vsub.s32 0, %v637
        %v639 = vsel %vm633, %v638, %v637
        %vm640 = vcmp.lt.s32.totalorder %v566, 0
        %v641 = vsub.s32 0, %v566
        %v642 = vsel %vm640, %v641, %v566
        %v643 = vshrl.u32 %v642, 4
        %v644 = vand.u32 %v642, 15
        %v645 = vsub.s32 0, %v644
        %v646 = vsel %vm640, %v645, %v644
        %vm647 = vcmp.lt.s32.totalorder %v567, 0
        %v648 = vsub.s32 0, %v567
        %v649 = vsel %vm647, %v648, %v567
        %v650 = vshrl.u32 %v649, 4
        %v651 = vand.u32 %v649, 15
        %v652 = vsub.s32 0, %v651
        %v653 = vsel %vm647, %v652, %v651
        %vm654 = vcmp.lt.s32.totalorder %v568, 0
        %v655 = vsub.s32 0, %v568
        %v656 = vsel %vm654, %v655, %v568
        %v657 = vshrl.u32 %v656, 4
        %v658 = vand.u32 %v656, 15
        %v659 = vsub.s32 0, %v658
        %v660 = vsel %vm654, %v659, %v658
        %vm661 = vcmp.lt.s32.totalorder %v569, 0
        %v662 = vsub.s32 0, %v569
        %v663 = vsel %vm661, %v662, %v569
        %v664 = vshrl.u32 %v663, 4
        %v665 = vand.u32 %v663, 15
        %v666 = vsub.s32 0, %v665
        %v667 = vsel %vm661, %v666, %v665
        %vm668 = vcmp.lt.s32.totalorder %v570, 0
        %v669 = vsub.s32 0, %v570
        %v670 = vsel %vm668, %v669, %v570
        %v671 = vshrl.u32 %v670, 4
        %v672 = vand.u32 %v670, 15
        %v673 = vsub.s32 0, %v672
        %v674 = vsel %vm668, %v673, %v672
        %vm675 = vcmp.lt.s32.totalorder %v571, 0
        %v676 = vsub.s32 0, %v571
        %v677 = vsel %vm675, %v676, %v571
        %v678 = vshrl.u32 %v677, 4
        %v679 = vand.u32 %v677, 15
        %v680 = vsub.s32 0, %v679
        %v681 = vsel %vm675, %v680, %v679
        %vm682 = vcmp.lt.s32.totalorder %v572, 0
        %v683 = vsub.s32 0, %v572
        %v684 = vsel %vm682, %v683, %v572
        %v685 = vshrl.u32 %v684, 4
        %v686 = vand.u32 %v684, 15
        %v687 = vsub.s32 0, %v686
        %v688 = vsel %vm682, %v687, %v686
        %vm689 = vcmp.lt.s32.totalorder %v573, 0
        %v690 = vsub.s32 0, %v573
        %v691 = vsel %vm689, %v690, %v573
        %v692 = vshrl.u32 %v691, 4
        %v693 = vand.u32 %v691, 15
        %v694 = vsub.s32 0, %v693
        %v695 = vsel %vm689, %v694, %v693
        %vm696 = vcmp.lt.s32.totalorder %v574, 0
        %v697 = vsub.s32 0, %v574
        %v698 = vsel %vm696, %v697, %v574
        %v699 = vshrl.u32 %v698, 4
        %v700 = vand.u32 %v698, 15
        %v701 = vsub.s32 0, %v700
        %v702 = vsel %vm696, %v701, %v700
        %vm703 = vcmp.lt.s32.totalorder %v575, 0
        %v704 = vsub.s32 0, %v575
        %v705 = vsel %vm703, %v704, %v575
        %v706 = vshrl.u32 %v705, 4
        %v707 = vand.u32 %v705, 15
        %v708 = vsub.s32 0, %v707
        %v709 = vsel %vm703, %v708, %v707
        %vm710 = vcmp.lt.s32.totalorder %v576, 0
        %v711 = vsub.s32 0, %v576
        %v712 = vsel %vm710, %v711, %v576
        %v713 = vshrl.u32 %v712, 4
        %v714 = vand.u32 %v712, 15
        %v715 = vsub.s32 0, %v714
        %v716 = vsel %vm710, %v715, %v714
        %vm717 = vcmp.lt.s32.totalorder %v577, 0
        %v718 = vsub.s32 0, %v577
        %v719 = vsel %vm717, %v718, %v577
        %v720 = vshrl.u32 %v719, 4
        %v721 = vand.u32 %v719, 15
        %v722 = vsub.s32 0, %v721
        %v723 = vsel %vm717, %v722, %v721
        %vm724 = vcmp.lt.s32.totalorder %v578, 0
        %v725 = vsub.s32 0, %v578
        %v726 = vsel %vm724, %v725, %v578
        %v727 = vshrl.u32 %v726, 4
        %v728 = vand.u32 %v726, 15
        %v729 = vsub.s32 0, %v728
        %v730 = vsel %vm724, %v729, %v728
        %vm731 = vcmp.lt.s32.totalorder %v579, 0
        %v732 = vsub.s32 0, %v579
        %v733 = vsel %vm731, %v732, %v579
        %v734 = vshrl.u32 %v733, 4
        %v735 = vand.u32 %v733, 15
        %v736 = vsub.s32 0, %v735
        %v737 = vsel %vm731, %v736, %v735
        %vm738 = vcmp.lt.s32.totalorder %v580, 0
        %v739 = vsub.s32 0, %v580
        %v740 = vsel %vm738, %v739, %v580
        %v741 = vshrl.u32 %v740, 4
        %v742 = vand.u32 %v740, 15
        %v743 = vsub.s32 0, %v742
        %v744 = vsel %vm738, %v743, %v742
        %vm745 = vcmp.lt.s32.totalorder %v581, 0
        %v746 = vsub.s32 0, %v581
        %v747 = vsel %vm745, %v746, %v581
        %v748 = vshrl.u32 %v747, 4
        %v749 = vand.u32 %v747, 15
        %v750 = vsub.s32 0, %v749
        %v751 = vsel %vm745, %v750, %v749
        %vm752 = vcmp.lt.s32.totalorder %v582, 0
        %v753 = vsub.s32 0, %v582
        %v754 = vsel %vm752, %v753, %v582
        %v755 = vshrl.u32 %v754, 4
        %v756 = vand.u32 %v754, 15
        %v757 = vsub.s32 0, %v756
        %v758 = vsel %vm752, %v757, %v756
        %vm759 = vcmp.lt.s32.totalorder %v583, 0
        %v760 = vsub.s32 0, %v583
        %v761 = vsel %vm759, %v760, %v583
        %v762 = vshrl.u32 %v761, 4
        %v763 = vand.u32 %v761, 15
        %v764 = vsub.s32 0, %v763
        %v765 = vsel %vm759, %v764, %v763
        %vm766 = vcmp.lt.s32.totalorder %v584, 0
        %v767 = vsub.s32 0, %v584
        %v768 = vsel %vm766, %v767, %v584
        %v769 = vshrl.u32 %v768, 4
        %v770 = vand.u32 %v768, 15
        %v771 = vsub.s32 0, %v770
        %v772 = vsel %vm766, %v771, %v770
        %vm773 = vcmp.lt.s32.totalorder %v585, 0
        %v774 = vsub.s32 0, %v585
        %v775 = vsel %vm773, %v774, %v585
        %v776 = vshrl.u32 %v775, 4
        %v777 = vand.u32 %v775, 15
        %v778 = vsub.s32 0, %v777
        %v779 = vsel %vm773, %v778, %v777
        %vm780 = vcmp.lt.s32.totalorder %v586, 0
        %v781 = vsub.s32 0, %v586
        %v782 = vsel %vm780, %v781, %v586
        %v783 = vshrl.u32 %v782, 4
        %v784 = vand.u32 %v782, 15
        %v785 = vsub.s32 0, %v784
        %v786 = vsel %vm780, %v785, %v784
        %vm787 = vcmp.lt.s32.totalorder %v587, 0
        %v788 = vsub.s32 0, %v587
        %v789 = vsel %vm787, %v788, %v587
        %v790 = vshrl.u32 %v789, 4
        %v791 = vand.u32 %v789, 15
        %v792 = vsub.s32 0, %v791
        %v793 = vsel %vm787, %v792, %v791
        %vm794 = vcmp.lt.s32.totalorder %v588, 0
        %v795 = vsub.s32 0, %v588
        %v796 = vsel %vm794, %v795, %v588
        %v797 = vshrl.u32 %v796, 4
        %v798 = vand.u32 %v796, 15
        %v799 = vsub.s32 0, %v798
        %v800 = vsel %vm794, %v799, %v798
        %vm801 = vcmp.lt.s32.totalorder %v589, 0
        %v802 = vsub.s32 0, %v589
        %v803 = vsel %vm801, %v802, %v589
        %v804 = vshrl.u32 %v803, 4
        %v805 = vand.u32 %v803, 15
        %v806 = vsub.s32 0, %v805
        %v807 = vsel %vm801, %v806, %v805
        %vm808 = vcmp.lt.s32.totalorder %v590, 0
        %v809 = vsub.s32 0, %v590
        %v810 = vsel %vm808, %v809, %v590
        %v811 = vshrl.u32 %v810, 4
        %v812 = vand.u32 %v810, 15
        %v813 = vsub.s32 0, %v812
        %v814 = vsel %vm808, %v813, %v812
        %vm815 = vcmp.ne.s32.totalorder %v597, 0
        %vm816 = vcmp.ne.s32.totalorder %v604, 0
        %vm817 = vcmp.ne.s32.totalorder %v611, 0
        %vm818 = vcmp.ne.s32.totalorder %v618, 0
        %vm819 = vcmp.ne.s32.totalorder %v625, 0
        %vm820 = vcmp.ne.s32.totalorder %v632, 0
        %vm821 = vcmp.ne.s32.totalorder %v639, 0
        %vm822 = vcmp.ne.s32.totalorder %v646, 0
        %vm823 = vcmp.ne.s32.totalorder %v653, 0
        %vm824 = vcmp.ne.s32.totalorder %v660, 0
        %vm825 = vcmp.ne.s32.totalorder %v667, 0
        %vm826 = vcmp.ne.s32.totalorder %v674, 0
        %vm827 = vcmp.ne.s32.totalorder %v681, 0
        %vm828 = vcmp.ne.s32.totalorder %v688, 0
        %vm829 = vcmp.ne.s32.totalorder %v695, 0
        %vm830 = vcmp.ne.s32.totalorder %v702, 0
        %vm831 = vcmp.ne.s32.totalorder %v709, 0
        %vm832 = vcmp.ne.s32.totalorder %v716, 0
        %vm833 = vcmp.ne.s32.totalorder %v723, 0
        %vm834 = vcmp.ne.s32.totalorder %v730, 0
        %vm835 = vcmp.ne.s32.totalorder %v737, 0
        %vm836 = vcmp.ne.s32.totalorder %v744, 0
        %vm837 = vcmp.ne.s32.totalorder %v751, 0
        %vm838 = vcmp.ne.s32.totalorder %v758, 0
        %vm839 = vcmp.ne.s32.totalorder %v765, 0
        %vm840 = vcmp.ne.s32.totalorder %v772, 0
        %vm841 = vcmp.ne.s32.totalorder %v779, 0
        %vm842 = vcmp.ne.s32.totalorder %v786, 0
        %vm843 = vcmp.ne.s32.totalorder %v793, 0
        %vm844 = vcmp.ne.s32.totalorder %v800, 0
        %vm845 = vcmp.ne.s32.totalorder %v807, 0
        %vm846 = vcmp.ne.s32.totalorder %v814, 0
        %vm847 = vcmp.lt.s32.totalorder %v597, 0
        %vm848 = vcmp.lt.s32.totalorder %v604, 0
        %vm849 = vcmp.lt.s32.totalorder %v611, 0
        %vm850 = vcmp.lt.s32.totalorder %v618, 0
        %vm851 = vcmp.lt.s32.totalorder %v625, 0
        %vm852 = vcmp.lt.s32.totalorder %v632, 0
        %vm853 = vcmp.lt.s32.totalorder %v639, 0
        %vm854 = vcmp.lt.s32.totalorder %v646, 0
        %vm855 = vcmp.lt.s32.totalorder %v653, 0
        %vm856 = vcmp.lt.s32.totalorder %v660, 0
        %vm857 = vcmp.lt.s32.totalorder %v667, 0
        %vm858 = vcmp.lt.s32.totalorder %v674, 0
        %vm859 = vcmp.lt.s32.totalorder %v681, 0
        %vm860 = vcmp.lt.s32.totalorder %v688, 0
        %vm861 = vcmp.lt.s32.totalorder %v695, 0
        %vm862 = vcmp.lt.s32.totalorder %v702, 0
        %vm863 = vcmp.lt.s32.totalorder %v709, 0
        %vm864 = vcmp.lt.s32.totalorder %v716, 0
        %vm865 = vcmp.lt.s32.totalorder %v723, 0
        %vm866 = vcmp.lt.s32.totalorder %v730, 0
        %vm867 = vcmp.lt.s32.totalorder %v737, 0
        %vm868 = vcmp.lt.s32.totalorder %v744, 0
        %vm869 = vcmp.lt.s32.totalorder %v751, 0
        %vm870 = vcmp.lt.s32.totalorder %v758, 0
        %vm871 = vcmp.lt.s32.totalorder %v765, 0
        %vm872 = vcmp.lt.s32.totalorder %v772, 0
        %vm873 = vcmp.lt.s32.totalorder %v779, 0
        %vm874 = vcmp.lt.s32.totalorder %v786, 0
        %vm875 = vcmp.lt.s32.totalorder %v793, 0
        %vm876 = vcmp.lt.s32.totalorder %v800, 0
        %vm877 = vcmp.lt.s32.totalorder %v807, 0
        %vm878 = vcmp.lt.s32.totalorder %v814, 0
        %vm879 = vmand %vm847, %vm815
        %vm880 = vmand %vm848, %vm816
        %vm881 = vmand %vm849, %vm817
        %vm882 = vmand %vm850, %vm818
        %vm883 = vmand %vm851, %vm819
        %vm884 = vmand %vm852, %vm820
        %vm885 = vmand %vm853, %vm821
        %vm886 = vmand %vm854, %vm822
        %vm887 = vmand %vm855, %vm823
        %vm888 = vmand %vm856, %vm824
        %vm889 = vmand %vm857, %vm825
        %vm890 = vmand %vm858, %vm826
        %vm891 = vmand %vm859, %vm827
        %vm892 = vmand %vm860, %vm828
        %vm893 = vmand %vm861, %vm829
        %vm894 = vmand %vm862, %vm830
        %vm895 = vmand %vm863, %vm831
        %vm896 = vmand %vm864, %vm832
        %vm897 = vmand %vm865, %vm833
        %vm898 = vmand %vm866, %vm834
        %vm899 = vmand %vm867, %vm835
        %vm900 = vmand %vm868, %vm836
        %vm901 = vmand %vm869, %vm837
        %vm902 = vmand %vm870, %vm838
        %vm903 = vmand %vm871, %vm839
        %vm904 = vmand %vm872, %vm840
        %vm905 = vmand %vm873, %vm841
        %vm906 = vmand %vm874, %vm842
        %vm907 = vmand %vm875, %vm843
        %vm908 = vmand %vm876, %vm844
        %vm909 = vmand %vm877, %vm845
        %vm910 = vmand %vm878, %vm846
        %v911 = vadd.s32 %v597, 16
        %v912 = vadd.s32 %v604, 16
        %v913 = vadd.s32 %v611, 16
        %v914 = vadd.s32 %v618, 16
        %v915 = vadd.s32 %v625, 16
        %v916 = vadd.s32 %v632, 16
        %v917 = vadd.s32 %v639, 16
        %v918 = vadd.s32 %v646, 16
        %v919 = vadd.s32 %v653, 16
        %v920 = vadd.s32 %v660, 16
        %v921 = vadd.s32 %v667, 16
        %v922 = vadd.s32 %v674, 16
        %v923 = vadd.s32 %v681, 16
        %v924 = vadd.s32 %v688, 16
        %v925 = vadd.s32 %v695, 16
        %v926 = vadd.s32 %v702, 16
        %v927 = vadd.s32 %v709, 16
        %v928 = vadd.s32 %v716, 16
        %v929 = vadd.s32 %v723, 16
        %v930 = vadd.s32 %v730, 16
        %v931 = vadd.s32 %v737, 16
        %v932 = vadd.s32 %v744, 16
        %v933 = vadd.s32 %v751, 16
        %v934 = vadd.s32 %v758, 16
        %v935 = vadd.s32 %v765, 16
        %v936 = vadd.s32 %v772, 16
        %v937 = vadd.s32 %v779, 16
        %v938 = vadd.s32 %v786, 16
        %v939 = vadd.s32 %v793, 16
        %v940 = vadd.s32 %v800, 16
        %v941 = vadd.s32 %v807, 16
        %v942 = vadd.s32 %v814, 16
        %v943 = vsel %vm879, %v911, %v597
        %v944 = vsel %vm880, %v912, %v604
        %v945 = vsel %vm881, %v913, %v611
        %v946 = vsel %vm882, %v914, %v618
        %v947 = vsel %vm883, %v915, %v625
        %v948 = vsel %vm884, %v916, %v632
        %v949 = vsel %vm885, %v917, %v639
        %v950 = vsel %vm886, %v918, %v646
        %v951 = vsel %vm887, %v919, %v653
        %v952 = vsel %vm888, %v920, %v660
        %v953 = vsel %vm889, %v921, %v667
        %v954 = vsel %vm890, %v922, %v674
        %v955 = vsel %vm891, %v923, %v681
        %v956 = vsel %vm892, %v924, %v688
        %v957 = vsel %vm893, %v925, %v695
        %v958 = vsel %vm894, %v926, %v702
        %v959 = vsel %vm895, %v927, %v709
        %v960 = vsel %vm896, %v928, %v716
        %v961 = vsel %vm897, %v929, %v723
        %v962 = vsel %vm898, %v930, %v730
        %v963 = vsel %vm899, %v931, %v737
        %v964 = vsel %vm900, %v932, %v744
        %v965 = vsel %vm901, %v933, %v751
        %v966 = vsel %vm902, %v934, %v758
        %v967 = vsel %vm903, %v935, %v765
        %v968 = vsel %vm904, %v936, %v772
        %v969 = vsel %vm905, %v937, %v779
        %v970 = vsel %vm906, %v938, %v786
        %v971 = vsel %vm907, %v939, %v793
        %v972 = vsel %vm908, %v940, %v800
        %v973 = vsel %vm909, %v941, %v807
        %v974 = vsel %vm910, %v942, %v814
        %vm975 = vcmp.eq.s32.totalorder %v943, 0
        %vm976 = vcmp.eq.s32.totalorder %v944, 0
        %vm977 = vcmp.eq.s32.totalorder %v945, 0
        %vm978 = vcmp.eq.s32.totalorder %v946, 0
        %vm979 = vcmp.eq.s32.totalorder %v947, 0
        %vm980 = vcmp.eq.s32.totalorder %v948, 0
        %vm981 = vcmp.eq.s32.totalorder %v949, 0
        %vm982 = vcmp.eq.s32.totalorder %v950, 0
        %vm983 = vcmp.eq.s32.totalorder %v951, 0
        %vm984 = vcmp.eq.s32.totalorder %v952, 0
        %vm985 = vcmp.eq.s32.totalorder %v953, 0
        %vm986 = vcmp.eq.s32.totalorder %v954, 0
        %vm987 = vcmp.eq.s32.totalorder %v955, 0
        %vm988 = vcmp.eq.s32.totalorder %v956, 0
        %vm989 = vcmp.eq.s32.totalorder %v957, 0
        %vm990 = vcmp.eq.s32.totalorder %v958, 0
        %vm991 = vcmp.eq.s32.totalorder %v959, 0
        %vm992 = vcmp.eq.s32.totalorder %v960, 0
        %vm993 = vcmp.eq.s32.totalorder %v961, 0
        %vm994 = vcmp.eq.s32.totalorder %v962, 0
        %vm995 = vcmp.eq.s32.totalorder %v963, 0
        %vm996 = vcmp.eq.s32.totalorder %v964, 0
        %vm997 = vcmp.eq.s32.totalorder %v965, 0
        %vm998 = vcmp.eq.s32.totalorder %v966, 0
        %vm999 = vcmp.eq.s32.totalorder %v967, 0
        %vm1000 = vcmp.eq.s32.totalorder %v968, 0
        %vm1001 = vcmp.eq.s32.totalorder %v969, 0
        %vm1002 = vcmp.eq.s32.totalorder %v970, 0
        %vm1003 = vcmp.eq.s32.totalorder %v971, 0
        %vm1004 = vcmp.eq.s32.totalorder %v972, 0
        %vm1005 = vcmp.eq.s32.totalorder %v973, 0
        %vm1006 = vcmp.eq.s32.totalorder %v974, 0
        %vm1007 = vcmp.eq.s32.totalorder %v943, 15
        %vm1008 = vcmp.eq.s32.totalorder %v944, 15
        %vm1009 = vcmp.eq.s32.totalorder %v945, 15
        %vm1010 = vcmp.eq.s32.totalorder %v946, 15
        %vm1011 = vcmp.eq.s32.totalorder %v947, 15
        %vm1012 = vcmp.eq.s32.totalorder %v948, 15
        %vm1013 = vcmp.eq.s32.totalorder %v949, 15
        %vm1014 = vcmp.eq.s32.totalorder %v950, 15
        %vm1015 = vcmp.eq.s32.totalorder %v951, 15
        %vm1016 = vcmp.eq.s32.totalorder %v952, 15
        %vm1017 = vcmp.eq.s32.totalorder %v953, 15
        %vm1018 = vcmp.eq.s32.totalorder %v954, 15
        %vm1019 = vcmp.eq.s32.totalorder %v955, 15
        %vm1020 = vcmp.eq.s32.totalorder %v956, 15
        %vm1021 = vcmp.eq.s32.totalorder %v957, 15
        %vm1022 = vcmp.eq.s32.totalorder %v958, 15
        %vm1023 = vcmp.eq.s32.totalorder %v959, 15
        %vm1024 = vcmp.eq.s32.totalorder %v960, 15
        %vm1025 = vcmp.eq.s32.totalorder %v961, 15
        %vm1026 = vcmp.eq.s32.totalorder %v962, 15
        %vm1027 = vcmp.eq.s32.totalorder %v963, 15
        %vm1028 = vcmp.eq.s32.totalorder %v964, 15
        %vm1029 = vcmp.eq.s32.totalorder %v965, 15
        %vm1030 = vcmp.eq.s32.totalorder %v966, 15
        %vm1031 = vcmp.eq.s32.totalorder %v967, 15
        %vm1032 = vcmp.eq.s32.totalorder %v968, 15
        %vm1033 = vcmp.eq.s32.totalorder %v969, 15
        %vm1034 = vcmp.eq.s32.totalorder %v970, 15
        %vm1035 = vcmp.eq.s32.totalorder %v971, 15
        %vm1036 = vcmp.eq.s32.totalorder %v972, 15
        %vm1037 = vcmp.eq.s32.totalorder %v973, 15
        %vm1038 = vcmp.eq.s32.totalorder %v974, 15
        %v1039 = vld [vmem:[%s520] sm:$0xff]
        %v1040 = vld [vmem:[%s520 + $0x8] sm:$0xff]
        %v1041 = vld [vmem:[%s520 + $0x10] sm:$0xff]
        %v1042 = vld [vmem:[%s520 + $0x18] sm:$0xff]
        %v1043 = vld [vmem:[%s520 + $0x20] sm:$0xff]
        %v1044 = vld [vmem:[%s520 + $0x28] sm:$0xff]
        %v1045 = vld [vmem:[%s520 + $0x30] sm:$0xff]
        %v1046 = vld [vmem:[%s520 + $0x38] sm:$0xff]
        %v1047 = vld [vmem:[%s520 + $0x40] sm:$0xff]
        %v1048 = vld [vmem:[%s520 + $0x48] sm:$0xff]
        %v1049 = vld [vmem:[%s520 + $0x50] sm:$0xff]
        %v1050 = vld [vmem:[%s520 + $0x58] sm:$0xff]
        %v1051 = vld [vmem:[%s520 + $0x60] sm:$0xff]
        %v1052 = vld [vmem:[%s520 + $0x68] sm:$0xff]
        %v1053 = vld [vmem:[%s520 + $0x70] sm:$0xff]
        %v1054 = vld [vmem:[%s520 + $0x78] sm:$0xff]
        %v1055 = vld [vmem:[%s520 + $0x80] sm:$0xff]
        %v1056 = vld [vmem:[%s520 + $0x88] sm:$0xff]
        %v1057 = vld [vmem:[%s520 + $0x90] sm:$0xff]
        %v1058 = vld [vmem:[%s520 + $0x98] sm:$0xff]
        %v1059 = vld [vmem:[%s520 + $0xa0] sm:$0xff]
        %v1060 = vld [vmem:[%s520 + $0xa8] sm:$0xff]
        %v1061 = vld [vmem:[%s520 + $0xb0] sm:$0xff]
        %v1062 = vld [vmem:[%s520 + $0xb8] sm:$0xff]
        %v1063 = vld [vmem:[%s520 + $0xc0] sm:$0xff]
        %v1064 = vld [vmem:[%s520 + $0xc8] sm:$0xff]
        %v1065 = vld [vmem:[%s520 + $0xd0] sm:$0xff]
        %v1066 = vld [vmem:[%s520 + $0xd8] sm:$0xff]
        %v1067 = vld [vmem:[%s520 + $0xe0] sm:$0xff]
        %v1068 = vld [vmem:[%s520 + $0xe8] sm:$0xff]
        %v1069 = vld [vmem:[%s520 + $0xf0] sm:$0xff]
        %v1070 = vld [vmem:[%s520 + $0xf8] sm:$0xff]
        %vm1101 = vcmask 1040384
        %v1102 = vrot.slane %v1039, 7
        %v1103 = vrot.slane %v1040, 7
        %v1104 = vsel %vm1101, %v1102, %v1103
        %v1105 = vrot.slane %v1041, 7
        %v1106 = vsel %vm1101, %v1103, %v1105
        %v1107 = vrot.slane %v1042, 7
        %v1108 = vsel %vm1101, %v1105, %v1107
        %v1109 = vrot.slane %v1043, 7
        %v1110 = vsel %vm1101, %v1107, %v1109
        %v1111 = vrot.slane %v1044, 7
        %v1112 = vsel %vm1101, %v1109, %v1111
        %v1113 = vrot.slane %v1045, 7
        %v1114 = vsel %vm1101, %v1111, %v1113
        %v1115 = vrot.slane %v1046, 7
        %v1116 = vsel %vm1101, %v1113, %v1115
        %v1117 = vrot.slane %v1047, 7
        %v1118 = vsel %vm1101, %v1115, %v1117
        %v1119 = vrot.slane %v1048, 7
        %v1120 = vsel %vm1101, %v1117, %v1119
        %v1121 = vrot.slane %v1049, 7
        %v1122 = vsel %vm1101, %v1119, %v1121
        %v1123 = vrot.slane %v1050, 7
        %v1124 = vsel %vm1101, %v1121, %v1123
        %v1125 = vrot.slane %v1051, 7
        %v1126 = vsel %vm1101, %v1123, %v1125
        %v1127 = vrot.slane %v1052, 7
        %v1128 = vsel %vm1101, %v1125, %v1127
        %v1129 = vrot.slane %v1053, 7
        %v1130 = vsel %vm1101, %v1127, %v1129
        %v1131 = vrot.slane %v1054, 7
        %v1132 = vsel %vm1101, %v1129, %v1131
        %v1133 = vrot.slane %v1055, 7
        %v1134 = vsel %vm1101, %v1131, %v1133
        %v1135 = vrot.slane %v1056, 7
        %v1136 = vsel %vm1101, %v1133, %v1135
        %v1137 = vrot.slane %v1057, 7
        %v1138 = vsel %vm1101, %v1135, %v1137
        %v1139 = vrot.slane %v1058, 7
        %v1140 = vsel %vm1101, %v1137, %v1139
        %v1141 = vrot.slane %v1059, 7
        %v1142 = vsel %vm1101, %v1139, %v1141
        %v1143 = vrot.slane %v1060, 7
        %v1144 = vsel %vm1101, %v1141, %v1143
        %v1145 = vrot.slane %v1061, 7
        %v1146 = vsel %vm1101, %v1143, %v1145
        %v1147 = vrot.slane %v1062, 7
        %v1148 = vsel %vm1101, %v1145, %v1147
        %v1149 = vrot.slane %v1063, 7
        %v1150 = vsel %vm1101, %v1147, %v1149
        %v1151 = vrot.slane %v1064, 7
        %v1152 = vsel %vm1101, %v1149, %v1151
        %v1153 = vrot.slane %v1065, 7
        %v1154 = vsel %vm1101, %v1151, %v1153
        %v1155 = vrot.slane %v1066, 7
        %v1156 = vsel %vm1101, %v1153, %v1155
        %v1157 = vrot.slane %v1067, 7
        %v1158 = vsel %vm1101, %v1155, %v1157
        %v1159 = vrot.slane %v1068, 7
        %v1160 = vsel %vm1101, %v1157, %v1159
        %v1191 = vsel %vm1101, 0.0, %v1102
        %v1192 = vsel %vm975, 1, 0
        %v1193 = vsel %vm976, 1, 0
        %v1194 = vsel %vm977, 1, 0
        %v1195 = vsel %vm978, 1, 0
        %v1196 = vsel %vm979, 1, 0
        %v1197 = vsel %vm980, 1, 0
        %v1198 = vsel %vm981, 1, 0
        %v1199 = vsel %vm982, 1, 0
        %v1200 = vsel %vm983, 1, 0
        %v1201 = vsel %vm984, 1, 0
        %v1202 = vsel %vm985, 1, 0
        %v1203 = vsel %vm986, 1, 0
        %v1204 = vsel %vm987, 1, 0
        %v1205 = vsel %vm988, 1, 0
        %v1206 = vsel %vm989, 1, 0
        %v1207 = vsel %vm990, 1, 0
        %v1208 = vsel %vm991, 1, 0
        %v1209 = vsel %vm992, 1, 0
        %v1210 = vsel %vm993, 1, 0
        %v1211 = vsel %vm994, 1, 0
        %v1212 = vsel %vm995, 1, 0
        %v1213 = vsel %vm996, 1, 0
        %v1214 = vsel %vm997, 1, 0
        %v1215 = vsel %vm998, 1, 0
        %v1216 = vsel %vm999, 1, 0
        %v1217 = vsel %vm1000, 1, 0
        %v1218 = vsel %vm1001, 1, 0
        %v1219 = vsel %vm1002, 1, 0
        %v1220 = vsel %vm1003, 1, 0
        %v1221 = vsel %vm1004, 1, 0
        %v1222 = vsel %vm1005, 1, 0
        %v1223 = vsel %vm1006, 1, 0
        %vm1224 = vcmp.eq.s32.totalorder %v1192, 1
        %vm1225 = vcmp.eq.s32.totalorder %v1193, 1
        %vm1226 = vcmp.eq.s32.totalorder %v1194, 1
        %vm1227 = vcmp.eq.s32.totalorder %v1195, 1
        %vm1228 = vcmp.eq.s32.totalorder %v1196, 1
        %vm1229 = vcmp.eq.s32.totalorder %v1197, 1
        %vm1230 = vcmp.eq.s32.totalorder %v1198, 1
        %vm1231 = vcmp.eq.s32.totalorder %v1199, 1
        %vm1232 = vcmp.eq.s32.totalorder %v1200, 1
        %vm1233 = vcmp.eq.s32.totalorder %v1201, 1
        %vm1234 = vcmp.eq.s32.totalorder %v1202, 1
        %vm1235 = vcmp.eq.s32.totalorder %v1203, 1
        %vm1236 = vcmp.eq.s32.totalorder %v1204, 1
        %vm1237 = vcmp.eq.s32.totalorder %v1205, 1
        %vm1238 = vcmp.eq.s32.totalorder %v1206, 1
        %vm1239 = vcmp.eq.s32.totalorder %v1207, 1
        %vm1240 = vcmp.eq.s32.totalorder %v1208, 1
        %vm1241 = vcmp.eq.s32.totalorder %v1209, 1
        %vm1242 = vcmp.eq.s32.totalorder %v1210, 1
        %vm1243 = vcmp.eq.s32.totalorder %v1211, 1
        %vm1244 = vcmp.eq.s32.totalorder %v1212, 1
        %vm1245 = vcmp.eq.s32.totalorder %v1213, 1
        %vm1246 = vcmp.eq.s32.totalorder %v1214, 1
        %vm1247 = vcmp.eq.s32.totalorder %v1215, 1
        %vm1248 = vcmp.eq.s32.totalorder %v1216, 1
        %vm1249 = vcmp.eq.s32.totalorder %v1217, 1
        %vm1250 = vcmp.eq.s32.totalorder %v1218, 1
        %vm1251 = vcmp.eq.s32.totalorder %v1219, 1
        %vm1252 = vcmp.eq.s32.totalorder %v1220, 1
        %vm1253 = vcmp.eq.s32.totalorder %v1221, 1
        %vm1254 = vcmp.eq.s32.totalorder %v1222, 1
        %vm1255 = vcmp.eq.s32.totalorder %v1223, 1
        %v1256 = vsel %vm1226, 0.0, %v1191
        %v1257 = vsel %vm1227, 0.0, %v1104
        %v1258 = vsel %vm1228, 0.0, %v1106
        %v1259 = vsel %vm1229, 0.0, %v1108
        %v1260 = vsel %vm1230, 0.0, %v1110
        %v1261 = vsel %vm1231, 0.0, %v1112
        %v1262 = vsel %vm1232, 0.0, %v1114
        %v1263 = vsel %vm1233, 0.0, %v1116
        %v1264 = vsel %vm1234, 0.0, %v1118
        %v1265 = vsel %vm1235, 0.0, %v1120
        %v1266 = vsel %vm1236, 0.0, %v1122
        %v1267 = vsel %vm1237, 0.0, %v1124
        %v1268 = vsel %vm1238, 0.0, %v1126
        %v1269 = vsel %vm1239, 0.0, %v1128
        %v1270 = vsel %vm1240, 0.0, %v1130
        %v1271 = vsel %vm1241, 0.0, %v1132
        %v1272 = vsel %vm1242, 0.0, %v1134
        %v1273 = vsel %vm1243, 0.0, %v1136
        %v1274 = vsel %vm1244, 0.0, %v1138
        %v1275 = vsel %vm1245, 0.0, %v1140
        %v1276 = vsel %vm1246, 0.0, %v1142
        %v1277 = vsel %vm1247, 0.0, %v1144
        %v1278 = vsel %vm1248, 0.0, %v1146
        %v1279 = vsel %vm1249, 0.0, %v1148
        %v1280 = vsel %vm1250, 0.0, %v1150
        %v1281 = vsel %vm1251, 0.0, %v1152
        %v1282 = vsel %vm1252, 0.0, %v1154
        %v1283 = vsel %vm1253, 0.0, %v1156
        %v1284 = vsel %vm1254, 0.0, %v1158
        %v1285 = vsel %vm1255, 0.0, %v1160
        %vm1287 = vcmask 1046528
        %v1288 = vrot.slane %v1039, 1
        %v1289 = vrot.slane %v1040, 1
        %v1290 = vsel %vm1287, %v1288, %v1289
        %v1291 = vrot.slane %v1041, 1
        %v1292 = vsel %vm1287, %v1289, %v1291
        %v1293 = vrot.slane %v1042, 1
        %v1294 = vsel %vm1287, %v1291, %v1293
        %v1295 = vrot.slane %v1043, 1
        %v1296 = vsel %vm1287, %v1293, %v1295
        %v1297 = vrot.slane %v1044, 1
        %v1298 = vsel %vm1287, %v1295, %v1297
        %v1299 = vrot.slane %v1045, 1
        %v1300 = vsel %vm1287, %v1297, %v1299
        %v1301 = vrot.slane %v1046, 1
        %v1302 = vsel %vm1287, %v1299, %v1301
        %v1303 = vrot.slane %v1047, 1
        %v1304 = vsel %vm1287, %v1301, %v1303
        %v1305 = vrot.slane %v1048, 1
        %v1306 = vsel %vm1287, %v1303, %v1305
        %v1307 = vrot.slane %v1049, 1
        %v1308 = vsel %vm1287, %v1305, %v1307
        %v1309 = vrot.slane %v1050, 1
        %v1310 = vsel %vm1287, %v1307, %v1309
        %v1311 = vrot.slane %v1051, 1
        %v1312 = vsel %vm1287, %v1309, %v1311
        %v1313 = vrot.slane %v1052, 1
        %v1314 = vsel %vm1287, %v1311, %v1313
        %v1315 = vrot.slane %v1053, 1
        %v1316 = vsel %vm1287, %v1313, %v1315
        %v1317 = vrot.slane %v1054, 1
        %v1318 = vsel %vm1287, %v1315, %v1317
        %v1319 = vrot.slane %v1055, 1
        %v1320 = vsel %vm1287, %v1317, %v1319
        %v1321 = vrot.slane %v1056, 1
        %v1322 = vsel %vm1287, %v1319, %v1321
        %v1323 = vrot.slane %v1057, 1
        %v1324 = vsel %vm1287, %v1321, %v1323
        %v1325 = vrot.slane %v1058, 1
        %v1326 = vsel %vm1287, %v1323, %v1325
        %v1327 = vrot.slane %v1059, 1
        %v1328 = vsel %vm1287, %v1325, %v1327
        %v1329 = vrot.slane %v1060, 1
        %v1330 = vsel %vm1287, %v1327, %v1329
        %v1331 = vrot.slane %v1061, 1
        %v1332 = vsel %vm1287, %v1329, %v1331
        %v1333 = vrot.slane %v1062, 1
        %v1334 = vsel %vm1287, %v1331, %v1333
        %v1335 = vrot.slane %v1063, 1
        %v1336 = vsel %vm1287, %v1333, %v1335
        %v1337 = vrot.slane %v1064, 1
        %v1338 = vsel %vm1287, %v1335, %v1337
        %v1339 = vrot.slane %v1065, 1
        %v1340 = vsel %vm1287, %v1337, %v1339
        %v1341 = vrot.slane %v1066, 1
        %v1342 = vsel %vm1287, %v1339, %v1341
        %v1343 = vrot.slane %v1067, 1
        %v1344 = vsel %vm1287, %v1341, %v1343
        %v1345 = vrot.slane %v1068, 1
        %v1346 = vsel %vm1287, %v1343, %v1345
        %v1347 = vrot.slane %v1069, 1
        %v1348 = vsel %vm1287, %v1345, %v1347
        %v1380 = vsel %vm1287, 0.0, %v1288
        %v1381 = vsel %vm1007, 1, 0
        %v1382 = vsel %vm1008, 1, 0
        %v1383 = vsel %vm1009, 1, 0
        %v1384 = vsel %vm1010, 1, 0
        %v1385 = vsel %vm1011, 1, 0
        %v1386 = vsel %vm1012, 1, 0
        %v1387 = vsel %vm1013, 1, 0
        %v1388 = vsel %vm1014, 1, 0
        %v1389 = vsel %vm1015, 1, 0
        %v1390 = vsel %vm1016, 1, 0
        %v1391 = vsel %vm1017, 1, 0
        %v1392 = vsel %vm1018, 1, 0
        %v1393 = vsel %vm1019, 1, 0
        %v1394 = vsel %vm1020, 1, 0
        %v1395 = vsel %vm1021, 1, 0
        %v1396 = vsel %vm1022, 1, 0
        %v1397 = vsel %vm1023, 1, 0
        %v1398 = vsel %vm1024, 1, 0
        %v1399 = vsel %vm1025, 1, 0
        %v1400 = vsel %vm1026, 1, 0
        %v1401 = vsel %vm1027, 1, 0
        %v1402 = vsel %vm1028, 1, 0
        %v1403 = vsel %vm1029, 1, 0
        %v1404 = vsel %vm1030, 1, 0
        %v1405 = vsel %vm1031, 1, 0
        %v1406 = vsel %vm1032, 1, 0
        %v1407 = vsel %vm1033, 1, 0
        %v1408 = vsel %vm1034, 1, 0
        %v1409 = vsel %vm1035, 1, 0
        %v1410 = vsel %vm1036, 1, 0
        %v1411 = vsel %vm1037, 1, 0
        %v1412 = vsel %vm1038, 1, 0
        %vm1413 = vcmp.eq.s32.totalorder %v1381, 1
        %vm1414 = vcmp.eq.s32.totalorder %v1382, 1
        %vm1415 = vcmp.eq.s32.totalorder %v1383, 1
        %vm1416 = vcmp.eq.s32.totalorder %v1384, 1
        %vm1417 = vcmp.eq.s32.totalorder %v1385, 1
        %vm1418 = vcmp.eq.s32.totalorder %v1386, 1
        %vm1419 = vcmp.eq.s32.totalorder %v1387, 1
        %vm1420 = vcmp.eq.s32.totalorder %v1388, 1
        %vm1421 = vcmp.eq.s32.totalorder %v1389, 1
        %vm1422 = vcmp.eq.s32.totalorder %v1390, 1
        %vm1423 = vcmp.eq.s32.totalorder %v1391, 1
        %vm1424 = vcmp.eq.s32.totalorder %v1392, 1
        %vm1425 = vcmp.eq.s32.totalorder %v1393, 1
        %vm1426 = vcmp.eq.s32.totalorder %v1394, 1
        %vm1427 = vcmp.eq.s32.totalorder %v1395, 1
        %vm1428 = vcmp.eq.s32.totalorder %v1396, 1
        %vm1429 = vcmp.eq.s32.totalorder %v1397, 1
        %vm1430 = vcmp.eq.s32.totalorder %v1398, 1
        %vm1431 = vcmp.eq.s32.totalorder %v1399, 1
        %vm1432 = vcmp.eq.s32.totalorder %v1400, 1
        %vm1433 = vcmp.eq.s32.totalorder %v1401, 1
        %vm1434 = vcmp.eq.s32.totalorder %v1402, 1
        %vm1435 = vcmp.eq.s32.totalorder %v1403, 1
        %vm1436 = vcmp.eq.s32.totalorder %v1404, 1
        %vm1437 = vcmp.eq.s32.totalorder %v1405, 1
        %vm1438 = vcmp.eq.s32.totalorder %v1406, 1
        %vm1439 = vcmp.eq.s32.totalorder %v1407, 1
        %vm1440 = vcmp.eq.s32.totalorder %v1408, 1
        %vm1441 = vcmp.eq.s32.totalorder %v1409, 1
        %vm1442 = vcmp.eq.s32.totalorder %v1410, 1
        %vm1443 = vcmp.eq.s32.totalorder %v1411, 1
        %vm1444 = vcmp.eq.s32.totalorder %v1412, 1
        %v1445 = vsel %vm1414, 0.0, %v1380
        %v1446 = vsel %vm1415, 0.0, %v1290
        %v1447 = vsel %vm1416, 0.0, %v1292
        %v1448 = vsel %vm1417, 0.0, %v1294
        %v1449 = vsel %vm1418, 0.0, %v1296
        %v1450 = vsel %vm1419, 0.0, %v1298
        %v1451 = vsel %vm1420, 0.0, %v1300
        %v1452 = vsel %vm1421, 0.0, %v1302
        %v1453 = vsel %vm1422, 0.0, %v1304
        %v1454 = vsel %vm1423, 0.0, %v1306
        %v1455 = vsel %vm1424, 0.0, %v1308
        %v1456 = vsel %vm1425, 0.0, %v1310
        %v1457 = vsel %vm1426, 0.0, %v1312
        %v1458 = vsel %vm1427, 0.0, %v1314
        %v1459 = vsel %vm1428, 0.0, %v1316
        %v1460 = vsel %vm1429, 0.0, %v1318
        %v1461 = vsel %vm1430, 0.0, %v1320
        %v1462 = vsel %vm1431, 0.0, %v1322
        %v1463 = vsel %vm1432, 0.0, %v1324
        %v1464 = vsel %vm1433, 0.0, %v1326
        %v1465 = vsel %vm1434, 0.0, %v1328
        %v1466 = vsel %vm1435, 0.0, %v1330
        %v1467 = vsel %vm1436, 0.0, %v1332
        %v1468 = vsel %vm1437, 0.0, %v1334
        %v1469 = vsel %vm1438, 0.0, %v1336
        %v1470 = vsel %vm1439, 0.0, %v1338
        %v1471 = vsel %vm1440, 0.0, %v1340
        %v1472 = vsel %vm1441, 0.0, %v1342
        %v1473 = vsel %vm1442, 0.0, %v1344
        %v1474 = vsel %vm1443, 0.0, %v1346
        %v1475 = vsel %vm1444, 0.0, %v1348
        %v1477 = vrot.slane %v1069, 7
        %v1478 = vsel %vm1101, %v1159, %v1477
        %v1479 = vrot.slane %v1070, 7
        %v1480 = vsel %vm1101, %v1477, %v1479
        %v1483 = vsel %vm1224, 0.0, %v1191
        %v1484 = vsel %vm1225, 0.0, %v1104
        %v1485 = vsel %vm1226, 0.0, %v1106
        %v1486 = vsel %vm1227, 0.0, %v1108
        %v1487 = vsel %vm1228, 0.0, %v1110
        %v1488 = vsel %vm1229, 0.0, %v1112
        %v1489 = vsel %vm1230, 0.0, %v1114
        %v1490 = vsel %vm1231, 0.0, %v1116
        %v1491 = vsel %vm1232, 0.0, %v1118
        %v1492 = vsel %vm1233, 0.0, %v1120
        %v1493 = vsel %vm1234, 0.0, %v1122
        %v1494 = vsel %vm1235, 0.0, %v1124
        %v1495 = vsel %vm1236, 0.0, %v1126
        %v1496 = vsel %vm1237, 0.0, %v1128
        %v1497 = vsel %vm1238, 0.0, %v1130
        %v1498 = vsel %vm1239, 0.0, %v1132
        %v1499 = vsel %vm1240, 0.0, %v1134
        %v1500 = vsel %vm1241, 0.0, %v1136
        %v1501 = vsel %vm1242, 0.0, %v1138
        %v1502 = vsel %vm1243, 0.0, %v1140
        %v1503 = vsel %vm1244, 0.0, %v1142
        %v1504 = vsel %vm1245, 0.0, %v1144
        %v1505 = vsel %vm1246, 0.0, %v1146
        %v1506 = vsel %vm1247, 0.0, %v1148
        %v1507 = vsel %vm1248, 0.0, %v1150
        %v1508 = vsel %vm1249, 0.0, %v1152
        %v1509 = vsel %vm1250, 0.0, %v1154
        %v1510 = vsel %vm1251, 0.0, %v1156
        %v1511 = vsel %vm1252, 0.0, %v1158
        %v1512 = vsel %vm1253, 0.0, %v1160
        %v1513 = vsel %vm1254, 0.0, %v1478
        %v1514 = vsel %vm1255, 0.0, %v1480
        %v1515 = vrot.slane %v1070, 1
        %v1516 = vsel %vm1287, %v1347, %v1515
        %v1519 = vsel %vm1287, %v1515, 0.0
        %v1520 = vsel %vm1413, 0.0, %v1290
        %v1521 = vsel %vm1414, 0.0, %v1292
        %v1522 = vsel %vm1415, 0.0, %v1294
        %v1523 = vsel %vm1416, 0.0, %v1296
        %v1524 = vsel %vm1417, 0.0, %v1298
        %v1525 = vsel %vm1418, 0.0, %v1300
        %v1526 = vsel %vm1419, 0.0, %v1302
        %v1527 = vsel %vm1420, 0.0, %v1304
        %v1528 = vsel %vm1421, 0.0, %v1306
        %v1529 = vsel %vm1422, 0.0, %v1308
        %v1530 = vsel %vm1423, 0.0, %v1310
        %v1531 = vsel %vm1424, 0.0, %v1312
        %v1532 = vsel %vm1425, 0.0, %v1314
        %v1533 = vsel %vm1426, 0.0, %v1316
        %v1534 = vsel %vm1427, 0.0, %v1318
        %v1535 = vsel %vm1428, 0.0, %v1320
        %v1536 = vsel %vm1429, 0.0, %v1322
        %v1537 = vsel %vm1430, 0.0, %v1324
        %v1538 = vsel %vm1431, 0.0, %v1326
        %v1539 = vsel %vm1432, 0.0, %v1328
        %v1540 = vsel %vm1433, 0.0, %v1330
        %v1541 = vsel %vm1434, 0.0, %v1332
        %v1542 = vsel %vm1435, 0.0, %v1334
        %v1543 = vsel %vm1436, 0.0, %v1336
        %v1544 = vsel %vm1437, 0.0, %v1338
        %v1545 = vsel %vm1438, 0.0, %v1340
        %v1546 = vsel %vm1439, 0.0, %v1342
        %v1547 = vsel %vm1440, 0.0, %v1344
        %v1548 = vsel %vm1441, 0.0, %v1346
        %v1549 = vsel %vm1442, 0.0, %v1348
        %v1550 = vsel %vm1443, 0.0, %v1516
        %v1551 = vsel %vm1444, 0.0, %v1519
        %v1553 = vsel %vm1101, %v1479, 0.0
        %v1554 = vsel %vm1224, 0.0, %v1106
        %v1555 = vsel %vm1225, 0.0, %v1108
        %v1556 = vsel %vm1226, 0.0, %v1110
        %v1557 = vsel %vm1227, 0.0, %v1112
        %v1558 = vsel %vm1228, 0.0, %v1114
        %v1559 = vsel %vm1229, 0.0, %v1116
        %v1560 = vsel %vm1230, 0.0, %v1118
        %v1561 = vsel %vm1231, 0.0, %v1120
        %v1562 = vsel %vm1232, 0.0, %v1122
        %v1563 = vsel %vm1233, 0.0, %v1124
        %v1564 = vsel %vm1234, 0.0, %v1126
        %v1565 = vsel %vm1235, 0.0, %v1128
        %v1566 = vsel %vm1236, 0.0, %v1130
        %v1567 = vsel %vm1237, 0.0, %v1132
        %v1568 = vsel %vm1238, 0.0, %v1134
        %v1569 = vsel %vm1239, 0.0, %v1136
        %v1570 = vsel %vm1240, 0.0, %v1138
        %v1571 = vsel %vm1241, 0.0, %v1140
        %v1572 = vsel %vm1242, 0.0, %v1142
        %v1573 = vsel %vm1243, 0.0, %v1144
        %v1574 = vsel %vm1244, 0.0, %v1146
        %v1575 = vsel %vm1245, 0.0, %v1148
        %v1576 = vsel %vm1246, 0.0, %v1150
        %v1577 = vsel %vm1247, 0.0, %v1152
        %v1578 = vsel %vm1248, 0.0, %v1154
        %v1579 = vsel %vm1249, 0.0, %v1156
        %v1580 = vsel %vm1250, 0.0, %v1158
        %v1581 = vsel %vm1251, 0.0, %v1160
        %v1582 = vsel %vm1252, 0.0, %v1478
        %v1583 = vsel %vm1253, 0.0, %v1480
        %v1584 = vsel %vm1254, 0.0, %v1553
        %v1585 = vsel %vm1413, 0.0, %v1294
        %v1586 = vsel %vm1414, 0.0, %v1296
        %v1587 = vsel %vm1415, 0.0, %v1298
        %v1588 = vsel %vm1416, 0.0, %v1300
        %v1589 = vsel %vm1417, 0.0, %v1302
        %v1590 = vsel %vm1418, 0.0, %v1304
        %v1591 = vsel %vm1419, 0.0, %v1306
        %v1592 = vsel %vm1420, 0.0, %v1308
        %v1593 = vsel %vm1421, 0.0, %v1310
        %v1594 = vsel %vm1422, 0.0, %v1312
        %v1595 = vsel %vm1423, 0.0, %v1314
        %v1596 = vsel %vm1424, 0.0, %v1316
        %v1597 = vsel %vm1425, 0.0, %v1318
        %v1598 = vsel %vm1426, 0.0, %v1320
        %v1599 = vsel %vm1427, 0.0, %v1322
        %v1600 = vsel %vm1428, 0.0, %v1324
        %v1601 = vsel %vm1429, 0.0, %v1326
        %v1602 = vsel %vm1430, 0.0, %v1328
        %v1603 = vsel %vm1431, 0.0, %v1330
        %v1604 = vsel %vm1432, 0.0, %v1332
        %v1605 = vsel %vm1433, 0.0, %v1334
        %v1606 = vsel %vm1434, 0.0, %v1336
        %v1607 = vsel %vm1435, 0.0, %v1338
        %v1608 = vsel %vm1436, 0.0, %v1340
        %v1609 = vsel %vm1437, 0.0, %v1342
        %v1610 = vsel %vm1438, 0.0, %v1344
        %v1611 = vsel %vm1439, 0.0, %v1346
        %v1612 = vsel %vm1440, 0.0, %v1348
        %v1613 = vsel %vm1441, 0.0, %v1516
        %v1614 = vsel %vm1442, 0.0, %v1519
        %v1615 = vld [vmem:[%s1] sm:$0x1]
        %v1616 = vlaneseq
        %v1617 = vshrl.u32 %v1616, 7
        %v1618 = vsub.s32 0, %v1617
        %v1619 = vrot.slane %v1615, %v1618
        %v1620 = vmul.f32 %v1619, 0.0
        %v1621 = vmul.f32 %v1256, %v1619
        %v1622 = vmul.f32 %v1257, %v1619
        %v1623 = vmul.f32 %v1258, %v1619
        %v1624 = vmul.f32 %v1259, %v1619
        %v1625 = vmul.f32 %v1260, %v1619
        %v1626 = vmul.f32 %v1261, %v1619
        %v1627 = vmul.f32 %v1262, %v1619
        %v1628 = vmul.f32 %v1263, %v1619
        %v1629 = vmul.f32 %v1264, %v1619
        %v1630 = vmul.f32 %v1265, %v1619
        %v1631 = vmul.f32 %v1266, %v1619
        %v1632 = vmul.f32 %v1267, %v1619
        %v1633 = vmul.f32 %v1268, %v1619
        %v1634 = vmul.f32 %v1269, %v1619
        %v1635 = vmul.f32 %v1270, %v1619
        %v1636 = vmul.f32 %v1271, %v1619
        %v1637 = vmul.f32 %v1272, %v1619
        %v1638 = vmul.f32 %v1273, %v1619
        %v1639 = vmul.f32 %v1274, %v1619
        %v1640 = vmul.f32 %v1275, %v1619
        %v1641 = vmul.f32 %v1276, %v1619
        %v1642 = vmul.f32 %v1277, %v1619
        %v1643 = vmul.f32 %v1278, %v1619
        %v1644 = vmul.f32 %v1279, %v1619
        %v1645 = vmul.f32 %v1280, %v1619
        %v1646 = vmul.f32 %v1281, %v1619
        %v1647 = vmul.f32 %v1282, %v1619
        %v1648 = vmul.f32 %v1283, %v1619
        %v1649 = vmul.f32 %v1284, %v1619
        %v1650 = vmul.f32 %v1285, %v1619
        %v1651 = vadd.f32 %v1620, 0.0
        %v1652 = vadd.f32 %v1621, 0.0
        %v1653 = vadd.f32 %v1622, 0.0
        %v1654 = vadd.f32 %v1623, 0.0
        %v1655 = vadd.f32 %v1624, 0.0
        %v1656 = vadd.f32 %v1625, 0.0
        %v1657 = vadd.f32 %v1626, 0.0
        %v1658 = vadd.f32 %v1627, 0.0
        %v1659 = vadd.f32 %v1628, 0.0
        %v1660 = vadd.f32 %v1629, 0.0
        %v1661 = vadd.f32 %v1630, 0.0
        %v1662 = vadd.f32 %v1631, 0.0
        %v1663 = vadd.f32 %v1632, 0.0
        %v1664 = vadd.f32 %v1633, 0.0
        %v1665 = vadd.f32 %v1634, 0.0
        %v1666 = vadd.f32 %v1635, 0.0
        %v1667 = vadd.f32 %v1636, 0.0
        %v1668 = vadd.f32 %v1637, 0.0
        %v1669 = vadd.f32 %v1638, 0.0
        %v1670 = vadd.f32 %v1639, 0.0
        %v1671 = vadd.f32 %v1640, 0.0
        %v1672 = vadd.f32 %v1641, 0.0
        %v1673 = vadd.f32 %v1642, 0.0
        %v1674 = vadd.f32 %v1643, 0.0
        %v1675 = vadd.f32 %v1644, 0.0
        %v1676 = vadd.f32 %v1645, 0.0
        %v1677 = vadd.f32 %v1646, 0.0
        %v1678 = vadd.f32 %v1647, 0.0
        %v1679 = vadd.f32 %v1648, 0.0
        %v1680 = vadd.f32 %v1649, 0.0
        %v1681 = vadd.f32 %v1650, 0.0
        %v1682 = vld [vmem:[%s1 + $0x1] sm:$0x1]
        %v1683 = vlaneseq
        %v1684 = vshrl.u32 %v1683, 7
        %v1685 = vsub.s32 0, %v1684
        %v1686 = vrot.slane %v1682, %v1685
        %v1687 = vmul.f32 %v1686, 0.0
        %v1688 = vmul.f32 %v1039, %v1686
        %v1689 = vmul.f32 %v1040, %v1686
        %v1690 = vmul.f32 %v1041, %v1686
        %v1691 = vmul.f32 %v1042, %v1686
        %v1692 = vmul.f32 %v1043, %v1686
        %v1693 = vmul.f32 %v1044, %v1686
        %v1694 = vmul.f32 %v1045, %v1686
        %v1695 = vmul.f32 %v1046, %v1686
        %v1696 = vmul.f32 %v1047, %v1686
        %v1697 = vmul.f32 %v1048, %v1686
        %v1698 = vmul.f32 %v1049, %v1686
        %v1699 = vmul.f32 %v1050, %v1686
        %v1700 = vmul.f32 %v1051, %v1686
        %v1701 = vmul.f32 %v1052, %v1686
        %v1702 = vmul.f32 %v1053, %v1686
        %v1703 = vmul.f32 %v1054, %v1686
        %v1704 = vmul.f32 %v1055, %v1686
        %v1705 = vmul.f32 %v1056, %v1686
        %v1706 = vmul.f32 %v1057, %v1686
        %v1707 = vmul.f32 %v1058, %v1686
        %v1708 = vmul.f32 %v1059, %v1686
        %v1709 = vmul.f32 %v1060, %v1686
        %v1710 = vmul.f32 %v1061, %v1686
        %v1711 = vmul.f32 %v1062, %v1686
        %v1712 = vmul.f32 %v1063, %v1686
        %v1713 = vmul.f32 %v1064, %v1686
        %v1714 = vmul.f32 %v1065, %v1686
        %v1715 = vmul.f32 %v1066, %v1686
        %v1716 = vmul.f32 %v1067, %v1686
        %v1717 = vmul.f32 %v1068, %v1686
        %v1718 = vadd.f32 %v1651, %v1687
        %v1719 = vadd.f32 %v1652, %v1688
        %v1720 = vadd.f32 %v1653, %v1689
        %v1721 = vadd.f32 %v1654, %v1690
        %v1722 = vadd.f32 %v1655, %v1691
        %v1723 = vadd.f32 %v1656, %v1692
        %v1724 = vadd.f32 %v1657, %v1693
        %v1725 = vadd.f32 %v1658, %v1694
        %v1726 = vadd.f32 %v1659, %v1695
        %v1727 = vadd.f32 %v1660, %v1696
        %v1728 = vadd.f32 %v1661, %v1697
        %v1729 = vadd.f32 %v1662, %v1698
        %v1730 = vadd.f32 %v1663, %v1699
        %v1731 = vadd.f32 %v1664, %v1700
        %v1732 = vadd.f32 %v1665, %v1701
        %v1733 = vadd.f32 %v1666, %v1702
        %v1734 = vadd.f32 %v1667, %v1703
        %v1735 = vadd.f32 %v1668, %v1704
        %v1736 = vadd.f32 %v1669, %v1705
        %v1737 = vadd.f32 %v1670, %v1706
        %v1738 = vadd.f32 %v1671, %v1707
        %v1739 = vadd.f32 %v1672, %v1708
        %v1740 = vadd.f32 %v1673, %v1709
        %v1741 = vadd.f32 %v1674, %v1710
        %v1742 = vadd.f32 %v1675, %v1711
        %v1743 = vadd.f32 %v1676, %v1712
        %v1744 = vadd.f32 %v1677, %v1713
        %v1745 = vadd.f32 %v1678, %v1714
        %v1746 = vadd.f32 %v1679, %v1715
        %v1747 = vadd.f32 %v1680, %v1716
        %v1748 = vadd.f32 %v1681, %v1717
        %v1749 = vld [vmem:[%s1 + $0x2] sm:$0x1]
        %v1750 = vlaneseq
        %v1751 = vshrl.u32 %v1750, 7
        %v1752 = vsub.s32 0, %v1751
        %v1753 = vrot.slane %v1749, %v1752
        %v1754 = vmul.f32 %v1753, 0.0
        %v1755 = vmul.f32 %v1445, %v1753
        %v1756 = vmul.f32 %v1446, %v1753
        %v1757 = vmul.f32 %v1447, %v1753
        %v1758 = vmul.f32 %v1448, %v1753
        %v1759 = vmul.f32 %v1449, %v1753
        %v1760 = vmul.f32 %v1450, %v1753
        %v1761 = vmul.f32 %v1451, %v1753
        %v1762 = vmul.f32 %v1452, %v1753
        %v1763 = vmul.f32 %v1453, %v1753
        %v1764 = vmul.f32 %v1454, %v1753
        %v1765 = vmul.f32 %v1455, %v1753
        %v1766 = vmul.f32 %v1456, %v1753
        %v1767 = vmul.f32 %v1457, %v1753
        %v1768 = vmul.f32 %v1458, %v1753
        %v1769 = vmul.f32 %v1459, %v1753
        %v1770 = vmul.f32 %v1460, %v1753
        %v1771 = vmul.f32 %v1461, %v1753
        %v1772 = vmul.f32 %v1462, %v1753
        %v1773 = vmul.f32 %v1463, %v1753
        %v1774 = vmul.f32 %v1464, %v1753
        %v1775 = vmul.f32 %v1465, %v1753
        %v1776 = vmul.f32 %v1466, %v1753
        %v1777 = vmul.f32 %v1467, %v1753
        %v1778 = vmul.f32 %v1468, %v1753
        %v1779 = vmul.f32 %v1469, %v1753
        %v1780 = vmul.f32 %v1470, %v1753
        %v1781 = vmul.f32 %v1471, %v1753
        %v1782 = vmul.f32 %v1472, %v1753
        %v1783 = vmul.f32 %v1473, %v1753
        %v1784 = vmul.f32 %v1474, %v1753
        %v1785 = vmul.f32 %v1475, %v1753
        %v1786 = vadd.f32 %v1718, %v1754
        %v1787 = vadd.f32 %v1718, %v1755
        %v1788 = vadd.f32 %v1719, %v1756
        %v1789 = vadd.f32 %v1720, %v1757
        %v1790 = vadd.f32 %v1721, %v1758
        %v1791 = vadd.f32 %v1722, %v1759
        %v1792 = vadd.f32 %v1723, %v1760
        %v1793 = vadd.f32 %v1724, %v1761
        %v1794 = vadd.f32 %v1725, %v1762
        %v1795 = vadd.f32 %v1726, %v1763
        %v1796 = vadd.f32 %v1727, %v1764
        %v1797 = vadd.f32 %v1728, %v1765
        %v1798 = vadd.f32 %v1729, %v1766
        %v1799 = vadd.f32 %v1730, %v1767
        %v1800 = vadd.f32 %v1731, %v1768
        %v1801 = vadd.f32 %v1732, %v1769
        %v1802 = vadd.f32 %v1733, %v1770
        %v1803 = vadd.f32 %v1734, %v1771
        %v1804 = vadd.f32 %v1735, %v1772
        %v1805 = vadd.f32 %v1736, %v1773
        %v1806 = vadd.f32 %v1737, %v1774
        %v1807 = vadd.f32 %v1738, %v1775
        %v1808 = vadd.f32 %v1739, %v1776
        %v1809 = vadd.f32 %v1740, %v1777
        %v1810 = vadd.f32 %v1741, %v1778
        %v1811 = vadd.f32 %v1742, %v1779
        %v1812 = vadd.f32 %v1743, %v1780
        %v1813 = vadd.f32 %v1744, %v1781
        %v1814 = vadd.f32 %v1745, %v1782
        %v1815 = vadd.f32 %v1746, %v1783
        %v1816 = vadd.f32 %v1747, %v1784
        %v1817 = vadd.f32 %v1748, %v1785
        %v1818 = vld [vmem:[%s1 + $0x3] sm:$0x1]
        %v1819 = vlaneseq
        %v1820 = vshrl.u32 %v1819, 7
        %v1821 = vsub.s32 0, %v1820
        %v1822 = vrot.slane %v1818, %v1821
        %v1823 = vmul.f32 %v1483, %v1822
        %v1824 = vmul.f32 %v1484, %v1822
        %v1825 = vmul.f32 %v1485, %v1822
        %v1826 = vmul.f32 %v1486, %v1822
        %v1827 = vmul.f32 %v1487, %v1822
        %v1828 = vmul.f32 %v1488, %v1822
        %v1829 = vmul.f32 %v1489, %v1822
        %v1830 = vmul.f32 %v1490, %v1822
        %v1831 = vmul.f32 %v1491, %v1822
        %v1832 = vmul.f32 %v1492, %v1822
        %v1833 = vmul.f32 %v1493, %v1822
        %v1834 = vmul.f32 %v1494, %v1822
        %v1835 = vmul.f32 %v1495, %v1822
        %v1836 = vmul.f32 %v1496, %v1822
        %v1837 = vmul.f32 %v1497, %v1822
        %v1838 = vmul.f32 %v1498, %v1822
        %v1839 = vmul.f32 %v1499, %v1822
        %v1840 = vmul.f32 %v1500, %v1822
        %v1841 = vmul.f32 %v1501, %v1822
        %v1842 = vmul.f32 %v1502, %v1822
        %v1843 = vmul.f32 %v1503, %v1822
        %v1844 = vmul.f32 %v1504, %v1822
        %v1845 = vmul.f32 %v1505, %v1822
        %v1846 = vmul.f32 %v1506, %v1822
        %v1847 = vmul.f32 %v1507, %v1822
        %v1848 = vmul.f32 %v1508, %v1822
        %v1849 = vmul.f32 %v1509, %v1822
        %v1850 = vmul.f32 %v1510, %v1822
        %v1851 = vmul.f32 %v1511, %v1822
        %v1852 = vmul.f32 %v1512, %v1822
        %v1853 = vmul.f32 %v1513, %v1822
        %v1854 = vmul.f32 %v1514, %v1822
        %v1855 = vadd.f32 %v1786, %v1823
        %v1856 = vadd.f32 %v1787, %v1824
        %v1857 = vadd.f32 %v1788, %v1825
        %v1858 = vadd.f32 %v1789, %v1826
        %v1859 = vadd.f32 %v1790, %v1827
        %v1860 = vadd.f32 %v1791, %v1828
        %v1861 = vadd.f32 %v1792, %v1829
        %v1862 = vadd.f32 %v1793, %v1830
        %v1863 = vadd.f32 %v1794, %v1831
        %v1864 = vadd.f32 %v1795, %v1832
        %v1865 = vadd.f32 %v1796, %v1833
        %v1866 = vadd.f32 %v1797, %v1834
        %v1867 = vadd.f32 %v1798, %v1835
        %v1868 = vadd.f32 %v1799, %v1836
        %v1869 = vadd.f32 %v1800, %v1837
        %v1870 = vadd.f32 %v1801, %v1838
        %v1871 = vadd.f32 %v1802, %v1839
        %v1872 = vadd.f32 %v1803, %v1840
        %v1873 = vadd.f32 %v1804, %v1841
        %v1874 = vadd.f32 %v1805, %v1842
        %v1875 = vadd.f32 %v1806, %v1843
        %v1876 = vadd.f32 %v1807, %v1844
        %v1877 = vadd.f32 %v1808, %v1845
        %v1878 = vadd.f32 %v1809, %v1846
        %v1879 = vadd.f32 %v1810, %v1847
        %v1880 = vadd.f32 %v1811, %v1848
        %v1881 = vadd.f32 %v1812, %v1849
        %v1882 = vadd.f32 %v1813, %v1850
        %v1883 = vadd.f32 %v1814, %v1851
        %v1884 = vadd.f32 %v1815, %v1852
        %v1885 = vadd.f32 %v1816, %v1853
        %v1886 = vadd.f32 %v1817, %v1854
        %v1887 = vld [vmem:[%s1 + $0x4] sm:$0x1]
        %v1888 = vlaneseq
        %v1889 = vshrl.u32 %v1888, 7
        %v1890 = vsub.s32 0, %v1889
        %v1891 = vrot.slane %v1887, %v1890
        %v1892 = vmul.f32 %v1039, %v1891
        %v1893 = vmul.f32 %v1040, %v1891
        %v1894 = vmul.f32 %v1041, %v1891
        %v1895 = vmul.f32 %v1042, %v1891
        %v1896 = vmul.f32 %v1043, %v1891
        %v1897 = vmul.f32 %v1044, %v1891
        %v1898 = vmul.f32 %v1045, %v1891
        %v1899 = vmul.f32 %v1046, %v1891
        %v1900 = vmul.f32 %v1047, %v1891
        %v1901 = vmul.f32 %v1048, %v1891
        %v1902 = vmul.f32 %v1049, %v1891
        %v1903 = vmul.f32 %v1050, %v1891
        %v1904 = vmul.f32 %v1051, %v1891
        %v1905 = vmul.f32 %v1052, %v1891
        %v1906 = vmul.f32 %v1053, %v1891
        %v1907 = vmul.f32 %v1054, %v1891
        %v1908 = vmul.f32 %v1055, %v1891
        %v1909 = vmul.f32 %v1056, %v1891
        %v1910 = vmul.f32 %v1057, %v1891
        %v1911 = vmul.f32 %v1058, %v1891
        %v1912 = vmul.f32 %v1059, %v1891
        %v1913 = vmul.f32 %v1060, %v1891
        %v1914 = vmul.f32 %v1061, %v1891
        %v1915 = vmul.f32 %v1062, %v1891
        %v1916 = vmul.f32 %v1063, %v1891
        %v1917 = vmul.f32 %v1064, %v1891
        %v1918 = vmul.f32 %v1065, %v1891
        %v1919 = vmul.f32 %v1066, %v1891
        %v1920 = vmul.f32 %v1067, %v1891
        %v1921 = vmul.f32 %v1068, %v1891
        %v1922 = vmul.f32 %v1069, %v1891
        %v1923 = vmul.f32 %v1070, %v1891
        %v1924 = vadd.f32 %v1855, %v1892
        %v1925 = vadd.f32 %v1856, %v1893
        %v1926 = vadd.f32 %v1857, %v1894
        %v1927 = vadd.f32 %v1858, %v1895
        %v1928 = vadd.f32 %v1859, %v1896
        %v1929 = vadd.f32 %v1860, %v1897
        %v1930 = vadd.f32 %v1861, %v1898
        %v1931 = vadd.f32 %v1862, %v1899
        %v1932 = vadd.f32 %v1863, %v1900
        %v1933 = vadd.f32 %v1864, %v1901
        %v1934 = vadd.f32 %v1865, %v1902
        %v1935 = vadd.f32 %v1866, %v1903
        %v1936 = vadd.f32 %v1867, %v1904
        %v1937 = vadd.f32 %v1868, %v1905
        %v1938 = vadd.f32 %v1869, %v1906
        %v1939 = vadd.f32 %v1870, %v1907
        %v1940 = vadd.f32 %v1871, %v1908
        %v1941 = vadd.f32 %v1872, %v1909
        %v1942 = vadd.f32 %v1873, %v1910
        %v1943 = vadd.f32 %v1874, %v1911
        %v1944 = vadd.f32 %v1875, %v1912
        %v1945 = vadd.f32 %v1876, %v1913
        %v1946 = vadd.f32 %v1877, %v1914
        %v1947 = vadd.f32 %v1878, %v1915
        %v1948 = vadd.f32 %v1879, %v1916
        %v1949 = vadd.f32 %v1880, %v1917
        %v1950 = vadd.f32 %v1881, %v1918
        %v1951 = vadd.f32 %v1882, %v1919
        %v1952 = vadd.f32 %v1883, %v1920
        %v1953 = vadd.f32 %v1884, %v1921
        %v1954 = vadd.f32 %v1885, %v1922
        %v1955 = vadd.f32 %v1886, %v1923
        %v1956 = vld [vmem:[%s1 + $0x5] sm:$0x1]
        %v1957 = vlaneseq
        %v1958 = vshrl.u32 %v1957, 7
        %v1959 = vsub.s32 0, %v1958
        %v1960 = vrot.slane %v1956, %v1959
        %v1961 = vmul.f32 %v1520, %v1960
        %v1962 = vmul.f32 %v1521, %v1960
        %v1963 = vmul.f32 %v1522, %v1960
        %v1964 = vmul.f32 %v1523, %v1960
        %v1965 = vmul.f32 %v1524, %v1960
        %v1966 = vmul.f32 %v1525, %v1960
        %v1967 = vmul.f32 %v1526, %v1960
        %v1968 = vmul.f32 %v1527, %v1960
        %v1969 = vmul.f32 %v1528, %v1960
        %v1970 = vmul.f32 %v1529, %v1960
        %v1971 = vmul.f32 %v1530, %v1960
        %v1972 = vmul.f32 %v1531, %v1960
        %v1973 = vmul.f32 %v1532, %v1960
        %v1974 = vmul.f32 %v1533, %v1960
        %v1975 = vmul.f32 %v1534, %v1960
        %v1976 = vmul.f32 %v1535, %v1960
        %v1977 = vmul.f32 %v1536, %v1960
        %v1978 = vmul.f32 %v1537, %v1960
        %v1979 = vmul.f32 %v1538, %v1960
        %v1980 = vmul.f32 %v1539, %v1960
        %v1981 = vmul.f32 %v1540, %v1960
        %v1982 = vmul.f32 %v1541, %v1960
        %v1983 = vmul.f32 %v1542, %v1960
        %v1984 = vmul.f32 %v1543, %v1960
        %v1985 = vmul.f32 %v1544, %v1960
        %v1986 = vmul.f32 %v1545, %v1960
        %v1987 = vmul.f32 %v1546, %v1960
        %v1988 = vmul.f32 %v1547, %v1960
        %v1989 = vmul.f32 %v1548, %v1960
        %v1990 = vmul.f32 %v1549, %v1960
        %v1991 = vmul.f32 %v1550, %v1960
        %v1992 = vmul.f32 %v1551, %v1960
        %v1993 = vadd.f32 %v1924, %v1961
        %v1994 = vadd.f32 %v1925, %v1962
        %v1995 = vadd.f32 %v1926, %v1963
        %v1996 = vadd.f32 %v1927, %v1964
        %v1997 = vadd.f32 %v1928, %v1965
        %v1998 = vadd.f32 %v1929, %v1966
        %v1999 = vadd.f32 %v1930, %v1967
        %v2000 = vadd.f32 %v1931, %v1968
        %v2001 = vadd.f32 %v1932, %v1969
        %v2002 = vadd.f32 %v1933, %v1970
        %v2003 = vadd.f32 %v1934, %v1971
        %v2004 = vadd.f32 %v1935, %v1972
        %v2005 = vadd.f32 %v1936, %v1973
        %v2006 = vadd.f32 %v1937, %v1974
        %v2007 = vadd.f32 %v1938, %v1975
        %v2008 = vadd.f32 %v1939, %v1976
        %v2009 = vadd.f32 %v1940, %v1977
        %v2010 = vadd.f32 %v1941, %v1978
        %v2011 = vadd.f32 %v1942, %v1979
        %v2012 = vadd.f32 %v1943, %v1980
        %v2013 = vadd.f32 %v1944, %v1981
        %v2014 = vadd.f32 %v1945, %v1982
        %v2015 = vadd.f32 %v1946, %v1983
        %v2016 = vadd.f32 %v1947, %v1984
        %v2017 = vadd.f32 %v1948, %v1985
        %v2018 = vadd.f32 %v1949, %v1986
        %v2019 = vadd.f32 %v1950, %v1987
        %v2020 = vadd.f32 %v1951, %v1988
        %v2021 = vadd.f32 %v1952, %v1989
        %v2022 = vadd.f32 %v1953, %v1990
        %v2023 = vadd.f32 %v1954, %v1991
        %v2024 = vadd.f32 %v1955, %v1992
        %v2025 = vld [vmem:[%s1 + $0x6] sm:$0x1]
        %v2026 = vlaneseq
        %v2027 = vshrl.u32 %v2026, 7
        %v2028 = vsub.s32 0, %v2027
        %v2029 = vrot.slane %v2025, %v2028
        %v2030 = vmul.f32 %v1554, %v2029
        %v2031 = vmul.f32 %v1555, %v2029
        %v2032 = vmul.f32 %v1556, %v2029
        %v2033 = vmul.f32 %v1557, %v2029
        %v2034 = vmul.f32 %v1558, %v2029
        %v2035 = vmul.f32 %v1559, %v2029
        %v2036 = vmul.f32 %v1560, %v2029
        %v2037 = vmul.f32 %v1561, %v2029
        %v2038 = vmul.f32 %v1562, %v2029
        %v2039 = vmul.f32 %v1563, %v2029
        %v2040 = vmul.f32 %v1564, %v2029
        %v2041 = vmul.f32 %v1565, %v2029
        %v2042 = vmul.f32 %v1566, %v2029
        %v2043 = vmul.f32 %v1567, %v2029
        %v2044 = vmul.f32 %v1568, %v2029
        %v2045 = vmul.f32 %v1569, %v2029
        %v2046 = vmul.f32 %v1570, %v2029
        %v2047 = vmul.f32 %v1571, %v2029
        %v2048 = vmul.f32 %v1572, %v2029
        %v2049 = vmul.f32 %v1573, %v2029
        %v2050 = vmul.f32 %v1574, %v2029
        %v2051 = vmul.f32 %v1575, %v2029
        %v2052 = vmul.f32 %v1576, %v2029
        %v2053 = vmul.f32 %v1577, %v2029
        %v2054 = vmul.f32 %v1578, %v2029
        %v2055 = vmul.f32 %v1579, %v2029
        %v2056 = vmul.f32 %v1580, %v2029
        %v2057 = vmul.f32 %v1581, %v2029
        %v2058 = vmul.f32 %v1582, %v2029
        %v2059 = vmul.f32 %v1583, %v2029
        %v2060 = vmul.f32 %v1584, %v2029
        %v2061 = vmul.f32 %v2029, 0.0
        %v2062 = vadd.f32 %v1993, %v2030
        %v2063 = vadd.f32 %v1994, %v2031
        %v2064 = vadd.f32 %v1995, %v2032
        %v2065 = vadd.f32 %v1996, %v2033
        %v2066 = vadd.f32 %v1997, %v2034
        %v2067 = vadd.f32 %v1998, %v2035
        %v2068 = vadd.f32 %v1999, %v2036
        %v2069 = vadd.f32 %v2000, %v2037
        %v2070 = vadd.f32 %v2001, %v2038
        %v2071 = vadd.f32 %v2002, %v2039
        %v2072 = vadd.f32 %v2003, %v2040
        %v2073 = vadd.f32 %v2004, %v2041
        %v2074 = vadd.f32 %v2005, %v2042
        %v2075 = vadd.f32 %v2006, %v2043
        %v2076 = vadd.f32 %v2007, %v2044
        %v2077 = vadd.f32 %v2008, %v2045
        %v2078 = vadd.f32 %v2009, %v2046
        %v2079 = vadd.f32 %v2010, %v2047
        %v2080 = vadd.f32 %v2011, %v2048
        %v2081 = vadd.f32 %v2012, %v2049
        %v2082 = vadd.f32 %v2013, %v2050
        %v2083 = vadd.f32 %v2014, %v2051
        %v2084 = vadd.f32 %v2015, %v2052
        %v2085 = vadd.f32 %v2016, %v2053
        %v2086 = vadd.f32 %v2017, %v2054
        %v2087 = vadd.f32 %v2018, %v2055
        %v2088 = vadd.f32 %v2019, %v2056
        %v2089 = vadd.f32 %v2020, %v2057
        %v2090 = vadd.f32 %v2021, %v2058
        %v2091 = vadd.f32 %v2022, %v2059
        %v2092 = vadd.f32 %v2023, %v2060
        %v2093 = vadd.f32 %v2024, %v2061
        %v2094 = vld [vmem:[%s1 + $0x7] sm:$0x1]
        %v2095 = vlaneseq
        %v2096 = vshrl.u32 %v2095, 7
        %v2097 = vsub.s32 0, %v2096
        %v2098 = vrot.slane %v2094, %v2097
        %v2099 = vmul.f32 %v1041, %v2098
        %v2100 = vmul.f32 %v1042, %v2098
        %v2101 = vmul.f32 %v1043, %v2098
        %v2102 = vmul.f32 %v1044, %v2098
        %v2103 = vmul.f32 %v1045, %v2098
        %v2104 = vmul.f32 %v1046, %v2098
        %v2105 = vmul.f32 %v1047, %v2098
        %v2106 = vmul.f32 %v1048, %v2098
        %v2107 = vmul.f32 %v1049, %v2098
        %v2108 = vmul.f32 %v1050, %v2098
        %v2109 = vmul.f32 %v1051, %v2098
        %v2110 = vmul.f32 %v1052, %v2098
        %v2111 = vmul.f32 %v1053, %v2098
        %v2112 = vmul.f32 %v1054, %v2098
        %v2113 = vmul.f32 %v1055, %v2098
        %v2114 = vmul.f32 %v1056, %v2098
        %v2115 = vmul.f32 %v1057, %v2098
        %v2116 = vmul.f32 %v1058, %v2098
        %v2117 = vmul.f32 %v1059, %v2098
        %v2118 = vmul.f32 %v1060, %v2098
        %v2119 = vmul.f32 %v1061, %v2098
        %v2120 = vmul.f32 %v1062, %v2098
        %v2121 = vmul.f32 %v1063, %v2098
        %v2122 = vmul.f32 %v1064, %v2098
        %v2123 = vmul.f32 %v1065, %v2098
        %v2124 = vmul.f32 %v1066, %v2098
        %v2125 = vmul.f32 %v1067, %v2098
        %v2126 = vmul.f32 %v1068, %v2098
        %v2127 = vmul.f32 %v1069, %v2098
        %v2128 = vmul.f32 %v1070, %v2098
        %v2129 = vmul.f32 %v2098, 0.0
        %v2130 = vadd.f32 %v2062, %v2099
        %v2131 = vadd.f32 %v2063, %v2100
        %v2132 = vadd.f32 %v2064, %v2101
        %v2133 = vadd.f32 %v2065, %v2102
        %v2134 = vadd.f32 %v2066, %v2103
        %v2135 = vadd.f32 %v2067, %v2104
        %v2136 = vadd.f32 %v2068, %v2105
        %v2137 = vadd.f32 %v2069, %v2106
        %v2138 = vadd.f32 %v2070, %v2107
        %v2139 = vadd.f32 %v2071, %v2108
        %v2140 = vadd.f32 %v2072, %v2109
        %v2141 = vadd.f32 %v2073, %v2110
        %v2142 = vadd.f32 %v2074, %v2111
        %v2143 = vadd.f32 %v2075, %v2112
        %v2144 = vadd.f32 %v2076, %v2113
        %v2145 = vadd.f32 %v2077, %v2114
        %v2146 = vadd.f32 %v2078, %v2115
        %v2147 = vadd.f32 %v2079, %v2116
        %v2148 = vadd.f32 %v2080, %v2117
        %v2149 = vadd.f32 %v2081, %v2118
        %v2150 = vadd.f32 %v2082, %v2119
        %v2151 = vadd.f32 %v2083, %v2120
        %v2152 = vadd.f32 %v2084, %v2121
        %v2153 = vadd.f32 %v2085, %v2122
        %v2154 = vadd.f32 %v2086, %v2123
        %v2155 = vadd.f32 %v2087, %v2124
        %v2156 = vadd.f32 %v2088, %v2125
        %v2157 = vadd.f32 %v2089, %v2126
        %v2158 = vadd.f32 %v2090, %v2127
        %v2159 = vadd.f32 %v2091, %v2128
        %v2160 = vadd.f32 %v2092, %v2129
        %v2161 = vadd.f32 %v2093, %v2129
        %v2162 = vld [vmem:[%s1 + $0x8] sm:$0x1]
        %v2163 = vlaneseq
        %v2164 = vshrl.u32 %v2163, 7
        %v2165 = vsub.s32 0, %v2164
        %v2166 = vrot.slane %v2162, %v2165
        %v2167 = vmul.f32 %v1585, %v2166
        %v2168 = vmul.f32 %v1586, %v2166
        %v2169 = vmul.f32 %v1587, %v2166
        %v2170 = vmul.f32 %v1588, %v2166
        %v2171 = vmul.f32 %v1589, %v2166
        %v2172 = vmul.f32 %v1590, %v2166
        %v2173 = vmul.f32 %v1591, %v2166
        %v2174 = vmul.f32 %v1592, %v2166
        %v2175 = vmul.f32 %v1593, %v2166
        %v2176 = vmul.f32 %v1594, %v2166
        %v2177 = vmul.f32 %v1595, %v2166
        %v2178 = vmul.f32 %v1596, %v2166
        %v2179 = vmul.f32 %v1597, %v2166
        %v2180 = vmul.f32 %v1598, %v2166
        %v2181 = vmul.f32 %v1599, %v2166
        %v2182 = vmul.f32 %v1600, %v2166
        %v2183 = vmul.f32 %v1601, %v2166
        %v2184 = vmul.f32 %v1602, %v2166
        %v2185 = vmul.f32 %v1603, %v2166
        %v2186 = vmul.f32 %v1604, %v2166
        %v2187 = vmul.f32 %v1605, %v2166
        %v2188 = vmul.f32 %v1606, %v2166
        %v2189 = vmul.f32 %v1607, %v2166
        %v2190 = vmul.f32 %v1608, %v2166
        %v2191 = vmul.f32 %v1609, %v2166
        %v2192 = vmul.f32 %v1610, %v2166
        %v2193 = vmul.f32 %v1611, %v2166
        %v2194 = vmul.f32 %v1612, %v2166
        %v2195 = vmul.f32 %v1613, %v2166
        %v2196 = vmul.f32 %v1614, %v2166
        %v2197 = vmul.f32 %v2166, 0.0
        %v2198 = vadd.f32 %v2130, %v2167
        %v2199 = vadd.f32 %v2131, %v2168
        %v2200 = vadd.f32 %v2132, %v2169
        %v2201 = vadd.f32 %v2133, %v2170
        %v2202 = vadd.f32 %v2134, %v2171
        %v2203 = vadd.f32 %v2135, %v2172
        %v2204 = vadd.f32 %v2136, %v2173
        %v2205 = vadd.f32 %v2137, %v2174
        %v2206 = vadd.f32 %v2138, %v2175
        %v2207 = vadd.f32 %v2139, %v2176
        %v2208 = vadd.f32 %v2140, %v2177
        %v2209 = vadd.f32 %v2141, %v2178
        %v2210 = vadd.f32 %v2142, %v2179
        %v2211 = vadd.f32 %v2143, %v2180
        %v2212 = vadd.f32 %v2144, %v2181
        %v2213 = vadd.f32 %v2145, %v2182
        %v2214 = vadd.f32 %v2146, %v2183
        %v2215 = vadd.f32 %v2147, %v2184
        %v2216 = vadd.f32 %v2148, %v2185
        %v2217 = vadd.f32 %v2149, %v2186
        %v2218 = vadd.f32 %v2150, %v2187
        %v2219 = vadd.f32 %v2151, %v2188
        %v2220 = vadd.f32 %v2152, %v2189
        %v2221 = vadd.f32 %v2153, %v2190
        %v2222 = vadd.f32 %v2154, %v2191
        %v2223 = vadd.f32 %v2155, %v2192
        %v2224 = vadd.f32 %v2156, %v2193
        %v2225 = vadd.f32 %v2157, %v2194
        %v2226 = vadd.f32 %v2158, %v2195
        %v2227 = vadd.f32 %v2159, %v2196
        %v2228 = vadd.f32 %v2160, %v2197
        %v2229 = vadd.f32 %v2161, %v2197
        %v2230 = vld [vmem:[%s2] sm:$0x1]
        %v2232 = vlaneseq
        %v2233 = vshrl.u32 %v2232, 7
        %v2234 = vsub.s32 0, %v2233
        %v2235 = vrot.slane %v2230, %v2234
        %v2237 = vmul.f32 %v2198, %v2235
        %v2238 = vmul.f32 %v2199, %v2235
        %v2239 = vmul.f32 %v2200, %v2235
        %v2240 = vmul.f32 %v2201, %v2235
        %v2241 = vmul.f32 %v2202, %v2235
        %v2242 = vmul.f32 %v2203, %v2235
        %v2243 = vmul.f32 %v2204, %v2235
        %v2244 = vmul.f32 %v2205, %v2235
        %v2245 = vmul.f32 %v2206, %v2235
        %v2246 = vmul.f32 %v2207, %v2235
        %v2247 = vmul.f32 %v2208, %v2235
        %v2248 = vmul.f32 %v2209, %v2235
        %v2249 = vmul.f32 %v2210, %v2235
        %v2250 = vmul.f32 %v2211, %v2235
        %v2251 = vmul.f32 %v2212, %v2235
        %v2252 = vmul.f32 %v2213, %v2235
        %v2253 = vmul.f32 %v2214, %v2235
        %v2254 = vmul.f32 %v2215, %v2235
        %v2255 = vmul.f32 %v2216, %v2235
        %v2256 = vmul.f32 %v2217, %v2235
        %v2257 = vmul.f32 %v2218, %v2235
        %v2258 = vmul.f32 %v2219, %v2235
        %v2259 = vmul.f32 %v2220, %v2235
        %v2260 = vmul.f32 %v2221, %v2235
        %v2261 = vmul.f32 %v2222, %v2235
        %v2262 = vmul.f32 %v2223, %v2235
        %v2263 = vmul.f32 %v2224, %v2235
        %v2264 = vmul.f32 %v2225, %v2235
        %v2265 = vmul.f32 %v2226, %v2235
        %v2266 = vmul.f32 %v2227, %v2235
        %v2267 = vmul.f32 %v2228, %v2235
        %v2268 = vmul.f32 %v2229, %v2235
        %v2269 = vld [vmem:[%s3] sm:$0x1]
        %v2271 = vlaneseq
        %v2272 = vshrl.u32 %v2271, 7
        %v2273 = vsub.s32 0, %v2272
        %v2274 = vrot.slane %v2269, %v2273
        %v2276 = vadd.f32 %v2237, %v2274
        %v2277 = vadd.f32 %v2238, %v2274
        %v2278 = vadd.f32 %v2239, %v2274
        %v2279 = vadd.f32 %v2240, %v2274
        %v2280 = vadd.f32 %v2241, %v2274
        %v2281 = vadd.f32 %v2242, %v2274
        %v2282 = vadd.f32 %v2243, %v2274
        %v2283 = vadd.f32 %v2244, %v2274
        %v2284 = vadd.f32 %v2245, %v2274
        %v2285 = vadd.f32 %v2246, %v2274
        %v2286 = vadd.f32 %v2247, %v2274
        %v2287 = vadd.f32 %v2248, %v2274
        %v2288 = vadd.f32 %v2249, %v2274
        %v2289 = vadd.f32 %v2250, %v2274
        %v2290 = vadd.f32 %v2251, %v2274
        %v2291 = vadd.f32 %v2252, %v2274
        %v2292 = vadd.f32 %v2253, %v2274
        %v2293 = vadd.f32 %v2254, %v2274
        %v2294 = vadd.f32 %v2255, %v2274
        %v2295 = vadd.f32 %v2256, %v2274
        %v2296 = vadd.f32 %v2257, %v2274
        %v2297 = vadd.f32 %v2258, %v2274
        %v2298 = vadd.f32 %v2259, %v2274
        %v2299 = vadd.f32 %v2260, %v2274
        %v2300 = vadd.f32 %v2261, %v2274
        %v2301 = vadd.f32 %v2262, %v2274
        %v2302 = vadd.f32 %v2263, %v2274
        %v2303 = vadd.f32 %v2264, %v2274
        %v2304 = vadd.f32 %v2265, %v2274
        %v2305 = vadd.f32 %v2266, %v2274
        %v2306 = vadd.f32 %v2267, %v2274
        %v2307 = vadd.f32 %v2268, %v2274
        %v2308 = vmax.f32 %v2276, 0.0
        %v2309 = vmax.f32 %v2277, 0.0
        %v2310 = vmax.f32 %v2278, 0.0
        %v2311 = vmax.f32 %v2279, 0.0
        %v2312 = vmax.f32 %v2280, 0.0
        %v2313 = vmax.f32 %v2281, 0.0
        %v2314 = vmax.f32 %v2282, 0.0
        %v2315 = vmax.f32 %v2283, 0.0
        %v2316 = vmax.f32 %v2284, 0.0
        %v2317 = vmax.f32 %v2285, 0.0
        %v2318 = vmax.f32 %v2286, 0.0
        %v2319 = vmax.f32 %v2287, 0.0
        %v2320 = vmax.f32 %v2288, 0.0
        %v2321 = vmax.f32 %v2289, 0.0
        %v2322 = vmax.f32 %v2290, 0.0
        %v2323 = vmax.f32 %v2291, 0.0
        %v2324 = vmax.f32 %v2292, 0.0
        %v2325 = vmax.f32 %v2293, 0.0
        %v2326 = vmax.f32 %v2294, 0.0
        %v2327 = vmax.f32 %v2295, 0.0
        %v2328 = vmax.f32 %v2296, 0.0
        %v2329 = vmax.f32 %v2297, 0.0
        %v2330 = vmax.f32 %v2298, 0.0
        %v2331 = vmax.f32 %v2299, 0.0
        %v2332 = vmax.f32 %v2300, 0.0
        %v2333 = vmax.f32 %v2301, 0.0
        %v2334 = vmax.f32 %v2302, 0.0
        %v2335 = vmax.f32 %v2303, 0.0
        %v2336 = vmax.f32 %v2304, 0.0
        %v2337 = vmax.f32 %v2305, 0.0
        %v2338 = vmax.f32 %v2306, 0.0
        %v2339 = vmax.f32 %v2307, 0.0
        %v2340 = vld [vmem:[%s4] sm:$0xf]
        %v2341 = vld [vmem:[%s4 + $0x4] sm:$0xf]
        %v2342 = vld [vmem:[%s4 + $0x8] sm:$0xf]
        %v2343 = vld [vmem:[%s4 + $0xc] sm:$0xf]
        %v2344 = vld [vmem:[%s4 + $0x10] sm:$0xf]
        %v2345 = vld [vmem:[%s4 + $0x14] sm:$0xf]
        %v2346 = vld [vmem:[%s4 + $0x18] sm:$0xf]
        %v2347 = vld [vmem:[%s4 + $0x1c] sm:$0xf]
        %v2348 = vld [vmem:[%s4 + $0x20] sm:$0xf]
        %v2349 = vld [vmem:[%s4 + $0x24] sm:$0xf]
        %v2350 = vld [vmem:[%s4 + $0x28] sm:$0xf]
        %v2351 = vld [vmem:[%s4 + $0x2c] sm:$0xf]
        %v2352 = vld [vmem:[%s4 + $0x30] sm:$0xf]
        %v2353 = vld [vmem:[%s4 + $0x34] sm:$0xf]
        %v2354 = vld [vmem:[%s4 + $0x38] sm:$0xf]
        %v2355 = vld [vmem:[%s4 + $0x3c] sm:$0xf]
        %v2356 = vld [vmem:[%s4 + $0x40] sm:$0xf]
        %v2357 = vld [vmem:[%s4 + $0x44] sm:$0xf]
        %v2358 = vld [vmem:[%s4 + $0x48] sm:$0xf]
        %v2359 = vld [vmem:[%s4 + $0x4c] sm:$0xf]
        %v2360 = vld [vmem:[%s4 + $0x50] sm:$0xf]
        %v2361 = vld [vmem:[%s4 + $0x54] sm:$0xf]
        %v2362 = vld [vmem:[%s4 + $0x58] sm:$0xf]
        %v2363 = vld [vmem:[%s4 + $0x5c] sm:$0xf]
        %v2364 = vld [vmem:[%s4 + $0x60] sm:$0xf]
        %v2365 = vld [vmem:[%s4 + $0x64] sm:$0xf]
        %v2366 = vld [vmem:[%s4 + $0x68] sm:$0xf]
        %v2367 = vld [vmem:[%s4 + $0x6c] sm:$0xf]
        %v2368 = vld [vmem:[%s4 + $0x70] sm:$0xf]
        %v2369 = vld [vmem:[%s4 + $0x74] sm:$0xf]
        %v2370 = vld [vmem:[%s4 + $0x78] sm:$0xf]
        %v2371 = vld [vmem:[%s4 + $0x7c] sm:$0xf]
        %v2372 = vld [vmem:[%s4 + $0x80] sm:$0xf]
        %v2373 = vld [vmem:[%s4 + $0x84] sm:$0xf]
        %v2374 = vld [vmem:[%s4 + $0x88] sm:$0xf]
        %v2375 = vld [vmem:[%s4 + $0x8c] sm:$0xf]
        %v2376 = vld [vmem:[%s5] sm:$0x1]
        %v2377 = vld [vmem:[%s6] sm:$0x1]
        %v2408 = vrot.slane %v2308, 7
        %v2409 = vrot.slane %v2309, 7
        %v2410 = vsel %vm1101, %v2408, %v2409
        %v2411 = vrot.slane %v2310, 7
        %v2412 = vsel %vm1101, %v2409, %v2411
        %v2413 = vrot.slane %v2311, 7
        %v2414 = vsel %vm1101, %v2411, %v2413
        %v2415 = vrot.slane %v2312, 7
        %v2416 = vsel %vm1101, %v2413, %v2415
        %v2417 = vrot.slane %v2313, 7
        %v2418 = vsel %vm1101, %v2415, %v2417
        %v2419 = vrot.slane %v2314, 7
        %v2420 = vsel %vm1101, %v2417, %v2419
        %v2421 = vrot.slane %v2315, 7
        %v2422 = vsel %vm1101, %v2419, %v2421
        %v2423 = vrot.slane %v2316, 7
        %v2424 = vsel %vm1101, %v2421, %v2423
        %v2425 = vrot.slane %v2317, 7
        %v2426 = vsel %vm1101, %v2423, %v2425
        %v2427 = vrot.slane %v2318, 7
        %v2428 = vsel %vm1101, %v2425, %v2427
        %v2429 = vrot.slane %v2319, 7
        %v2430 = vsel %vm1101, %v2427, %v2429
        %v2431 = vrot.slane %v2320, 7
        %v2432 = vsel %vm1101, %v2429, %v2431
        %v2433 = vrot.slane %v2321, 7
        %v2434 = vsel %vm1101, %v2431, %v2433
        %v2435 = vrot.slane %v2322, 7
        %v2436 = vsel %vm1101, %v2433, %v2435
        %v2437 = vrot.slane %v2323, 7
        %v2438 = vsel %vm1101, %v2435, %v2437
        %v2439 = vrot.slane %v2324, 7
        %v2440 = vsel %vm1101, %v2437, %v2439
        %v2441 = vrot.slane %v2325, 7
        %v2442 = vsel %vm1101, %v2439, %v2441
        %v2443 = vrot.slane %v2326, 7
        %v2444 = vsel %vm1101, %v2441, %v2443
        %v2445 = vrot.slane %v2327, 7
        %v2446 = vsel %vm1101, %v2443, %v2445
        %v2447 = vrot.slane %v2328, 7
        %v2448 = vsel %vm1101, %v2445, %v2447
        %v2449 = vrot.slane %v2329, 7
        %v2450 = vsel %vm1101, %v2447, %v2449
        %v2451 = vrot.slane %v2330, 7
        %v2452 = vsel %vm1101, %v2449, %v2451
        %v2453 = vrot.slane %v2331, 7
        %v2454 = vsel %vm1101, %v2451, %v2453
        %v2455 = vrot.slane %v2332, 7
        %v2456 = vsel %vm1101, %v2453, %v2455
        %v2457 = vrot.slane %v2333, 7
        %v2458 = vsel %vm1101, %v2455, %v2457
        %v2459 = vrot.slane %v2334, 7
        %v2460 = vsel %vm1101, %v2457, %v2459
        %v2461 = vrot.slane %v2335, 7
        %v2462 = vsel %vm1101, %v2459, %v2461
        %v2463 = vrot.slane %v2336, 7
        %v2464 = vsel %vm1101, %v2461, %v2463
        %v2465 = vrot.slane %v2337, 7
        %v2466 = vsel %vm1101, %v2463, %v2465
        %v2497 = vsel %vm1101, 0.0, %v2408
        %v2498 = vsel %vm1226, 0.0, %v2497
        %v2499 = vsel %vm1227, 0.0, %v2410
        %v2500 = vsel %vm1228, 0.0, %v2412
        %v2501 = vsel %vm1229, 0.0, %v2414
        %v2502 = vsel %vm1230, 0.0, %v2416
        %v2503 = vsel %vm1231, 0.0, %v2418
        %v2504 = vsel %vm1232, 0.0, %v2420
        %v2505 = vsel %vm1233, 0.0, %v2422
        %v2506 = vsel %vm1234, 0.0, %v2424
        %v2507 = vsel %vm1235, 0.0, %v2426
        %v2508 = vsel %vm1236, 0.0, %v2428
        %v2509 = vsel %vm1237, 0.0, %v2430
        %v2510 = vsel %vm1238, 0.0, %v2432
        %v2511 = vsel %vm1239, 0.0, %v2434
        %v2512 = vsel %vm1240, 0.0, %v2436
        %v2513 = vsel %vm1241, 0.0, %v2438
        %v2514 = vsel %vm1242, 0.0, %v2440
        %v2515 = vsel %vm1243, 0.0, %v2442
        %v2516 = vsel %vm1244, 0.0, %v2444
        %v2517 = vsel %vm1245, 0.0, %v2446
        %v2518 = vsel %vm1246, 0.0, %v2448
        %v2519 = vsel %vm1247, 0.0, %v2450
        %v2520 = vsel %vm1248, 0.0, %v2452
        %v2521 = vsel %vm1249, 0.0, %v2454
        %v2522 = vsel %vm1250, 0.0, %v2456
        %v2523 = vsel %vm1251, 0.0, %v2458
        %v2524 = vsel %vm1252, 0.0, %v2460
        %v2525 = vsel %vm1253, 0.0, %v2462
        %v2526 = vsel %vm1254, 0.0, %v2464
        %v2527 = vsel %vm1255, 0.0, %v2466
        %v2529 = vrot.slane %v2308, 1
        %v2530 = vrot.slane %v2309, 1
        %v2531 = vsel %vm1287, %v2529, %v2530
        %v2532 = vrot.slane %v2310, 1
        %v2533 = vsel %vm1287, %v2530, %v2532
        %v2534 = vrot.slane %v2311, 1
        %v2535 = vsel %vm1287, %v2532, %v2534
        %v2536 = vrot.slane %v2312, 1
        %v2537 = vsel %vm1287, %v2534, %v2536
        %v2538 = vrot.slane %v2313, 1
        %v2539 = vsel %vm1287, %v2536, %v2538
        %v2540 = vrot.slane %v2314, 1
        %v2541 = vsel %vm1287, %v2538, %v2540
        %v2542 = vrot.slane %v2315, 1
        %v2543 = vsel %vm1287, %v2540, %v2542
        %v2544 = vrot.slane %v2316, 1
        %v2545 = vsel %vm1287, %v2542, %v2544
        %v2546 = vrot.slane %v2317, 1
        %v2547 = vsel %vm1287, %v2544, %v2546
        %v2548 = vrot.slane %v2318, 1
        %v2549 = vsel %vm1287, %v2546, %v2548
        %v2550 = vrot.slane %v2319, 1
        %v2551 = vsel %vm1287, %v2548, %v2550
        %v2552 = vrot.slane %v2320, 1
        %v2553 = vsel %vm1287, %v2550, %v2552
        %v2554 = vrot.slane %v2321, 1
        %v2555 = vsel %vm1287, %v2552, %v2554
        %v2556 = vrot.slane %v2322, 1
        %v2557 = vsel %vm1287, %v2554, %v2556
        %v2558 = vrot.slane %v2323, 1
        %v2559 = vsel %vm1287, %v2556, %v2558
        %v2560 = vrot.slane %v2324, 1
        %v2561 = vsel %vm1287, %v2558, %v2560
        %v2562 = vrot.slane %v2325, 1
        %v2563 = vsel %vm1287, %v2560, %v2562
        %v2564 = vrot.slane %v2326, 1
        %v2565 = vsel %vm1287, %v2562, %v2564
        %v2566 = vrot.slane %v2327, 1
        %v2567 = vsel %vm1287, %v2564, %v2566
        %v2568 = vrot.slane %v2328, 1
        %v2569 = vsel %vm1287, %v2566, %v2568
        %v2570 = vrot.slane %v2329, 1
        %v2571 = vsel %vm1287, %v2568, %v2570
        %v2572 = vrot.slane %v2330, 1
        %v2573 = vsel %vm1287, %v2570, %v2572
        %v2574 = vrot.slane %v2331, 1
        %v2575 = vsel %vm1287, %v2572, %v2574
        %v2576 = vrot.slane %v2332, 1
        %v2577 = vsel %vm1287, %v2574, %v2576
        %v2578 = vrot.slane %v2333, 1
        %v2579 = vsel %vm1287, %v2576, %v2578
        %v2580 = vrot.slane %v2334, 1
        %v2581 = vsel %vm1287, %v2578, %v2580
        %v2582 = vrot.slane %v2335, 1
        %v2583 = vsel %vm1287, %v2580, %v2582
        %v2584 = vrot.slane %v2336, 1
        %v2585 = vsel %vm1287, %v2582, %v2584
        %v2586 = vrot.slane %v2337, 1
        %v2587 = vsel %vm1287, %v2584, %v2586
        %v2588 = vrot.slane %v2338, 1
        %v2589 = vsel %vm1287, %v2586, %v2588
        %v2621 = vsel %vm1287, 0.0, %v2529
        %v2622 = vsel %vm1414, 0.0, %v2621
        %v2623 = vsel %vm1415, 0.0, %v2531
        %v2624 = vsel %vm1416, 0.0, %v2533
        %v2625 = vsel %vm1417, 0.0, %v2535
        %v2626 = vsel %vm1418, 0.0, %v2537
        %v2627 = vsel %vm1419, 0.0, %v2539
        %v2628 = vsel %vm1420, 0.0, %v2541
        %v2629 = vsel %vm1421, 0.0, %v2543
        %v2630 = vsel %vm1422, 0.0, %v2545
        %v2631 = vsel %vm1423, 0.0, %v2547
        %v2632 = vsel %vm1424, 0.0, %v2549
        %v2633 = vsel %vm1425, 0.0, %v2551
        %v2634 = vsel %vm1426, 0.0, %v2553
        %v2635 = vsel %vm1427, 0.0, %v2555
        %v2636 = vsel %vm1428, 0.0, %v2557
        %v2637 = vsel %vm1429, 0.0, %v2559
        %v2638 = vsel %vm1430, 0.0, %v2561
        %v2639 = vsel %vm1431, 0.0, %v2563
        %v2640 = vsel %vm1432, 0.0, %v2565
        %v2641 = vsel %vm1433, 0.0, %v2567
        %v2642 = vsel %vm1434, 0.0, %v2569
        %v2643 = vsel %vm1435, 0.0, %v2571
        %v2644 = vsel %vm1436, 0.0, %v2573
        %v2645 = vsel %vm1437, 0.0, %v2575
        %v2646 = vsel %vm1438, 0.0, %v2577
        %v2647 = vsel %vm1439, 0.0, %v2579
        %v2648 = vsel %vm1440, 0.0, %v2581
        %v2649 = vsel %vm1441, 0.0, %v2583
        %v2650 = vsel %vm1442, 0.0, %v2585
        %v2651 = vsel %vm1443, 0.0, %v2587
        %v2652 = vsel %vm1444, 0.0, %v2589
        %v2654 = vrot.slane %v2338, 7
        %v2655 = vsel %vm1101, %v2465, %v2654
        %v2656 = vrot.slane %v2339, 7
        %v2657 = vsel %vm1101, %v2654, %v2656
        %v2660 = vsel %vm1224, 0.0, %v2497
        %v2661 = vsel %vm1225, 0.0, %v2410
        %v2662 = vsel %vm1226, 0.0, %v2412
        %v2663 = vsel %vm1227, 0.0, %v2414
        %v2664 = vsel %vm1228, 0.0, %v2416
        %v2665 = vsel %vm1229, 0.0, %v2418
        %v2666 = vsel %vm1230, 0.0, %v2420
        %v2667 = vsel %vm1231, 0.0, %v2422
        %v2668 = vsel %vm1232, 0.0, %v2424
        %v2669 = vsel %vm1233, 0.0, %v2426
        %v2670 = vsel %vm1234, 0.0, %v2428
        %v2671 = vsel %vm1235, 0.0, %v2430
        %v2672 = vsel %vm1236, 0.0, %v2432
        %v2673 = vsel %vm1237, 0.0, %v2434
        %v2674 = vsel %vm1238, 0.0, %v2436
        %v2675 = vsel %vm1239, 0.0, %v2438
        %v2676 = vsel %vm1240, 0.0, %v2440
        %v2677 = vsel %vm1241, 0.0, %v2442
        %v2678 = vsel %vm1242, 0.0, %v2444
        %v2679 = vsel %vm1243, 0.0, %v2446
        %v2680 = vsel %vm1244, 0.0, %v2448
        %v2681 = vsel %vm1245, 0.0, %v2450
        %v2682 = vsel %vm1246, 0.0, %v2452
        %v2683 = vsel %vm1247, 0.0, %v2454
        %v2684 = vsel %vm1248, 0.0, %v2456
        %v2685 = vsel %vm1249, 0.0, %v2458
        %v2686 = vsel %vm1250, 0.0, %v2460
        %v2687 = vsel %vm1251, 0.0, %v2462
        %v2688 = vsel %vm1252, 0.0, %v2464
        %v2689 = vsel %vm1253, 0.0, %v2466
        %v2690 = vsel %vm1254, 0.0, %v2655
        %v2691 = vsel %vm1255, 0.0, %v2657
        %v2692 = vrot.slane %v2339, 1
        %v2693 = vsel %vm1287, %v2588, %v2692
        %v2696 = vsel %vm1287, %v2692, 0.0
        %v2697 = vsel %vm1413, 0.0, %v2531
        %v2698 = vsel %vm1414, 0.0, %v2533
        %v2699 = vsel %vm1415, 0.0, %v2535
        %v2700 = vsel %vm1416, 0.0, %v2537
        %v2701 = vsel %vm1417, 0.0, %v2539
        %v2702 = vsel %vm1418, 0.0, %v2541
        %v2703 = vsel %vm1419, 0.0, %v2543
        %v2704 = vsel %vm1420, 0.0, %v2545
        %v2705 = vsel %vm1421, 0.0, %v2547
        %v2706 = vsel %vm1422, 0.0, %v2549
        %v2707 = vsel %vm1423, 0.0, %v2551
        %v2708 = vsel %vm1424, 0.0, %v2553
        %v2709 = vsel %vm1425, 0.0, %v2555
        %v2710 = vsel %vm1426, 0.0, %v2557
        %v2711 = vsel %vm1427, 0.0, %v2559
        %v2712 = vsel %vm1428, 0.0, %v2561
        %v2713 = vsel %vm1429, 0.0, %v2563
        %v2714 = vsel %vm1430, 0.0, %v2565
        %v2715 = vsel %vm1431, 0.0, %v2567
        %v2716 = vsel %vm1432, 0.0, %v2569
        %v2717 = vsel %vm1433, 0.0, %v2571
        %v2718 = vsel %vm1434, 0.0, %v2573
        %v2719 = vsel %vm1435, 0.0, %v2575
        %v2720 = vsel %vm1436, 0.0, %v2577
        %v2721 = vsel %vm1437, 0.0, %v2579
        %v2722 = vsel %vm1438, 0.0, %v2581
        %v2723 = vsel %vm1439, 0.0, %v2583
        %v2724 = vsel %vm1440, 0.0, %v2585
        %v2725 = vsel %vm1441, 0.0, %v2587
        %v2726 = vsel %vm1442, 0.0, %v2589
        %v2727 = vsel %vm1443, 0.0, %v2693
        %v2728 = vsel %vm1444, 0.0, %v2696
        %v2730 = vsel %vm1101, %v2656, 0.0
        %v2731 = vsel %vm1224, 0.0, %v2412
        %v2732 = vsel %vm1225, 0.0, %v2414
        %v2733 = vsel %vm1226, 0.0, %v2416
        %v2734 = vsel %vm1227, 0.0, %v2418
        %v2735 = vsel %vm1228, 0.0, %v2420
        %v2736 = vsel %vm1229, 0.0, %v2422
        %v2737 = vsel %vm1230, 0.0, %v2424
        %v2738 = vsel %vm1231, 0.0, %v2426
        %v2739 = vsel %vm1232, 0.0, %v2428
        %v2740 = vsel %vm1233, 0.0, %v2430
        %v2741 = vsel %vm1234, 0.0, %v2432
        %v2742 = vsel %vm1235, 0.0, %v2434
        %v2743 = vsel %vm1236, 0.0, %v2436
        %v2744 = vsel %vm1237, 0.0, %v2438
        %v2745 = vsel %vm1238, 0.0, %v2440
        %v2746 = vsel %vm1239, 0.0, %v2442
        %v2747 = vsel %vm1240, 0.0, %v2444
        %v2748 = vsel %vm1241, 0.0, %v2446
        %v2749 = vsel %vm1242, 0.0, %v2448
        %v2750 = vsel %vm1243, 0.0, %v2450
        %v2751 = vsel %vm1244, 0.0, %v2452
        %v2752 = vsel %vm1245, 0.0, %v2454
        %v2753 = vsel %vm1246, 0.0, %v2456
        %v2754 = vsel %vm1247, 0.0, %v2458
        %v2755 = vsel %vm1248, 0.0, %v2460
        %v2756 = vsel %vm1249, 0.0, %v2462
        %v2757 = vsel %vm1250, 0.0, %v2464
        %v2758 = vsel %vm1251, 0.0, %v2466
        %v2759 = vsel %vm1252, 0.0, %v2655
        %v2760 = vsel %vm1253, 0.0, %v2657
        %v2761 = vsel %vm1254, 0.0, %v2730
        %v2762 = vsel %vm1413, 0.0, %v2535
        %v2763 = vsel %vm1414, 0.0, %v2537
        %v2764 = vsel %vm1415, 0.0, %v2539
        %v2765 = vsel %vm1416, 0.0, %v2541
        %v2766 = vsel %vm1417, 0.0, %v2543
        %v2767 = vsel %vm1418, 0.0, %v2545
        %v2768 = vsel %vm1419, 0.0, %v2547
        %v2769 = vsel %vm1420, 0.0, %v2549
        %v2770 = vsel %vm1421, 0.0, %v2551
        %v2771 = vsel %vm1422, 0.0, %v2553
        %v2772 = vsel %vm1423, 0.0, %v2555
        %v2773 = vsel %vm1424, 0.0, %v2557
        %v2774 = vsel %vm1425, 0.0, %v2559
        %v2775 = vsel %vm1426, 0.0, %v2561
        %v2776 = vsel %vm1427, 0.0, %v2563
        %v2777 = vsel %vm1428, 0.0, %v2565
        %v2778 = vsel %vm1429, 0.0, %v2567
        %v2779 = vsel %vm1430, 0.0, %v2569
        %v2780 = vsel %vm1431, 0.0, %v2571
        %v2781 = vsel %vm1432, 0.0, %v2573
        %v2782 = vsel %vm1433, 0.0, %v2575
        %v2783 = vsel %vm1434, 0.0, %v2577
        %v2784 = vsel %vm1435, 0.0, %v2579
        %v2785 = vsel %vm1436, 0.0, %v2581
        %v2786 = vsel %vm1437, 0.0, %v2583
        %v2787 = vsel %vm1438, 0.0, %v2585
        %v2788 = vsel %vm1439, 0.0, %v2587
        %v2789 = vsel %vm1440, 0.0, %v2589
        %v2790 = vsel %vm1441, 0.0, %v2693
        %v2791 = vsel %vm1442, 0.0, %v2696
        %v2792 = vpack.c.bf16 0.0, 0.0
        %v2793 = vpack.c.bf16 %v2499, %v2498
        %v2794 = vpack.c.bf16 %v2501, %v2500
        %v2795 = vpack.c.bf16 %v2503, %v2502
        %v2796 = vpack.c.bf16 %v2505, %v2504
        %v2797 = vpack.c.bf16 %v2507, %v2506
        %v2798 = vpack.c.bf16 %v2509, %v2508
        %v2799 = vpack.c.bf16 %v2511, %v2510
        %v2800 = vpack.c.bf16 %v2513, %v2512
        %v2801 = vpack.c.bf16 %v2515, %v2514
        %v2802 = vpack.c.bf16 %v2517, %v2516
        %v2803 = vpack.c.bf16 %v2519, %v2518
        %v2804 = vpack.c.bf16 %v2521, %v2520
        %v2805 = vpack.c.bf16 %v2523, %v2522
        %v2806 = vpack.c.bf16 %v2525, %v2524
        %v2807 = vpack.c.bf16 %v2527, %v2526
        %v2808 = vpack.c.bf16 %v2309, %v2308
        %v2809 = vpack.c.bf16 %v2311, %v2310
        %v2810 = vpack.c.bf16 %v2313, %v2312
        %v2811 = vpack.c.bf16 %v2315, %v2314
        %v2812 = vpack.c.bf16 %v2317, %v2316
        %v2813 = vpack.c.bf16 %v2319, %v2318
        %v2814 = vpack.c.bf16 %v2321, %v2320
        %v2815 = vpack.c.bf16 %v2323, %v2322
        %v2816 = vpack.c.bf16 %v2325, %v2324
        %v2817 = vpack.c.bf16 %v2327, %v2326
        %v2818 = vpack.c.bf16 %v2329, %v2328
        %v2819 = vpack.c.bf16 %v2331, %v2330
        %v2820 = vpack.c.bf16 %v2333, %v2332
        %v2821 = vpack.c.bf16 %v2335, %v2334
        %v2822 = vpack.c.bf16 %v2337, %v2336
        %v2823 = vpack.c.bf16 %v2622, 0.0
        %v2824 = vpack.c.bf16 %v2624, %v2623
        %v2825 = vpack.c.bf16 %v2626, %v2625
        %v2826 = vpack.c.bf16 %v2628, %v2627
        %v2827 = vpack.c.bf16 %v2630, %v2629
        %v2828 = vpack.c.bf16 %v2632, %v2631
        %v2829 = vpack.c.bf16 %v2634, %v2633
        %v2830 = vpack.c.bf16 %v2636, %v2635
        %v2831 = vpack.c.bf16 %v2638, %v2637
        %v2832 = vpack.c.bf16 %v2640, %v2639
        %v2833 = vpack.c.bf16 %v2642, %v2641
        %v2834 = vpack.c.bf16 %v2644, %v2643
        %v2835 = vpack.c.bf16 %v2646, %v2645
        %v2836 = vpack.c.bf16 %v2648, %v2647
        %v2837 = vpack.c.bf16 %v2650, %v2649
        %v2838 = vpack.c.bf16 %v2652, %v2651
        %v2839 = vpack.c.bf16 %v2661, %v2660
        %v2840 = vpack.c.bf16 %v2663, %v2662
        %v2841 = vpack.c.bf16 %v2665, %v2664
        %v2842 = vpack.c.bf16 %v2667, %v2666
        %v2843 = vpack.c.bf16 %v2669, %v2668
        %v2844 = vpack.c.bf16 %v2671, %v2670
        %v2845 = vpack.c.bf16 %v2673, %v2672
        %v2846 = vpack.c.bf16 %v2675, %v2674
        %v2847 = vpack.c.bf16 %v2677, %v2676
        %v2848 = vpack.c.bf16 %v2679, %v2678
        %v2849 = vpack.c.bf16 %v2681, %v2680
        %v2850 = vpack.c.bf16 %v2683, %v2682
        %v2851 = vpack.c.bf16 %v2685, %v2684
        %v2852 = vpack.c.bf16 %v2687, %v2686
        %v2853 = vpack.c.bf16 %v2689, %v2688
        %v2854 = vpack.c.bf16 %v2691, %v2690
        %v2855 = vpack.c.bf16 %v2339, %v2338
        %v2856 = vpack.c.bf16 %v2698, %v2697
        %v2857 = vpack.c.bf16 %v2700, %v2699
        %v2858 = vpack.c.bf16 %v2702, %v2701
        %v2859 = vpack.c.bf16 %v2704, %v2703
        %v2860 = vpack.c.bf16 %v2706, %v2705
        %v2861 = vpack.c.bf16 %v2708, %v2707
        %v2862 = vpack.c.bf16 %v2710, %v2709
        %v2863 = vpack.c.bf16 %v2712, %v2711
        %v2864 = vpack.c.bf16 %v2714, %v2713
        %v2865 = vpack.c.bf16 %v2716, %v2715
        %v2866 = vpack.c.bf16 %v2718, %v2717
        %v2867 = vpack.c.bf16 %v2720, %v2719
        %v2868 = vpack.c.bf16 %v2722, %v2721
        %v2869 = vpack.c.bf16 %v2724, %v2723
        %v2870 = vpack.c.bf16 %v2726, %v2725
        %v2871 = vpack.c.bf16 %v2728, %v2727
        %v2872 = vpack.c.bf16 %v2732, %v2731
        %v2873 = vpack.c.bf16 %v2734, %v2733
        %v2874 = vpack.c.bf16 %v2736, %v2735
        %v2875 = vpack.c.bf16 %v2738, %v2737
        %v2876 = vpack.c.bf16 %v2740, %v2739
        %v2877 = vpack.c.bf16 %v2742, %v2741
        %v2878 = vpack.c.bf16 %v2744, %v2743
        %v2879 = vpack.c.bf16 %v2746, %v2745
        %v2880 = vpack.c.bf16 %v2748, %v2747
        %v2881 = vpack.c.bf16 %v2750, %v2749
        %v2882 = vpack.c.bf16 %v2752, %v2751
        %v2883 = vpack.c.bf16 %v2754, %v2753
        %v2884 = vpack.c.bf16 %v2756, %v2755
        %v2885 = vpack.c.bf16 %v2758, %v2757
        %v2886 = vpack.c.bf16 %v2760, %v2759
        %v2887 = vpack.c.bf16 0.0, %v2761
        %v2888 = vpack.c.bf16 %v2763, %v2762
        %v2889 = vpack.c.bf16 %v2765, %v2764
        %v2890 = vpack.c.bf16 %v2767, %v2766
        %v2891 = vpack.c.bf16 %v2769, %v2768
        %v2892 = vpack.c.bf16 %v2771, %v2770
        %v2893 = vpack.c.bf16 %v2773, %v2772
        %v2894 = vpack.c.bf16 %v2775, %v2774
        %v2895 = vpack.c.bf16 %v2777, %v2776
        %v2896 = vpack.c.bf16 %v2779, %v2778
        %v2897 = vpack.c.bf16 %v2781, %v2780
        %v2898 = vpack.c.bf16 %v2783, %v2782
        %v2899 = vpack.c.bf16 %v2785, %v2784
        %v2900 = vpack.c.bf16 %v2787, %v2786
        %v2901 = vpack.c.bf16 %v2789, %v2788
        %v2902 = vpack.c.bf16 %v2791, %v2790
        %2919 = vrot.lane.b32.xlu0 %v2792, 32
        %v2920 = vpop.permute.xlu0 %2919
        %2921 = vrot.lane.b32.xlu0 %v2808, 32
        %v2922 = vpop.permute.xlu0 %2921
        %2923 = vrot.lane.b32.xlu0 %v2809, 32
        %v2924 = vpop.permute.xlu0 %2923
        %2925 = vrot.lane.b32.xlu0 %v2810, 32
        %v2926 = vpop.permute.xlu0 %2925
        %2927 = vrot.lane.b32.xlu0 %v2811, 32
        %v2928 = vpop.permute.xlu0 %2927
        %2929 = vrot.lane.b32.xlu0 %v2812, 32
        %v2930 = vpop.permute.xlu0 %2929
        %2931 = vrot.lane.b32.xlu0 %v2813, 32
        %v2932 = vpop.permute.xlu0 %2931
        %2933 = vrot.lane.b32.xlu0 %v2814, 32
        %v2934 = vpop.permute.xlu0 %2933
        %2935 = vrot.lane.b32.xlu0 %v2815, 32
        %v2936 = vpop.permute.xlu0 %2935
        %2937 = vrot.lane.b32.xlu0 %v2816, 32
        %v2938 = vpop.permute.xlu0 %2937
        %2939 = vrot.lane.b32.xlu0 %v2817, 32
        %v2940 = vpop.permute.xlu0 %2939
        %2941 = vrot.lane.b32.xlu0 %v2818, 32
        %v2942 = vpop.permute.xlu0 %2941
        %2943 = vrot.lane.b32.xlu0 %v2819, 32
        %v2944 = vpop.permute.xlu0 %2943
        %2945 = vrot.lane.b32.xlu0 %v2820, 32
        %v2946 = vpop.permute.xlu0 %2945
        %2947 = vrot.lane.b32.xlu0 %v2821, 32
        %v2948 = vpop.permute.xlu0 %2947
        %2949 = vrot.lane.b32.xlu0 %v2822, 32
        %v2950 = vpop.permute.xlu0 %2949
        %2967 = vrot.lane.b32.xlu0 %v2823, 64
        %v2968 = vpop.permute.xlu0 %2967
        %2969 = vrot.lane.b32.xlu0 %v2824, 64
        %v2970 = vpop.permute.xlu0 %2969
        %2971 = vrot.lane.b32.xlu0 %v2825, 64
        %v2972 = vpop.permute.xlu0 %2971
        %2973 = vrot.lane.b32.xlu0 %v2826, 64
        %v2974 = vpop.permute.xlu0 %2973
        %2975 = vrot.lane.b32.xlu0 %v2827, 64
        %v2976 = vpop.permute.xlu0 %2975
        %2977 = vrot.lane.b32.xlu0 %v2828, 64
        %v2978 = vpop.permute.xlu0 %2977
        %2979 = vrot.lane.b32.xlu0 %v2829, 64
        %v2980 = vpop.permute.xlu0 %2979
        %2981 = vrot.lane.b32.xlu0 %v2830, 64
        %v2982 = vpop.permute.xlu0 %2981
        %2983 = vrot.lane.b32.xlu0 %v2831, 64
        %v2984 = vpop.permute.xlu0 %2983
        %2985 = vrot.lane.b32.xlu0 %v2832, 64
        %v2986 = vpop.permute.xlu0 %2985
        %2987 = vrot.lane.b32.xlu0 %v2833, 64
        %v2988 = vpop.permute.xlu0 %2987
        %2989 = vrot.lane.b32.xlu0 %v2834, 64
        %v2990 = vpop.permute.xlu0 %2989
        %2991 = vrot.lane.b32.xlu0 %v2835, 64
        %v2992 = vpop.permute.xlu0 %2991
        %2993 = vrot.lane.b32.xlu0 %v2836, 64
        %v2994 = vpop.permute.xlu0 %2993
        %2995 = vrot.lane.b32.xlu0 %v2837, 64
        %v2996 = vpop.permute.xlu0 %2995
        %2997 = vrot.lane.b32.xlu0 %v2838, 64
        %v2998 = vpop.permute.xlu0 %2997
        %3015 = vrot.lane.b32.xlu0 %v2839, 96
        %v3016 = vpop.permute.xlu0 %3015
        %3017 = vrot.lane.b32.xlu0 %v2840, 96
        %v3018 = vpop.permute.xlu0 %3017
        %3019 = vrot.lane.b32.xlu0 %v2841, 96
        %v3020 = vpop.permute.xlu0 %3019
        %3021 = vrot.lane.b32.xlu0 %v2842, 96
        %v3022 = vpop.permute.xlu0 %3021
        %3023 = vrot.lane.b32.xlu0 %v2843, 96
        %v3024 = vpop.permute.xlu0 %3023
        %3025 = vrot.lane.b32.xlu0 %v2844, 96
        %v3026 = vpop.permute.xlu0 %3025
        %3027 = vrot.lane.b32.xlu0 %v2845, 96
        %v3028 = vpop.permute.xlu0 %3027
        %3029 = vrot.lane.b32.xlu0 %v2846, 96
        %v3030 = vpop.permute.xlu0 %3029
        %3031 = vrot.lane.b32.xlu0 %v2847, 96
        %v3032 = vpop.permute.xlu0 %3031
        %3033 = vrot.lane.b32.xlu0 %v2848, 96
        %v3034 = vpop.permute.xlu0 %3033
        %3035 = vrot.lane.b32.xlu0 %v2849, 96
        %v3036 = vpop.permute.xlu0 %3035
        %3037 = vrot.lane.b32.xlu0 %v2850, 96
        %v3038 = vpop.permute.xlu0 %3037
        %3039 = vrot.lane.b32.xlu0 %v2851, 96
        %v3040 = vpop.permute.xlu0 %3039
        %3041 = vrot.lane.b32.xlu0 %v2852, 96
        %v3042 = vpop.permute.xlu0 %3041
        %3043 = vrot.lane.b32.xlu0 %v2853, 96
        %v3044 = vpop.permute.xlu0 %3043
        %3045 = vrot.lane.b32.xlu0 %v2854, 96
        %v3046 = vpop.permute.xlu0 %3045
        %3063 = vrot.lane.b32.xlu0 %v2856, 32
        %v3064 = vpop.permute.xlu0 %3063
        %3065 = vrot.lane.b32.xlu0 %v2857, 32
        %v3066 = vpop.permute.xlu0 %3065
        %3067 = vrot.lane.b32.xlu0 %v2858, 32
        %v3068 = vpop.permute.xlu0 %3067
        %3069 = vrot.lane.b32.xlu0 %v2859, 32
        %v3070 = vpop.permute.xlu0 %3069
        %3071 = vrot.lane.b32.xlu0 %v2860, 32
        %v3072 = vpop.permute.xlu0 %3071
        %3073 = vrot.lane.b32.xlu0 %v2861, 32
        %v3074 = vpop.permute.xlu0 %3073
        %3075 = vrot.lane.b32.xlu0 %v2862, 32
        %v3076 = vpop.permute.xlu0 %3075
        %3077 = vrot.lane.b32.xlu0 %v2863, 32
        %v3078 = vpop.permute.xlu0 %3077
        %3079 = vrot.lane.b32.xlu0 %v2864, 32
        %v3080 = vpop.permute.xlu0 %3079
        %3081 = vrot.lane.b32.xlu0 %v2865, 32
        %v3082 = vpop.permute.xlu0 %3081
        %3083 = vrot.lane.b32.xlu0 %v2866, 32
        %v3084 = vpop.permute.xlu0 %3083
        %3085 = vrot.lane.b32.xlu0 %v2867, 32
        %v3086 = vpop.permute.xlu0 %3085
        %3087 = vrot.lane.b32.xlu0 %v2868, 32
        %v3088 = vpop.permute.xlu0 %3087
        %3089 = vrot.lane.b32.xlu0 %v2869, 32
        %v3090 = vpop.permute.xlu0 %3089
        %3091 = vrot.lane.b32.xlu0 %v2870, 32
        %v3092 = vpop.permute.xlu0 %3091
        %3093 = vrot.lane.b32.xlu0 %v2871, 32
        %v3094 = vpop.permute.xlu0 %3093
        %3111 = vrot.lane.b32.xlu0 %v2872, 64
        %v3112 = vpop.permute.xlu0 %3111
        %3113 = vrot.lane.b32.xlu0 %v2873, 64
        %v3114 = vpop.permute.xlu0 %3113
        %3115 = vrot.lane.b32.xlu0 %v2874, 64
        %v3116 = vpop.permute.xlu0 %3115
        %3117 = vrot.lane.b32.xlu0 %v2875, 64
        %v3118 = vpop.permute.xlu0 %3117
        %3119 = vrot.lane.b32.xlu0 %v2876, 64
        %v3120 = vpop.permute.xlu0 %3119
        %3121 = vrot.lane.b32.xlu0 %v2877, 64
        %v3122 = vpop.permute.xlu0 %3121
        %3123 = vrot.lane.b32.xlu0 %v2878, 64
        %v3124 = vpop.permute.xlu0 %3123
        %3125 = vrot.lane.b32.xlu0 %v2879, 64
        %v3126 = vpop.permute.xlu0 %3125
        %3127 = vrot.lane.b32.xlu0 %v2880, 64
        %v3128 = vpop.permute.xlu0 %3127
        %3129 = vrot.lane.b32.xlu0 %v2881, 64
        %v3130 = vpop.permute.xlu0 %3129
        %3131 = vrot.lane.b32.xlu0 %v2882, 64
        %v3132 = vpop.permute.xlu0 %3131
        %3133 = vrot.lane.b32.xlu0 %v2883, 64
        %v3134 = vpop.permute.xlu0 %3133
        %3135 = vrot.lane.b32.xlu0 %v2884, 64
        %v3136 = vpop.permute.xlu0 %3135
        %3137 = vrot.lane.b32.xlu0 %v2885, 64
        %v3138 = vpop.permute.xlu0 %3137
        %3139 = vrot.lane.b32.xlu0 %v2886, 64
        %v3140 = vpop.permute.xlu0 %3139
        %3141 = vrot.lane.b32.xlu0 %v2887, 64
        %v3142 = vpop.permute.xlu0 %3141
        %3144 = vrot.lane.b32.xlu0 %v2809, 96
        %v3145 = vpop.permute.xlu0 %3144
        %3146 = vrot.lane.b32.xlu0 %v2810, 96
        %v3147 = vpop.permute.xlu0 %3146
        %3148 = vrot.lane.b32.xlu0 %v2811, 96
        %v3149 = vpop.permute.xlu0 %3148
        %3150 = vrot.lane.b32.xlu0 %v2812, 96
        %v3151 = vpop.permute.xlu0 %3150
        %3152 = vrot.lane.b32.xlu0 %v2813, 96
        %v3153 = vpop.permute.xlu0 %3152
        %3154 = vrot.lane.b32.xlu0 %v2814, 96
        %v3155 = vpop.permute.xlu0 %3154
        %3156 = vrot.lane.b32.xlu0 %v2815, 96
        %v3157 = vpop.permute.xlu0 %3156
        %3158 = vrot.lane.b32.xlu0 %v2816, 96
        %v3159 = vpop.permute.xlu0 %3158
        %3160 = vrot.lane.b32.xlu0 %v2817, 96
        %v3161 = vpop.permute.xlu0 %3160
        %3162 = vrot.lane.b32.xlu0 %v2818, 96
        %v3163 = vpop.permute.xlu0 %3162
        %3164 = vrot.lane.b32.xlu0 %v2819, 96
        %v3165 = vpop.permute.xlu0 %3164
        %3166 = vrot.lane.b32.xlu0 %v2820, 96
        %v3167 = vpop.permute.xlu0 %3166
        %3168 = vrot.lane.b32.xlu0 %v2821, 96
        %v3169 = vpop.permute.xlu0 %3168
        %3170 = vrot.lane.b32.xlu0 %v2822, 96
        %v3171 = vpop.permute.xlu0 %3170
        %3172 = vrot.lane.b32.xlu0 %v2855, 96
        %v3173 = vpop.permute.xlu0 %3172
        %3174 = vrot.lane.b32.xlu0 %v2792, 96
        %v3175 = vpop.permute.xlu0 %3174
        %vm3176 = vcmask 261120
        %v3179 = vsel %vm3176, %v2792, %v2920
        %v3182 = vsel %vm3176, %v2793, %v2922
        %v3185 = vsel %vm3176, %v2794, %v2924
        %v3188 = vsel %vm3176, %v2795, %v2926
        %v3191 = vsel %vm3176, %v2796, %v2928
        %v3194 = vsel %vm3176, %v2797, %v2930
        %v3197 = vsel %vm3176, %v2798, %v2932
        %v3200 = vsel %vm3176, %v2799, %v2934
        %v3203 = vsel %vm3176, %v2800, %v2936
        %v3206 = vsel %vm3176, %v2801, %v2938
        %v3209 = vsel %vm3176, %v2802, %v2940
        %v3212 = vsel %vm3176, %v2803, %v2942
        %v3215 = vsel %vm3176, %v2804, %v2944
        %v3218 = vsel %vm3176, %v2805, %v2946
        %v3221 = vsel %vm3176, %v2806, %v2948
        %v3224 = vsel %vm3176, %v2807, %v2950
        %vm3225 = vcmask 523264
        %v3227 = vsel %vm3225, %v3179, %v2968
        %v3229 = vsel %vm3225, %v3182, %v2970
        %v3231 = vsel %vm3225, %v3185, %v2972
        %v3233 = vsel %vm3225, %v3188, %v2974
        %v3235 = vsel %vm3225, %v3191, %v2976
        %v3237 = vsel %vm3225, %v3194, %v2978
        %v3239 = vsel %vm3225, %v3197, %v2980
        %v3241 = vsel %vm3225, %v3200, %v2982
        %v3243 = vsel %vm3225, %v3203, %v2984
        %v3245 = vsel %vm3225, %v3206, %v2986
        %v3247 = vsel %vm3225, %v3209, %v2988
        %v3249 = vsel %vm3225, %v3212, %v2990
        %v3251 = vsel %vm3225, %v3215, %v2992
        %v3253 = vsel %vm3225, %v3218, %v2994
        %v3255 = vsel %vm3225, %v3221, %v2996
        %v3257 = vsel %vm3225, %v3224, %v2998
        %vm3258 = vcmask 785408
        %v3260 = vsel %vm3258, %v3227, %v3016
        %v3263 = vsel %vm3258, %v3229, %v3018
        %v3266 = vsel %vm3258, %v3231, %v3020
        %v3269 = vsel %vm3258, %v3233, %v3022
        %v3272 = vsel %vm3258, %v3235, %v3024
        %v3275 = vsel %vm3258, %v3237, %v3026
        %v3278 = vsel %vm3258, %v3239, %v3028
        %v3281 = vsel %vm3258, %v3241, %v3030
        %v3284 = vsel %vm3258, %v3243, %v3032
        %v3287 = vsel %vm3258, %v3245, %v3034
        %v3290 = vsel %vm3258, %v3247, %v3036
        %v3293 = vsel %vm3258, %v3249, %v3038
        %v3296 = vsel %vm3258, %v3251, %v3040
        %v3299 = vsel %vm3258, %v3253, %v3042
        %v3302 = vsel %vm3258, %v3255, %v3044
        %v3305 = vsel %vm3258, %v3257, %v3046
        %v3309 = vsel %vm3176, %v2808, %v3064
        %v3312 = vsel %vm3176, %v2809, %v3066
        %v3315 = vsel %vm3176, %v2810, %v3068
        %v3318 = vsel %vm3176, %v2811, %v3070
        %v3321 = vsel %vm3176, %v2812, %v3072
        %v3324 = vsel %vm3176, %v2813, %v3074
        %v3327 = vsel %vm3176, %v2814, %v3076
        %v3330 = vsel %vm3176, %v2815, %v3078
        %v3333 = vsel %vm3176, %v2816, %v3080
        %v3336 = vsel %vm3176, %v2817, %v3082
        %v3339 = vsel %vm3176, %v2818, %v3084
        %v3342 = vsel %vm3176, %v2819, %v3086
        %v3345 = vsel %vm3176, %v2820, %v3088
        %v3348 = vsel %vm3176, %v2821, %v3090
        %v3351 = vsel %vm3176, %v2822, %v3092
        %v3354 = vsel %vm3176, %v2855, %v3094
        %v3356 = vsel %vm3225, %v3309, %v3112
        %v3358 = vsel %vm3225, %v3312, %v3114
        %v3360 = vsel %vm3225, %v3315, %v3116
        %v3362 = vsel %vm3225, %v3318, %v3118
        %v3364 = vsel %vm3225, %v3321, %v3120
        %v3366 = vsel %vm3225, %v3324, %v3122
        %v3368 = vsel %vm3225, %v3327, %v3124
        %v3370 = vsel %vm3225, %v3330, %v3126
        %v3372 = vsel %vm3225, %v3333, %v3128
        %v3374 = vsel %vm3225, %v3336, %v3130
        %v3376 = vsel %vm3225, %v3339, %v3132
        %v3378 = vsel %vm3225, %v3342, %v3134
        %v3380 = vsel %vm3225, %v3345, %v3136
        %v3382 = vsel %vm3225, %v3348, %v3138
        %v3384 = vsel %vm3225, %v3351, %v3140
        %v3386 = vsel %vm3225, %v3354, %v3142
        %v3388 = vsel %vm3258, %v3356, %v3145
        %v3391 = vsel %vm3258, %v3358, %v3147
        %v3394 = vsel %vm3258, %v3360, %v3149
        %v3397 = vsel %vm3258, %v3362, %v3151
        %v3400 = vsel %vm3258, %v3364, %v3153
        %v3403 = vsel %vm3258, %v3366, %v3155
        %v3406 = vsel %vm3258, %v3368, %v3157
        %v3409 = vsel %vm3258, %v3370, %v3159
        %v3412 = vsel %vm3258, %v3372, %v3161
        %v3415 = vsel %vm3258, %v3374, %v3163
        %v3418 = vsel %vm3258, %v3376, %v3165
        %v3421 = vsel %vm3258, %v3378, %v3167
        %v3424 = vsel %vm3258, %v3380, %v3169
        %v3427 = vsel %vm3258, %v3382, %v3171
        %v3430 = vsel %vm3258, %v3384, %v3173
        %v3433 = vsel %vm3258, %v3386, %v3175
        %v3471 = vunpack.c.l.b16 %v2340
        %v3472 = vunpack.c.l.b16 %v2341
        %v3473 = vunpack.c.l.b16 %v2342
        %v3474 = vunpack.c.l.b16 %v2343
        %v3475 = vunpack.c.l.b16 %v2344
        %v3476 = vunpack.c.l.b16 %v2345
        %v3477 = vunpack.c.l.b16 %v2346
        %v3478 = vunpack.c.l.b16 %v2347
        %v3479 = vunpack.c.l.b16 %v2348
        %v3480 = vunpack.c.l.b16 %v2349
        %v3481 = vunpack.c.l.b16 %v2350
        %v3482 = vunpack.c.l.b16 %v2351
        %v3483 = vunpack.c.l.b16 %v2352
        %v3484 = vunpack.c.l.b16 %v2353
        %v3485 = vunpack.c.l.b16 %v2354
        %v3486 = vunpack.c.l.b16 %v2355
        %v3487 = vunpack.c.l.b16 %v2356
        %v3488 = vunpack.c.l.b16 %v2357
        %v3489 = vunpack.c.l.b16 %v2358
        %v3490 = vunpack.c.l.b16 %v2359
        %v3491 = vunpack.c.l.b16 %v2360
        %v3492 = vunpack.c.l.b16 %v2361
        %v3493 = vunpack.c.l.b16 %v2362
        %v3494 = vunpack.c.l.b16 %v2363
        %v3495 = vunpack.c.l.b16 %v2364
        %v3496 = vunpack.c.l.b16 %v2365
        %v3497 = vunpack.c.l.b16 %v2366
        %v3498 = vunpack.c.l.b16 %v2367
        %v3499 = vunpack.c.l.b16 %v2368
        %v3500 = vunpack.c.l.b16 %v2369
        %v3501 = vunpack.c.l.b16 %v2370
        %v3502 = vunpack.c.l.b16 %v2371
        %v3503 = vunpack.c.l.b16 %v2372
        %v3504 = vunpack.c.l.b16 %v2373
        %v3505 = vunpack.c.l.b16 %v2374
        %v3506 = vunpack.c.l.b16 %v2375
        %v3507 = vpack.c.b16 %v3472, %v3471
        %v3508 = vpack.c.b16 %v3474, %v3473
        %v3509 = vpack.c.b16 %v3476, %v3475
        %v3510 = vpack.c.b16 %v3478, %v3477
        %v3511 = vpack.c.b16 %v3480, %v3479
        %v3512 = vpack.c.b16 %v3482, %v3481
        %v3513 = vpack.c.b16 %v3484, %v3483
        %v3514 = vpack.c.b16 %v3486, %v3485
        %v3515 = vpack.c.b16 %v3488, %v3487
        %v3516 = vpack.c.b16 %v3490, %v3489
        %v3517 = vpack.c.b16 %v3492, %v3491
        %v3518 = vpack.c.b16 %v3494, %v3493
        %v3519 = vpack.c.b16 %v3496, %v3495
        %v3520 = vpack.c.b16 %v3498, %v3497
        %v3521 = vpack.c.b16 %v3500, %v3499
        %v3522 = vpack.c.b16 %v3502, %v3501
        %v3523 = vpack.c.b16 %v3504, %v3503
        %v3524 = vpack.c.b16 %v3506, %v3505
        %v3544 = vsel %vm3176, %v2888, 0
        %v3547 = vsel %vm3176, %v2889, 0
        %v3550 = vsel %vm3176, %v2890, 0
        %v3553 = vsel %vm3176, %v2891, 0
        %v3556 = vsel %vm3176, %v2892, 0
        %v3559 = vsel %vm3176, %v2893, 0
        %v3562 = vsel %vm3176, %v2894, 0
        %v3565 = vsel %vm3176, %v2895, 0
        %v3568 = vsel %vm3176, %v2896, 0
        %v3571 = vsel %vm3176, %v2897, 0
        %v3574 = vsel %vm3176, %v2898, 0
        %v3577 = vsel %vm3176, %v2899, 0
        %v3580 = vsel %vm3176, %v2900, 0
        %v3583 = vsel %vm3176, %v2901, 0
        %v3586 = vsel %vm3176, %v2902, 0
        %v3588 = vsel %vm3176, %v2792, 0
        %3590 = vmatprep.subr.bf16.mxu0 0
        %3591 = vmatpush1.bf16.msra.mxu0 %v3507
        %3592 = vmatprep.subr.bf16.mxu0 0
        %3593 = vmatpush1.bf16.msra.mxu0 %v3508
        %3594 = vmatprep.subr.bf16.mxu0 0
        %3595 = vmatpush1.bf16.msra.mxu0 %v3509
        %3596 = vmatprep.subr.bf16.mxu0 0
        %3597 = vmatpush1.bf16.msra.mxu0 %v3510
        %3598 = vmatprep.subr.bf16.mxu0 0
        %3599 = vmatpush1.bf16.msra.mxu0 %v3511
        %3600 = vmatprep.subr.bf16.mxu0 0
        %3601 = vmatpush1.bf16.msra.mxu0 %v3512
        %3602 = vmatprep.subr.bf16.mxu0 0
        %3603 = vmatpush1.bf16.msra.mxu0 %v3513
        %3604 = vmatprep.subr.bf16.mxu0 0
        %3605 = vmatpush1.bf16.msra.mxu0 %v3514
        %3606 = vmatprep.subr.bf16.mxu0 0
        %3607 = vmatpush1.bf16.msra.mxu0 %v3515
        %3608 = vmatprep.subr.bf16.mxu0 0
        %3609 = vmatpush1.bf16.msra.mxu0 %v3516
        %3610 = vmatprep.subr.bf16.mxu0 0
        %3611 = vmatpush1.bf16.msra.mxu0 %v3517
        %3612 = vmatprep.subr.bf16.mxu0 0
        %3613 = vmatpush1.bf16.msra.mxu0 %v3518
        %3614 = vmatprep.subr.bf16.mxu0 0
        %3615 = vmatpush1.bf16.msra.mxu0 %v3519
        %3616 = vmatprep.subr.bf16.mxu0 0
        %3617 = vmatpush1.bf16.msra.mxu0 %v3520
        %3618 = vmatprep.subr.bf16.mxu0 0
        %3619 = vmatpush1.bf16.msra.mxu0 %v3521
        %3620 = vmatprep.subr.bf16.mxu0 0
        %3621 = vmatpush1.bf16.msra.mxu0 %v3522
        %3622 = vmatprep.mubr.bf16.mxu0 %v3388
        %3623 = vmatmul.mubr.bf16.gmra.mrb[0].mxu0 %v3260
        %v3624 = vpop.f32.mrb[0].mxu0
        %v3625 = vadd.f32 0.0, %v3624
        %v3626 = vpop.f32.mrb[0].mxu0
        %v3627 = vpop.f32.mrb[0].mxu0
        %v3628 = vadd.f32 0.0, %v3627
        %v3629 = vpop.f32.mrb[0].mxu0
        %3630 = vmatprep.mubr.bf16.mxu0 %v3391
        %3631 = vmatmul.mubr.bf16.gmra.mrb[0].mxu0 %v3263
        %v3632 = vpop.f32.mrb[0].mxu0
        %v3633 = vadd.f32 0.0, %v3632
        %v3634 = vpop.f32.mrb[0].mxu0
        %v3635 = vpop.f32.mrb[0].mxu0
        %v3636 = vadd.f32 0.0, %v3635
        %v3637 = vpop.f32.mrb[0].mxu0
        %3638 = vmatprep.mubr.bf16.mxu0 %v3394
        %3639 = vmatmul.mubr.bf16.gmra.mrb[0].mxu0 %v3266
        %v3640 = vpop.f32.mrb[0].mxu0
        %v3641 = vadd.f32 0.0, %v3640
        %v3642 = vpop.f32.mrb[0].mxu0
        %v3643 = vpop.f32.mrb[0].mxu0
        %v3644 = vadd.f32 0.0, %v3643
        %v3645 = vpop.f32.mrb[0].mxu0
        %3646 = vmatprep.mubr.bf16.mxu0 %v3397
        %3647 = vmatmul.mubr.bf16.gmra.mrb[0].mxu0 %v3269
        %v3648 = vpop.f32.mrb[0].mxu0
        %v3649 = vadd.f32 0.0, %v3648
        %v3650 = vpop.f32.mrb[0].mxu0
        %v3651 = vpop.f32.mrb[0].mxu0
        %v3652 = vadd.f32 0.0, %v3651
        %v3653 = vpop.f32.mrb[0].mxu0
        %3654 = vmatprep.mubr.bf16.mxu0 %v3400
        %3655 = vmatmul.mubr.bf16.gmra.mrb[0].mxu0 %v3272
        %v3656 = vpop.f32.mrb[0].mxu0
        %v3657 = vadd.f32 0.0, %v3656
        %v3658 = vpop.f32.mrb[0].mxu0
        %v3659 = vpop.f32.mrb[0].mxu0
        %v3660 = vadd.f32 0.0, %v3659
        %v3661 = vpop.f32.mrb[0].mxu0
        %3662 = vmatprep.mubr.bf16.mxu0 %v3403
        %3663 = vmatmul.mubr.bf16.gmra.mrb[0].mxu0 %v3275
        %v3664 = vpop.f32.mrb[0].mxu0
        %v3665 = vadd.f32 0.0, %v3664
        %v3666 = vpop.f32.mrb[0].mxu0
        %v3667 = vpop.f32.mrb[0].mxu0
        %v3668 = vadd.f32 0.0, %v3667
        %v3669 = vpop.f32.mrb[0].mxu0
        %3670 = vmatprep.mubr.bf16.mxu0 %v3406
        %3671 = vmatmul.mubr.bf16.gmra.mrb[0].mxu0 %v3278
        %v3672 = vpop.f32.mrb[0].mxu0
        %v3673 = vadd.f32 0.0, %v3672
        %v3674 = vpop.f32.mrb[0].mxu0
        %v3675 = vpop.f32.mrb[0].mxu0
        %v3676 = vadd.f32 0.0, %v3675
        %v3677 = vpop.f32.mrb[0].mxu0
        %3678 = vmatprep.mubr.bf16.mxu0 %v3409
        %3679 = vmatmul.mubr.bf16.gmra.mrb[0].mxu0 %v3281
        %v3680 = vpop.f32.mrb[0].mxu0
        %v3681 = vadd.f32 0.0, %v3680
        %v3682 = vpop.f32.mrb[0].mxu0
        %v3683 = vpop.f32.mrb[0].mxu0
        %v3684 = vadd.f32 0.0, %v3683
        %v3685 = vpop.f32.mrb[0].mxu0
        %3686 = vmatprep.mubr.bf16.mxu0 %v3412
        %3687 = vmatmul.mubr.bf16.gmra.mrb[0].mxu0 %v3284
        %v3688 = vpop.f32.mrb[0].mxu0
        %v3689 = vadd.f32 0.0, %v3688
        %v3690 = vpop.f32.mrb[0].mxu0
        %v3691 = vpop.f32.mrb[0].mxu0
        %v3692 = vadd.f32 0.0, %v3691
        %v3693 = vpop.f32.mrb[0].mxu0
        %3694 = vmatprep.mubr.bf16.mxu0 %v3415
        %3695 = vmatmul.mubr.bf16.gmra.mrb[0].mxu0 %v3287
        %v3696 = vpop.f32.mrb[0].mxu0
        %v3697 = vadd.f32 0.0, %v3696
        %v3698 = vpop.f32.mrb[0].mxu0
        %v3699 = vpop.f32.mrb[0].mxu0
        %v3700 = vadd.f32 0.0, %v3699
        %v3701 = vpop.f32.mrb[0].mxu0
        %3702 = vmatprep.mubr.bf16.mxu0 %v3418
        %3703 = vmatmul.mubr.bf16.gmra.mrb[0].mxu0 %v3290
        %v3704 = vpop.f32.mrb[0].mxu0
        %v3705 = vadd.f32 0.0, %v3704
        %v3706 = vpop.f32.mrb[0].mxu0
        %v3707 = vpop.f32.mrb[0].mxu0
        %v3708 = vadd.f32 0.0, %v3707
        %v3709 = vpop.f32.mrb[0].mxu0
        %3710 = vmatprep.mubr.bf16.mxu0 %v3421
        %3711 = vmatmul.mubr.bf16.gmra.mrb[0].mxu0 %v3293
        %v3712 = vpop.f32.mrb[0].mxu0
        %v3713 = vadd.f32 0.0, %v3712
        %v3714 = vpop.f32.mrb[0].mxu0
        %v3715 = vpop.f32.mrb[0].mxu0
        %v3716 = vadd.f32 0.0, %v3715
        %v3717 = vpop.f32.mrb[0].mxu0
        %3718 = vmatprep.mubr.bf16.mxu0 %v3424
        %3719 = vmatmul.mubr.bf16.gmra.mrb[0].mxu0 %v3296
        %v3720 = vpop.f32.mrb[0].mxu0
        %v3721 = vadd.f32 0.0, %v3720
        %v3722 = vpop.f32.mrb[0].mxu0
        %v3723 = vpop.f32.mrb[0].mxu0
        %v3724 = vadd.f32 0.0, %v3723
        %v3725 = vpop.f32.mrb[0].mxu0
        %3726 = vmatprep.mubr.bf16.mxu0 %v3427
        %3727 = vmatmul.mubr.bf16.gmra.mrb[0].mxu0 %v3299
        %v3728 = vpop.f32.mrb[0].mxu0
        %v3729 = vadd.f32 0.0, %v3728
        %v3730 = vpop.f32.mrb[0].mxu0
        %v3731 = vpop.f32.mrb[0].mxu0
        %v3732 = vadd.f32 0.0, %v3731
        %v3733 = vpop.f32.mrb[0].mxu0
        %3734 = vmatprep.mubr.bf16.mxu0 %v3430
        %3735 = vmatmul.mubr.bf16.gmra.mrb[0].mxu0 %v3302
        %v3736 = vpop.f32.mrb[0].mxu0
        %v3737 = vadd.f32 0.0, %v3736
        %v3738 = vpop.f32.mrb[0].mxu0
        %v3739 = vpop.f32.mrb[0].mxu0
        %v3740 = vadd.f32 0.0, %v3739
        %v3741 = vpop.f32.mrb[0].mxu0
        %3742 = vmatprep.mubr.bf16.mxu0 %v3433
        %3743 = vmatmul.mubr.bf16.gmra.mrb[0].mxu0 %v3305
        %v3744 = vpop.f32.mrb[0].mxu0
        %v3745 = vadd.f32 0.0, %v3744
        %v3746 = vpop.f32.mrb[0].mxu0
        %v3747 = vpop.f32.mrb[0].mxu0
        %v3748 = vadd.f32 0.0, %v3747
        %v3749 = vpop.f32.mrb[0].mxu0
        %3750 = vdwg.mxu0
        %3751 = vmatprep.subr.bf16.mxu0 0
        %3752 = vmatpush1.bf16.msra.mxu0 %v3523
        %3753 = vmatprep.subr.bf16.mxu0 0
        %3754 = vmatpush1.bf16.msra.mxu0 %v3524
        %3755 = vmatprep.subr.bf16.mxu0 0
        %3756 = vmatpush1.bf16.msra.mxu0 0
        %3757 = vmatprep.subr.bf16.mxu0 0
        %3758 = vmatpush1.bf16.msra.mxu0 0
        %3759 = vmatprep.subr.bf16.mxu0 0
        %3760 = vmatpush1.bf16.msra.mxu0 0
        %3761 = vmatprep.subr.bf16.mxu0 0
        %3762 = vmatpush1.bf16.msra.mxu0 0
        %3763 = vmatprep.subr.bf16.mxu0 0
        %3764 = vmatpush1.bf16.msra.mxu0 0
        %3765 = vmatprep.subr.bf16.mxu0 0
        %3766 = vmatpush1.bf16.msra.mxu0 0
        %3767 = vmatprep.subr.bf16.mxu0 0
        %3768 = vmatpush1.bf16.msra.mxu0 0
        %3769 = vmatprep.subr.bf16.mxu0 0
        %3770 = vmatpush1.bf16.msra.mxu0 0
        %3771 = vmatprep.subr.bf16.mxu0 0
        %3772 = vmatpush1.bf16.msra.mxu0 0
        %3773 = vmatprep.subr.bf16.mxu0 0
        %3774 = vmatpush1.bf16.msra.mxu0 0
        %3775 = vmatprep.subr.bf16.mxu0 0
        %3776 = vmatpush1.bf16.msra.mxu0 0
        %3777 = vmatprep.subr.bf16.mxu0 0
        %3778 = vmatpush1.bf16.msra.mxu0 0
        %3779 = vmatprep.subr.bf16.mxu0 0
        %3780 = vmatpush1.bf16.msra.mxu0 0
        %3781 = vmatprep.subr.bf16.mxu0 0
        %3782 = vmatpush1.bf16.msra.mxu0 0
        %3783 = vmatprep.mubr.bf16.mxu0 0
        %3784 = vmatmul.mubr.bf16.gmra.mrb[0].mxu0 %v3544
        %v3785 = vpop.f32.mrb[0].mxu0
        %v3786 = vadd.f32 %v3625, %v3785
        %v3787 = vpop.f32.mrb[0].mxu0
        %v3788 = vpop.f32.mrb[0].mxu0
        %v3789 = vadd.f32 %v3628, %v3788
        %v3790 = vpop.f32.mrb[0].mxu0
        %3791 = vmatprep.mubr.bf16.mxu0 0
        %3792 = vmatmul.mubr.bf16.gmra.mrb[0].mxu0 %v3547
        %v3793 = vpop.f32.mrb[0].mxu0
        %v3794 = vadd.f32 %v3633, %v3793
        %v3795 = vpop.f32.mrb[0].mxu0
        %v3796 = vpop.f32.mrb[0].mxu0
        %v3797 = vadd.f32 %v3636, %v3796
        %v3798 = vpop.f32.mrb[0].mxu0
        %3799 = vmatprep.mubr.bf16.mxu0 0
        %3800 = vmatmul.mubr.bf16.gmra.mrb[0].mxu0 %v3550
        %v3801 = vpop.f32.mrb[0].mxu0
        %v3802 = vadd.f32 %v3641, %v3801
        %v3803 = vpop.f32.mrb[0].mxu0
        %v3804 = vpop.f32.mrb[0].mxu0
        %v3805 = vadd.f32 %v3644, %v3804
        %v3806 = vpop.f32.mrb[0].mxu0
        %3807 = vmatprep.mubr.bf16.mxu0 0
        %3808 = vmatmul.mubr.bf16.gmra.mrb[0].mxu0 %v3553
        %v3809 = vpop.f32.mrb[0].mxu0
        %v3810 = vadd.f32 %v3649, %v3809
        %v3811 = vpop.f32.mrb[0].mxu0
        %v3812 = vpop.f32.mrb[0].mxu0
        %v3813 = vadd.f32 %v3652, %v3812
        %v3814 = vpop.f32.mrb[0].mxu0
        %3815 = vmatprep.mubr.bf16.mxu0 0
        %3816 = vmatmul.mubr.bf16.gmra.mrb[0].mxu0 %v3556
        %v3817 = vpop.f32.mrb[0].mxu0
        %v3818 = vadd.f32 %v3657, %v3817
        %v3819 = vpop.f32.mrb[0].mxu0
        %v3820 = vpop.f32.mrb[0].mxu0
        %v3821 = vadd.f32 %v3660, %v3820
        %v3822 = vpop.f32.mrb[0].mxu0
        %3823 = vmatprep.mubr.bf16.mxu0 0
        %3824 = vmatmul.mubr.bf16.gmra.mrb[0].mxu0 %v3559
        %v3825 = vpop.f32.mrb[0].mxu0
        %v3826 = vadd.f32 %v3665, %v3825
        %v3827 = vpop.f32.mrb[0].mxu0
        %v3828 = vpop.f32.mrb[0].mxu0
        %v3829 = vadd.f32 %v3668, %v3828
        %v3830 = vpop.f32.mrb[0].mxu0
        %3831 = vmatprep.mubr.bf16.mxu0 0
        %3832 = vmatmul.mubr.bf16.gmra.mrb[0].mxu0 %v3562
        %v3833 = vpop.f32.mrb[0].mxu0
        %v3834 = vadd.f32 %v3673, %v3833
        %v3835 = vpop.f32.mrb[0].mxu0
        %v3836 = vpop.f32.mrb[0].mxu0
        %v3837 = vadd.f32 %v3676, %v3836
        %v3838 = vpop.f32.mrb[0].mxu0
        %3839 = vmatprep.mubr.bf16.mxu0 0
        %3840 = vmatmul.mubr.bf16.gmra.mrb[0].mxu0 %v3565
        %v3841 = vpop.f32.mrb[0].mxu0
        %v3842 = vadd.f32 %v3681, %v3841
        %v3843 = vpop.f32.mrb[0].mxu0
        %v3844 = vpop.f32.mrb[0].mxu0
        %v3845 = vadd.f32 %v3684, %v3844
        %v3846 = vpop.f32.mrb[0].mxu0
        %3847 = vmatprep.mubr.bf16.mxu0 0
        %3848 = vmatmul.mubr.bf16.gmra.mrb[0].mxu0 %v3568
        %v3849 = vpop.f32.mrb[0].mxu0
        %v3850 = vadd.f32 %v3689, %v3849
        %v3851 = vpop.f32.mrb[0].mxu0
        %v3852 = vpop.f32.mrb[0].mxu0
        %v3853 = vadd.f32 %v3692, %v3852
        %v3854 = vpop.f32.mrb[0].mxu0
        %3855 = vmatprep.mubr.bf16.mxu0 0
        %3856 = vmatmul.mubr.bf16.gmra.mrb[0].mxu0 %v3571
        %v3857 = vpop.f32.mrb[0].mxu0
        %v3858 = vadd.f32 %v3697, %v3857
        %v3859 = vpop.f32.mrb[0].mxu0
        %v3860 = vpop.f32.mrb[0].mxu0
        %v3861 = vadd.f32 %v3700, %v3860
        %v3862 = vpop.f32.mrb[0].mxu0
        %3863 = vmatprep.mubr.bf16.mxu0 0
        %3864 = vmatmul.mubr.bf16.gmra.mrb[0].mxu0 %v3574
        %v3865 = vpop.f32.mrb[0].mxu0
        %v3866 = vadd.f32 %v3705, %v3865
        %v3867 = vpop.f32.mrb[0].mxu0
        %v3868 = vpop.f32.mrb[0].mxu0
        %v3869 = vadd.f32 %v3708, %v3868
        %v3870 = vpop.f32.mrb[0].mxu0
        %3871 = vmatprep.mubr.bf16.mxu0 0
        %3872 = vmatmul.mubr.bf16.gmra.mrb[0].mxu0 %v3577
        %v3873 = vpop.f32.mrb[0].mxu0
        %v3874 = vadd.f32 %v3713, %v3873
        %v3875 = vpop.f32.mrb[0].mxu0
        %v3876 = vpop.f32.mrb[0].mxu0
        %v3877 = vadd.f32 %v3716, %v3876
        %v3878 = vpop.f32.mrb[0].mxu0
        %3879 = vmatprep.mubr.bf16.mxu0 0
        %3880 = vmatmul.mubr.bf16.gmra.mrb[0].mxu0 %v3580
        %v3881 = vpop.f32.mrb[0].mxu0
        %v3882 = vadd.f32 %v3721, %v3881
        %v3883 = vpop.f32.mrb[0].mxu0
        %v3884 = vpop.f32.mrb[0].mxu0
        %v3885 = vadd.f32 %v3724, %v3884
        %v3886 = vpop.f32.mrb[0].mxu0
        %3887 = vmatprep.mubr.bf16.mxu0 0
        %3888 = vmatmul.mubr.bf16.gmra.mrb[0].mxu0 %v3583
        %v3889 = vpop.f32.mrb[0].mxu0
        %v3890 = vadd.f32 %v3729, %v3889
        %v3891 = vpop.f32.mrb[0].mxu0
        %v3892 = vpop.f32.mrb[0].mxu0
        %v3893 = vadd.f32 %v3732, %v3892
        %v3894 = vpop.f32.mrb[0].mxu0
        %3895 = vmatprep.mubr.bf16.mxu0 0
        %3896 = vmatmul.mubr.bf16.gmra.mrb[0].mxu0 %v3586
        %v3897 = vpop.f32.mrb[0].mxu0
        %v3898 = vadd.f32 %v3737, %v3897
        %v3899 = vpop.f32.mrb[0].mxu0
        %v3900 = vpop.f32.mrb[0].mxu0
        %v3901 = vadd.f32 %v3740, %v3900
        %v3902 = vpop.f32.mrb[0].mxu0
        %3903 = vmatprep.mubr.bf16.mxu0 0
        %3904 = vmatmul.mubr.bf16.gmra.mrb[0].mxu0 %v3588
        %v3905 = vpop.f32.mrb[0].mxu0
        %v3906 = vadd.f32 %v3745, %v3905
        %v3907 = vpop.f32.mrb[0].mxu0
        %v3908 = vpop.f32.mrb[0].mxu0
        %v3909 = vadd.f32 %v3748, %v3908
        %v3910 = vpop.f32.mrb[0].mxu0
        %3911 = vdwg.mxu0
        %v3913 = vlaneseq
        %v3914 = vshrl.u32 %v3913, 7
        %v3915 = vsub.s32 0, %v3914
        %v3916 = vrot.slane %v2376, %v3915
        %v3918 = vmul.f32 %v3786, %v3916
        %v3919 = vmul.f32 %v3789, %v3916
        %v3920 = vmul.f32 %v3794, %v3916
        %v3921 = vmul.f32 %v3797, %v3916
        %v3922 = vmul.f32 %v3802, %v3916
        %v3923 = vmul.f32 %v3805, %v3916
        %v3924 = vmul.f32 %v3810, %v3916
        %v3925 = vmul.f32 %v3813, %v3916
        %v3926 = vmul.f32 %v3818, %v3916
        %v3927 = vmul.f32 %v3821, %v3916
        %v3928 = vmul.f32 %v3826, %v3916
        %v3929 = vmul.f32 %v3829, %v3916
        %v3930 = vmul.f32 %v3834, %v3916
        %v3931 = vmul.f32 %v3837, %v3916
        %v3932 = vmul.f32 %v3842, %v3916
        %v3933 = vmul.f32 %v3845, %v3916
        %v3934 = vmul.f32 %v3850, %v3916
        %v3935 = vmul.f32 %v3853, %v3916
        %v3936 = vmul.f32 %v3858, %v3916
        %v3937 = vmul.f32 %v3861, %v3916
        %v3938 = vmul.f32 %v3866, %v3916
        %v3939 = vmul.f32 %v3869, %v3916
        %v3940 = vmul.f32 %v3874, %v3916
        %v3941 = vmul.f32 %v3877, %v3916
        %v3942 = vmul.f32 %v3882, %v3916
        %v3943 = vmul.f32 %v3885, %v3916
        %v3944 = vmul.f32 %v3890, %v3916
        %v3945 = vmul.f32 %v3893, %v3916
        %v3946 = vmul.f32 %v3898, %v3916
        %v3947 = vmul.f32 %v3901, %v3916
        %v3948 = vmul.f32 %v3906, %v3916
        %v3949 = vmul.f32 %v3909, %v3916
        %v3951 = vlaneseq
        %v3952 = vshrl.u32 %v3951, 7
        %v3953 = vsub.s32 0, %v3952
        %v3954 = vrot.slane %v2377, %v3953
        %v3956 = vadd.f32 %v3918, %v3954
        %v3957 = vadd.f32 %v3919, %v3954
        %v3958 = vadd.f32 %v3920, %v3954
        %v3959 = vadd.f32 %v3921, %v3954
        %v3960 = vadd.f32 %v3922, %v3954
        %v3961 = vadd.f32 %v3923, %v3954
        %v3962 = vadd.f32 %v3924, %v3954
        %v3963 = vadd.f32 %v3925, %v3954
        %v3964 = vadd.f32 %v3926, %v3954
        %v3965 = vadd.f32 %v3927, %v3954
        %v3966 = vadd.f32 %v3928, %v3954
        %v3967 = vadd.f32 %v3929, %v3954
        %v3968 = vadd.f32 %v3930, %v3954
        %v3969 = vadd.f32 %v3931, %v3954
        %v3970 = vadd.f32 %v3932, %v3954
        %v3971 = vadd.f32 %v3933, %v3954
        %v3972 = vadd.f32 %v3934, %v3954
        %v3973 = vadd.f32 %v3935, %v3954
        %v3974 = vadd.f32 %v3936, %v3954
        %v3975 = vadd.f32 %v3937, %v3954
        %v3976 = vadd.f32 %v3938, %v3954
        %v3977 = vadd.f32 %v3939, %v3954
        %v3978 = vadd.f32 %v3940, %v3954
        %v3979 = vadd.f32 %v3941, %v3954
        %v3980 = vadd.f32 %v3942, %v3954
        %v3981 = vadd.f32 %v3943, %v3954
        %v3982 = vadd.f32 %v3944, %v3954
        %v3983 = vadd.f32 %v3945, %v3954
        %v3984 = vadd.f32 %v3946, %v3954
        %v3985 = vadd.f32 %v3947, %v3954
        %v3986 = vadd.f32 %v3948, %v3954
        %v3987 = vadd.f32 %v3949, %v3954
        %v3988 = vmax.f32 %v3956, 0.0
        %v3989 = vmax.f32 %v3957, 0.0
        %v3990 = vmax.f32 %v3958, 0.0
        %v3991 = vmax.f32 %v3959, 0.0
        %v3992 = vmax.f32 %v3960, 0.0
        %v3993 = vmax.f32 %v3961, 0.0
        %v3994 = vmax.f32 %v3962, 0.0
        %v3995 = vmax.f32 %v3963, 0.0
        %v3996 = vmax.f32 %v3964, 0.0
        %v3997 = vmax.f32 %v3965, 0.0
        %v3998 = vmax.f32 %v3966, 0.0
        %v3999 = vmax.f32 %v3967, 0.0
        %v4000 = vmax.f32 %v3968, 0.0
        %v4001 = vmax.f32 %v3969, 0.0
        %v4002 = vmax.f32 %v3970, 0.0
        %v4003 = vmax.f32 %v3971, 0.0
        %v4004 = vmax.f32 %v3972, 0.0
        %v4005 = vmax.f32 %v3973, 0.0
        %v4006 = vmax.f32 %v3974, 0.0
        %v4007 = vmax.f32 %v3975, 0.0
        %v4008 = vmax.f32 %v3976, 0.0
        %v4009 = vmax.f32 %v3977, 0.0
        %v4010 = vmax.f32 %v3978, 0.0
        %v4011 = vmax.f32 %v3979, 0.0
        %v4012 = vmax.f32 %v3980, 0.0
        %v4013 = vmax.f32 %v3981, 0.0
        %v4014 = vmax.f32 %v3982, 0.0
        %v4015 = vmax.f32 %v3983, 0.0
        %v4016 = vmax.f32 %v3984, 0.0
        %v4017 = vmax.f32 %v3985, 0.0
        %v4018 = vmax.f32 %v3986, 0.0
        %v4019 = vmax.f32 %v3987, 0.0
        %v4020 = vld [vmem:[%s7] sm:$0xf]
        %v4021 = vld [vmem:[%s7 + $0x4] sm:$0xf]
        %v4022 = vld [vmem:[%s7 + $0x8] sm:$0xf]
        %v4023 = vld [vmem:[%s7 + $0xc] sm:$0xf]
        %v4024 = vld [vmem:[%s7 + $0x10] sm:$0xf]
        %v4025 = vld [vmem:[%s7 + $0x14] sm:$0xf]
        %v4026 = vld [vmem:[%s7 + $0x18] sm:$0xf]
        %v4027 = vld [vmem:[%s7 + $0x1c] sm:$0xf]
        %v4028 = vld [vmem:[%s7 + $0x20] sm:$0xf]
        %v4029 = vld [vmem:[%s7 + $0x24] sm:$0xf]
        %v4030 = vld [vmem:[%s7 + $0x28] sm:$0xf]
        %v4031 = vld [vmem:[%s7 + $0x2c] sm:$0xf]
        %v4032 = vld [vmem:[%s7 + $0x30] sm:$0xf]
        %v4033 = vld [vmem:[%s7 + $0x34] sm:$0xf]
        %v4034 = vld [vmem:[%s7 + $0x38] sm:$0xf]
        %v4035 = vld [vmem:[%s7 + $0x3c] sm:$0xf]
        %v4036 = vld [vmem:[%s7 + $0x40] sm:$0xf]
        %v4037 = vld [vmem:[%s7 + $0x44] sm:$0xf]
        %v4038 = vld [vmem:[%s7 + $0x48] sm:$0xf]
        %v4039 = vld [vmem:[%s7 + $0x4c] sm:$0xf]
        %v4040 = vld [vmem:[%s7 + $0x50] sm:$0xf]
        %v4041 = vld [vmem:[%s7 + $0x54] sm:$0xf]
        %v4042 = vld [vmem:[%s7 + $0x58] sm:$0xf]
        %v4043 = vld [vmem:[%s7 + $0x5c] sm:$0xf]
        %v4044 = vld [vmem:[%s7 + $0x60] sm:$0xf]
        %v4045 = vld [vmem:[%s7 + $0x64] sm:$0xf]
        %v4046 = vld [vmem:[%s7 + $0x68] sm:$0xf]
        %v4047 = vld [vmem:[%s7 + $0x6c] sm:$0xf]
        %v4048 = vld [vmem:[%s7 + $0x70] sm:$0xf]
        %v4049 = vld [vmem:[%s7 + $0x74] sm:$0xf]
        %v4050 = vld [vmem:[%s7 + $0x78] sm:$0xf]
        %v4051 = vld [vmem:[%s7 + $0x7c] sm:$0xf]
        %v4052 = vld [vmem:[%s7 + $0x80] sm:$0xf]
        %v4053 = vld [vmem:[%s7 + $0x84] sm:$0xf]
        %v4054 = vld [vmem:[%s7 + $0x88] sm:$0xf]
        %v4055 = vld [vmem:[%s7 + $0x8c] sm:$0xf]
        %v4056 = vld [vmem:[%s7 + $0x90] sm:$0xf]
        %v4057 = vld [vmem:[%s7 + $0x94] sm:$0xf]
        %v4058 = vld [vmem:[%s7 + $0x98] sm:$0xf]
        %v4059 = vld [vmem:[%s7 + $0x9c] sm:$0xf]
        %v4060 = vld [vmem:[%s7 + $0xa0] sm:$0xf]
        %v4061 = vld [vmem:[%s7 + $0xa4] sm:$0xf]
        %v4062 = vld [vmem:[%s7 + $0xa8] sm:$0xf]
        %v4063 = vld [vmem:[%s7 + $0xac] sm:$0xf]
        %v4064 = vld [vmem:[%s7 + $0xb0] sm:$0xf]
        %v4065 = vld [vmem:[%s7 + $0xb4] sm:$0xf]
        %v4066 = vld [vmem:[%s7 + $0xb8] sm:$0xf]
        %v4067 = vld [vmem:[%s7 + $0xbc] sm:$0xf]
        %v4068 = vld [vmem:[%s7 + $0xc0] sm:$0xf]
        %v4069 = vld [vmem:[%s7 + $0xc4] sm:$0xf]
        %v4070 = vld [vmem:[%s7 + $0xc8] sm:$0xf]
        %v4071 = vld [vmem:[%s7 + $0xcc] sm:$0xf]
        %v4072 = vld [vmem:[%s7 + $0xd0] sm:$0xf]
        %v4073 = vld [vmem:[%s7 + $0xd4] sm:$0xf]
        %v4074 = vld [vmem:[%s7 + $0xd8] sm:$0xf]
        %v4075 = vld [vmem:[%s7 + $0xdc] sm:$0xf]
        %v4076 = vld [vmem:[%s7 + $0xe0] sm:$0xf]
        %v4077 = vld [vmem:[%s7 + $0xe4] sm:$0xf]
        %v4078 = vld [vmem:[%s7 + $0xe8] sm:$0xf]
        %v4079 = vld [vmem:[%s7 + $0xec] sm:$0xf]
        %v4080 = vld [vmem:[%s7 + $0xf0] sm:$0xf]
        %v4081 = vld [vmem:[%s7 + $0xf4] sm:$0xf]
        %v4082 = vld [vmem:[%s7 + $0xf8] sm:$0xf]
        %v4083 = vld [vmem:[%s7 + $0xfc] sm:$0xf]
        %v4084 = vld [vmem:[%s7 + $0x100] sm:$0xf]
        %v4085 = vld [vmem:[%s7 + $0x104] sm:$0xf]
        %v4086 = vld [vmem:[%s7 + $0x108] sm:$0xf]
        %v4087 = vld [vmem:[%s7 + $0x10c] sm:$0xf]
        %v4088 = vld [vmem:[%s7 + $0x110] sm:$0xf]
        %v4089 = vld [vmem:[%s7 + $0x114] sm:$0xf]
        %v4090 = vld [vmem:[%s7 + $0x118] sm:$0xf]
        %v4091 = vld [vmem:[%s7 + $0x11c] sm:$0xf]
        %v4092 = vld [vmem:[%s8] sm:$0x1]
        %v4093 = vld [vmem:[%s9] sm:$0x1]
        %v4124 = vrot.slane %v3988, 7
        %v4125 = vrot.slane %v3989, 7
        %v4126 = vsel %vm1101, %v4124, %v4125
        %v4127 = vrot.slane %v3990, 7
        %v4128 = vsel %vm1101, %v4125, %v4127
        %v4129 = vrot.slane %v3991, 7
        %v4130 = vsel %vm1101, %v4127, %v4129
        %v4131 = vrot.slane %v3992, 7
        %v4132 = vsel %vm1101, %v4129, %v4131
        %v4133 = vrot.slane %v3993, 7
        %v4134 = vsel %vm1101, %v4131, %v4133
        %v4135 = vrot.slane %v3994, 7
        %v4136 = vsel %vm1101, %v4133, %v4135
        %v4137 = vrot.slane %v3995, 7
        %v4138 = vsel %vm1101, %v4135, %v4137
        %v4139 = vrot.slane %v3996, 7
        %v4140 = vsel %vm1101, %v4137, %v4139
        %v4141 = vrot.slane %v3997, 7
        %v4142 = vsel %vm1101, %v4139, %v4141
        %v4143 = vrot.slane %v3998, 7
        %v4144 = vsel %vm1101, %v4141, %v4143
        %v4145 = vrot.slane %v3999, 7
        %v4146 = vsel %vm1101, %v4143, %v4145
        %v4147 = vrot.slane %v4000, 7
        %v4148 = vsel %vm1101, %v4145, %v4147
        %v4149 = vrot.slane %v4001, 7
        %v4150 = vsel %vm1101, %v4147, %v4149
        %v4151 = vrot.slane %v4002, 7
        %v4152 = vsel %vm1101, %v4149, %v4151
        %v4153 = vrot.slane %v4003, 7
        %v4154 = vsel %vm1101, %v4151, %v4153
        %v4155 = vrot.slane %v4004, 7
        %v4156 = vsel %vm1101, %v4153, %v4155
        %v4157 = vrot.slane %v4005, 7
        %v4158 = vsel %vm1101, %v4155, %v4157
        %v4159 = vrot.slane %v4006, 7
        %v4160 = vsel %vm1101, %v4157, %v4159
        %v4161 = vrot.slane %v4007, 7
        %v4162 = vsel %vm1101, %v4159, %v4161
        %v4163 = vrot.slane %v4008, 7
        %v4164 = vsel %vm1101, %v4161, %v4163
        %v4165 = vrot.slane %v4009, 7
        %v4166 = vsel %vm1101, %v4163, %v4165
        %v4167 = vrot.slane %v4010, 7
        %v4168 = vsel %vm1101, %v4165, %v4167
        %v4169 = vrot.slane %v4011, 7
        %v4170 = vsel %vm1101, %v4167, %v4169
        %v4171 = vrot.slane %v4012, 7
        %v4172 = vsel %vm1101, %v4169, %v4171
        %v4173 = vrot.slane %v4013, 7
        %v4174 = vsel %vm1101, %v4171, %v4173
        %v4175 = vrot.slane %v4014, 7
        %v4176 = vsel %vm1101, %v4173, %v4175
        %v4177 = vrot.slane %v4015, 7
        %v4178 = vsel %vm1101, %v4175, %v4177
        %v4179 = vrot.slane %v4016, 7
        %v4180 = vsel %vm1101, %v4177, %v4179
        %v4181 = vrot.slane %v4017, 7
        %v4182 = vsel %vm1101, %v4179, %v4181
        %v4213 = vsel %vm1101, 0.0, %v4124
        %v4214 = vsel %vm1226, 0.0, %v4213
        %v4215 = vsel %vm1227, 0.0, %v4126
        %v4216 = vsel %vm1228, 0.0, %v4128
        %v4217 = vsel %vm1229, 0.0, %v4130
        %v4218 = vsel %vm1230, 0.0, %v4132
        %v4219 = vsel %vm1231, 0.0, %v4134
        %v4220 = vsel %vm1232, 0.0, %v4136
        %v4221 = vsel %vm1233, 0.0, %v4138
        %v4222 = vsel %vm1234, 0.0, %v4140
        %v4223 = vsel %vm1235, 0.0, %v4142
        %v4224 = vsel %vm1236, 0.0, %v4144
        %v4225 = vsel %vm1237, 0.0, %v4146
        %v4226 = vsel %vm1238, 0.0, %v4148
        %v4227 = vsel %vm1239, 0.0, %v4150
        %v4228 = vsel %vm1240, 0.0, %v4152
        %v4229 = vsel %vm1241, 0.0, %v4154
        %v4230 = vsel %vm1242, 0.0, %v4156
        %v4231 = vsel %vm1243, 0.0, %v4158
        %v4232 = vsel %vm1244, 0.0, %v4160
        %v4233 = vsel %vm1245, 0.0, %v4162
        %v4234 = vsel %vm1246, 0.0, %v4164
        %v4235 = vsel %vm1247, 0.0, %v4166
        %v4236 = vsel %vm1248, 0.0, %v4168
        %v4237 = vsel %vm1249, 0.0, %v4170
        %v4238 = vsel %vm1250, 0.0, %v4172
        %v4239 = vsel %vm1251, 0.0, %v4174
        %v4240 = vsel %vm1252, 0.0, %v4176
        %v4241 = vsel %vm1253, 0.0, %v4178
        %v4242 = vsel %vm1254, 0.0, %v4180
        %v4243 = vsel %vm1255, 0.0, %v4182
        %v4245 = vrot.slane %v3988, 1
        %v4246 = vrot.slane %v3989, 1
        %v4247 = vsel %vm1287, %v4245, %v4246
        %v4248 = vrot.slane %v3990, 1
        %v4249 = vsel %vm1287, %v4246, %v4248
        %v4250 = vrot.slane %v3991, 1
        %v4251 = vsel %vm1287, %v4248, %v4250
        %v4252 = vrot.slane %v3992, 1
        %v4253 = vsel %vm1287, %v4250, %v4252
        %v4254 = vrot.slane %v3993, 1
        %v4255 = vsel %vm1287, %v4252, %v4254
        %v4256 = vrot.slane %v3994, 1
        %v4257 = vsel %vm1287, %v4254, %v4256
        %v4258 = vrot.slane %v3995, 1
        %v4259 = vsel %vm1287, %v4256, %v4258
        %v4260 = vrot.slane %v3996, 1
        %v4261 = vsel %vm1287, %v4258, %v4260
        %v4262 = vrot.slane %v3997, 1
        %v4263 = vsel %vm1287, %v4260, %v4262
        %v4264 = vrot.slane %v3998, 1
        %v4265 = vsel %vm1287, %v4262, %v4264
        %v4266 = vrot.slane %v3999, 1
        %v4267 = vsel %vm1287, %v4264, %v4266
        %v4268 = vrot.slane %v4000, 1
        %v4269 = vsel %vm1287, %v4266, %v4268
        %v4270 = vrot.slane %v4001, 1
        %v4271 = vsel %vm1287, %v4268, %v4270
        %v4272 = vrot.slane %v4002, 1
        %v4273 = vsel %vm1287, %v4270, %v4272
        %v4274 = vrot.slane %v4003, 1
        %v4275 = vsel %vm1287, %v4272, %v4274
        %v4276 = vrot.slane %v4004, 1
        %v4277 = vsel %vm1287, %v4274, %v4276
        %v4278 = vrot.slane %v4005, 1
        %v4279 = vsel %vm1287, %v4276, %v4278
        %v4280 = vrot.slane %v4006, 1
        %v4281 = vsel %vm1287, %v4278, %v4280
        %v4282 = vrot.slane %v4007, 1
        %v4283 = vsel %vm1287, %v4280, %v4282
        %v4284 = vrot.slane %v4008, 1
        %v4285 = vsel %vm1287, %v4282, %v4284
        %v4286 = vrot.slane %v4009, 1
        %v4287 = vsel %vm1287, %v4284, %v4286
        %v4288 = vrot.slane %v4010, 1
        %v4289 = vsel %vm1287, %v4286, %v4288
        %v4290 = vrot.slane %v4011, 1
        %v4291 = vsel %vm1287, %v4288, %v4290
        %v4292 = vrot.slane %v4012, 1
        %v4293 = vsel %vm1287, %v4290, %v4292
        %v4294 = vrot.slane %v4013, 1
        %v4295 = vsel %vm1287, %v4292, %v4294
        %v4296 = vrot.slane %v4014, 1
        %v4297 = vsel %vm1287, %v4294, %v4296
        %v4298 = vrot.slane %v4015, 1
        %v4299 = vsel %vm1287, %v4296, %v4298
        %v4300 = vrot.slane %v4016, 1
        %v4301 = vsel %vm1287, %v4298, %v4300
        %v4302 = vrot.slane %v4017, 1
        %v4303 = vsel %vm1287, %v4300, %v4302
        %v4304 = vrot.slane %v4018, 1
        %v4305 = vsel %vm1287, %v4302, %v4304
        %v4337 = vsel %vm1287, 0.0, %v4245
        %v4338 = vsel %vm1414, 0.0, %v4337
        %v4339 = vsel %vm1415, 0.0, %v4247
        %v4340 = vsel %vm1416, 0.0, %v4249
        %v4341 = vsel %vm1417, 0.0, %v4251
        %v4342 = vsel %vm1418, 0.0, %v4253
        %v4343 = vsel %vm1419, 0.0, %v4255
        %v4344 = vsel %vm1420, 0.0, %v4257
        %v4345 = vsel %vm1421, 0.0, %v4259
        %v4346 = vsel %vm1422, 0.0, %v4261
        %v4347 = vsel %vm1423, 0.0, %v4263
        %v4348 = vsel %vm1424, 0.0, %v4265
        %v4349 = vsel %vm1425, 0.0, %v4267
        %v4350 = vsel %vm1426, 0.0, %v4269
        %v4351 = vsel %vm1427, 0.0, %v4271
        %v4352 = vsel %vm1428, 0.0, %v4273
        %v4353 = vsel %vm1429, 0.0, %v4275
        %v4354 = vsel %vm1430, 0.0, %v4277
        %v4355 = vsel %vm1431, 0.0, %v4279
        %v4356 = vsel %vm1432, 0.0, %v4281
        %v4357 = vsel %vm1433, 0.0, %v4283
        %v4358 = vsel %vm1434, 0.0, %v4285
        %v4359 = vsel %vm1435, 0.0, %v4287
        %v4360 = vsel %vm1436, 0.0, %v4289
        %v4361 = vsel %vm1437, 0.0, %v4291
        %v4362 = vsel %vm1438, 0.0, %v4293
        %v4363 = vsel %vm1439, 0.0, %v4295
        %v4364 = vsel %vm1440, 0.0, %v4297
        %v4365 = vsel %vm1441, 0.0, %v4299
        %v4366 = vsel %vm1442, 0.0, %v4301
        %v4367 = vsel %vm1443, 0.0, %v4303
        %v4368 = vsel %vm1444, 0.0, %v4305
        %v4370 = vrot.slane %v4018, 7
        %v4371 = vsel %vm1101, %v4181, %v4370
        %v4372 = vrot.slane %v4019, 7
        %v4373 = vsel %vm1101, %v4370, %v4372
        %v4376 = vsel %vm1224, 0.0, %v4213
        %v4377 = vsel %vm1225, 0.0, %v4126
        %v4378 = vsel %vm1226, 0.0, %v4128
        %v4379 = vsel %vm1227, 0.0, %v4130
        %v4380 = vsel %vm1228, 0.0, %v4132
        %v4381 = vsel %vm1229, 0.0, %v4134
        %v4382 = vsel %vm1230, 0.0, %v4136
        %v4383 = vsel %vm1231, 0.0, %v4138
        %v4384 = vsel %vm1232, 0.0, %v4140
        %v4385 = vsel %vm1233, 0.0, %v4142
        %v4386 = vsel %vm1234, 0.0, %v4144
        %v4387 = vsel %vm1235, 0.0, %v4146
        %v4388 = vsel %vm1236, 0.0, %v4148
        %v4389 = vsel %vm1237, 0.0, %v4150
        %v4390 = vsel %vm1238, 0.0, %v4152
        %v4391 = vsel %vm1239, 0.0, %v4154
        %v4392 = vsel %vm1240, 0.0, %v4156
        %v4393 = vsel %vm1241, 0.0, %v4158
        %v4394 = vsel %vm1242, 0.0, %v4160
        %v4395 = vsel %vm1243, 0.0, %v4162
        %v4396 = vsel %vm1244, 0.0, %v4164
        %v4397 = vsel %vm1245, 0.0, %v4166
        %v4398 = vsel %vm1246, 0.0, %v4168
        %v4399 = vsel %vm1247, 0.0, %v4170
        %v4400 = vsel %vm1248, 0.0, %v4172
        %v4401 = vsel %vm1249, 0.0, %v4174
        %v4402 = vsel %vm1250, 0.0, %v4176
        %v4403 = vsel %vm1251, 0.0, %v4178
        %v4404 = vsel %vm1252, 0.0, %v4180
        %v4405 = vsel %vm1253, 0.0, %v4182
        %v4406 = vsel %vm1254, 0.0, %v4371
        %v4407 = vsel %vm1255, 0.0, %v4373
        %v4408 = vrot.slane %v4019, 1
        %v4409 = vsel %vm1287, %v4304, %v4408
        %v4412 = vsel %vm1287, %v4408, 0.0
        %v4413 = vsel %vm1413, 0.0, %v4247
        %v4414 = vsel %vm1414, 0.0, %v4249
        %v4415 = vsel %vm1415, 0.0, %v4251
        %v4416 = vsel %vm1416, 0.0, %v4253
        %v4417 = vsel %vm1417, 0.0, %v4255
        %v4418 = vsel %vm1418, 0.0, %v4257
        %v4419 = vsel %vm1419, 0.0, %v4259
        %v4420 = vsel %vm1420, 0.0, %v4261
        %v4421 = vsel %vm1421, 0.0, %v4263
        %v4422 = vsel %vm1422, 0.0, %v4265
        %v4423 = vsel %vm1423, 0.0, %v4267
        %v4424 = vsel %vm1424, 0.0, %v4269
        %v4425 = vsel %vm1425, 0.0, %v4271
        %v4426 = vsel %vm1426, 0.0, %v4273
        %v4427 = vsel %vm1427, 0.0, %v4275
        %v4428 = vsel %vm1428, 0.0, %v4277
        %v4429 = vsel %vm1429, 0.0, %v4279
        %v4430 = vsel %vm1430, 0.0, %v4281
        %v4431 = vsel %vm1431, 0.0, %v4283
        %v4432 = vsel %vm1432, 0.0, %v4285
        %v4433 = vsel %vm1433, 0.0, %v4287
        %v4434 = vsel %vm1434, 0.0, %v4289
        %v4435 = vsel %vm1435, 0.0, %v4291
        %v4436 = vsel %vm1436, 0.0, %v4293
        %v4437 = vsel %vm1437, 0.0, %v4295
        %v4438 = vsel %vm1438, 0.0, %v4297
        %v4439 = vsel %vm1439, 0.0, %v4299
        %v4440 = vsel %vm1440, 0.0, %v4301
        %v4441 = vsel %vm1441, 0.0, %v4303
        %v4442 = vsel %vm1442, 0.0, %v4305
        %v4443 = vsel %vm1443, 0.0, %v4409
        %v4444 = vsel %vm1444, 0.0, %v4412
        %v4446 = vsel %vm1101, %v4372, 0.0
        %v4447 = vsel %vm1224, 0.0, %v4128
        %v4448 = vsel %vm1225, 0.0, %v4130
        %v4449 = vsel %vm1226, 0.0, %v4132
        %v4450 = vsel %vm1227, 0.0, %v4134
        %v4451 = vsel %vm1228, 0.0, %v4136
        %v4452 = vsel %vm1229, 0.0, %v4138
        %v4453 = vsel %vm1230, 0.0, %v4140
        %v4454 = vsel %vm1231, 0.0, %v4142
        %v4455 = vsel %vm1232, 0.0, %v4144
        %v4456 = vsel %vm1233, 0.0, %v4146
        %v4457 = vsel %vm1234, 0.0, %v4148
        %v4458 = vsel %vm1235, 0.0, %v4150
        %v4459 = vsel %vm1236, 0.0, %v4152
        %v4460 = vsel %vm1237, 0.0, %v4154
        %v4461 = vsel %vm1238, 0.0, %v4156
        %v4462 = vsel %vm1239, 0.0, %v4158
        %v4463 = vsel %vm1240, 0.0, %v4160
        %v4464 = vsel %vm1241, 0.0, %v4162
        %v4465 = vsel %vm1242, 0.0, %v4164
        %v4466 = vsel %vm1243, 0.0, %v4166
        %v4467 = vsel %vm1244, 0.0, %v4168
        %v4468 = vsel %vm1245, 0.0, %v4170
        %v4469 = vsel %vm1246, 0.0, %v4172
        %v4470 = vsel %vm1247, 0.0, %v4174
        %v4471 = vsel %vm1248, 0.0, %v4176
        %v4472 = vsel %vm1249, 0.0, %v4178
        %v4473 = vsel %vm1250, 0.0, %v4180
        %v4474 = vsel %vm1251, 0.0, %v4182
        %v4475 = vsel %vm1252, 0.0, %v4371
        %v4476 = vsel %vm1253, 0.0, %v4373
        %v4477 = vsel %vm1254, 0.0, %v4446
        %v4478 = vsel %vm1413, 0.0, %v4251
        %v4479 = vsel %vm1414, 0.0, %v4253
        %v4480 = vsel %vm1415, 0.0, %v4255
        %v4481 = vsel %vm1416, 0.0, %v4257
        %v4482 = vsel %vm1417, 0.0, %v4259
        %v4483 = vsel %vm1418, 0.0, %v4261
        %v4484 = vsel %vm1419, 0.0, %v4263
        %v4485 = vsel %vm1420, 0.0, %v4265
        %v4486 = vsel %vm1421, 0.0, %v4267
        %v4487 = vsel %vm1422, 0.0, %v4269
        %v4488 = vsel %vm1423, 0.0, %v4271
        %v4489 = vsel %vm1424, 0.0, %v4273
        %v4490 = vsel %vm1425, 0.0, %v4275
        %v4491 = vsel %vm1426, 0.0, %v4277
        %v4492 = vsel %vm1427, 0.0, %v4279
        %v4493 = vsel %vm1428, 0.0, %v4281
        %v4494 = vsel %vm1429, 0.0, %v4283
        %v4495 = vsel %vm1430, 0.0, %v4285
        %v4496 = vsel %vm1431, 0.0, %v4287
        %v4497 = vsel %vm1432, 0.0, %v4289
        %v4498 = vsel %vm1433, 0.0, %v4291
        %v4499 = vsel %vm1434, 0.0, %v4293
        %v4500 = vsel %vm1435, 0.0, %v4295
        %v4501 = vsel %vm1436, 0.0, %v4297
        %v4502 = vsel %vm1437, 0.0, %v4299
        %v4503 = vsel %vm1438, 0.0, %v4301
        %v4504 = vsel %vm1439, 0.0, %v4303
        %v4505 = vsel %vm1440, 0.0, %v4305
        %v4506 = vsel %vm1441, 0.0, %v4409
        %v4507 = vsel %vm1442, 0.0, %v4412
        %v4508 = vpack.c.bf16 %v4215, %v4214
        %v4509 = vpack.c.bf16 %v4217, %v4216
        %v4510 = vpack.c.bf16 %v4219, %v4218
        %v4511 = vpack.c.bf16 %v4221, %v4220
        %v4512 = vpack.c.bf16 %v4223, %v4222
        %v4513 = vpack.c.bf16 %v4225, %v4224
        %v4514 = vpack.c.bf16 %v4227, %v4226
        %v4515 = vpack.c.bf16 %v4229, %v4228
        %v4516 = vpack.c.bf16 %v4231, %v4230
        %v4517 = vpack.c.bf16 %v4233, %v4232
        %v4518 = vpack.c.bf16 %v4235, %v4234
        %v4519 = vpack.c.bf16 %v4237, %v4236
        %v4520 = vpack.c.bf16 %v4239, %v4238
        %v4521 = vpack.c.bf16 %v4241, %v4240
        %v4522 = vpack.c.bf16 %v4243, %v4242
        %v4523 = vpack.c.bf16 %v3989, %v3988
        %v4524 = vpack.c.bf16 %v3991, %v3990
        %v4525 = vpack.c.bf16 %v3993, %v3992
        %v4526 = vpack.c.bf16 %v3995, %v3994
        %v4527 = vpack.c.bf16 %v3997, %v3996
        %v4528 = vpack.c.bf16 %v3999, %v3998
        %v4529 = vpack.c.bf16 %v4001, %v4000
        %v4530 = vpack.c.bf16 %v4003, %v4002
        %v4531 = vpack.c.bf16 %v4005, %v4004
        %v4532 = vpack.c.bf16 %v4007, %v4006
        %v4533 = vpack.c.bf16 %v4009, %v4008
        %v4534 = vpack.c.bf16 %v4011, %v4010
        %v4535 = vpack.c.bf16 %v4013, %v4012
        %v4536 = vpack.c.bf16 %v4015, %v4014
        %v4537 = vpack.c.bf16 %v4017, %v4016
        %v4538 = vpack.c.bf16 %v4338, 0.0
        %v4539 = vpack.c.bf16 %v4340, %v4339
        %v4540 = vpack.c.bf16 %v4342, %v4341
        %v4541 = vpack.c.bf16 %v4344, %v4343
        %v4542 = vpack.c.bf16 %v4346, %v4345
        %v4543 = vpack.c.bf16 %v4348, %v4347
        %v4544 = vpack.c.bf16 %v4350, %v4349
        %v4545 = vpack.c.bf16 %v4352, %v4351
        %v4546 = vpack.c.bf16 %v4354, %v4353
        %v4547 = vpack.c.bf16 %v4356, %v4355
        %v4548 = vpack.c.bf16 %v4358, %v4357
        %v4549 = vpack.c.bf16 %v4360, %v4359
        %v4550 = vpack.c.bf16 %v4362, %v4361
        %v4551 = vpack.c.bf16 %v4364, %v4363
        %v4552 = vpack.c.bf16 %v4366, %v4365
        %v4553 = vpack.c.bf16 %v4368, %v4367
        %v4554 = vpack.c.bf16 %v4377, %v4376
        %v4555 = vpack.c.bf16 %v4379, %v4378
        %v4556 = vpack.c.bf16 %v4381, %v4380
        %v4557 = vpack.c.bf16 %v4383, %v4382
        %v4558 = vpack.c.bf16 %v4385, %v4384
        %v4559 = vpack.c.bf16 %v4387, %v4386
        %v4560 = vpack.c.bf16 %v4389, %v4388
        %v4561 = vpack.c.bf16 %v4391, %v4390
        %v4562 = vpack.c.bf16 %v4393, %v4392
        %v4563 = vpack.c.bf16 %v4395, %v4394
        %v4564 = vpack.c.bf16 %v4397, %v4396
        %v4565 = vpack.c.bf16 %v4399, %v4398
        %v4566 = vpack.c.bf16 %v4401, %v4400
        %v4567 = vpack.c.bf16 %v4403, %v4402
        %v4568 = vpack.c.bf16 %v4405, %v4404
        %v4569 = vpack.c.bf16 %v4407, %v4406
        %v4570 = vpack.c.bf16 %v4019, %v4018
        %v4571 = vpack.c.bf16 %v4414, %v4413
        %v4572 = vpack.c.bf16 %v4416, %v4415
        %v4573 = vpack.c.bf16 %v4418, %v4417
        %v4574 = vpack.c.bf16 %v4420, %v4419
        %v4575 = vpack.c.bf16 %v4422, %v4421
        %v4576 = vpack.c.bf16 %v4424, %v4423
        %v4577 = vpack.c.bf16 %v4426, %v4425
        %v4578 = vpack.c.bf16 %v4428, %v4427
        %v4579 = vpack.c.bf16 %v4430, %v4429
        %v4580 = vpack.c.bf16 %v4432, %v4431
        %v4581 = vpack.c.bf16 %v4434, %v4433
        %v4582 = vpack.c.bf16 %v4436, %v4435
        %v4583 = vpack.c.bf16 %v4438, %v4437
        %v4584 = vpack.c.bf16 %v4440, %v4439
        %v4585 = vpack.c.bf16 %v4442, %v4441
        %v4586 = vpack.c.bf16 %v4444, %v4443
        %v4587 = vpack.c.bf16 %v4448, %v4447
        %v4588 = vpack.c.bf16 %v4450, %v4449
        %v4589 = vpack.c.bf16 %v4452, %v4451
        %v4590 = vpack.c.bf16 %v4454, %v4453
        %v4591 = vpack.c.bf16 %v4456, %v4455
        %v4592 = vpack.c.bf16 %v4458, %v4457
        %v4593 = vpack.c.bf16 %v4460, %v4459
        %v4594 = vpack.c.bf16 %v4462, %v4461
        %v4595 = vpack.c.bf16 %v4464, %v4463
        %v4596 = vpack.c.bf16 %v4466, %v4465
        %v4597 = vpack.c.bf16 %v4468, %v4467
        %v4598 = vpack.c.bf16 %v4470, %v4469
        %v4599 = vpack.c.bf16 %v4472, %v4471
        %v4600 = vpack.c.bf16 %v4474, %v4473
        %v4601 = vpack.c.bf16 %v4476, %v4475
        %v4602 = vpack.c.bf16 0.0, %v4477
        %v4603 = vpack.c.bf16 %v4479, %v4478
        %v4604 = vpack.c.bf16 %v4481, %v4480
        %v4605 = vpack.c.bf16 %v4483, %v4482
        %v4606 = vpack.c.bf16 %v4485, %v4484
        %v4607 = vpack.c.bf16 %v4487, %v4486
        %v4608 = vpack.c.bf16 %v4489, %v4488
        %v4609 = vpack.c.bf16 %v4491, %v4490
        %v4610 = vpack.c.bf16 %v4493, %v4492
        %v4611 = vpack.c.bf16 %v4495, %v4494
        %v4612 = vpack.c.bf16 %v4497, %v4496
        %v4613 = vpack.c.bf16 %v4499, %v4498
        %v4614 = vpack.c.bf16 %v4501, %v4500
        %v4615 = vpack.c.bf16 %v4503, %v4502
        %v4616 = vpack.c.bf16 %v4505, %v4504
        %v4617 = vpack.c.bf16 %v4507, %v4506
        %4633 = vrot.lane.b32.xlu0 %v2792, 64
        %v4634 = vpop.permute.xlu0 %4633
        %4635 = vrot.lane.b32.xlu0 %v4523, 64
        %v4636 = vpop.permute.xlu0 %4635
        %4637 = vrot.lane.b32.xlu0 %v4524, 64
        %v4638 = vpop.permute.xlu0 %4637
        %4639 = vrot.lane.b32.xlu0 %v4525, 64
        %v4640 = vpop.permute.xlu0 %4639
        %4641 = vrot.lane.b32.xlu0 %v4526, 64
        %v4642 = vpop.permute.xlu0 %4641
        %4643 = vrot.lane.b32.xlu0 %v4527, 64
        %v4644 = vpop.permute.xlu0 %4643
        %4645 = vrot.lane.b32.xlu0 %v4528, 64
        %v4646 = vpop.permute.xlu0 %4645
        %4647 = vrot.lane.b32.xlu0 %v4529, 64
        %v4648 = vpop.permute.xlu0 %4647
        %4649 = vrot.lane.b32.xlu0 %v4530, 64
        %v4650 = vpop.permute.xlu0 %4649
        %4651 = vrot.lane.b32.xlu0 %v4531, 64
        %v4652 = vpop.permute.xlu0 %4651
        %4653 = vrot.lane.b32.xlu0 %v4532, 64
        %v4654 = vpop.permute.xlu0 %4653
        %4655 = vrot.lane.b32.xlu0 %v4533, 64
        %v4656 = vpop.permute.xlu0 %4655
        %4657 = vrot.lane.b32.xlu0 %v4534, 64
        %v4658 = vpop.permute.xlu0 %4657
        %4659 = vrot.lane.b32.xlu0 %v4535, 64
        %v4660 = vpop.permute.xlu0 %4659
        %4661 = vrot.lane.b32.xlu0 %v4536, 64
        %v4662 = vpop.permute.xlu0 %4661
        %4663 = vrot.lane.b32.xlu0 %v4537, 64
        %v4664 = vpop.permute.xlu0 %4663
        %4681 = vrot.lane.b32.xlu0 %v4554, 64
        %v4682 = vpop.permute.xlu0 %4681
        %4683 = vrot.lane.b32.xlu0 %v4555, 64
        %v4684 = vpop.permute.xlu0 %4683
        %4685 = vrot.lane.b32.xlu0 %v4556, 64
        %v4686 = vpop.permute.xlu0 %4685
        %4687 = vrot.lane.b32.xlu0 %v4557, 64
        %v4688 = vpop.permute.xlu0 %4687
        %4689 = vrot.lane.b32.xlu0 %v4558, 64
        %v4690 = vpop.permute.xlu0 %4689
        %4691 = vrot.lane.b32.xlu0 %v4559, 64
        %v4692 = vpop.permute.xlu0 %4691
        %4693 = vrot.lane.b32.xlu0 %v4560, 64
        %v4694 = vpop.permute.xlu0 %4693
        %4695 = vrot.lane.b32.xlu0 %v4561, 64
        %v4696 = vpop.permute.xlu0 %4695
        %4697 = vrot.lane.b32.xlu0 %v4562, 64
        %v4698 = vpop.permute.xlu0 %4697
        %4699 = vrot.lane.b32.xlu0 %v4563, 64
        %v4700 = vpop.permute.xlu0 %4699
        %4701 = vrot.lane.b32.xlu0 %v4564, 64
        %v4702 = vpop.permute.xlu0 %4701
        %4703 = vrot.lane.b32.xlu0 %v4565, 64
        %v4704 = vpop.permute.xlu0 %4703
        %4705 = vrot.lane.b32.xlu0 %v4566, 64
        %v4706 = vpop.permute.xlu0 %4705
        %4707 = vrot.lane.b32.xlu0 %v4567, 64
        %v4708 = vpop.permute.xlu0 %4707
        %4709 = vrot.lane.b32.xlu0 %v4568, 64
        %v4710 = vpop.permute.xlu0 %4709
        %4711 = vrot.lane.b32.xlu0 %v4569, 64
        %v4712 = vpop.permute.xlu0 %4711
        %4729 = vrot.lane.b32.xlu0 %v4571, 64
        %v4730 = vpop.permute.xlu0 %4729
        %4731 = vrot.lane.b32.xlu0 %v4572, 64
        %v4732 = vpop.permute.xlu0 %4731
        %4733 = vrot.lane.b32.xlu0 %v4573, 64
        %v4734 = vpop.permute.xlu0 %4733
        %4735 = vrot.lane.b32.xlu0 %v4574, 64
        %v4736 = vpop.permute.xlu0 %4735
        %4737 = vrot.lane.b32.xlu0 %v4575, 64
        %v4738 = vpop.permute.xlu0 %4737
        %4739 = vrot.lane.b32.xlu0 %v4576, 64
        %v4740 = vpop.permute.xlu0 %4739
        %4741 = vrot.lane.b32.xlu0 %v4577, 64
        %v4742 = vpop.permute.xlu0 %4741
        %4743 = vrot.lane.b32.xlu0 %v4578, 64
        %v4744 = vpop.permute.xlu0 %4743
        %4745 = vrot.lane.b32.xlu0 %v4579, 64
        %v4746 = vpop.permute.xlu0 %4745
        %4747 = vrot.lane.b32.xlu0 %v4580, 64
        %v4748 = vpop.permute.xlu0 %4747
        %4749 = vrot.lane.b32.xlu0 %v4581, 64
        %v4750 = vpop.permute.xlu0 %4749
        %4751 = vrot.lane.b32.xlu0 %v4582, 64
        %v4752 = vpop.permute.xlu0 %4751
        %4753 = vrot.lane.b32.xlu0 %v4583, 64
        %v4754 = vpop.permute.xlu0 %4753
        %4755 = vrot.lane.b32.xlu0 %v4584, 64
        %v4756 = vpop.permute.xlu0 %4755
        %4757 = vrot.lane.b32.xlu0 %v4585, 64
        %v4758 = vpop.permute.xlu0 %4757
        %4759 = vrot.lane.b32.xlu0 %v4586, 64
        %v4760 = vpop.permute.xlu0 %4759
        %4762 = vrot.lane.b32.xlu0 %v4570, 64
        %v4763 = vpop.permute.xlu0 %4762
        %v4765 = vsel %vm3225, %v2792, %v4634
        %v4769 = vsel %vm3225, %v4508, %v4636
        %v4773 = vsel %vm3225, %v4509, %v4638
        %v4777 = vsel %vm3225, %v4510, %v4640
        %v4781 = vsel %vm3225, %v4511, %v4642
        %v4785 = vsel %vm3225, %v4512, %v4644
        %v4789 = vsel %vm3225, %v4513, %v4646
        %v4793 = vsel %vm3225, %v4514, %v4648
        %v4797 = vsel %vm3225, %v4515, %v4650
        %v4801 = vsel %vm3225, %v4516, %v4652
        %v4805 = vsel %vm3225, %v4517, %v4654
        %v4809 = vsel %vm3225, %v4518, %v4656
        %v4813 = vsel %vm3225, %v4519, %v4658
        %v4817 = vsel %vm3225, %v4520, %v4660
        %v4821 = vsel %vm3225, %v4521, %v4662
        %v4825 = vsel %vm3225, %v4522, %v4664
        %v4829 = vsel %vm3225, %v4538, %v4682
        %v4833 = vsel %vm3225, %v4539, %v4684
        %v4837 = vsel %vm3225, %v4540, %v4686
        %v4841 = vsel %vm3225, %v4541, %v4688
        %v4845 = vsel %vm3225, %v4542, %v4690
        %v4849 = vsel %vm3225, %v4543, %v4692
        %v4853 = vsel %vm3225, %v4544, %v4694
        %v4857 = vsel %vm3225, %v4545, %v4696
        %v4861 = vsel %vm3225, %v4546, %v4698
        %v4865 = vsel %vm3225, %v4547, %v4700
        %v4869 = vsel %vm3225, %v4548, %v4702
        %v4873 = vsel %vm3225, %v4549, %v4704
        %v4877 = vsel %vm3225, %v4550, %v4706
        %v4881 = vsel %vm3225, %v4551, %v4708
        %v4885 = vsel %vm3225, %v4552, %v4710
        %v4889 = vsel %vm3225, %v4553, %v4712
        %v4893 = vsel %vm3225, %v4523, %v4730
        %v4897 = vsel %vm3225, %v4524, %v4732
        %v4901 = vsel %vm3225, %v4525, %v4734
        %v4905 = vsel %vm3225, %v4526, %v4736
        %v4909 = vsel %vm3225, %v4527, %v4738
        %v4913 = vsel %vm3225, %v4528, %v4740
        %v4917 = vsel %vm3225, %v4529, %v4742
        %v4921 = vsel %vm3225, %v4530, %v4744
        %v4925 = vsel %vm3225, %v4531, %v4746
        %v4929 = vsel %vm3225, %v4532, %v4748
        %v4933 = vsel %vm3225, %v4533, %v4750
        %v4937 = vsel %vm3225, %v4534, %v4752
        %v4941 = vsel %vm3225, %v4535, %v4754
        %v4945 = vsel %vm3225, %v4536, %v4756
        %v4949 = vsel %vm3225, %v4537, %v4758
        %v4953 = vsel %vm3225, %v4570, %v4760
        %v4956 = vsel %vm3225, %v4587, %v4638
        %v4959 = vsel %vm3225, %v4588, %v4640
        %v4962 = vsel %vm3225, %v4589, %v4642
        %v4965 = vsel %vm3225, %v4590, %v4644
        %v4968 = vsel %vm3225, %v4591, %v4646
        %v4971 = vsel %vm3225, %v4592, %v4648
        %v4974 = vsel %vm3225, %v4593, %v4650
        %v4977 = vsel %vm3225, %v4594, %v4652
        %v4980 = vsel %vm3225, %v4595, %v4654
        %v4983 = vsel %vm3225, %v4596, %v4656
        %v4986 = vsel %vm3225, %v4597, %v4658
        %v4989 = vsel %vm3225, %v4598, %v4660
        %v4992 = vsel %vm3225, %v4599, %v4662
        %v4995 = vsel %vm3225, %v4600, %v4664
        %v4999 = vsel %vm3225, %v4601, %v4763
        %v5002 = vsel %vm3225, %v4602, %v4634
        %v5076 = vunpack.c.l.b16 %v4020
        %v5077 = vunpack.c.l.b16 %v4021
        %v5078 = vunpack.c.l.b16 %v4022
        %v5079 = vunpack.c.l.b16 %v4023
        %v5080 = vunpack.c.l.b16 %v4024
        %v5081 = vunpack.c.l.b16 %v4025
        %v5082 = vunpack.c.l.b16 %v4026
        %v5083 = vunpack.c.l.b16 %v4027
        %v5084 = vunpack.c.l.b16 %v4028
        %v5085 = vunpack.c.l.b16 %v4029
        %v5086 = vunpack.c.l.b16 %v4030
        %v5087 = vunpack.c.l.b16 %v4031
        %v5088 = vunpack.c.l.b16 %v4032
        %v5089 = vunpack.c.l.b16 %v4033
        %v5090 = vunpack.c.l.b16 %v4034
        %v5091 = vunpack.c.l.b16 %v4035
        %v5092 = vunpack.c.l.b16 %v4036
        %v5093 = vunpack.c.l.b16 %v4037
        %v5094 = vunpack.c.l.b16 %v4038
        %v5095 = vunpack.c.l.b16 %v4039
        %v5096 = vunpack.c.l.b16 %v4040
        %v5097 = vunpack.c.l.b16 %v4041
        %v5098 = vunpack.c.l.b16 %v4042
        %v5099 = vunpack.c.l.b16 %v4043
        %v5100 = vunpack.c.l.b16 %v4044
        %v5101 = vunpack.c.l.b16 %v4045
        %v5102 = vunpack.c.l.b16 %v4046
        %v5103 = vunpack.c.l.b16 %v4047
        %v5104 = vunpack.c.l.b16 %v4048
        %v5105 = vunpack.c.l.b16 %v4049
        %v5106 = vunpack.c.l.b16 %v4050
        %v5107 = vunpack.c.l.b16 %v4051
        %v5108 = vunpack.c.l.b16 %v4052
        %v5109 = vunpack.c.l.b16 %v4053
        %v5110 = vunpack.c.l.b16 %v4054
        %v5111 = vunpack.c.l.b16 %v4055
        %v5112 = vunpack.c.l.b16 %v4056
        %v5113 = vunpack.c.l.b16 %v4057
        %v5114 = vunpack.c.l.b16 %v4058
        %v5115 = vunpack.c.l.b16 %v4059
        %v5116 = vunpack.c.l.b16 %v4060
        %v5117 = vunpack.c.l.b16 %v4061
        %v5118 = vunpack.c.l.b16 %v4062
        %v5119 = vunpack.c.l.b16 %v4063
        %v5120 = vunpack.c.l.b16 %v4064
        %v5121 = vunpack.c.l.b16 %v4065
        %v5122 = vunpack.c.l.b16 %v4066
        %v5123 = vunpack.c.l.b16 %v4067
        %v5124 = vunpack.c.l.b16 %v4068
        %v5125 = vunpack.c.l.b16 %v4069
        %v5126 = vunpack.c.l.b16 %v4070
        %v5127 = vunpack.c.l.b16 %v4071
        %v5128 = vunpack.c.l.b16 %v4072
        %v5129 = vunpack.c.l.b16 %v4073
        %v5130 = vunpack.c.l.b16 %v4074
        %v5131 = vunpack.c.l.b16 %v4075
        %v5132 = vunpack.c.l.b16 %v4076
        %v5133 = vunpack.c.l.b16 %v4077
        %v5134 = vunpack.c.l.b16 %v4078
        %v5135 = vunpack.c.l.b16 %v4079
        %v5136 = vunpack.c.l.b16 %v4080
        %v5137 = vunpack.c.l.b16 %v4081
        %v5138 = vunpack.c.l.b16 %v4082
        %v5139 = vunpack.c.l.b16 %v4083
        %v5140 = vunpack.c.l.b16 %v4084
        %v5141 = vunpack.c.l.b16 %v4085
        %v5142 = vunpack.c.l.b16 %v4086
        %v5143 = vunpack.c.l.b16 %v4087
        %v5144 = vunpack.c.l.b16 %v4088
        %v5145 = vunpack.c.l.b16 %v4089
        %v5146 = vunpack.c.l.b16 %v4090
        %v5147 = vunpack.c.l.b16 %v4091
        %v5148 = vpack.c.b16 %v5077, %v5076
        %v5149 = vpack.c.b16 %v5079, %v5078
        %v5150 = vpack.c.b16 %v5081, %v5080
        %v5151 = vpack.c.b16 %v5083, %v5082
        %v5152 = vpack.c.b16 %v5085, %v5084
        %v5153 = vpack.c.b16 %v5087, %v5086
        %v5154 = vpack.c.b16 %v5089, %v5088
        %v5155 = vpack.c.b16 %v5091, %v5090
        %v5156 = vpack.c.b16 %v5093, %v5092
        %v5157 = vpack.c.b16 %v5095, %v5094
        %v5158 = vpack.c.b16 %v5097, %v5096
        %v5159 = vpack.c.b16 %v5099, %v5098
        %v5160 = vpack.c.b16 %v5101, %v5100
        %v5161 = vpack.c.b16 %v5103, %v5102
        %v5162 = vpack.c.b16 %v5105, %v5104
        %v5163 = vpack.c.b16 %v5107, %v5106
        %v5164 = vpack.c.b16 %v5109, %v5108
        %v5165 = vpack.c.b16 %v5111, %v5110
        %v5166 = vpack.c.b16 %v5113, %v5112
        %v5167 = vpack.c.b16 %v5115, %v5114
        %v5168 = vpack.c.b16 %v5117, %v5116
        %v5169 = vpack.c.b16 %v5119, %v5118
        %v5170 = vpack.c.b16 %v5121, %v5120
        %v5171 = vpack.c.b16 %v5123, %v5122
        %v5172 = vpack.c.b16 %v5125, %v5124
        %v5173 = vpack.c.b16 %v5127, %v5126
        %v5174 = vpack.c.b16 %v5129, %v5128
        %v5175 = vpack.c.b16 %v5131, %v5130
        %v5176 = vpack.c.b16 %v5133, %v5132
        %v5177 = vpack.c.b16 %v5135, %v5134
        %v5178 = vpack.c.b16 %v5137, %v5136
        %v5179 = vpack.c.b16 %v5139, %v5138
        %v5180 = vpack.c.b16 %v5141, %v5140
        %v5181 = vpack.c.b16 %v5143, %v5142
        %v5182 = vpack.c.b16 %v5145, %v5144
        %v5183 = vpack.c.b16 %v5147, %v5146
        %v5221 = vsel %vm3225, %v4603, 0
        %v5224 = vsel %vm3225, %v4604, 0
        %v5227 = vsel %vm3225, %v4605, 0
        %v5230 = vsel %vm3225, %v4606, 0
        %v5233 = vsel %vm3225, %v4607, 0
        %v5236 = vsel %vm3225, %v4608, 0
        %v5239 = vsel %vm3225, %v4609, 0
        %v5242 = vsel %vm3225, %v4610, 0
        %v5245 = vsel %vm3225, %v4611, 0
        %v5248 = vsel %vm3225, %v4612, 0
        %v5251 = vsel %vm3225, %v4613, 0
        %v5254 = vsel %vm3225, %v4614, 0
        %v5257 = vsel %vm3225, %v4615, 0
        %v5260 = vsel %vm3225, %v4616, 0
        %v5263 = vsel %vm3225, %v4617, 0
        %v5265 = vsel %vm3225, %v2792, 0
        %5267 = vmatprep.subr.bf16.mxu0 0
        %5268 = vmatpush1.bf16.msra.mxu0 %v5148
        %5269 = vmatprep.subr.bf16.mxu0 0
        %5270 = vmatpush1.bf16.msra.mxu0 %v5149
        %5271 = vmatprep.subr.bf16.mxu0 0
        %5272 = vmatpush1.bf16.msra.mxu0 %v5150
        %5273 = vmatprep.subr.bf16.mxu0 0
        %5274 = vmatpush1.bf16.msra.mxu0 %v5151
        %5275 = vmatprep.subr.bf16.mxu0 0
        %5276 = vmatpush1.bf16.msra.mxu0 %v5152
        %5277 = vmatprep.subr.bf16.mxu0 0
        %5278 = vmatpush1.bf16.msra.mxu0 %v5153
        %5279 = vmatprep.subr.bf16.mxu0 0
        %5280 = vmatpush1.bf16.msra.mxu0 %v5154
        %5281 = vmatprep.subr.bf16.mxu0 0
        %5282 = vmatpush1.bf16.msra.mxu0 %v5155
        %5283 = vmatprep.subr.bf16.mxu0 0
        %5284 = vmatpush1.bf16.msra.mxu0 %v5156
        %5285 = vmatprep.subr.bf16.mxu0 0
        %5286 = vmatpush1.bf16.msra.mxu0 %v5157
        %5287 = vmatprep.subr.bf16.mxu0 0
        %5288 = vmatpush1.bf16.msra.mxu0 %v5158
        %5289 = vmatprep.subr.bf16.mxu0 0
        %5290 = vmatpush1.bf16.msra.mxu0 %v5159
        %5291 = vmatprep.subr.bf16.mxu0 0
        %5292 = vmatpush1.bf16.msra.mxu0 %v5160
        %5293 = vmatprep.subr.bf16.mxu0 0
        %5294 = vmatpush1.bf16.msra.mxu0 %v5161
        %5295 = vmatprep.subr.bf16.mxu0 0
        %5296 = vmatpush1.bf16.msra.mxu0 %v5162
        %5297 = vmatprep.subr.bf16.mxu0 0
        %5298 = vmatpush1.bf16.msra.mxu0 %v5163
        %5299 = vmatprep.mubr.bf16.mxu0 %v4829
        %5300 = vmatmul.mubr.bf16.gmra.mrb[0].mxu0 %v4765
        %v5301 = vpop.f32.mrb[0].mxu0
        %v5302 = vadd.f32 0.0, %v5301
        %v5303 = vpop.f32.mrb[0].mxu0
        %v5304 = vpop.f32.mrb[0].mxu0
        %v5305 = vadd.f32 0.0, %v5304
        %v5306 = vpop.f32.mrb[0].mxu0
        %5307 = vmatprep.mubr.bf16.mxu0 %v4833
        %5308 = vmatmul.mubr.bf16.gmra.mrb[0].mxu0 %v4769
        %v5309 = vpop.f32.mrb[0].mxu0
        %v5310 = vadd.f32 0.0, %v5309
        %v5311 = vpop.f32.mrb[0].mxu0
        %v5312 = vpop.f32.mrb[0].mxu0
        %v5313 = vadd.f32 0.0, %v5312
        %v5314 = vpop.f32.mrb[0].mxu0
        %5315 = vmatprep.mubr.bf16.mxu0 %v4837
        %5316 = vmatmul.mubr.bf16.gmra.mrb[0].mxu0 %v4773
        %v5317 = vpop.f32.mrb[0].mxu0
        %v5318 = vadd.f32 0.0, %v5317
        %v5319 = vpop.f32.mrb[0].mxu0
        %v5320 = vpop.f32.mrb[0].mxu0
        %v5321 = vadd.f32 0.0, %v5320
        %v5322 = vpop.f32.mrb[0].mxu0
        %5323 = vmatprep.mubr.bf16.mxu0 %v4841
        %5324 = vmatmul.mubr.bf16.gmra.mrb[0].mxu0 %v4777
        %v5325 = vpop.f32.mrb[0].mxu0
        %v5326 = vadd.f32 0.0, %v5325
        %v5327 = vpop.f32.mrb[0].mxu0
        %v5328 = vpop.f32.mrb[0].mxu0
        %v5329 = vadd.f32 0.0, %v5328
        %v5330 = vpop.f32.mrb[0].mxu0
        %5331 = vmatprep.mubr.bf16.mxu0 %v4845
        %5332 = vmatmul.mubr.bf16.gmra.mrb[0].mxu0 %v4781
        %v5333 = vpop.f32.mrb[0].mxu0
        %v5334 = vadd.f32 0.0, %v5333
        %v5335 = vpop.f32.mrb[0].mxu0
        %v5336 = vpop.f32.mrb[0].mxu0
        %v5337 = vadd.f32 0.0, %v5336
        %v5338 = vpop.f32.mrb[0].mxu0
        %5339 = vmatprep.mubr.bf16.mxu0 %v4849
        %5340 = vmatmul.mubr.bf16.gmra.mrb[0].mxu0 %v4785
        %v5341 = vpop.f32.mrb[0].mxu0
        %v5342 = vadd.f32 0.0, %v5341
        %v5343 = vpop.f32.mrb[0].mxu0
        %v5344 = vpop.f32.mrb[0].mxu0
        %v5345 = vadd.f32 0.0, %v5344
        %v5346 = vpop.f32.mrb[0].mxu0
        %5347 = vmatprep.mubr.bf16.mxu0 %v4853
        %5348 = vmatmul.mubr.bf16.gmra.mrb[0].mxu0 %v4789
        %v5349 = vpop.f32.mrb[0].mxu0
        %v5350 = vadd.f32 0.0, %v5349
        %v5351 = vpop.f32.mrb[0].mxu0
        %v5352 = vpop.f32.mrb[0].mxu0
        %v5353 = vadd.f32 0.0, %v5352
        %v5354 = vpop.f32.mrb[0].mxu0
        %5355 = vmatprep.mubr.bf16.mxu0 %v4857
        %5356 = vmatmul.mubr.bf16.gmra.mrb[0].mxu0 %v4793
        %v5357 = vpop.f32.mrb[0].mxu0
        %v5358 = vadd.f32 0.0, %v5357
        %v5359 = vpop.f32.mrb[0].mxu0
        %v5360 = vpop.f32.mrb[0].mxu0
        %v5361 = vadd.f32 0.0, %v5360
        %v5362 = vpop.f32.mrb[0].mxu0
        %5363 = vmatprep.mubr.bf16.mxu0 %v4861
        %5364 = vmatmul.mubr.bf16.gmra.mrb[0].mxu0 %v4797
        %v5365 = vpop.f32.mrb[0].mxu0
        %v5366 = vadd.f32 0.0, %v5365
        %v5367 = vpop.f32.mrb[0].mxu0
        %v5368 = vpop.f32.mrb[0].mxu0
        %v5369 = vadd.f32 0.0, %v5368
        %v5370 = vpop.f32.mrb[0].mxu0
        %5371 = vmatprep.mubr.bf16.mxu0 %v4865
        %5372 = vmatmul.mubr.bf16.gmra.mrb[0].mxu0 %v4801
        %v5373 = vpop.f32.mrb[0].mxu0
        %v5374 = vadd.f32 0.0, %v5373
        %v5375 = vpop.f32.mrb[0].mxu0
        %v5376 = vpop.f32.mrb[0].mxu0
        %v5377 = vadd.f32 0.0, %v5376
        %v5378 = vpop.f32.mrb[0].mxu0
        %5379 = vmatprep.mubr.bf16.mxu0 %v4869
        %5380 = vmatmul.mubr.bf16.gmra.mrb[0].mxu0 %v4805
        %v5381 = vpop.f32.mrb[0].mxu0
        %v5382 = vadd.f32 0.0, %v5381
        %v5383 = vpop.f32.mrb[0].mxu0
        %v5384 = vpop.f32.mrb[0].mxu0
        %v5385 = vadd.f32 0.0, %v5384
        %v5386 = vpop.f32.mrb[0].mxu0
        %5387 = vmatprep.mubr.bf16.mxu0 %v4873
        %5388 = vmatmul.mubr.bf16.gmra.mrb[0].mxu0 %v4809
        %v5389 = vpop.f32.mrb[0].mxu0
        %v5390 = vadd.f32 0.0, %v5389
        %v5391 = vpop.f32.mrb[0].mxu0
        %v5392 = vpop.f32.mrb[0].mxu0
        %v5393 = vadd.f32 0.0, %v5392
        %v5394 = vpop.f32.mrb[0].mxu0
        %5395 = vmatprep.mubr.bf16.mxu0 %v4877
        %5396 = vmatmul.mubr.bf16.gmra.mrb[0].mxu0 %v4813
        %v5397 = vpop.f32.mrb[0].mxu0
        %v5398 = vadd.f32 0.0, %v5397
        %v5399 = vpop.f32.mrb[0].mxu0
        %v5400 = vpop.f32.mrb[0].mxu0
        %v5401 = vadd.f32 0.0, %v5400
        %v5402 = vpop.f32.mrb[0].mxu0
        %5403 = vmatprep.mubr.bf16.mxu0 %v4881
        %5404 = vmatmul.mubr.bf16.gmra.mrb[0].mxu0 %v4817
        %v5405 = vpop.f32.mrb[0].mxu0
        %v5406 = vadd.f32 0.0, %v5405
        %v5407 = vpop.f32.mrb[0].mxu0
        %v5408 = vpop.f32.mrb[0].mxu0
        %v5409 = vadd.f32 0.0, %v5408
        %v5410 = vpop.f32.mrb[0].mxu0
        %5411 = vmatprep.mubr.bf16.mxu0 %v4885
        %5412 = vmatmul.mubr.bf16.gmra.mrb[0].mxu0 %v4821
        %v5413 = vpop.f32.mrb[0].mxu0
        %v5414 = vadd.f32 0.0, %v5413
        %v5415 = vpop.f32.mrb[0].mxu0
        %v5416 = vpop.f32.mrb[0].mxu0
        %v5417 = vadd.f32 0.0, %v5416
        %v5418 = vpop.f32.mrb[0].mxu0
        %5419 = vmatprep.mubr.bf16.mxu0 %v4889
        %5420 = vmatmul.mubr.bf16.gmra.mrb[0].mxu0 %v4825
        %v5421 = vpop.f32.mrb[0].mxu0
        %v5422 = vadd.f32 0.0, %v5421
        %v5423 = vpop.f32.mrb[0].mxu0
        %v5424 = vpop.f32.mrb[0].mxu0
        %v5425 = vadd.f32 0.0, %v5424
        %v5426 = vpop.f32.mrb[0].mxu0
        %5427 = vdwg.mxu0
        %5428 = vmatprep.subr.bf16.mxu0 0
        %5429 = vmatpush1.bf16.msra.mxu0 %v5164
        %5430 = vmatprep.subr.bf16.mxu0 0
        %5431 = vmatpush1.bf16.msra.mxu0 %v5165
        %5432 = vmatprep.subr.bf16.mxu0 0
        %5433 = vmatpush1.bf16.msra.mxu0 %v5166
        %5434 = vmatprep.subr.bf16.mxu0 0
        %5435 = vmatpush1.bf16.msra.mxu0 %v5167
        %5436 = vmatprep.subr.bf16.mxu0 0
        %5437 = vmatpush1.bf16.msra.mxu0 %v5168
        %5438 = vmatprep.subr.bf16.mxu0 0
        %5439 = vmatpush1.bf16.msra.mxu0 %v5169
        %5440 = vmatprep.subr.bf16.mxu0 0
        %5441 = vmatpush1.bf16.msra.mxu0 %v5170
        %5442 = vmatprep.subr.bf16.mxu0 0
        %5443 = vmatpush1.bf16.msra.mxu0 %v5171
        %5444 = vmatprep.subr.bf16.mxu0 0
        %5445 = vmatpush1.bf16.msra.mxu0 %v5172
        %5446 = vmatprep.subr.bf16.mxu0 0
        %5447 = vmatpush1.bf16.msra.mxu0 %v5173
        %5448 = vmatprep.subr.bf16.mxu0 0
        %5449 = vmatpush1.bf16.msra.mxu0 %v5174
        %5450 = vmatprep.subr.bf16.mxu0 0
        %5451 = vmatpush1.bf16.msra.mxu0 %v5175
        %5452 = vmatprep.subr.bf16.mxu0 0
        %5453 = vmatpush1.bf16.msra.mxu0 %v5176
        %5454 = vmatprep.subr.bf16.mxu0 0
        %5455 = vmatpush1.bf16.msra.mxu0 %v5177
        %5456 = vmatprep.subr.bf16.mxu0 0
        %5457 = vmatpush1.bf16.msra.mxu0 %v5178
        %5458 = vmatprep.subr.bf16.mxu0 0
        %5459 = vmatpush1.bf16.msra.mxu0 %v5179
        %5460 = vmatprep.mubr.bf16.mxu0 %v4956
        %5461 = vmatmul.mubr.bf16.gmra.mrb[0].mxu0 %v4893
        %v5462 = vpop.f32.mrb[0].mxu0
        %v5463 = vadd.f32 %v5302, %v5462
        %v5464 = vpop.f32.mrb[0].mxu0
        %v5465 = vpop.f32.mrb[0].mxu0
        %v5466 = vadd.f32 %v5305, %v5465
        %v5467 = vpop.f32.mrb[0].mxu0
        %5468 = vmatprep.mubr.bf16.mxu0 %v4959
        %5469 = vmatmul.mubr.bf16.gmra.mrb[0].mxu0 %v4897
        %v5470 = vpop.f32.mrb[0].mxu0
        %v5471 = vadd.f32 %v5310, %v5470
        %v5472 = vpop.f32.mrb[0].mxu0
        %v5473 = vpop.f32.mrb[0].mxu0
        %v5474 = vadd.f32 %v5313, %v5473
        %v5475 = vpop.f32.mrb[0].mxu0
        %5476 = vmatprep.mubr.bf16.mxu0 %v4962
        %5477 = vmatmul.mubr.bf16.gmra.mrb[0].mxu0 %v4901
        %v5478 = vpop.f32.mrb[0].mxu0
        %v5479 = vadd.f32 %v5318, %v5478
        %v5480 = vpop.f32.mrb[0].mxu0
        %v5481 = vpop.f32.mrb[0].mxu0
        %v5482 = vadd.f32 %v5321, %v5481
        %v5483 = vpop.f32.mrb[0].mxu0
        %5484 = vmatprep.mubr.bf16.mxu0 %v4965
        %5485 = vmatmul.mubr.bf16.gmra.mrb[0].mxu0 %v4905
        %v5486 = vpop.f32.mrb[0].mxu0
        %v5487 = vadd.f32 %v5326, %v5486
        %v5488 = vpop.f32.mrb[0].mxu0
        %v5489 = vpop.f32.mrb[0].mxu0
        %v5490 = vadd.f32 %v5329, %v5489
        %v5491 = vpop.f32.mrb[0].mxu0
        %5492 = vmatprep.mubr.bf16.mxu0 %v4968
        %5493 = vmatmul.mubr.bf16.gmra.mrb[0].mxu0 %v4909
        %v5494 = vpop.f32.mrb[0].mxu0
        %v5495 = vadd.f32 %v5334, %v5494
        %v5496 = vpop.f32.mrb[0].mxu0
        %v5497 = vpop.f32.mrb[0].mxu0
        %v5498 = vadd.f32 %v5337, %v5497
        %v5499 = vpop.f32.mrb[0].mxu0
        %5500 = vmatprep.mubr.bf16.mxu0 %v4971
        %5501 = vmatmul.mubr.bf16.gmra.mrb[0].mxu0 %v4913
        %v5502 = vpop.f32.mrb[0].mxu0
        %v5503 = vadd.f32 %v5342, %v5502
        %v5504 = vpop.f32.mrb[0].mxu0
        %v5505 = vpop.f32.mrb[0].mxu0
        %v5506 = vadd.f32 %v5345, %v5505
        %v5507 = vpop.f32.mrb[0].mxu0
        %5508 = vmatprep.mubr.bf16.mxu0 %v4974
        %5509 = vmatmul.mubr.bf16.gmra.mrb[0].mxu0 %v4917
        %v5510 = vpop.f32.mrb[0].mxu0
        %v5511 = vadd.f32 %v5350, %v5510
        %v5512 = vpop.f32.mrb[0].mxu0
        %v5513 = vpop.f32.mrb[0].mxu0
        %v5514 = vadd.f32 %v5353, %v5513
        %v5515 = vpop.f32.mrb[0].mxu0
        %5516 = vmatprep.mubr.bf16.mxu0 %v4977
        %5517 = vmatmul.mubr.bf16.gmra.mrb[0].mxu0 %v4921
        %v5518 = vpop.f32.mrb[0].mxu0
        %v5519 = vadd.f32 %v5358, %v5518
        %v5520 = vpop.f32.mrb[0].mxu0
        %v5521 = vpop.f32.mrb[0].mxu0
        %v5522 = vadd.f32 %v5361, %v5521
        %v5523 = vpop.f32.mrb[0].mxu0
        %5524 = vmatprep.mubr.bf16.mxu0 %v4980
        %5525 = vmatmul.mubr.bf16.gmra.mrb[0].mxu0 %v4925
        %v5526 = vpop.f32.mrb[0].mxu0
        %v5527 = vadd.f32 %v5366, %v5526
        %v5528 = vpop.f32.mrb[0].mxu0
        %v5529 = vpop.f32.mrb[0].mxu0
        %v5530 = vadd.f32 %v5369, %v5529
        %v5531 = vpop.f32.mrb[0].mxu0
        %5532 = vmatprep.mubr.bf16.mxu0 %v4983
        %5533 = vmatmul.mubr.bf16.gmra.mrb[0].mxu0 %v4929
        %v5534 = vpop.f32.mrb[0].mxu0
        %v5535 = vadd.f32 %v5374, %v5534
        %v5536 = vpop.f32.mrb[0].mxu0
        %v5537 = vpop.f32.mrb[0].mxu0
        %v5538 = vadd.f32 %v5377, %v5537
        %v5539 = vpop.f32.mrb[0].mxu0
        %5540 = vmatprep.mubr.bf16.mxu0 %v4986
        %5541 = vmatmul.mubr.bf16.gmra.mrb[0].mxu0 %v4933
        %v5542 = vpop.f32.mrb[0].mxu0
        %v5543 = vadd.f32 %v5382, %v5542
        %v5544 = vpop.f32.mrb[0].mxu0
        %v5545 = vpop.f32.mrb[0].mxu0
        %v5546 = vadd.f32 %v5385, %v5545
        %v5547 = vpop.f32.mrb[0].mxu0
        %5548 = vmatprep.mubr.bf16.mxu0 %v4989
        %5549 = vmatmul.mubr.bf16.gmra.mrb[0].mxu0 %v4937
        %v5550 = vpop.f32.mrb[0].mxu0
        %v5551 = vadd.f32 %v5390, %v5550
        %v5552 = vpop.f32.mrb[0].mxu0
        %v5553 = vpop.f32.mrb[0].mxu0
        %v5554 = vadd.f32 %v5393, %v5553
        %v5555 = vpop.f32.mrb[0].mxu0
        %5556 = vmatprep.mubr.bf16.mxu0 %v4992
        %5557 = vmatmul.mubr.bf16.gmra.mrb[0].mxu0 %v4941
        %v5558 = vpop.f32.mrb[0].mxu0
        %v5559 = vadd.f32 %v5398, %v5558
        %v5560 = vpop.f32.mrb[0].mxu0
        %v5561 = vpop.f32.mrb[0].mxu0
        %v5562 = vadd.f32 %v5401, %v5561
        %v5563 = vpop.f32.mrb[0].mxu0
        %5564 = vmatprep.mubr.bf16.mxu0 %v4995
        %5565 = vmatmul.mubr.bf16.gmra.mrb[0].mxu0 %v4945
        %v5566 = vpop.f32.mrb[0].mxu0
        %v5567 = vadd.f32 %v5406, %v5566
        %v5568 = vpop.f32.mrb[0].mxu0
        %v5569 = vpop.f32.mrb[0].mxu0
        %v5570 = vadd.f32 %v5409, %v5569
        %v5571 = vpop.f32.mrb[0].mxu0
        %5572 = vmatprep.mubr.bf16.mxu0 %v4999
        %5573 = vmatmul.mubr.bf16.gmra.mrb[0].mxu0 %v4949
        %v5574 = vpop.f32.mrb[0].mxu0
        %v5575 = vadd.f32 %v5414, %v5574
        %v5576 = vpop.f32.mrb[0].mxu0
        %v5577 = vpop.f32.mrb[0].mxu0
        %v5578 = vadd.f32 %v5417, %v5577
        %v5579 = vpop.f32.mrb[0].mxu0
        %5580 = vmatprep.mubr.bf16.mxu0 %v5002
        %5581 = vmatmul.mubr.bf16.gmra.mrb[0].mxu0 %v4953
        %v5582 = vpop.f32.mrb[0].mxu0
        %v5583 = vadd.f32 %v5422, %v5582
        %v5584 = vpop.f32.mrb[0].mxu0
        %v5585 = vpop.f32.mrb[0].mxu0
        %v5586 = vadd.f32 %v5425, %v5585
        %v5587 = vpop.f32.mrb[0].mxu0
        %5588 = vdwg.mxu0
        %5589 = vmatprep.subr.bf16.mxu0 0
        %5590 = vmatpush1.bf16.msra.mxu0 %v5180
        %5591 = vmatprep.subr.bf16.mxu0 0
        %5592 = vmatpush1.bf16.msra.mxu0 %v5181
        %5593 = vmatprep.subr.bf16.mxu0 0
        %5594 = vmatpush1.bf16.msra.mxu0 %v5182
        %5595 = vmatprep.subr.bf16.mxu0 0
        %5596 = vmatpush1.bf16.msra.mxu0 %v5183
        %5597 = vmatprep.subr.bf16.mxu0 0
        %5598 = vmatpush1.bf16.msra.mxu0 0
        %5599 = vmatprep.subr.bf16.mxu0 0
        %5600 = vmatpush1.bf16.msra.mxu0 0
        %5601 = vmatprep.subr.bf16.mxu0 0
        %5602 = vmatpush1.bf16.msra.mxu0 0
        %5603 = vmatprep.subr.bf16.mxu0 0
        %5604 = vmatpush1.bf16.msra.mxu0 0
        %5605 = vmatprep.subr.bf16.mxu0 0
        %5606 = vmatpush1.bf16.msra.mxu0 0
        %5607 = vmatprep.subr.bf16.mxu0 0
        %5608 = vmatpush1.bf16.msra.mxu0 0
        %5609 = vmatprep.subr.bf16.mxu0 0
        %5610 = vmatpush1.bf16.msra.mxu0 0
        %5611 = vmatprep.subr.bf16.mxu0 0
        %5612 = vmatpush1.bf16.msra.mxu0 0
        %5613 = vmatprep.subr.bf16.mxu0 0
        %5614 = vmatpush1.bf16.msra.mxu0 0
        %5615 = vmatprep.subr.bf16.mxu0 0
        %5616 = vmatpush1.bf16.msra.mxu0 0
        %5617 = vmatprep.subr.bf16.mxu0 0
        %5618 = vmatpush1.bf16.msra.mxu0 0
        %5619 = vmatprep.subr.bf16.mxu0 0
        %5620 = vmatpush1.bf16.msra.mxu0 0
        %5621 = vmatprep.mubr.bf16.mxu0 0
        %5622 = vmatmul.mubr.bf16.gmra.mrb[0].mxu0 %v5221
        %v5623 = vpop.f32.mrb[0].mxu0
        %v5624 = vadd.f32 %v5463, %v5623
        %v5625 = vpop.f32.mrb[0].mxu0
        %v5626 = vpop.f32.mrb[0].mxu0
        %v5627 = vadd.f32 %v5466, %v5626
        %v5628 = vpop.f32.mrb[0].mxu0
        %5629 = vmatprep.mubr.bf16.mxu0 0
        %5630 = vmatmul.mubr.bf16.gmra.mrb[0].mxu0 %v5224
        %v5631 = vpop.f32.mrb[0].mxu0
        %v5632 = vadd.f32 %v5471, %v5631
        %v5633 = vpop.f32.mrb[0].mxu0
        %v5634 = vpop.f32.mrb[0].mxu0
        %v5635 = vadd.f32 %v5474, %v5634
        %v5636 = vpop.f32.mrb[0].mxu0
        %5637 = vmatprep.mubr.bf16.mxu0 0
        %5638 = vmatmul.mubr.bf16.gmra.mrb[0].mxu0 %v5227
        %v5639 = vpop.f32.mrb[0].mxu0
        %v5640 = vadd.f32 %v5479, %v5639
        %v5641 = vpop.f32.mrb[0].mxu0
        %v5642 = vpop.f32.mrb[0].mxu0
        %v5643 = vadd.f32 %v5482, %v5642
        %v5644 = vpop.f32.mrb[0].mxu0
        %5645 = vmatprep.mubr.bf16.mxu0 0
        %5646 = vmatmul.mubr.bf16.gmra.mrb[0].mxu0 %v5230
        %v5647 = vpop.f32.mrb[0].mxu0
        %v5648 = vadd.f32 %v5487, %v5647
        %v5649 = vpop.f32.mrb[0].mxu0
        %v5650 = vpop.f32.mrb[0].mxu0
        %v5651 = vadd.f32 %v5490, %v5650
        %v5652 = vpop.f32.mrb[0].mxu0
        %5653 = vmatprep.mubr.bf16.mxu0 0
        %5654 = vmatmul.mubr.bf16.gmra.mrb[0].mxu0 %v5233
        %v5655 = vpop.f32.mrb[0].mxu0
        %v5656 = vadd.f32 %v5495, %v5655
        %v5657 = vpop.f32.mrb[0].mxu0
        %v5658 = vpop.f32.mrb[0].mxu0
        %v5659 = vadd.f32 %v5498, %v5658
        %v5660 = vpop.f32.mrb[0].mxu0
        %5661 = vmatprep.mubr.bf16.mxu0 0
        %5662 = vmatmul.mubr.bf16.gmra.mrb[0].mxu0 %v5236
        %v5663 = vpop.f32.mrb[0].mxu0
        %v5664 = vadd.f32 %v5503, %v5663
        %v5665 = vpop.f32.mrb[0].mxu0
        %v5666 = vpop.f32.mrb[0].mxu0
        %v5667 = vadd.f32 %v5506, %v5666
        %v5668 = vpop.f32.mrb[0].mxu0
        %5669 = vmatprep.mubr.bf16.mxu0 0
        %5670 = vmatmul.mubr.bf16.gmra.mrb[0].mxu0 %v5239
        %v5671 = vpop.f32.mrb[0].mxu0
        %v5672 = vadd.f32 %v5511, %v5671
        %v5673 = vpop.f32.mrb[0].mxu0
        %v5674 = vpop.f32.mrb[0].mxu0
        %v5675 = vadd.f32 %v5514, %v5674
        %v5676 = vpop.f32.mrb[0].mxu0
        %5677 = vmatprep.mubr.bf16.mxu0 0
        %5678 = vmatmul.mubr.bf16.gmra.mrb[0].mxu0 %v5242
        %v5679 = vpop.f32.mrb[0].mxu0
        %v5680 = vadd.f32 %v5519, %v5679
        %v5681 = vpop.f32.mrb[0].mxu0
        %v5682 = vpop.f32.mrb[0].mxu0
        %v5683 = vadd.f32 %v5522, %v5682
        %v5684 = vpop.f32.mrb[0].mxu0
        %5685 = vmatprep.mubr.bf16.mxu0 0
        %5686 = vmatmul.mubr.bf16.gmra.mrb[0].mxu0 %v5245
        %v5687 = vpop.f32.mrb[0].mxu0
        %v5688 = vadd.f32 %v5527, %v5687
        %v5689 = vpop.f32.mrb[0].mxu0
        %v5690 = vpop.f32.mrb[0].mxu0
        %v5691 = vadd.f32 %v5530, %v5690
        %v5692 = vpop.f32.mrb[0].mxu0
        %5693 = vmatprep.mubr.bf16.mxu0 0
        %5694 = vmatmul.mubr.bf16.gmra.mrb[0].mxu0 %v5248
        %v5695 = vpop.f32.mrb[0].mxu0
        %v5696 = vadd.f32 %v5535, %v5695
        %v5697 = vpop.f32.mrb[0].mxu0
        %v5698 = vpop.f32.mrb[0].mxu0
        %v5699 = vadd.f32 %v5538, %v5698
        %v5700 = vpop.f32.mrb[0].mxu0
        %5701 = vmatprep.mubr.bf16.mxu0 0
        %5702 = vmatmul.mubr.bf16.gmra.mrb[0].mxu0 %v5251
        %v5703 = vpop.f32.mrb[0].mxu0
        %v5704 = vadd.f32 %v5543, %v5703
        %v5705 = vpop.f32.mrb[0].mxu0
        %v5706 = vpop.f32.mrb[0].mxu0
        %v5707 = vadd.f32 %v5546, %v5706
        %v5708 = vpop.f32.mrb[0].mxu0
        %5709 = vmatprep.mubr.bf16.mxu0 0
        %5710 = vmatmul.mubr.bf16.gmra.mrb[0].mxu0 %v5254
        %v5711 = vpop.f32.mrb[0].mxu0
        %v5712 = vadd.f32 %v5551, %v5711
        %v5713 = vpop.f32.mrb[0].mxu0
        %v5714 = vpop.f32.mrb[0].mxu0
        %v5715 = vadd.f32 %v5554, %v5714
        %v5716 = vpop.f32.mrb[0].mxu0
        %5717 = vmatprep.mubr.bf16.mxu0 0
        %5718 = vmatmul.mubr.bf16.gmra.mrb[0].mxu0 %v5257
        %v5719 = vpop.f32.mrb[0].mxu0
        %v5720 = vadd.f32 %v5559, %v5719
        %v5721 = vpop.f32.mrb[0].mxu0
        %v5722 = vpop.f32.mrb[0].mxu0
        %v5723 = vadd.f32 %v5562, %v5722
        %v5724 = vpop.f32.mrb[0].mxu0
        %5725 = vmatprep.mubr.bf16.mxu0 0
        %5726 = vmatmul.mubr.bf16.gmra.mrb[0].mxu0 %v5260
        %v5727 = vpop.f32.mrb[0].mxu0
        %v5728 = vadd.f32 %v5567, %v5727
        %v5729 = vpop.f32.mrb[0].mxu0
        %v5730 = vpop.f32.mrb[0].mxu0
        %v5731 = vadd.f32 %v5570, %v5730
        %v5732 = vpop.f32.mrb[0].mxu0
        %5733 = vmatprep.mubr.bf16.mxu0 0
        %5734 = vmatmul.mubr.bf16.gmra.mrb[0].mxu0 %v5263
        %v5735 = vpop.f32.mrb[0].mxu0
        %v5736 = vadd.f32 %v5575, %v5735
        %v5737 = vpop.f32.mrb[0].mxu0
        %v5738 = vpop.f32.mrb[0].mxu0
        %v5739 = vadd.f32 %v5578, %v5738
        %v5740 = vpop.f32.mrb[0].mxu0
        %5741 = vmatprep.mubr.bf16.mxu0 0
        %5742 = vmatmul.mubr.bf16.gmra.mrb[0].mxu0 %v5265
        %v5743 = vpop.f32.mrb[0].mxu0
        %v5744 = vadd.f32 %v5583, %v5743
        %v5745 = vpop.f32.mrb[0].mxu0
        %v5746 = vpop.f32.mrb[0].mxu0
        %v5747 = vadd.f32 %v5586, %v5746
        %v5748 = vpop.f32.mrb[0].mxu0
        %5749 = vdwg.mxu0
        %v5751 = vlaneseq
        %v5752 = vshrl.u32 %v5751, 7
        %v5753 = vsub.s32 0, %v5752
        %v5754 = vrot.slane %v4092, %v5753
        %v5756 = vmul.f32 %v5624, %v5754
        %v5757 = vmul.f32 %v5627, %v5754
        %v5758 = vmul.f32 %v5632, %v5754
        %v5759 = vmul.f32 %v5635, %v5754
        %v5760 = vmul.f32 %v5640, %v5754
        %v5761 = vmul.f32 %v5643, %v5754
        %v5762 = vmul.f32 %v5648, %v5754
        %v5763 = vmul.f32 %v5651, %v5754
        %v5764 = vmul.f32 %v5656, %v5754
        %v5765 = vmul.f32 %v5659, %v5754
        %v5766 = vmul.f32 %v5664, %v5754
        %v5767 = vmul.f32 %v5667, %v5754
        %v5768 = vmul.f32 %v5672, %v5754
        %v5769 = vmul.f32 %v5675, %v5754
        %v5770 = vmul.f32 %v5680, %v5754
        %v5771 = vmul.f32 %v5683, %v5754
        %v5772 = vmul.f32 %v5688, %v5754
        %v5773 = vmul.f32 %v5691, %v5754
        %v5774 = vmul.f32 %v5696, %v5754
        %v5775 = vmul.f32 %v5699, %v5754
        %v5776 = vmul.f32 %v5704, %v5754
        %v5777 = vmul.f32 %v5707, %v5754
        %v5778 = vmul.f32 %v5712, %v5754
        %v5779 = vmul.f32 %v5715, %v5754
        %v5780 = vmul.f32 %v5720, %v5754
        %v5781 = vmul.f32 %v5723, %v5754
        %v5782 = vmul.f32 %v5728, %v5754
        %v5783 = vmul.f32 %v5731, %v5754
        %v5784 = vmul.f32 %v5736, %v5754
        %v5785 = vmul.f32 %v5739, %v5754
        %v5786 = vmul.f32 %v5744, %v5754
        %v5787 = vmul.f32 %v5747, %v5754
        %v5789 = vlaneseq
        %v5790 = vshrl.u32 %v5789, 7
        %v5791 = vsub.s32 0, %v5790
        %v5792 = vrot.slane %v4093, %v5791
        %v5794 = vadd.f32 %v5756, %v5792
        %v5795 = vadd.f32 %v5757, %v5792
        %v5796 = vadd.f32 %v5758, %v5792
        %v5797 = vadd.f32 %v5759, %v5792
        %v5798 = vadd.f32 %v5760, %v5792
        %v5799 = vadd.f32 %v5761, %v5792
        %v5800 = vadd.f32 %v5762, %v5792
        %v5801 = vadd.f32 %v5763, %v5792
        %v5802 = vadd.f32 %v5764, %v5792
        %v5803 = vadd.f32 %v5765, %v5792
        %v5804 = vadd.f32 %v5766, %v5792
        %v5805 = vadd.f32 %v5767, %v5792
        %v5806 = vadd.f32 %v5768, %v5792
        %v5807 = vadd.f32 %v5769, %v5792
        %v5808 = vadd.f32 %v5770, %v5792
        %v5809 = vadd.f32 %v5771, %v5792
        %v5810 = vadd.f32 %v5772, %v5792
        %v5811 = vadd.f32 %v5773, %v5792
        %v5812 = vadd.f32 %v5774, %v5792
        %v5813 = vadd.f32 %v5775, %v5792
        %v5814 = vadd.f32 %v5776, %v5792
        %v5815 = vadd.f32 %v5777, %v5792
        %v5816 = vadd.f32 %v5778, %v5792
        %v5817 = vadd.f32 %v5779, %v5792
        %v5818 = vadd.f32 %v5780, %v5792
        %v5819 = vadd.f32 %v5781, %v5792
        %v5820 = vadd.f32 %v5782, %v5792
        %v5821 = vadd.f32 %v5783, %v5792
        %v5822 = vadd.f32 %v5784, %v5792
        %v5823 = vadd.f32 %v5785, %v5792
        %v5824 = vadd.f32 %v5786, %v5792
        %v5825 = vadd.f32 %v5787, %v5792
        %v5826 = vmax.f32 %v5794, 0.0
        %v5827 = vmax.f32 %v5795, 0.0
        %v5828 = vmax.f32 %v5796, 0.0
        %v5829 = vmax.f32 %v5797, 0.0
        %v5830 = vmax.f32 %v5798, 0.0
        %v5831 = vmax.f32 %v5799, 0.0
        %v5832 = vmax.f32 %v5800, 0.0
        %v5833 = vmax.f32 %v5801, 0.0
        %v5834 = vmax.f32 %v5802, 0.0
        %v5835 = vmax.f32 %v5803, 0.0
        %v5836 = vmax.f32 %v5804, 0.0
        %v5837 = vmax.f32 %v5805, 0.0
        %v5838 = vmax.f32 %v5806, 0.0
        %v5839 = vmax.f32 %v5807, 0.0
        %v5840 = vmax.f32 %v5808, 0.0
        %v5841 = vmax.f32 %v5809, 0.0
        %v5842 = vmax.f32 %v5810, 0.0
        %v5843 = vmax.f32 %v5811, 0.0
        %v5844 = vmax.f32 %v5812, 0.0
        %v5845 = vmax.f32 %v5813, 0.0
        %v5846 = vmax.f32 %v5814, 0.0
        %v5847 = vmax.f32 %v5815, 0.0
        %v5848 = vmax.f32 %v5816, 0.0
        %v5849 = vmax.f32 %v5817, 0.0
        %v5850 = vmax.f32 %v5818, 0.0
        %v5851 = vmax.f32 %v5819, 0.0
        %v5852 = vmax.f32 %v5820, 0.0
        %v5853 = vmax.f32 %v5821, 0.0
        %v5854 = vmax.f32 %v5822, 0.0
        %v5855 = vmax.f32 %v5823, 0.0
        %v5856 = vmax.f32 %v5824, 0.0
        %v5857 = vmax.f32 %v5825, 0.0
        %s5858 = smul.u32 4, 144
        %s5859 = smul.u32 %s5858, 2
        %s5860 = sshll.u32 %s5859, 4
        %5861 = dma.done [#allocation3], %s5860
        %v5862 = vld [vmem:[#allocation2] sm:$0xff]
        %v5863 = vld [vmem:[#allocation2 + $0x8] sm:$0xff]
        %v5864 = vld [vmem:[#allocation2 + $0x10] sm:$0xff]
        %v5865 = vld [vmem:[#allocation2 + $0x18] sm:$0xff]
        %v5866 = vld [vmem:[#allocation2 + $0x20] sm:$0xff]
        %v5867 = vld [vmem:[#allocation2 + $0x28] sm:$0xff]
        %v5868 = vld [vmem:[#allocation2 + $0x30] sm:$0xff]
        %v5869 = vld [vmem:[#allocation2 + $0x38] sm:$0xff]
        %v5870 = vld [vmem:[#allocation2 + $0x40] sm:$0xff]
        %v5871 = vld [vmem:[#allocation2 + $0x48] sm:$0xff]
        %v5872 = vld [vmem:[#allocation2 + $0x50] sm:$0xff]
        %v5873 = vld [vmem:[#allocation2 + $0x58] sm:$0xff]
        %v5874 = vld [vmem:[#allocation2 + $0x60] sm:$0xff]
        %v5875 = vld [vmem:[#allocation2 + $0x68] sm:$0xff]
        %v5876 = vld [vmem:[#allocation2 + $0x70] sm:$0xff]
        %v5877 = vld [vmem:[#allocation2 + $0x78] sm:$0xff]
        %v5878 = vld [vmem:[#allocation2 + $0x80] sm:$0xff]
        %v5879 = vld [vmem:[#allocation2 + $0x88] sm:$0xff]
        %v5880 = vld [vmem:[#allocation2 + $0x90] sm:$0xff]
        %v5881 = vld [vmem:[#allocation2 + $0x98] sm:$0xff]
        %v5882 = vld [vmem:[#allocation2 + $0xa0] sm:$0xff]
        %v5883 = vld [vmem:[#allocation2 + $0xa8] sm:$0xff]
        %v5884 = vld [vmem:[#allocation2 + $0xb0] sm:$0xff]
        %v5885 = vld [vmem:[#allocation2 + $0xb8] sm:$0xff]
        %v5886 = vld [vmem:[#allocation2 + $0xc0] sm:$0xff]
        %v5887 = vld [vmem:[#allocation2 + $0xc8] sm:$0xff]
        %v5888 = vld [vmem:[#allocation2 + $0xd0] sm:$0xff]
        %v5889 = vld [vmem:[#allocation2 + $0xd8] sm:$0xff]
        %v5890 = vld [vmem:[#allocation2 + $0xe0] sm:$0xff]
        %v5891 = vld [vmem:[#allocation2 + $0xe8] sm:$0xff]
        %v5892 = vld [vmem:[#allocation2 + $0xf0] sm:$0xff]
        %v5893 = vld [vmem:[#allocation2 + $0xf8] sm:$0xff]
        %v5894 = vld [vmem:[#allocation2 + $0x100] sm:$0xff]
        %v5895 = vld [vmem:[#allocation2 + $0x108] sm:$0xff]
        %v5896 = vld [vmem:[#allocation2 + $0x110] sm:$0xff]
        %v5897 = vld [vmem:[#allocation2 + $0x118] sm:$0xff]
        %v5898 = vld [vmem:[#allocation2 + $0x120] sm:$0xff]
        %v5899 = vld [vmem:[#allocation2 + $0x128] sm:$0xff]
        %v5900 = vld [vmem:[#allocation2 + $0x130] sm:$0xff]
        %v5901 = vld [vmem:[#allocation2 + $0x138] sm:$0xff]
        %v5902 = vld [vmem:[#allocation2 + $0x140] sm:$0xff]
        %v5903 = vld [vmem:[#allocation2 + $0x148] sm:$0xff]
        %v5904 = vld [vmem:[#allocation2 + $0x150] sm:$0xff]
        %v5905 = vld [vmem:[#allocation2 + $0x158] sm:$0xff]
        %v5906 = vld [vmem:[#allocation2 + $0x160] sm:$0xff]
        %v5907 = vld [vmem:[#allocation2 + $0x168] sm:$0xff]
        %v5908 = vld [vmem:[#allocation2 + $0x170] sm:$0xff]
        %v5909 = vld [vmem:[#allocation2 + $0x178] sm:$0xff]
        %v5910 = vld [vmem:[#allocation2 + $0x180] sm:$0xff]
        %v5911 = vld [vmem:[#allocation2 + $0x188] sm:$0xff]
        %v5912 = vld [vmem:[#allocation2 + $0x190] sm:$0xff]
        %v5913 = vld [vmem:[#allocation2 + $0x198] sm:$0xff]
        %v5914 = vld [vmem:[#allocation2 + $0x1a0] sm:$0xff]
        %v5915 = vld [vmem:[#allocation2 + $0x1a8] sm:$0xff]
        %v5916 = vld [vmem:[#allocation2 + $0x1b0] sm:$0xff]
        %v5917 = vld [vmem:[#allocation2 + $0x1b8] sm:$0xff]
        %v5918 = vld [vmem:[#allocation2 + $0x1c0] sm:$0xff]
        %v5919 = vld [vmem:[#allocation2 + $0x1c8] sm:$0xff]
        %v5920 = vld [vmem:[#allocation2 + $0x1d0] sm:$0xff]
        %v5921 = vld [vmem:[#allocation2 + $0x1d8] sm:$0xff]
        %v5922 = vld [vmem:[#allocation2 + $0x1e0] sm:$0xff]
        %v5923 = vld [vmem:[#allocation2 + $0x1e8] sm:$0xff]
        %v5924 = vld [vmem:[#allocation2 + $0x1f0] sm:$0xff]
        %v5925 = vld [vmem:[#allocation2 + $0x1f8] sm:$0xff]
        %v5926 = vld [vmem:[#allocation2 + $0x200] sm:$0xff]
        %v5927 = vld [vmem:[#allocation2 + $0x208] sm:$0xff]
        %v5928 = vld [vmem:[#allocation2 + $0x210] sm:$0xff]
        %v5929 = vld [vmem:[#allocation2 + $0x218] sm:$0xff]
        %v5930 = vld [vmem:[#allocation2 + $0x220] sm:$0xff]
        %v5931 = vld [vmem:[#allocation2 + $0x228] sm:$0xff]
        %v5932 = vld [vmem:[#allocation2 + $0x230] sm:$0xff]
        %v5933 = vld [vmem:[#allocation2 + $0x238] sm:$0xff]
        %v5934 = vld [vmem:[#allocation2 + $0x240] sm:$0xff]
        %v5935 = vld [vmem:[#allocation2 + $0x248] sm:$0xff]
        %v5936 = vld [vmem:[#allocation2 + $0x250] sm:$0xff]
        %v5937 = vld [vmem:[#allocation2 + $0x258] sm:$0xff]
        %v5938 = vld [vmem:[#allocation2 + $0x260] sm:$0xff]
        %v5939 = vld [vmem:[#allocation2 + $0x268] sm:$0xff]
        %v5940 = vld [vmem:[#allocation2 + $0x270] sm:$0xff]
        %v5941 = vld [vmem:[#allocation2 + $0x278] sm:$0xff]
        %v5942 = vld [vmem:[#allocation2 + $0x280] sm:$0xff]
        %v5943 = vld [vmem:[#allocation2 + $0x288] sm:$0xff]
        %v5944 = vld [vmem:[#allocation2 + $0x290] sm:$0xff]
        %v5945 = vld [vmem:[#allocation2 + $0x298] sm:$0xff]
        %v5946 = vld [vmem:[#allocation2 + $0x2a0] sm:$0xff]
        %v5947 = vld [vmem:[#allocation2 + $0x2a8] sm:$0xff]
        %v5948 = vld [vmem:[#allocation2 + $0x2b0] sm:$0xff]
        %v5949 = vld [vmem:[#allocation2 + $0x2b8] sm:$0xff]
        %v5950 = vld [vmem:[#allocation2 + $0x2c0] sm:$0xff]
        %v5951 = vld [vmem:[#allocation2 + $0x2c8] sm:$0xff]
        %v5952 = vld [vmem:[#allocation2 + $0x2d0] sm:$0xff]
        %v5953 = vld [vmem:[#allocation2 + $0x2d8] sm:$0xff]
        %v5954 = vld [vmem:[#allocation2 + $0x2e0] sm:$0xff]
        %v5955 = vld [vmem:[#allocation2 + $0x2e8] sm:$0xff]
        %v5956 = vld [vmem:[#allocation2 + $0x2f0] sm:$0xff]
        %v5957 = vld [vmem:[#allocation2 + $0x2f8] sm:$0xff]
        %v5958 = vld [vmem:[#allocation2 + $0x300] sm:$0xff]
        %v5959 = vld [vmem:[#allocation2 + $0x308] sm:$0xff]
        %v5960 = vld [vmem:[#allocation2 + $0x310] sm:$0xff]
        %v5961 = vld [vmem:[#allocation2 + $0x318] sm:$0xff]
        %v5962 = vld [vmem:[#allocation2 + $0x320] sm:$0xff]
        %v5963 = vld [vmem:[#allocation2 + $0x328] sm:$0xff]
        %v5964 = vld [vmem:[#allocation2 + $0x330] sm:$0xff]
        %v5965 = vld [vmem:[#allocation2 + $0x338] sm:$0xff]
        %v5966 = vld [vmem:[#allocation2 + $0x340] sm:$0xff]
        %v5967 = vld [vmem:[#allocation2 + $0x348] sm:$0xff]
        %v5968 = vld [vmem:[#allocation2 + $0x350] sm:$0xff]
        %v5969 = vld [vmem:[#allocation2 + $0x358] sm:$0xff]
        %v5970 = vld [vmem:[#allocation2 + $0x360] sm:$0xff]
        %v5971 = vld [vmem:[#allocation2 + $0x368] sm:$0xff]
        %v5972 = vld [vmem:[#allocation2 + $0x370] sm:$0xff]
        %v5973 = vld [vmem:[#allocation2 + $0x378] sm:$0xff]
        %v5974 = vld [vmem:[#allocation2 + $0x380] sm:$0xff]
        %v5975 = vld [vmem:[#allocation2 + $0x388] sm:$0xff]
        %v5976 = vld [vmem:[#allocation2 + $0x390] sm:$0xff]
        %v5977 = vld [vmem:[#allocation2 + $0x398] sm:$0xff]
        %v5978 = vld [vmem:[#allocation2 + $0x3a0] sm:$0xff]
        %v5979 = vld [vmem:[#allocation2 + $0x3a8] sm:$0xff]
        %v5980 = vld [vmem:[#allocation2 + $0x3b0] sm:$0xff]
        %v5981 = vld [vmem:[#allocation2 + $0x3b8] sm:$0xff]
        %v5982 = vld [vmem:[#allocation2 + $0x3c0] sm:$0xff]
        %v5983 = vld [vmem:[#allocation2 + $0x3c8] sm:$0xff]
        %v5984 = vld [vmem:[#allocation2 + $0x3d0] sm:$0xff]
        %v5985 = vld [vmem:[#allocation2 + $0x3d8] sm:$0xff]
        %v5986 = vld [vmem:[#allocation2 + $0x3e0] sm:$0xff]
        %v5987 = vld [vmem:[#allocation2 + $0x3e8] sm:$0xff]
        %v5988 = vld [vmem:[#allocation2 + $0x3f0] sm:$0xff]
        %v5989 = vld [vmem:[#allocation2 + $0x3f8] sm:$0xff]
        %v5990 = vld [vmem:[#allocation2 + $0x400] sm:$0xff]
        %v5991 = vld [vmem:[#allocation2 + $0x408] sm:$0xff]
        %v5992 = vld [vmem:[#allocation2 + $0x410] sm:$0xff]
        %v5993 = vld [vmem:[#allocation2 + $0x418] sm:$0xff]
        %v5994 = vld [vmem:[#allocation2 + $0x420] sm:$0xff]
        %v5995 = vld [vmem:[#allocation2 + $0x428] sm:$0xff]
        %v5996 = vld [vmem:[#allocation2 + $0x430] sm:$0xff]
        %v5997 = vld [vmem:[#allocation2 + $0x438] sm:$0xff]
        %v5998 = vld [vmem:[#allocation2 + $0x440] sm:$0xff]
        %v5999 = vld [vmem:[#allocation2 + $0x448] sm:$0xff]
        %v6000 = vld [vmem:[#allocation2 + $0x450] sm:$0xff]
        %v6001 = vld [vmem:[#allocation2 + $0x458] sm:$0xff]
        %v6002 = vld [vmem:[#allocation2 + $0x460] sm:$0xff]
        %v6003 = vld [vmem:[#allocation2 + $0x468] sm:$0xff]
        %v6004 = vld [vmem:[#allocation2 + $0x470] sm:$0xff]
        %v6005 = vld [vmem:[#allocation2 + $0x478] sm:$0xff]
        %v6006 = vld [vmem:[%s11] sm:$0x3]
        %v6007 = vld [vmem:[%s12] sm:$0x3]
        %v6038 = vrot.slane %v5826, 7
        %v6039 = vrot.slane %v5827, 7
        %v6040 = vsel %vm1101, %v6038, %v6039
        %v6041 = vrot.slane %v5828, 7
        %v6042 = vsel %vm1101, %v6039, %v6041
        %v6043 = vrot.slane %v5829, 7
        %v6044 = vsel %vm1101, %v6041, %v6043
        %v6045 = vrot.slane %v5830, 7
        %v6046 = vsel %vm1101, %v6043, %v6045
        %v6047 = vrot.slane %v5831, 7
        %v6048 = vsel %vm1101, %v6045, %v6047
        %v6049 = vrot.slane %v5832, 7
        %v6050 = vsel %vm1101, %v6047, %v6049
        %v6051 = vrot.slane %v5833, 7
        %v6052 = vsel %vm1101, %v6049, %v6051
        %v6053 = vrot.slane %v5834, 7
        %v6054 = vsel %vm1101, %v6051, %v6053
        %v6055 = vrot.slane %v5835, 7
        %v6056 = vsel %vm1101, %v6053, %v6055
        %v6057 = vrot.slane %v5836, 7
        %v6058 = vsel %vm1101, %v6055, %v6057
        %v6059 = vrot.slane %v5837, 7
        %v6060 = vsel %vm1101, %v6057, %v6059
        %v6061 = vrot.slane %v5838, 7
        %v6062 = vsel %vm1101, %v6059, %v6061
        %v6063 = vrot.slane %v5839, 7
        %v6064 = vsel %vm1101, %v6061, %v6063
        %v6065 = vrot.slane %v5840, 7
        %v6066 = vsel %vm1101, %v6063, %v6065
        %v6067 = vrot.slane %v5841, 7
        %v6068 = vsel %vm1101, %v6065, %v6067
        %v6069 = vrot.slane %v5842, 7
        %v6070 = vsel %vm1101, %v6067, %v6069
        %v6071 = vrot.slane %v5843, 7
        %v6072 = vsel %vm1101, %v6069, %v6071
        %v6073 = vrot.slane %v5844, 7
        %v6074 = vsel %vm1101, %v6071, %v6073
        %v6075 = vrot.slane %v5845, 7
        %v6076 = vsel %vm1101, %v6073, %v6075
        %v6077 = vrot.slane %v5846, 7
        %v6078 = vsel %vm1101, %v6075, %v6077
        %v6079 = vrot.slane %v5847, 7
        %v6080 = vsel %vm1101, %v6077, %v6079
        %v6081 = vrot.slane %v5848, 7
        %v6082 = vsel %vm1101, %v6079, %v6081
        %v6083 = vrot.slane %v5849, 7
        %v6084 = vsel %vm1101, %v6081, %v6083
        %v6085 = vrot.slane %v5850, 7
        %v6086 = vsel %vm1101, %v6083, %v6085
        %v6087 = vrot.slane %v5851, 7
        %v6088 = vsel %vm1101, %v6085, %v6087
        %v6089 = vrot.slane %v5852, 7
        %v6090 = vsel %vm1101, %v6087, %v6089
        %v6091 = vrot.slane %v5853, 7
        %v6092 = vsel %vm1101, %v6089, %v6091
        %v6093 = vrot.slane %v5854, 7
        %v6094 = vsel %vm1101, %v6091, %v6093
        %v6095 = vrot.slane %v5855, 7
        %v6096 = vsel %vm1101, %v6093, %v6095
        %v6127 = vsel %vm1101, 0.0, %v6038
        %v6128 = vsel %vm1226, 0.0, %v6127
        %v6129 = vsel %vm1227, 0.0, %v6040
        %v6130 = vsel %vm1228, 0.0, %v6042
        %v6131 = vsel %vm1229, 0.0, %v6044
        %v6132 = vsel %vm1230, 0.0, %v6046
        %v6133 = vsel %vm1231, 0.0, %v6048
        %v6134 = vsel %vm1232, 0.0, %v6050
        %v6135 = vsel %vm1233, 0.0, %v6052
        %v6136 = vsel %vm1234, 0.0, %v6054
        %v6137 = vsel %vm1235, 0.0, %v6056
        %v6138 = vsel %vm1236, 0.0, %v6058
        %v6139 = vsel %vm1237, 0.0, %v6060
        %v6140 = vsel %vm1238, 0.0, %v6062
        %v6141 = vsel %vm1239, 0.0, %v6064
        %v6142 = vsel %vm1240, 0.0, %v6066
        %v6143 = vsel %vm1241, 0.0, %v6068
        %v6144 = vsel %vm1242, 0.0, %v6070
        %v6145 = vsel %vm1243, 0.0, %v6072
        %v6146 = vsel %vm1244, 0.0, %v6074
        %v6147 = vsel %vm1245, 0.0, %v6076
        %v6148 = vsel %vm1246, 0.0, %v6078
        %v6149 = vsel %vm1247, 0.0, %v6080
        %v6150 = vsel %vm1248, 0.0, %v6082
        %v6151 = vsel %vm1249, 0.0, %v6084
        %v6152 = vsel %vm1250, 0.0, %v6086
        %v6153 = vsel %vm1251, 0.0, %v6088
        %v6154 = vsel %vm1252, 0.0, %v6090
        %v6155 = vsel %vm1253, 0.0, %v6092
        %v6156 = vsel %vm1254, 0.0, %v6094
        %v6157 = vsel %vm1255, 0.0, %v6096
        %v6159 = vrot.slane %v5826, 1
        %v6160 = vrot.slane %v5827, 1
        %v6161 = vsel %vm1287, %v6159, %v6160
        %v6162 = vrot.slane %v5828, 1
        %v6163 = vsel %vm1287, %v6160, %v6162
        %v6164 = vrot.slane %v5829, 1
        %v6165 = vsel %vm1287, %v6162, %v6164
        %v6166 = vrot.slane %v5830, 1
        %v6167 = vsel %vm1287, %v6164, %v6166
        %v6168 = vrot.slane %v5831, 1
        %v6169 = vsel %vm1287, %v6166, %v6168
        %v6170 = vrot.slane %v5832, 1
        %v6171 = vsel %vm1287, %v6168, %v6170
        %v6172 = vrot.slane %v5833, 1
        %v6173 = vsel %vm1287, %v6170, %v6172
        %v6174 = vrot.slane %v5834, 1
        %v6175 = vsel %vm1287, %v6172, %v6174
        %v6176 = vrot.slane %v5835, 1
        %v6177 = vsel %vm1287, %v6174, %v6176
        %v6178 = vrot.slane %v5836, 1
        %v6179 = vsel %vm1287, %v6176, %v6178
        %v6180 = vrot.slane %v5837, 1
        %v6181 = vsel %vm1287, %v6178, %v6180
        %v6182 = vrot.slane %v5838, 1
        %v6183 = vsel %vm1287, %v6180, %v6182
        %v6184 = vrot.slane %v5839, 1
        %v6185 = vsel %vm1287, %v6182, %v6184
        %v6186 = vrot.slane %v5840, 1
        %v6187 = vsel %vm1287, %v6184, %v6186
        %v6188 = vrot.slane %v5841, 1
        %v6189 = vsel %vm1287, %v6186, %v6188
        %v6190 = vrot.slane %v5842, 1
        %v6191 = vsel %vm1287, %v6188, %v6190
        %v6192 = vrot.slane %v5843, 1
        %v6193 = vsel %vm1287, %v6190, %v6192
        %v6194 = vrot.slane %v5844, 1
        %v6195 = vsel %vm1287, %v6192, %v6194
        %v6196 = vrot.slane %v5845, 1
        %v6197 = vsel %vm1287, %v6194, %v6196
        %v6198 = vrot.slane %v5846, 1
        %v6199 = vsel %vm1287, %v6196, %v6198
        %v6200 = vrot.slane %v5847, 1
        %v6201 = vsel %vm1287, %v6198, %v6200
        %v6202 = vrot.slane %v5848, 1
        %v6203 = vsel %vm1287, %v6200, %v6202
        %v6204 = vrot.slane %v5849, 1
        %v6205 = vsel %vm1287, %v6202, %v6204
        %v6206 = vrot.slane %v5850, 1
        %v6207 = vsel %vm1287, %v6204, %v6206
        %v6208 = vrot.slane %v5851, 1
        %v6209 = vsel %vm1287, %v6206, %v6208
        %v6210 = vrot.slane %v5852, 1
        %v6211 = vsel %vm1287, %v6208, %v6210
        %v6212 = vrot.slane %v5853, 1
        %v6213 = vsel %vm1287, %v6210, %v6212
        %v6214 = vrot.slane %v5854, 1
        %v6215 = vsel %vm1287, %v6212, %v6214
        %v6216 = vrot.slane %v5855, 1
        %v6217 = vsel %vm1287, %v6214, %v6216
        %v6218 = vrot.slane %v5856, 1
        %v6219 = vsel %vm1287, %v6216, %v6218
        %v6251 = vsel %vm1287, 0.0, %v6159
        %v6252 = vsel %vm1414, 0.0, %v6251
        %v6253 = vsel %vm1415, 0.0, %v6161
        %v6254 = vsel %vm1416, 0.0, %v6163
        %v6255 = vsel %vm1417, 0.0, %v6165
        %v6256 = vsel %vm1418, 0.0, %v6167
        %v6257 = vsel %vm1419, 0.0, %v6169
        %v6258 = vsel %vm1420, 0.0, %v6171
        %v6259 = vsel %vm1421, 0.0, %v6173
        %v6260 = vsel %vm1422, 0.0, %v6175
        %v6261 = vsel %vm1423, 0.0, %v6177
        %v6262 = vsel %vm1424, 0.0, %v6179
        %v6263 = vsel %vm1425, 0.0, %v6181
        %v6264 = vsel %vm1426, 0.0, %v6183
        %v6265 = vsel %vm1427, 0.0, %v6185
        %v6266 = vsel %vm1428, 0.0, %v6187
        %v6267 = vsel %vm1429, 0.0, %v6189
        %v6268 = vsel %vm1430, 0.0, %v6191
        %v6269 = vsel %vm1431, 0.0, %v6193
        %v6270 = vsel %vm1432, 0.0, %v6195
        %v6271 = vsel %vm1433, 0.0, %v6197
        %v6272 = vsel %vm1434, 0.0, %v6199
        %v6273 = vsel %vm1435, 0.0, %v6201
        %v6274 = vsel %vm1436, 0.0, %v6203
        %v6275 = vsel %vm1437, 0.0, %v6205
        %v6276 = vsel %vm1438, 0.0, %v6207
        %v6277 = vsel %vm1439, 0.0, %v6209
        %v6278 = vsel %vm1440, 0.0, %v6211
        %v6279 = vsel %vm1441, 0.0, %v6213
        %v6280 = vsel %vm1442, 0.0, %v6215
        %v6281 = vsel %vm1443, 0.0, %v6217
        %v6282 = vsel %vm1444, 0.0, %v6219
        %v6284 = vrot.slane %v5856, 7
        %v6285 = vsel %vm1101, %v6095, %v6284
        %v6286 = vrot.slane %v5857, 7
        %v6287 = vsel %vm1101, %v6284, %v6286
        %v6290 = vsel %vm1224, 0.0, %v6127
        %v6291 = vsel %vm1225, 0.0, %v6040
        %v6292 = vsel %vm1226, 0.0, %v6042
        %v6293 = vsel %vm1227, 0.0, %v6044
        %v6294 = vsel %vm1228, 0.0, %v6046
        %v6295 = vsel %vm1229, 0.0, %v6048
        %v6296 = vsel %vm1230, 0.0, %v6050
        %v6297 = vsel %vm1231, 0.0, %v6052
        %v6298 = vsel %vm1232, 0.0, %v6054
        %v6299 = vsel %vm1233, 0.0, %v6056
        %v6300 = vsel %vm1234, 0.0, %v6058
        %v6301 = vsel %vm1235, 0.0, %v6060
        %v6302 = vsel %vm1236, 0.0, %v6062
        %v6303 = vsel %vm1237, 0.0, %v6064
        %v6304 = vsel %vm1238, 0.0, %v6066
        %v6305 = vsel %vm1239, 0.0, %v6068
        %v6306 = vsel %vm1240, 0.0, %v6070
        %v6307 = vsel %vm1241, 0.0, %v6072
        %v6308 = vsel %vm1242, 0.0, %v6074
        %v6309 = vsel %vm1243, 0.0, %v6076
        %v6310 = vsel %vm1244, 0.0, %v6078
        %v6311 = vsel %vm1245, 0.0, %v6080
        %v6312 = vsel %vm1246, 0.0, %v6082
        %v6313 = vsel %vm1247, 0.0, %v6084
        %v6314 = vsel %vm1248, 0.0, %v6086
        %v6315 = vsel %vm1249, 0.0, %v6088
        %v6316 = vsel %vm1250, 0.0, %v6090
        %v6317 = vsel %vm1251, 0.0, %v6092
        %v6318 = vsel %vm1252, 0.0, %v6094
        %v6319 = vsel %vm1253, 0.0, %v6096
        %v6320 = vsel %vm1254, 0.0, %v6285
        %v6321 = vsel %vm1255, 0.0, %v6287
        %v6322 = vrot.slane %v5857, 1
        %v6323 = vsel %vm1287, %v6218, %v6322
        %v6326 = vsel %vm1287, %v6322, 0.0
        %v6327 = vsel %vm1413, 0.0, %v6161
        %v6328 = vsel %vm1414, 0.0, %v6163
        %v6329 = vsel %vm1415, 0.0, %v6165
        %v6330 = vsel %vm1416, 0.0, %v6167
        %v6331 = vsel %vm1417, 0.0, %v6169
        %v6332 = vsel %vm1418, 0.0, %v6171
        %v6333 = vsel %vm1419, 0.0, %v6173
        %v6334 = vsel %vm1420, 0.0, %v6175
        %v6335 = vsel %vm1421, 0.0, %v6177
        %v6336 = vsel %vm1422, 0.0, %v6179
        %v6337 = vsel %vm1423, 0.0, %v6181
        %v6338 = vsel %vm1424, 0.0, %v6183
        %v6339 = vsel %vm1425, 0.0, %v6185
        %v6340 = vsel %vm1426, 0.0, %v6187
        %v6341 = vsel %vm1427, 0.0, %v6189
        %v6342 = vsel %vm1428, 0.0, %v6191
        %v6343 = vsel %vm1429, 0.0, %v6193
        %v6344 = vsel %vm1430, 0.0, %v6195
        %v6345 = vsel %vm1431, 0.0, %v6197
        %v6346 = vsel %vm1432, 0.0, %v6199
        %v6347 = vsel %vm1433, 0.0, %v6201
        %v6348 = vsel %vm1434, 0.0, %v6203
        %v6349 = vsel %vm1435, 0.0, %v6205
        %v6350 = vsel %vm1436, 0.0, %v6207
        %v6351 = vsel %vm1437, 0.0, %v6209
        %v6352 = vsel %vm1438, 0.0, %v6211
        %v6353 = vsel %vm1439, 0.0, %v6213
        %v6354 = vsel %vm1440, 0.0, %v6215
        %v6355 = vsel %vm1441, 0.0, %v6217
        %v6356 = vsel %vm1442, 0.0, %v6219
        %v6357 = vsel %vm1443, 0.0, %v6323
        %v6358 = vsel %vm1444, 0.0, %v6326
        %v6360 = vsel %vm1101, %v6286, 0.0
        %v6361 = vsel %vm1224, 0.0, %v6042
        %v6362 = vsel %vm1225, 0.0, %v6044
        %v6363 = vsel %vm1226, 0.0, %v6046
        %v6364 = vsel %vm1227, 0.0, %v6048
        %v6365 = vsel %vm1228, 0.0, %v6050
        %v6366 = vsel %vm1229, 0.0, %v6052
        %v6367 = vsel %vm1230, 0.0, %v6054
        %v6368 = vsel %vm1231, 0.0, %v6056
        %v6369 = vsel %vm1232, 0.0, %v6058
        %v6370 = vsel %vm1233, 0.0, %v6060
        %v6371 = vsel %vm1234, 0.0, %v6062
        %v6372 = vsel %vm1235, 0.0, %v6064
        %v6373 = vsel %vm1236, 0.0, %v6066
        %v6374 = vsel %vm1237, 0.0, %v6068
        %v6375 = vsel %vm1238, 0.0, %v6070
        %v6376 = vsel %vm1239, 0.0, %v6072
        %v6377 = vsel %vm1240, 0.0, %v6074
        %v6378 = vsel %vm1241, 0.0, %v6076
        %v6379 = vsel %vm1242, 0.0, %v6078
        %v6380 = vsel %vm1243, 0.0, %v6080
        %v6381 = vsel %vm1244, 0.0, %v6082
        %v6382 = vsel %vm1245, 0.0, %v6084
        %v6383 = vsel %vm1246, 0.0, %v6086
        %v6384 = vsel %vm1247, 0.0, %v6088
        %v6385 = vsel %vm1248, 0.0, %v6090
        %v6386 = vsel %vm1249, 0.0, %v6092
        %v6387 = vsel %vm1250, 0.0, %v6094
        %v6388 = vsel %vm1251, 0.0, %v6096
        %v6389 = vsel %vm1252, 0.0, %v6285
        %v6390 = vsel %vm1253, 0.0, %v6287
        %v6391 = vsel %vm1254, 0.0, %v6360
        %v6392 = vsel %vm1413, 0.0, %v6165
        %v6393 = vsel %vm1414, 0.0, %v6167
        %v6394 = vsel %vm1415, 0.0, %v6169
        %v6395 = vsel %vm1416, 0.0, %v6171
        %v6396 = vsel %vm1417, 0.0, %v6173
        %v6397 = vsel %vm1418, 0.0, %v6175
        %v6398 = vsel %vm1419, 0.0, %v6177
        %v6399 = vsel %vm1420, 0.0, %v6179
        %v6400 = vsel %vm1421, 0.0, %v6181
        %v6401 = vsel %vm1422, 0.0, %v6183
        %v6402 = vsel %vm1423, 0.0, %v6185
        %v6403 = vsel %vm1424, 0.0, %v6187
        %v6404 = vsel %vm1425, 0.0, %v6189
        %v6405 = vsel %vm1426, 0.0, %v6191
        %v6406 = vsel %vm1427, 0.0, %v6193
        %v6407 = vsel %vm1428, 0.0, %v6195
        %v6408 = vsel %vm1429, 0.0, %v6197
        %v6409 = vsel %vm1430, 0.0, %v6199
        %v6410 = vsel %vm1431, 0.0, %v6201
        %v6411 = vsel %vm1432, 0.0, %v6203
        %v6412 = vsel %vm1433, 0.0, %v6205
        %v6413 = vsel %vm1434, 0.0, %v6207
        %v6414 = vsel %vm1435, 0.0, %v6209
        %v6415 = vsel %vm1436, 0.0, %v6211
        %v6416 = vsel %vm1437, 0.0, %v6213
        %v6417 = vsel %vm1438, 0.0, %v6215
        %v6418 = vsel %vm1439, 0.0, %v6217
        %v6419 = vsel %vm1440, 0.0, %v6219
        %v6420 = vsel %vm1441, 0.0, %v6323
        %v6421 = vsel %vm1442, 0.0, %v6326
        %v6422 = vpack.c.bf16 %v6129, %v6128
        %v6423 = vpack.c.bf16 %v6131, %v6130
        %v6424 = vpack.c.bf16 %v6133, %v6132
        %v6425 = vpack.c.bf16 %v6135, %v6134
        %v6426 = vpack.c.bf16 %v6137, %v6136
        %v6427 = vpack.c.bf16 %v6139, %v6138
        %v6428 = vpack.c.bf16 %v6141, %v6140
        %v6429 = vpack.c.bf16 %v6143, %v6142
        %v6430 = vpack.c.bf16 %v6145, %v6144
        %v6431 = vpack.c.bf16 %v6147, %v6146
        %v6432 = vpack.c.bf16 %v6149, %v6148
        %v6433 = vpack.c.bf16 %v6151, %v6150
        %v6434 = vpack.c.bf16 %v6153, %v6152
        %v6435 = vpack.c.bf16 %v6155, %v6154
        %v6436 = vpack.c.bf16 %v6157, %v6156
        %v6437 = vpack.c.bf16 %v5827, %v5826
        %v6438 = vpack.c.bf16 %v5829, %v5828
        %v6439 = vpack.c.bf16 %v5831, %v5830
        %v6440 = vpack.c.bf16 %v5833, %v5832
        %v6441 = vpack.c.bf16 %v5835, %v5834
        %v6442 = vpack.c.bf16 %v5837, %v5836
        %v6443 = vpack.c.bf16 %v5839, %v5838
        %v6444 = vpack.c.bf16 %v5841, %v5840
        %v6445 = vpack.c.bf16 %v5843, %v5842
        %v6446 = vpack.c.bf16 %v5845, %v5844
        %v6447 = vpack.c.bf16 %v5847, %v5846
        %v6448 = vpack.c.bf16 %v5849, %v5848
        %v6449 = vpack.c.bf16 %v5851, %v5850
        %v6450 = vpack.c.bf16 %v5853, %v5852
        %v6451 = vpack.c.bf16 %v5855, %v5854
        %v6452 = vpack.c.bf16 %v6252, 0.0
        %v6453 = vpack.c.bf16 %v6254, %v6253
        %v6454 = vpack.c.bf16 %v6256, %v6255
        %v6455 = vpack.c.bf16 %v6258, %v6257
        %v6456 = vpack.c.bf16 %v6260, %v6259
        %v6457 = vpack.c.bf16 %v6262, %v6261
        %v6458 = vpack.c.bf16 %v6264, %v6263
        %v6459 = vpack.c.bf16 %v6266, %v6265
        %v6460 = vpack.c.bf16 %v6268, %v6267
        %v6461 = vpack.c.bf16 %v6270, %v6269
        %v6462 = vpack.c.bf16 %v6272, %v6271
        %v6463 = vpack.c.bf16 %v6274, %v6273
        %v6464 = vpack.c.bf16 %v6276, %v6275
        %v6465 = vpack.c.bf16 %v6278, %v6277
        %v6466 = vpack.c.bf16 %v6280, %v6279
        %v6467 = vpack.c.bf16 %v6282, %v6281
        %v6468 = vpack.c.bf16 %v6291, %v6290
        %v6469 = vpack.c.bf16 %v6293, %v6292
        %v6470 = vpack.c.bf16 %v6295, %v6294
        %v6471 = vpack.c.bf16 %v6297, %v6296
        %v6472 = vpack.c.bf16 %v6299, %v6298
        %v6473 = vpack.c.bf16 %v6301, %v6300
        %v6474 = vpack.c.bf16 %v6303, %v6302
        %v6475 = vpack.c.bf16 %v6305, %v6304
        %v6476 = vpack.c.bf16 %v6307, %v6306
        %v6477 = vpack.c.bf16 %v6309, %v6308
        %v6478 = vpack.c.bf16 %v6311, %v6310
        %v6479 = vpack.c.bf16 %v6313, %v6312
        %v6480 = vpack.c.bf16 %v6315, %v6314
        %v6481 = vpack.c.bf16 %v6317, %v6316
        %v6482 = vpack.c.bf16 %v6319, %v6318
        %v6483 = vpack.c.bf16 %v6321, %v6320
        %v6484 = vpack.c.bf16 %v5857, %v5856
        %v6485 = vpack.c.bf16 %v6328, %v6327
        %v6486 = vpack.c.bf16 %v6330, %v6329
        %v6487 = vpack.c.bf16 %v6332, %v6331
        %v6488 = vpack.c.bf16 %v6334, %v6333
        %v6489 = vpack.c.bf16 %v6336, %v6335
        %v6490 = vpack.c.bf16 %v6338, %v6337
        %v6491 = vpack.c.bf16 %v6340, %v6339
        %v6492 = vpack.c.bf16 %v6342, %v6341
        %v6493 = vpack.c.bf16 %v6344, %v6343
        %v6494 = vpack.c.bf16 %v6346, %v6345
        %v6495 = vpack.c.bf16 %v6348, %v6347
        %v6496 = vpack.c.bf16 %v6350, %v6349
        %v6497 = vpack.c.bf16 %v6352, %v6351
        %v6498 = vpack.c.bf16 %v6354, %v6353
        %v6499 = vpack.c.bf16 %v6356, %v6355
        %v6500 = vpack.c.bf16 %v6358, %v6357
        %v6501 = vpack.c.bf16 %v6362, %v6361
        %v6502 = vpack.c.bf16 %v6364, %v6363
        %v6503 = vpack.c.bf16 %v6366, %v6365
        %v6504 = vpack.c.bf16 %v6368, %v6367
        %v6505 = vpack.c.bf16 %v6370, %v6369
        %v6506 = vpack.c.bf16 %v6372, %v6371
        %v6507 = vpack.c.bf16 %v6374, %v6373
        %v6508 = vpack.c.bf16 %v6376, %v6375
        %v6509 = vpack.c.bf16 %v6378, %v6377
        %v6510 = vpack.c.bf16 %v6380, %v6379
        %v6511 = vpack.c.bf16 %v6382, %v6381
        %v6512 = vpack.c.bf16 %v6384, %v6383
        %v6513 = vpack.c.bf16 %v6386, %v6385
        %v6514 = vpack.c.bf16 %v6388, %v6387
        %v6515 = vpack.c.bf16 %v6390, %v6389
        %v6516 = vpack.c.bf16 0.0, %v6391
        %v6517 = vpack.c.bf16 %v6393, %v6392
        %v6518 = vpack.c.bf16 %v6395, %v6394
        %v6519 = vpack.c.bf16 %v6397, %v6396
        %v6520 = vpack.c.bf16 %v6399, %v6398
        %v6521 = vpack.c.bf16 %v6401, %v6400
        %v6522 = vpack.c.bf16 %v6403, %v6402
        %v6523 = vpack.c.bf16 %v6405, %v6404
        %v6524 = vpack.c.bf16 %v6407, %v6406
        %v6525 = vpack.c.bf16 %v6409, %v6408
        %v6526 = vpack.c.bf16 %v6411, %v6410
        %v6527 = vpack.c.bf16 %v6413, %v6412
        %v6528 = vpack.c.bf16 %v6415, %v6414
        %v6529 = vpack.c.bf16 %v6417, %v6416
        %v6530 = vpack.c.bf16 %v6419, %v6418
        %v6531 = vpack.c.bf16 %v6421, %v6420
        %6532 = vmatprep.subr.bf16.mxu0 %v5863
        %6533 = vmatpush1.bf16.msra.mxu0 %v5862
        %6534 = vmatprep.subr.bf16.mxu0 %v5865
        %6535 = vmatpush1.bf16.msra.mxu0 %v5864
        %6536 = vmatprep.subr.bf16.mxu0 %v5867
        %6537 = vmatpush1.bf16.msra.mxu0 %v5866
        %6538 = vmatprep.subr.bf16.mxu0 %v5869
        %6539 = vmatpush1.bf16.msra.mxu0 %v5868
        %6540 = vmatprep.subr.bf16.mxu0 %v5871
        %6541 = vmatpush1.bf16.msra.mxu0 %v5870
        %6542 = vmatprep.subr.bf16.mxu0 %v5873
        %6543 = vmatpush1.bf16.msra.mxu0 %v5872
        %6544 = vmatprep.subr.bf16.mxu0 %v5875
        %6545 = vmatpush1.bf16.msra.mxu0 %v5874
        %6546 = vmatprep.subr.bf16.mxu0 %v5877
        %6547 = vmatpush1.bf16.msra.mxu0 %v5876
        %6548 = vmatprep.subr.bf16.mxu0 %v5879
        %6549 = vmatpush1.bf16.msra.mxu0 %v5878
        %6550 = vmatprep.subr.bf16.mxu0 %v5881
        %6551 = vmatpush1.bf16.msra.mxu0 %v5880
        %6552 = vmatprep.subr.bf16.mxu0 %v5883
        %6553 = vmatpush1.bf16.msra.mxu0 %v5882
        %6554 = vmatprep.subr.bf16.mxu0 %v5885
        %6555 = vmatpush1.bf16.msra.mxu0 %v5884
        %6556 = vmatprep.subr.bf16.mxu0 %v5887
        %6557 = vmatpush1.bf16.msra.mxu0 %v5886
        %6558 = vmatprep.subr.bf16.mxu0 %v5889
        %6559 = vmatpush1.bf16.msra.mxu0 %v5888
        %6560 = vmatprep.subr.bf16.mxu0 %v5891
        %6561 = vmatpush1.bf16.msra.mxu0 %v5890
        %6562 = vmatprep.subr.bf16.mxu0 %v5893
        %6563 = vmatpush1.bf16.msra.mxu0 %v5892
        %6564 = vmatprep.mubr.bf16.mxu0 %v2792
        %6565 = vmatmul.mubr.bf16.gmra.mrb[0].mxu0 %v2792
        %v6566 = vpop.f32.mrb[0].mxu0
        %v6567 = vadd.f32 0.0, %v6566
        %v6568 = vpop.f32.mrb[0].mxu0
        %v6569 = vadd.f32 0.0, %v6568
        %v6570 = vpop.f32.mrb[0].mxu0
        %v6571 = vadd.f32 0.0, %v6570
        %v6572 = vpop.f32.mrb[0].mxu0
        %v6573 = vadd.f32 0.0, %v6572
        %6574 = vmatprep.mubr.bf16.mxu0 %v6437
        %6575 = vmatmul.mubr.bf16.gmra.mrb[0].mxu0 %v6422
        %v6576 = vpop.f32.mrb[0].mxu0
        %v6577 = vadd.f32 0.0, %v6576
        %v6578 = vpop.f32.mrb[0].mxu0
        %v6579 = vadd.f32 0.0, %v6578
        %v6580 = vpop.f32.mrb[0].mxu0
        %v6581 = vadd.f32 0.0, %v6580
        %v6582 = vpop.f32.mrb[0].mxu0
        %v6583 = vadd.f32 0.0, %v6582
        %6584 = vmatprep.mubr.bf16.mxu0 %v6438
        %6585 = vmatmul.mubr.bf16.gmra.mrb[0].mxu0 %v6423
        %v6586 = vpop.f32.mrb[0].mxu0
        %v6587 = vadd.f32 0.0, %v6586
        %v6588 = vpop.f32.mrb[0].mxu0
        %v6589 = vadd.f32 0.0, %v6588
        %v6590 = vpop.f32.mrb[0].mxu0
        %v6591 = vadd.f32 0.0, %v6590
        %v6592 = vpop.f32.mrb[0].mxu0
        %v6593 = vadd.f32 0.0, %v6592
        %6594 = vmatprep.mubr.bf16.mxu0 %v6439
        %6595 = vmatmul.mubr.bf16.gmra.mrb[0].mxu0 %v6424
        %v6596 = vpop.f32.mrb[0].mxu0
        %v6597 = vadd.f32 0.0, %v6596
        %v6598 = vpop.f32.mrb[0].mxu0
        %v6599 = vadd.f32 0.0, %v6598
        %v6600 = vpop.f32.mrb[0].mxu0
        %v6601 = vadd.f32 0.0, %v6600
        %v6602 = vpop.f32.mrb[0].mxu0
        %v6603 = vadd.f32 0.0, %v6602
        %6604 = vmatprep.mubr.bf16.mxu0 %v6440
        %6605 = vmatmul.mubr.bf16.gmra.mrb[0].mxu0 %v6425
        %v6606 = vpop.f32.mrb[0].mxu0
        %v6607 = vadd.f32 0.0, %v6606
        %v6608 = vpop.f32.mrb[0].mxu0
        %v6609 = vadd.f32 0.0, %v6608
        %v6610 = vpop.f32.mrb[0].mxu0
        %v6611 = vadd.f32 0.0, %v6610
        %v6612 = vpop.f32.mrb[0].mxu0
        %v6613 = vadd.f32 0.0, %v6612
        %6614 = vmatprep.mubr.bf16.mxu0 %v6441
        %6615 = vmatmul.mubr.bf16.gmra.mrb[0].mxu0 %v6426
        %v6616 = vpop.f32.mrb[0].mxu0
        %v6617 = vadd.f32 0.0, %v6616
        %v6618 = vpop.f32.mrb[0].mxu0
        %v6619 = vadd.f32 0.0, %v6618
        %v6620 = vpop.f32.mrb[0].mxu0
        %v6621 = vadd.f32 0.0, %v6620
        %v6622 = vpop.f32.mrb[0].mxu0
        %v6623 = vadd.f32 0.0, %v6622
        %6624 = vmatprep.mubr.bf16.mxu0 %v6442
        %6625 = vmatmul.mubr.bf16.gmra.mrb[0].mxu0 %v6427
        %v6626 = vpop.f32.mrb[0].mxu0
        %v6627 = vadd.f32 0.0, %v6626
        %v6628 = vpop.f32.mrb[0].mxu0
        %v6629 = vadd.f32 0.0, %v6628
        %v6630 = vpop.f32.mrb[0].mxu0
        %v6631 = vadd.f32 0.0, %v6630
        %v6632 = vpop.f32.mrb[0].mxu0
        %v6633 = vadd.f32 0.0, %v6632
        %6634 = vmatprep.mubr.bf16.mxu0 %v6443
        %6635 = vmatmul.mubr.bf16.gmra.mrb[0].mxu0 %v6428
        %v6636 = vpop.f32.mrb[0].mxu0
        %v6637 = vadd.f32 0.0, %v6636
        %v6638 = vpop.f32.mrb[0].mxu0
        %v6639 = vadd.f32 0.0, %v6638
        %v6640 = vpop.f32.mrb[0].mxu0
        %v6641 = vadd.f32 0.0, %v6640
        %v6642 = vpop.f32.mrb[0].mxu0
        %v6643 = vadd.f32 0.0, %v6642
        %6644 = vmatprep.mubr.bf16.mxu0 %v6444
        %6645 = vmatmul.mubr.bf16.gmra.mrb[0].mxu0 %v6429
        %v6646 = vpop.f32.mrb[0].mxu0
        %v6647 = vadd.f32 0.0, %v6646
        %v6648 = vpop.f32.mrb[0].mxu0
        %v6649 = vadd.f32 0.0, %v6648
        %v6650 = vpop.f32.mrb[0].mxu0
        %v6651 = vadd.f32 0.0, %v6650
        %v6652 = vpop.f32.mrb[0].mxu0
        %v6653 = vadd.f32 0.0, %v6652
        %6654 = vmatprep.mubr.bf16.mxu0 %v6445
        %6655 = vmatmul.mubr.bf16.gmra.mrb[0].mxu0 %v6430
        %v6656 = vpop.f32.mrb[0].mxu0
        %v6657 = vadd.f32 0.0, %v6656
        %v6658 = vpop.f32.mrb[0].mxu0
        %v6659 = vadd.f32 0.0, %v6658
        %v6660 = vpop.f32.mrb[0].mxu0
        %v6661 = vadd.f32 0.0, %v6660
        %v6662 = vpop.f32.mrb[0].mxu0
        %v6663 = vadd.f32 0.0, %v6662
        %6664 = vmatprep.mubr.bf16.mxu0 %v6446
        %6665 = vmatmul.mubr.bf16.gmra.mrb[0].mxu0 %v6431
        %v6666 = vpop.f32.mrb[0].mxu0
        %v6667 = vadd.f32 0.0, %v6666
        %v6668 = vpop.f32.mrb[0].mxu0
        %v6669 = vadd.f32 0.0, %v6668
        %v6670 = vpop.f32.mrb[0].mxu0
        %v6671 = vadd.f32 0.0, %v6670
        %v6672 = vpop.f32.mrb[0].mxu0
        %v6673 = vadd.f32 0.0, %v6672
        %6674 = vmatprep.mubr.bf16.mxu0 %v6447
        %6675 = vmatmul.mubr.bf16.gmra.mrb[0].mxu0 %v6432
        %v6676 = vpop.f32.mrb[0].mxu0
        %v6677 = vadd.f32 0.0, %v6676
        %v6678 = vpop.f32.mrb[0].mxu0
        %v6679 = vadd.f32 0.0, %v6678
        %v6680 = vpop.f32.mrb[0].mxu0
        %v6681 = vadd.f32 0.0, %v6680
        %v6682 = vpop.f32.mrb[0].mxu0
        %v6683 = vadd.f32 0.0, %v6682
        %6684 = vmatprep.mubr.bf16.mxu0 %v6448
        %6685 = vmatmul.mubr.bf16.gmra.mrb[0].mxu0 %v6433
        %v6686 = vpop.f32.mrb[0].mxu0
        %v6687 = vadd.f32 0.0, %v6686
        %v6688 = vpop.f32.mrb[0].mxu0
        %v6689 = vadd.f32 0.0, %v6688
        %v6690 = vpop.f32.mrb[0].mxu0
        %v6691 = vadd.f32 0.0, %v6690
        %v6692 = vpop.f32.mrb[0].mxu0
        %v6693 = vadd.f32 0.0, %v6692
        %6694 = vmatprep.mubr.bf16.mxu0 %v6449
        %6695 = vmatmul.mubr.bf16.gmra.mrb[0].mxu0 %v6434
        %v6696 = vpop.f32.mrb[0].mxu0
        %v6697 = vadd.f32 0.0, %v6696
        %v6698 = vpop.f32.mrb[0].mxu0
        %v6699 = vadd.f32 0.0, %v6698
        %v6700 = vpop.f32.mrb[0].mxu0
        %v6701 = vadd.f32 0.0, %v6700
        %v6702 = vpop.f32.mrb[0].mxu0
        %v6703 = vadd.f32 0.0, %v6702
        %6704 = vmatprep.mubr.bf16.mxu0 %v6450
        %6705 = vmatmul.mubr.bf16.gmra.mrb[0].mxu0 %v6435
        %v6706 = vpop.f32.mrb[0].mxu0
        %v6707 = vadd.f32 0.0, %v6706
        %v6708 = vpop.f32.mrb[0].mxu0
        %v6709 = vadd.f32 0.0, %v6708
        %v6710 = vpop.f32.mrb[0].mxu0
        %v6711 = vadd.f32 0.0, %v6710
        %v6712 = vpop.f32.mrb[0].mxu0
        %v6713 = vadd.f32 0.0, %v6712
        %6714 = vmatprep.mubr.bf16.mxu0 %v6451
        %6715 = vmatmul.mubr.bf16.gmra.mrb[0].mxu0 %v6436
        %v6716 = vpop.f32.mrb[0].mxu0
        %v6717 = vadd.f32 0.0, %v6716
        %v6718 = vpop.f32.mrb[0].mxu0
        %v6719 = vadd.f32 0.0, %v6718
        %v6720 = vpop.f32.mrb[0].mxu0
        %v6721 = vadd.f32 0.0, %v6720
        %v6722 = vpop.f32.mrb[0].mxu0
        %v6723 = vadd.f32 0.0, %v6722
        %6724 = vdwg.mxu0
        %6725 = vmatprep.subr.bf16.mxu0 %v5895
        %6726 = vmatpush1.bf16.msra.mxu0 %v5894
        %6727 = vmatprep.subr.bf16.mxu0 %v5897
        %6728 = vmatpush1.bf16.msra.mxu0 %v5896
        %6729 = vmatprep.subr.bf16.mxu0 %v5899
        %6730 = vmatpush1.bf16.msra.mxu0 %v5898
        %6731 = vmatprep.subr.bf16.mxu0 %v5901
        %6732 = vmatpush1.bf16.msra.mxu0 %v5900
        %6733 = vmatprep.subr.bf16.mxu0 %v5903
        %6734 = vmatpush1.bf16.msra.mxu0 %v5902
        %6735 = vmatprep.subr.bf16.mxu0 %v5905
        %6736 = vmatpush1.bf16.msra.mxu0 %v5904
        %6737 = vmatprep.subr.bf16.mxu0 %v5907
        %6738 = vmatpush1.bf16.msra.mxu0 %v5906
        %6739 = vmatprep.subr.bf16.mxu0 %v5909
        %6740 = vmatpush1.bf16.msra.mxu0 %v5908
        %6741 = vmatprep.subr.bf16.mxu0 %v5911
        %6742 = vmatpush1.bf16.msra.mxu0 %v5910
        %6743 = vmatprep.subr.bf16.mxu0 %v5913
        %6744 = vmatpush1.bf16.msra.mxu0 %v5912
        %6745 = vmatprep.subr.bf16.mxu0 %v5915
        %6746 = vmatpush1.bf16.msra.mxu0 %v5914
        %6747 = vmatprep.subr.bf16.mxu0 %v5917
        %6748 = vmatpush1.bf16.msra.mxu0 %v5916
        %6749 = vmatprep.subr.bf16.mxu0 %v5919
        %6750 = vmatpush1.bf16.msra.mxu0 %v5918
        %6751 = vmatprep.subr.bf16.mxu0 %v5921
        %6752 = vmatpush1.bf16.msra.mxu0 %v5920
        %6753 = vmatprep.subr.bf16.mxu0 %v5923
        %6754 = vmatpush1.bf16.msra.mxu0 %v5922
        %6755 = vmatprep.subr.bf16.mxu0 %v5925
        %6756 = vmatpush1.bf16.msra.mxu0 %v5924
        %6757 = vmatprep.mubr.bf16.mxu0 %v6468
        %6758 = vmatmul.mubr.bf16.gmra.mrb[0].mxu0 %v6452
        %v6759 = vpop.f32.mrb[0].mxu0
        %v6760 = vadd.f32 %v6567, %v6759
        %v6761 = vpop.f32.mrb[0].mxu0
        %v6762 = vadd.f32 %v6569, %v6761
        %v6763 = vpop.f32.mrb[0].mxu0
        %v6764 = vadd.f32 %v6571, %v6763
        %v6765 = vpop.f32.mrb[0].mxu0
        %v6766 = vadd.f32 %v6573, %v6765
        %6767 = vmatprep.mubr.bf16.mxu0 %v6469
        %6768 = vmatmul.mubr.bf16.gmra.mrb[0].mxu0 %v6453
        %v6769 = vpop.f32.mrb[0].mxu0
        %v6770 = vadd.f32 %v6577, %v6769
        %v6771 = vpop.f32.mrb[0].mxu0
        %v6772 = vadd.f32 %v6579, %v6771
        %v6773 = vpop.f32.mrb[0].mxu0
        %v6774 = vadd.f32 %v6581, %v6773
        %v6775 = vpop.f32.mrb[0].mxu0
        %v6776 = vadd.f32 %v6583, %v6775
        %6777 = vmatprep.mubr.bf16.mxu0 %v6470
        %6778 = vmatmul.mubr.bf16.gmra.mrb[0].mxu0 %v6454
        %v6779 = vpop.f32.mrb[0].mxu0
        %v6780 = vadd.f32 %v6587, %v6779
        %v6781 = vpop.f32.mrb[0].mxu0
        %v6782 = vadd.f32 %v6589, %v6781
        %v6783 = vpop.f32.mrb[0].mxu0
        %v6784 = vadd.f32 %v6591, %v6783
        %v6785 = vpop.f32.mrb[0].mxu0
        %v6786 = vadd.f32 %v6593, %v6785
        %6787 = vmatprep.mubr.bf16.mxu0 %v6471
        %6788 = vmatmul.mubr.bf16.gmra.mrb[0].mxu0 %v6455
        %v6789 = vpop.f32.mrb[0].mxu0
        %v6790 = vadd.f32 %v6597, %v6789
        %v6791 = vpop.f32.mrb[0].mxu0
        %v6792 = vadd.f32 %v6599, %v6791
        %v6793 = vpop.f32.mrb[0].mxu0
        %v6794 = vadd.f32 %v6601, %v6793
        %v6795 = vpop.f32.mrb[0].mxu0
        %v6796 = vadd.f32 %v6603, %v6795
        %6797 = vmatprep.mubr.bf16.mxu0 %v6472
        %6798 = vmatmul.mubr.bf16.gmra.mrb[0].mxu0 %v6456
        %v6799 = vpop.f32.mrb[0].mxu0
        %v6800 = vadd.f32 %v6607, %v6799
        %v6801 = vpop.f32.mrb[0].mxu0
        %v6802 = vadd.f32 %v6609, %v6801
        %v6803 = vpop.f32.mrb[0].mxu0
        %v6804 = vadd.f32 %v6611, %v6803
        %v6805 = vpop.f32.mrb[0].mxu0
        %v6806 = vadd.f32 %v6613, %v6805
        %6807 = vmatprep.mubr.bf16.mxu0 %v6473
        %6808 = vmatmul.mubr.bf16.gmra.mrb[0].mxu0 %v6457
        %v6809 = vpop.f32.mrb[0].mxu0
        %v6810 = vadd.f32 %v6617, %v6809
        %v6811 = vpop.f32.mrb[0].mxu0
        %v6812 = vadd.f32 %v6619, %v6811
        %v6813 = vpop.f32.mrb[0].mxu0
        %v6814 = vadd.f32 %v6621, %v6813
        %v6815 = vpop.f32.mrb[0].mxu0
        %v6816 = vadd.f32 %v6623, %v6815
        %6817 = vmatprep.mubr.bf16.mxu0 %v6474
        %6818 = vmatmul.mubr.bf16.gmra.mrb[0].mxu0 %v6458
        %v6819 = vpop.f32.mrb[0].mxu0
        %v6820 = vadd.f32 %v6627, %v6819
        %v6821 = vpop.f32.mrb[0].mxu0
        %v6822 = vadd.f32 %v6629, %v6821
        %v6823 = vpop.f32.mrb[0].mxu0
        %v6824 = vadd.f32 %v6631, %v6823
        %v6825 = vpop.f32.mrb[0].mxu0
        %v6826 = vadd.f32 %v6633, %v6825
        %6827 = vmatprep.mubr.bf16.mxu0 %v6475
        %6828 = vmatmul.mubr.bf16.gmra.mrb[0].mxu0 %v6459
        %v6829 = vpop.f32.mrb[0].mxu0
        %v6830 = vadd.f32 %v6637, %v6829
        %v6831 = vpop.f32.mrb[0].mxu0
        %v6832 = vadd.f32 %v6639, %v6831
        %v6833 = vpop.f32.mrb[0].mxu0
        %v6834 = vadd.f32 %v6641, %v6833
        %v6835 = vpop.f32.mrb[0].mxu0
        %v6836 = vadd.f32 %v6643, %v6835
        %6837 = vmatprep.mubr.bf16.mxu0 %v6476
        %6838 = vmatmul.mubr.bf16.gmra.mrb[0].mxu0 %v6460
        %v6839 = vpop.f32.mrb[0].mxu0
        %v6840 = vadd.f32 %v6647, %v6839
        %v6841 = vpop.f32.mrb[0].mxu0
        %v6842 = vadd.f32 %v6649, %v6841
        %v6843 = vpop.f32.mrb[0].mxu0
        %v6844 = vadd.f32 %v6651, %v6843
        %v6845 = vpop.f32.mrb[0].mxu0
        %v6846 = vadd.f32 %v6653, %v6845
        %6847 = vmatprep.mubr.bf16.mxu0 %v6477
        %6848 = vmatmul.mubr.bf16.gmra.mrb[0].mxu0 %v6461
        %v6849 = vpop.f32.mrb[0].mxu0
        %v6850 = vadd.f32 %v6657, %v6849
        %v6851 = vpop.f32.mrb[0].mxu0
        %v6852 = vadd.f32 %v6659, %v6851
        %v6853 = vpop.f32.mrb[0].mxu0
        %v6854 = vadd.f32 %v6661, %v6853
        %v6855 = vpop.f32.mrb[0].mxu0
        %v6856 = vadd.f32 %v6663, %v6855
        %6857 = vmatprep.mubr.bf16.mxu0 %v6478
        %6858 = vmatmul.mubr.bf16.gmra.mrb[0].mxu0 %v6462
        %v6859 = vpop.f32.mrb[0].mxu0
        %v6860 = vadd.f32 %v6667, %v6859
        %v6861 = vpop.f32.mrb[0].mxu0
        %v6862 = vadd.f32 %v6669, %v6861
        %v6863 = vpop.f32.mrb[0].mxu0
        %v6864 = vadd.f32 %v6671, %v6863
        %v6865 = vpop.f32.mrb[0].mxu0
        %v6866 = vadd.f32 %v6673, %v6865
        %6867 = vmatprep.mubr.bf16.mxu0 %v6479
        %6868 = vmatmul.mubr.bf16.gmra.mrb[0].mxu0 %v6463
        %v6869 = vpop.f32.mrb[0].mxu0
        %v6870 = vadd.f32 %v6677, %v6869
        %v6871 = vpop.f32.mrb[0].mxu0
        %v6872 = vadd.f32 %v6679, %v6871
        %v6873 = vpop.f32.mrb[0].mxu0
        %v6874 = vadd.f32 %v6681, %v6873
        %v6875 = vpop.f32.mrb[0].mxu0
        %v6876 = vadd.f32 %v6683, %v6875
        %6877 = vmatprep.mubr.bf16.mxu0 %v6480
        %6878 = vmatmul.mubr.bf16.gmra.mrb[0].mxu0 %v6464
        %v6879 = vpop.f32.mrb[0].mxu0
        %v6880 = vadd.f32 %v6687, %v6879
        %v6881 = vpop.f32.mrb[0].mxu0
        %v6882 = vadd.f32 %v6689, %v6881
        %v6883 = vpop.f32.mrb[0].mxu0
        %v6884 = vadd.f32 %v6691, %v6883
        %v6885 = vpop.f32.mrb[0].mxu0
        %v6886 = vadd.f32 %v6693, %v6885
        %6887 = vmatprep.mubr.bf16.mxu0 %v6481
        %6888 = vmatmul.mubr.bf16.gmra.mrb[0].mxu0 %v6465
        %v6889 = vpop.f32.mrb[0].mxu0
        %v6890 = vadd.f32 %v6697, %v6889
        %v6891 = vpop.f32.mrb[0].mxu0
        %v6892 = vadd.f32 %v6699, %v6891
        %v6893 = vpop.f32.mrb[0].mxu0
        %v6894 = vadd.f32 %v6701, %v6893
        %v6895 = vpop.f32.mrb[0].mxu0
        %v6896 = vadd.f32 %v6703, %v6895
        %6897 = vmatprep.mubr.bf16.mxu0 %v6482
        %6898 = vmatmul.mubr.bf16.gmra.mrb[0].mxu0 %v6466
        %v6899 = vpop.f32.mrb[0].mxu0
        %v6900 = vadd.f32 %v6707, %v6899
        %v6901 = vpop.f32.mrb[0].mxu0
        %v6902 = vadd.f32 %v6709, %v6901
        %v6903 = vpop.f32.mrb[0].mxu0
        %v6904 = vadd.f32 %v6711, %v6903
        %v6905 = vpop.f32.mrb[0].mxu0
        %v6906 = vadd.f32 %v6713, %v6905
        %6907 = vmatprep.mubr.bf16.mxu0 %v6483
        %6908 = vmatmul.mubr.bf16.gmra.mrb[0].mxu0 %v6467
        %v6909 = vpop.f32.mrb[0].mxu0
        %v6910 = vadd.f32 %v6717, %v6909
        %v6911 = vpop.f32.mrb[0].mxu0
        %v6912 = vadd.f32 %v6719, %v6911
        %v6913 = vpop.f32.mrb[0].mxu0
        %v6914 = vadd.f32 %v6721, %v6913
        %v6915 = vpop.f32.mrb[0].mxu0
        %v6916 = vadd.f32 %v6723, %v6915
        %6917 = vdwg.mxu0
        %6918 = vmatprep.subr.bf16.mxu0 %v5927
        %6919 = vmatpush1.bf16.msra.mxu0 %v5926
        %6920 = vmatprep.subr.bf16.mxu0 %v5929
        %6921 = vmatpush1.bf16.msra.mxu0 %v5928
        %6922 = vmatprep.subr.bf16.mxu0 %v5931
        %6923 = vmatpush1.bf16.msra.mxu0 %v5930
        %6924 = vmatprep.subr.bf16.mxu0 %v5933
        %6925 = vmatpush1.bf16.msra.mxu0 %v5932
        %6926 = vmatprep.subr.bf16.mxu0 %v5935
        %6927 = vmatpush1.bf16.msra.mxu0 %v5934
        %6928 = vmatprep.subr.bf16.mxu0 %v5937
        %6929 = vmatpush1.bf16.msra.mxu0 %v5936
        %6930 = vmatprep.subr.bf16.mxu0 %v5939
        %6931 = vmatpush1.bf16.msra.mxu0 %v5938
        %6932 = vmatprep.subr.bf16.mxu0 %v5941
        %6933 = vmatpush1.bf16.msra.mxu0 %v5940
        %6934 = vmatprep.subr.bf16.mxu0 %v5943
        %6935 = vmatpush1.bf16.msra.mxu0 %v5942
        %6936 = vmatprep.subr.bf16.mxu0 %v5945
        %6937 = vmatpush1.bf16.msra.mxu0 %v5944
        %6938 = vmatprep.subr.bf16.mxu0 %v5947
        %6939 = vmatpush1.bf16.msra.mxu0 %v5946
        %6940 = vmatprep.subr.bf16.mxu0 %v5949
        %6941 = vmatpush1.bf16.msra.mxu0 %v5948
        %6942 = vmatprep.subr.bf16.mxu0 %v5951
        %6943 = vmatpush1.bf16.msra.mxu0 %v5950
        %6944 = vmatprep.subr.bf16.mxu0 %v5953
        %6945 = vmatpush1.bf16.msra.mxu0 %v5952
        %6946 = vmatprep.subr.bf16.mxu0 %v5955
        %6947 = vmatpush1.bf16.msra.mxu0 %v5954
        %6948 = vmatprep.subr.bf16.mxu0 %v5957
        %6949 = vmatpush1.bf16.msra.mxu0 %v5956
        %6950 = vmatprep.mubr.bf16.mxu0 %v6485
        %6951 = vmatmul.mubr.bf16.gmra.mrb[0].mxu0 %v6437
        %v6952 = vpop.f32.mrb[0].mxu0
        %v6953 = vadd.f32 %v6760, %v6952
        %v6954 = vpop.f32.mrb[0].mxu0
        %v6955 = vadd.f32 %v6762, %v6954
        %v6956 = vpop.f32.mrb[0].mxu0
        %v6957 = vadd.f32 %v6764, %v6956
        %v6958 = vpop.f32.mrb[0].mxu0
        %v6959 = vadd.f32 %v6766, %v6958
        %6960 = vmatprep.mubr.bf16.mxu0 %v6486
        %6961 = vmatmul.mubr.bf16.gmra.mrb[0].mxu0 %v6438
        %v6962 = vpop.f32.mrb[0].mxu0
        %v6963 = vadd.f32 %v6770, %v6962
        %v6964 = vpop.f32.mrb[0].mxu0
        %v6965 = vadd.f32 %v6772, %v6964
        %v6966 = vpop.f32.mrb[0].mxu0
        %v6967 = vadd.f32 %v6774, %v6966
        %v6968 = vpop.f32.mrb[0].mxu0
        %v6969 = vadd.f32 %v6776, %v6968
        %6970 = vmatprep.mubr.bf16.mxu0 %v6487
        %6971 = vmatmul.mubr.bf16.gmra.mrb[0].mxu0 %v6439
        %v6972 = vpop.f32.mrb[0].mxu0
        %v6973 = vadd.f32 %v6780, %v6972
        %v6974 = vpop.f32.mrb[0].mxu0
        %v6975 = vadd.f32 %v6782, %v6974
        %v6976 = vpop.f32.mrb[0].mxu0
        %v6977 = vadd.f32 %v6784, %v6976
        %v6978 = vpop.f32.mrb[0].mxu0
        %v6979 = vadd.f32 %v6786, %v6978
        %6980 = vmatprep.mubr.bf16.mxu0 %v6488
        %6981 = vmatmul.mubr.bf16.gmra.mrb[0].mxu0 %v6440
        %v6982 = vpop.f32.mrb[0].mxu0
        %v6983 = vadd.f32 %v6790, %v6982
        %v6984 = vpop.f32.mrb[0].mxu0
        %v6985 = vadd.f32 %v6792, %v6984
        %v6986 = vpop.f32.mrb[0].mxu0
        %v6987 = vadd.f32 %v6794, %v6986
        %v6988 = vpop.f32.mrb[0].mxu0
        %v6989 = vadd.f32 %v6796, %v6988
        %6990 = vmatprep.mubr.bf16.mxu0 %v6489
        %6991 = vmatmul.mubr.bf16.gmra.mrb[0].mxu0 %v6441
        %v6992 = vpop.f32.mrb[0].mxu0
        %v6993 = vadd.f32 %v6800, %v6992
        %v6994 = vpop.f32.mrb[0].mxu0
        %v6995 = vadd.f32 %v6802, %v6994
        %v6996 = vpop.f32.mrb[0].mxu0
        %v6997 = vadd.f32 %v6804, %v6996
        %v6998 = vpop.f32.mrb[0].mxu0
        %v6999 = vadd.f32 %v6806, %v6998
        %7000 = vmatprep.mubr.bf16.mxu0 %v6490
        %7001 = vmatmul.mubr.bf16.gmra.mrb[0].mxu0 %v6442
        %v7002 = vpop.f32.mrb[0].mxu0
        %v7003 = vadd.f32 %v6810, %v7002
        %v7004 = vpop.f32.mrb[0].mxu0
        %v7005 = vadd.f32 %v6812, %v7004
        %v7006 = vpop.f32.mrb[0].mxu0
        %v7007 = vadd.f32 %v6814, %v7006
        %v7008 = vpop.f32.mrb[0].mxu0
        %v7009 = vadd.f32 %v6816, %v7008
        %7010 = vmatprep.mubr.bf16.mxu0 %v6491
        %7011 = vmatmul.mubr.bf16.gmra.mrb[0].mxu0 %v6443
        %v7012 = vpop.f32.mrb[0].mxu0
        %v7013 = vadd.f32 %v6820, %v7012
        %v7014 = vpop.f32.mrb[0].mxu0
        %v7015 = vadd.f32 %v6822, %v7014
        %v7016 = vpop.f32.mrb[0].mxu0
        %v7017 = vadd.f32 %v6824, %v7016
        %v7018 = vpop.f32.mrb[0].mxu0
        %v7019 = vadd.f32 %v6826, %v7018
        %7020 = vmatprep.mubr.bf16.mxu0 %v6492
        %7021 = vmatmul.mubr.bf16.gmra.mrb[0].mxu0 %v6444
        %v7022 = vpop.f32.mrb[0].mxu0
        %v7023 = vadd.f32 %v6830, %v7022
        %v7024 = vpop.f32.mrb[0].mxu0
        %v7025 = vadd.f32 %v6832, %v7024
        %v7026 = vpop.f32.mrb[0].mxu0
        %v7027 = vadd.f32 %v6834, %v7026
        %v7028 = vpop.f32.mrb[0].mxu0
        %v7029 = vadd.f32 %v6836, %v7028
        %7030 = vmatprep.mubr.bf16.mxu0 %v6493
        %7031 = vmatmul.mubr.bf16.gmra.mrb[0].mxu0 %v6445
        %v7032 = vpop.f32.mrb[0].mxu0
        %v7033 = vadd.f32 %v6840, %v7032
        %v7034 = vpop.f32.mrb[0].mxu0
        %v7035 = vadd.f32 %v6842, %v7034
        %v7036 = vpop.f32.mrb[0].mxu0
        %v7037 = vadd.f32 %v6844, %v7036
        %v7038 = vpop.f32.mrb[0].mxu0
        %v7039 = vadd.f32 %v6846, %v7038
        %7040 = vmatprep.mubr.bf16.mxu0 %v6494
        %7041 = vmatmul.mubr.bf16.gmra.mrb[0].mxu0 %v6446
        %v7042 = vpop.f32.mrb[0].mxu0
        %v7043 = vadd.f32 %v6850, %v7042
        %v7044 = vpop.f32.mrb[0].mxu0
        %v7045 = vadd.f32 %v6852, %v7044
        %v7046 = vpop.f32.mrb[0].mxu0
        %v7047 = vadd.f32 %v6854, %v7046
        %v7048 = vpop.f32.mrb[0].mxu0
        %v7049 = vadd.f32 %v6856, %v7048
        %7050 = vmatprep.mubr.bf16.mxu0 %v6495
        %7051 = vmatmul.mubr.bf16.gmra.mrb[0].mxu0 %v6447
        %v7052 = vpop.f32.mrb[0].mxu0
        %v7053 = vadd.f32 %v6860, %v7052
        %v7054 = vpop.f32.mrb[0].mxu0
        %v7055 = vadd.f32 %v6862, %v7054
        %v7056 = vpop.f32.mrb[0].mxu0
        %v7057 = vadd.f32 %v6864, %v7056
        %v7058 = vpop.f32.mrb[0].mxu0
        %v7059 = vadd.f32 %v6866, %v7058
        %7060 = vmatprep.mubr.bf16.mxu0 %v6496
        %7061 = vmatmul.mubr.bf16.gmra.mrb[0].mxu0 %v6448
        %v7062 = vpop.f32.mrb[0].mxu0
        %v7063 = vadd.f32 %v6870, %v7062
        %v7064 = vpop.f32.mrb[0].mxu0
        %v7065 = vadd.f32 %v6872, %v7064
        %v7066 = vpop.f32.mrb[0].mxu0
        %v7067 = vadd.f32 %v6874, %v7066
        %v7068 = vpop.f32.mrb[0].mxu0
        %v7069 = vadd.f32 %v6876, %v7068
        %7070 = vmatprep.mubr.bf16.mxu0 %v6497
        %7071 = vmatmul.mubr.bf16.gmra.mrb[0].mxu0 %v6449
        %v7072 = vpop.f32.mrb[0].mxu0
        %v7073 = vadd.f32 %v6880, %v7072
        %v7074 = vpop.f32.mrb[0].mxu0
        %v7075 = vadd.f32 %v6882, %v7074
        %v7076 = vpop.f32.mrb[0].mxu0
        %v7077 = vadd.f32 %v6884, %v7076
        %v7078 = vpop.f32.mrb[0].mxu0
        %v7079 = vadd.f32 %v6886, %v7078
        %7080 = vmatprep.mubr.bf16.mxu0 %v6498
        %7081 = vmatmul.mubr.bf16.gmra.mrb[0].mxu0 %v6450
        %v7082 = vpop.f32.mrb[0].mxu0
        %v7083 = vadd.f32 %v6890, %v7082
        %v7084 = vpop.f32.mrb[0].mxu0
        %v7085 = vadd.f32 %v6892, %v7084
        %v7086 = vpop.f32.mrb[0].mxu0
        %v7087 = vadd.f32 %v6894, %v7086
        %v7088 = vpop.f32.mrb[0].mxu0
        %v7089 = vadd.f32 %v6896, %v7088
        %7090 = vmatprep.mubr.bf16.mxu0 %v6499
        %7091 = vmatmul.mubr.bf16.gmra.mrb[0].mxu0 %v6451
        %v7092 = vpop.f32.mrb[0].mxu0
        %v7093 = vadd.f32 %v6900, %v7092
        %v7094 = vpop.f32.mrb[0].mxu0
        %v7095 = vadd.f32 %v6902, %v7094
        %v7096 = vpop.f32.mrb[0].mxu0
        %v7097 = vadd.f32 %v6904, %v7096
        %v7098 = vpop.f32.mrb[0].mxu0
        %v7099 = vadd.f32 %v6906, %v7098
        %7100 = vmatprep.mubr.bf16.mxu0 %v6500
        %7101 = vmatmul.mubr.bf16.gmra.mrb[0].mxu0 %v6484
        %v7102 = vpop.f32.mrb[0].mxu0
        %v7103 = vadd.f32 %v6910, %v7102
        %v7104 = vpop.f32.mrb[0].mxu0
        %v7105 = vadd.f32 %v6912, %v7104
        %v7106 = vpop.f32.mrb[0].mxu0
        %v7107 = vadd.f32 %v6914, %v7106
        %v7108 = vpop.f32.mrb[0].mxu0
        %v7109 = vadd.f32 %v6916, %v7108
        %7110 = vdwg.mxu0
        %7111 = vmatprep.subr.bf16.mxu0 %v5959
        %7112 = vmatpush1.bf16.msra.mxu0 %v5958
        %7113 = vmatprep.subr.bf16.mxu0 %v5961
        %7114 = vmatpush1.bf16.msra.mxu0 %v5960
        %7115 = vmatprep.subr.bf16.mxu0 %v5963
        %7116 = vmatpush1.bf16.msra.mxu0 %v5962
        %7117 = vmatprep.subr.bf16.mxu0 %v5965
        %7118 = vmatpush1.bf16.msra.mxu0 %v5964
        %7119 = vmatprep.subr.bf16.mxu0 %v5967
        %7120 = vmatpush1.bf16.msra.mxu0 %v5966
        %7121 = vmatprep.subr.bf16.mxu0 %v5969
        %7122 = vmatpush1.bf16.msra.mxu0 %v5968
        %7123 = vmatprep.subr.bf16.mxu0 %v5971
        %7124 = vmatpush1.bf16.msra.mxu0 %v5970
        %7125 = vmatprep.subr.bf16.mxu0 %v5973
        %7126 = vmatpush1.bf16.msra.mxu0 %v5972
        %7127 = vmatprep.subr.bf16.mxu0 %v5975
        %7128 = vmatpush1.bf16.msra.mxu0 %v5974
        %7129 = vmatprep.subr.bf16.mxu0 %v5977
        %7130 = vmatpush1.bf16.msra.mxu0 %v5976
        %7131 = vmatprep.subr.bf16.mxu0 %v5979
        %7132 = vmatpush1.bf16.msra.mxu0 %v5978
        %7133 = vmatprep.subr.bf16.mxu0 %v5981
        %7134 = vmatpush1.bf16.msra.mxu0 %v5980
        %7135 = vmatprep.subr.bf16.mxu0 %v5983
        %7136 = vmatpush1.bf16.msra.mxu0 %v5982
        %7137 = vmatprep.subr.bf16.mxu0 %v5985
        %7138 = vmatpush1.bf16.msra.mxu0 %v5984
        %7139 = vmatprep.subr.bf16.mxu0 %v5987
        %7140 = vmatpush1.bf16.msra.mxu0 %v5986
        %7141 = vmatprep.subr.bf16.mxu0 %v5989
        %7142 = vmatpush1.bf16.msra.mxu0 %v5988
        %7143 = vmatprep.mubr.bf16.mxu0 %v6438
        %7144 = vmatmul.mubr.bf16.gmra.mrb[0].mxu0 %v6501
        %v7145 = vpop.f32.mrb[0].mxu0
        %v7146 = vadd.f32 %v6953, %v7145
        %v7147 = vpop.f32.mrb[0].mxu0
        %v7148 = vadd.f32 %v6955, %v7147
        %v7149 = vpop.f32.mrb[0].mxu0
        %v7150 = vadd.f32 %v6957, %v7149
        %v7151 = vpop.f32.mrb[0].mxu0
        %v7152 = vadd.f32 %v6959, %v7151
        %7153 = vmatprep.mubr.bf16.mxu0 %v6439
        %7154 = vmatmul.mubr.bf16.gmra.mrb[0].mxu0 %v6502
        %v7155 = vpop.f32.mrb[0].mxu0
        %v7156 = vadd.f32 %v6963, %v7155
        %v7157 = vpop.f32.mrb[0].mxu0
        %v7158 = vadd.f32 %v6965, %v7157
        %v7159 = vpop.f32.mrb[0].mxu0
        %v7160 = vadd.f32 %v6967, %v7159
        %v7161 = vpop.f32.mrb[0].mxu0
        %v7162 = vadd.f32 %v6969, %v7161
        %7163 = vmatprep.mubr.bf16.mxu0 %v6440
        %7164 = vmatmul.mubr.bf16.gmra.mrb[0].mxu0 %v6503
        %v7165 = vpop.f32.mrb[0].mxu0
        %v7166 = vadd.f32 %v6973, %v7165
        %v7167 = vpop.f32.mrb[0].mxu0
        %v7168 = vadd.f32 %v6975, %v7167
        %v7169 = vpop.f32.mrb[0].mxu0
        %v7170 = vadd.f32 %v6977, %v7169
        %v7171 = vpop.f32.mrb[0].mxu0
        %v7172 = vadd.f32 %v6979, %v7171
        %7173 = vmatprep.mubr.bf16.mxu0 %v6441
        %7174 = vmatmul.mubr.bf16.gmra.mrb[0].mxu0 %v6504
        %v7175 = vpop.f32.mrb[0].mxu0
        %v7176 = vadd.f32 %v6983, %v7175
        %v7177 = vpop.f32.mrb[0].mxu0
        %v7178 = vadd.f32 %v6985, %v7177
        %v7179 = vpop.f32.mrb[0].mxu0
        %v7180 = vadd.f32 %v6987, %v7179
        %v7181 = vpop.f32.mrb[0].mxu0
        %v7182 = vadd.f32 %v6989, %v7181
        %7183 = vmatprep.mubr.bf16.mxu0 %v6442
        %7184 = vmatmul.mubr.bf16.gmra.mrb[0].mxu0 %v6505
        %v7185 = vpop.f32.mrb[0].mxu0
        %v7186 = vadd.f32 %v6993, %v7185
        %v7187 = vpop.f32.mrb[0].mxu0
        %v7188 = vadd.f32 %v6995, %v7187
        %v7189 = vpop.f32.mrb[0].mxu0
        %v7190 = vadd.f32 %v6997, %v7189
        %v7191 = vpop.f32.mrb[0].mxu0
        %v7192 = vadd.f32 %v6999, %v7191
        %7193 = vmatprep.mubr.bf16.mxu0 %v6443
        %7194 = vmatmul.mubr.bf16.gmra.mrb[0].mxu0 %v6506
        %v7195 = vpop.f32.mrb[0].mxu0
        %v7196 = vadd.f32 %v7003, %v7195
        %v7197 = vpop.f32.mrb[0].mxu0
        %v7198 = vadd.f32 %v7005, %v7197
        %v7199 = vpop.f32.mrb[0].mxu0
        %v7200 = vadd.f32 %v7007, %v7199
        %v7201 = vpop.f32.mrb[0].mxu0
        %v7202 = vadd.f32 %v7009, %v7201
        %7203 = vmatprep.mubr.bf16.mxu0 %v6444
        %7204 = vmatmul.mubr.bf16.gmra.mrb[0].mxu0 %v6507
        %v7205 = vpop.f32.mrb[0].mxu0
        %v7206 = vadd.f32 %v7013, %v7205
        %v7207 = vpop.f32.mrb[0].mxu0
        %v7208 = vadd.f32 %v7015, %v7207
        %v7209 = vpop.f32.mrb[0].mxu0
        %v7210 = vadd.f32 %v7017, %v7209
        %v7211 = vpop.f32.mrb[0].mxu0
        %v7212 = vadd.f32 %v7019, %v7211
        %7213 = vmatprep.mubr.bf16.mxu0 %v6445
        %7214 = vmatmul.mubr.bf16.gmra.mrb[0].mxu0 %v6508
        %v7215 = vpop.f32.mrb[0].mxu0
        %v7216 = vadd.f32 %v7023, %v7215
        %v7217 = vpop.f32.mrb[0].mxu0
        %v7218 = vadd.f32 %v7025, %v7217
        %v7219 = vpop.f32.mrb[0].mxu0
        %v7220 = vadd.f32 %v7027, %v7219
        %v7221 = vpop.f32.mrb[0].mxu0
        %v7222 = vadd.f32 %v7029, %v7221
        %7223 = vmatprep.mubr.bf16.mxu0 %v6446
        %7224 = vmatmul.mubr.bf16.gmra.mrb[0].mxu0 %v6509
        %v7225 = vpop.f32.mrb[0].mxu0
        %v7226 = vadd.f32 %v7033, %v7225
        %v7227 = vpop.f32.mrb[0].mxu0
        %v7228 = vadd.f32 %v7035, %v7227
        %v7229 = vpop.f32.mrb[0].mxu0
        %v7230 = vadd.f32 %v7037, %v7229
        %v7231 = vpop.f32.mrb[0].mxu0
        %v7232 = vadd.f32 %v7039, %v7231
        %7233 = vmatprep.mubr.bf16.mxu0 %v6447
        %7234 = vmatmul.mubr.bf16.gmra.mrb[0].mxu0 %v6510
        %v7235 = vpop.f32.mrb[0].mxu0
        %v7236 = vadd.f32 %v7043, %v7235
        %v7237 = vpop.f32.mrb[0].mxu0
        %v7238 = vadd.f32 %v7045, %v7237
        %v7239 = vpop.f32.mrb[0].mxu0
        %v7240 = vadd.f32 %v7047, %v7239
        %v7241 = vpop.f32.mrb[0].mxu0
        %v7242 = vadd.f32 %v7049, %v7241
        %7243 = vmatprep.mubr.bf16.mxu0 %v6448
        %7244 = vmatmul.mubr.bf16.gmra.mrb[0].mxu0 %v6511
        %v7245 = vpop.f32.mrb[0].mxu0
        %v7246 = vadd.f32 %v7053, %v7245
        %v7247 = vpop.f32.mrb[0].mxu0
        %v7248 = vadd.f32 %v7055, %v7247
        %v7249 = vpop.f32.mrb[0].mxu0
        %v7250 = vadd.f32 %v7057, %v7249
        %v7251 = vpop.f32.mrb[0].mxu0
        %v7252 = vadd.f32 %v7059, %v7251
        %7253 = vmatprep.mubr.bf16.mxu0 %v6449
        %7254 = vmatmul.mubr.bf16.gmra.mrb[0].mxu0 %v6512
        %v7255 = vpop.f32.mrb[0].mxu0
        %v7256 = vadd.f32 %v7063, %v7255
        %v7257 = vpop.f32.mrb[0].mxu0
        %v7258 = vadd.f32 %v7065, %v7257
        %v7259 = vpop.f32.mrb[0].mxu0
        %v7260 = vadd.f32 %v7067, %v7259
        %v7261 = vpop.f32.mrb[0].mxu0
        %v7262 = vadd.f32 %v7069, %v7261
        %7263 = vmatprep.mubr.bf16.mxu0 %v6450
        %7264 = vmatmul.mubr.bf16.gmra.mrb[0].mxu0 %v6513
        %v7265 = vpop.f32.mrb[0].mxu0
        %v7266 = vadd.f32 %v7073, %v7265
        %v7267 = vpop.f32.mrb[0].mxu0
        %v7268 = vadd.f32 %v7075, %v7267
        %v7269 = vpop.f32.mrb[0].mxu0
        %v7270 = vadd.f32 %v7077, %v7269
        %v7271 = vpop.f32.mrb[0].mxu0
        %v7272 = vadd.f32 %v7079, %v7271
        %7273 = vmatprep.mubr.bf16.mxu0 %v6451
        %7274 = vmatmul.mubr.bf16.gmra.mrb[0].mxu0 %v6514
        %v7275 = vpop.f32.mrb[0].mxu0
        %v7276 = vadd.f32 %v7083, %v7275
        %v7277 = vpop.f32.mrb[0].mxu0
        %v7278 = vadd.f32 %v7085, %v7277
        %v7279 = vpop.f32.mrb[0].mxu0
        %v7280 = vadd.f32 %v7087, %v7279
        %v7281 = vpop.f32.mrb[0].mxu0
        %v7282 = vadd.f32 %v7089, %v7281
        %7283 = vmatprep.mubr.bf16.mxu0 %v6484
        %7284 = vmatmul.mubr.bf16.gmra.mrb[0].mxu0 %v6515
        %v7285 = vpop.f32.mrb[0].mxu0
        %v7286 = vadd.f32 %v7093, %v7285
        %v7287 = vpop.f32.mrb[0].mxu0
        %v7288 = vadd.f32 %v7095, %v7287
        %v7289 = vpop.f32.mrb[0].mxu0
        %v7290 = vadd.f32 %v7097, %v7289
        %v7291 = vpop.f32.mrb[0].mxu0
        %v7292 = vadd.f32 %v7099, %v7291
        %7293 = vmatprep.mubr.bf16.mxu0 %v2792
        %7294 = vmatmul.mubr.bf16.gmra.mrb[0].mxu0 %v6516
        %v7295 = vpop.f32.mrb[0].mxu0
        %v7296 = vadd.f32 %v7103, %v7295
        %v7297 = vpop.f32.mrb[0].mxu0
        %v7298 = vadd.f32 %v7105, %v7297
        %v7299 = vpop.f32.mrb[0].mxu0
        %v7300 = vadd.f32 %v7107, %v7299
        %v7301 = vpop.f32.mrb[0].mxu0
        %v7302 = vadd.f32 %v7109, %v7301
        %7303 = vdwg.mxu0
        %7304 = vmatprep.subr.bf16.mxu0 %v5991
        %7305 = vmatpush1.bf16.msra.mxu0 %v5990
        %7306 = vmatprep.subr.bf16.mxu0 %v5993
        %7307 = vmatpush1.bf16.msra.mxu0 %v5992
        %7308 = vmatprep.subr.bf16.mxu0 %v5995
        %7309 = vmatpush1.bf16.msra.mxu0 %v5994
        %7310 = vmatprep.subr.bf16.mxu0 %v5997
        %7311 = vmatpush1.bf16.msra.mxu0 %v5996
        %7312 = vmatprep.subr.bf16.mxu0 %v5999
        %7313 = vmatpush1.bf16.msra.mxu0 %v5998
        %7314 = vmatprep.subr.bf16.mxu0 %v6001
        %7315 = vmatpush1.bf16.msra.mxu0 %v6000
        %7316 = vmatprep.subr.bf16.mxu0 %v6003
        %7317 = vmatpush1.bf16.msra.mxu0 %v6002
        %7318 = vmatprep.subr.bf16.mxu0 %v6005
        %7319 = vmatpush1.bf16.msra.mxu0 %v6004
        %7320 = vmatprep.subr.bf16.mxu0 0
        %7321 = vmatpush1.bf16.msra.mxu0 0
        %7322 = vmatprep.subr.bf16.mxu0 0
        %7323 = vmatpush1.bf16.msra.mxu0 0
        %7324 = vmatprep.subr.bf16.mxu0 0
        %7325 = vmatpush1.bf16.msra.mxu0 0
        %7326 = vmatprep.subr.bf16.mxu0 0
        %7327 = vmatpush1.bf16.msra.mxu0 0
        %7328 = vmatprep.subr.bf16.mxu0 0
        %7329 = vmatpush1.bf16.msra.mxu0 0
        %7330 = vmatprep.subr.bf16.mxu0 0
        %7331 = vmatpush1.bf16.msra.mxu0 0
        %7332 = vmatprep.subr.bf16.mxu0 0
        %7333 = vmatpush1.bf16.msra.mxu0 0
        %7334 = vmatprep.subr.bf16.mxu0 0
        %7335 = vmatpush1.bf16.msra.mxu0 0
        %7336 = vmatprep.mubr.bf16.mxu0 0
        %7337 = vmatmul.mubr.bf16.gmra.mrb[0].mxu0 %v6517
        %v7338 = vpop.f32.mrb[0].mxu0
        %v7339 = vadd.f32 %v7146, %v7338
        %v7340 = vpop.f32.mrb[0].mxu0
        %v7341 = vadd.f32 %v7148, %v7340
        %v7342 = vpop.f32.mrb[0].mxu0
        %v7343 = vadd.f32 %v7150, %v7342
        %v7344 = vpop.f32.mrb[0].mxu0
        %v7345 = vadd.f32 %v7152, %v7344
        %7346 = vmatprep.mubr.bf16.mxu0 0
        %7347 = vmatmul.mubr.bf16.gmra.mrb[0].mxu0 %v6518
        %v7348 = vpop.f32.mrb[0].mxu0
        %v7349 = vadd.f32 %v7156, %v7348
        %v7350 = vpop.f32.mrb[0].mxu0
        %v7351 = vadd.f32 %v7158, %v7350
        %v7352 = vpop.f32.mrb[0].mxu0
        %v7353 = vadd.f32 %v7160, %v7352
        %v7354 = vpop.f32.mrb[0].mxu0
        %v7355 = vadd.f32 %v7162, %v7354
        %7356 = vmatprep.mubr.bf16.mxu0 0
        %7357 = vmatmul.mubr.bf16.gmra.mrb[0].mxu0 %v6519
        %v7358 = vpop.f32.mrb[0].mxu0
        %v7359 = vadd.f32 %v7166, %v7358
        %v7360 = vpop.f32.mrb[0].mxu0
        %v7361 = vadd.f32 %v7168, %v7360
        %v7362 = vpop.f32.mrb[0].mxu0
        %v7363 = vadd.f32 %v7170, %v7362
        %v7364 = vpop.f32.mrb[0].mxu0
        %v7365 = vadd.f32 %v7172, %v7364
        %7366 = vmatprep.mubr.bf16.mxu0 0
        %7367 = vmatmul.mubr.bf16.gmra.mrb[0].mxu0 %v6520
        %v7368 = vpop.f32.mrb[0].mxu0
        %v7369 = vadd.f32 %v7176, %v7368
        %v7370 = vpop.f32.mrb[0].mxu0
        %v7371 = vadd.f32 %v7178, %v7370
        %v7372 = vpop.f32.mrb[0].mxu0
        %v7373 = vadd.f32 %v7180, %v7372
        %v7374 = vpop.f32.mrb[0].mxu0
        %v7375 = vadd.f32 %v7182, %v7374
        %7376 = vmatprep.mubr.bf16.mxu0 0
        %7377 = vmatmul.mubr.bf16.gmra.mrb[0].mxu0 %v6521
        %v7378 = vpop.f32.mrb[0].mxu0
        %v7379 = vadd.f32 %v7186, %v7378
        %v7380 = vpop.f32.mrb[0].mxu0
        %v7381 = vadd.f32 %v7188, %v7380
        %v7382 = vpop.f32.mrb[0].mxu0
        %v7383 = vadd.f32 %v7190, %v7382
        %v7384 = vpop.f32.mrb[0].mxu0
        %v7385 = vadd.f32 %v7192, %v7384
        %7386 = vmatprep.mubr.bf16.mxu0 0
        %7387 = vmatmul.mubr.bf16.gmra.mrb[0].mxu0 %v6522
        %v7388 = vpop.f32.mrb[0].mxu0
        %v7389 = vadd.f32 %v7196, %v7388
        %v7390 = vpop.f32.mrb[0].mxu0
        %v7391 = vadd.f32 %v7198, %v7390
        %v7392 = vpop.f32.mrb[0].mxu0
        %v7393 = vadd.f32 %v7200, %v7392
        %v7394 = vpop.f32.mrb[0].mxu0
        %v7395 = vadd.f32 %v7202, %v7394
        %7396 = vmatprep.mubr.bf16.mxu0 0
        %7397 = vmatmul.mubr.bf16.gmra.mrb[0].mxu0 %v6523
        %v7398 = vpop.f32.mrb[0].mxu0
        %v7399 = vadd.f32 %v7206, %v7398
        %v7400 = vpop.f32.mrb[0].mxu0
        %v7401 = vadd.f32 %v7208, %v7400
        %v7402 = vpop.f32.mrb[0].mxu0
        %v7403 = vadd.f32 %v7210, %v7402
        %v7404 = vpop.f32.mrb[0].mxu0
        %v7405 = vadd.f32 %v7212, %v7404
        %7406 = vmatprep.mubr.bf16.mxu0 0
        %7407 = vmatmul.mubr.bf16.gmra.mrb[0].mxu0 %v6524
        %v7408 = vpop.f32.mrb[0].mxu0
        %v7409 = vadd.f32 %v7216, %v7408
        %v7410 = vpop.f32.mrb[0].mxu0
        %v7411 = vadd.f32 %v7218, %v7410
        %v7412 = vpop.f32.mrb[0].mxu0
        %v7413 = vadd.f32 %v7220, %v7412
        %v7414 = vpop.f32.mrb[0].mxu0
        %v7415 = vadd.f32 %v7222, %v7414
        %7416 = vmatprep.mubr.bf16.mxu0 0
        %7417 = vmatmul.mubr.bf16.gmra.mrb[0].mxu0 %v6525
        %v7418 = vpop.f32.mrb[0].mxu0
        %v7419 = vadd.f32 %v7226, %v7418
        %v7420 = vpop.f32.mrb[0].mxu0
        %v7421 = vadd.f32 %v7228, %v7420
        %v7422 = vpop.f32.mrb[0].mxu0
        %v7423 = vadd.f32 %v7230, %v7422
        %v7424 = vpop.f32.mrb[0].mxu0
        %v7425 = vadd.f32 %v7232, %v7424
        %7426 = vmatprep.mubr.bf16.mxu0 0
        %7427 = vmatmul.mubr.bf16.gmra.mrb[0].mxu0 %v6526
        %v7428 = vpop.f32.mrb[0].mxu0
        %v7429 = vadd.f32 %v7236, %v7428
        %v7430 = vpop.f32.mrb[0].mxu0
        %v7431 = vadd.f32 %v7238, %v7430
        %v7432 = vpop.f32.mrb[0].mxu0
        %v7433 = vadd.f32 %v7240, %v7432
        %v7434 = vpop.f32.mrb[0].mxu0
        %v7435 = vadd.f32 %v7242, %v7434
        %7436 = vmatprep.mubr.bf16.mxu0 0
        %7437 = vmatmul.mubr.bf16.gmra.mrb[0].mxu0 %v6527
        %v7438 = vpop.f32.mrb[0].mxu0
        %v7439 = vadd.f32 %v7246, %v7438
        %v7440 = vpop.f32.mrb[0].mxu0
        %v7441 = vadd.f32 %v7248, %v7440
        %v7442 = vpop.f32.mrb[0].mxu0
        %v7443 = vadd.f32 %v7250, %v7442
        %v7444 = vpop.f32.mrb[0].mxu0
        %v7445 = vadd.f32 %v7252, %v7444
        %7446 = vmatprep.mubr.bf16.mxu0 0
        %7447 = vmatmul.mubr.bf16.gmra.mrb[0].mxu0 %v6528
        %v7448 = vpop.f32.mrb[0].mxu0
        %v7449 = vadd.f32 %v7256, %v7448
        %v7450 = vpop.f32.mrb[0].mxu0
        %v7451 = vadd.f32 %v7258, %v7450
        %v7452 = vpop.f32.mrb[0].mxu0
        %v7453 = vadd.f32 %v7260, %v7452
        %v7454 = vpop.f32.mrb[0].mxu0
        %v7455 = vadd.f32 %v7262, %v7454
        %7456 = vmatprep.mubr.bf16.mxu0 0
        %7457 = vmatmul.mubr.bf16.gmra.mrb[0].mxu0 %v6529
        %v7458 = vpop.f32.mrb[0].mxu0
        %v7459 = vadd.f32 %v7266, %v7458
        %v7460 = vpop.f32.mrb[0].mxu0
        %v7461 = vadd.f32 %v7268, %v7460
        %v7462 = vpop.f32.mrb[0].mxu0
        %v7463 = vadd.f32 %v7270, %v7462
        %v7464 = vpop.f32.mrb[0].mxu0
        %v7465 = vadd.f32 %v7272, %v7464
        %7466 = vmatprep.mubr.bf16.mxu0 0
        %7467 = vmatmul.mubr.bf16.gmra.mrb[0].mxu0 %v6530
        %v7468 = vpop.f32.mrb[0].mxu0
        %v7469 = vadd.f32 %v7276, %v7468
        %v7470 = vpop.f32.mrb[0].mxu0
        %v7471 = vadd.f32 %v7278, %v7470
        %v7472 = vpop.f32.mrb[0].mxu0
        %v7473 = vadd.f32 %v7280, %v7472
        %v7474 = vpop.f32.mrb[0].mxu0
        %v7475 = vadd.f32 %v7282, %v7474
        %7476 = vmatprep.mubr.bf16.mxu0 0
        %7477 = vmatmul.mubr.bf16.gmra.mrb[0].mxu0 %v6531
        %v7478 = vpop.f32.mrb[0].mxu0
        %v7479 = vadd.f32 %v7286, %v7478
        %v7480 = vpop.f32.mrb[0].mxu0
        %v7481 = vadd.f32 %v7288, %v7480
        %v7482 = vpop.f32.mrb[0].mxu0
        %v7483 = vadd.f32 %v7290, %v7482
        %v7484 = vpop.f32.mrb[0].mxu0
        %v7485 = vadd.f32 %v7292, %v7484
        %7486 = vmatprep.mubr.bf16.mxu0 0
        %7487 = vmatmul.mubr.bf16.gmra.mrb[0].mxu0 %v2792
        %v7488 = vpop.f32.mrb[0].mxu0
        %v7489 = vadd.f32 %v7296, %v7488
        %v7490 = vpop.f32.mrb[0].mxu0
        %v7491 = vadd.f32 %v7298, %v7490
        %v7492 = vpop.f32.mrb[0].mxu0
        %v7493 = vadd.f32 %v7300, %v7492
        %v7494 = vpop.f32.mrb[0].mxu0
        %v7495 = vadd.f32 %v7302, %v7494
        %7496 = vdwg.mxu0
        %v7498 = vlaneseq
        %v7499 = vshrl.u32 %v7498, 7
        %v7500 = vsub.s32 0, %v7499
        %v7501 = vrot.slane %v6006, %v7500
        %v7502 = vlaneseq
        %v7503 = vshrl.u32 %v7502, 7
        %v7504 = vsub.s32 1, %v7503
        %v7505 = vrot.slane %v6006, %v7504
        %v7508 = vmul.f32 %v7339, %v7501
        %v7509 = vmul.f32 %v7341, %v7505
        %v7510 = vmul.f32 %v7343, %v7501
        %v7511 = vmul.f32 %v7345, %v7505
        %v7512 = vmul.f32 %v7349, %v7501
        %v7513 = vmul.f32 %v7351, %v7505
        %v7514 = vmul.f32 %v7353, %v7501
        %v7515 = vmul.f32 %v7355, %v7505
        %v7516 = vmul.f32 %v7359, %v7501
        %v7517 = vmul.f32 %v7361, %v7505
        %v7518 = vmul.f32 %v7363, %v7501
        %v7519 = vmul.f32 %v7365, %v7505
        %v7520 = vmul.f32 %v7369, %v7501
        %v7521 = vmul.f32 %v7371, %v7505
        %v7522 = vmul.f32 %v7373, %v7501
        %v7523 = vmul.f32 %v7375, %v7505
        %v7524 = vmul.f32 %v7379, %v7501
        %v7525 = vmul.f32 %v7381, %v7505
        %v7526 = vmul.f32 %v7383, %v7501
        %v7527 = vmul.f32 %v7385, %v7505
        %v7528 = vmul.f32 %v7389, %v7501
        %v7529 = vmul.f32 %v7391, %v7505
        %v7530 = vmul.f32 %v7393, %v7501
        %v7531 = vmul.f32 %v7395, %v7505
        %v7532 = vmul.f32 %v7399, %v7501
        %v7533 = vmul.f32 %v7401, %v7505
        %v7534 = vmul.f32 %v7403, %v7501
        %v7535 = vmul.f32 %v7405, %v7505
        %v7536 = vmul.f32 %v7409, %v7501
        %v7537 = vmul.f32 %v7411, %v7505
        %v7538 = vmul.f32 %v7413, %v7501
        %v7539 = vmul.f32 %v7415, %v7505
        %v7540 = vmul.f32 %v7419, %v7501
        %v7541 = vmul.f32 %v7421, %v7505
        %v7542 = vmul.f32 %v7423, %v7501
        %v7543 = vmul.f32 %v7425, %v7505
        %v7544 = vmul.f32 %v7429, %v7501
        %v7545 = vmul.f32 %v7431, %v7505
        %v7546 = vmul.f32 %v7433, %v7501
        %v7547 = vmul.f32 %v7435, %v7505
        %v7548 = vmul.f32 %v7439, %v7501
        %v7549 = vmul.f32 %v7441, %v7505
        %v7550 = vmul.f32 %v7443, %v7501
        %v7551 = vmul.f32 %v7445, %v7505
        %v7552 = vmul.f32 %v7449, %v7501
        %v7553 = vmul.f32 %v7451, %v7505
        %v7554 = vmul.f32 %v7453, %v7501
        %v7555 = vmul.f32 %v7455, %v7505
        %v7556 = vmul.f32 %v7459, %v7501
        %v7557 = vmul.f32 %v7461, %v7505
        %v7558 = vmul.f32 %v7463, %v7501
        %v7559 = vmul.f32 %v7465, %v7505
        %v7560 = vmul.f32 %v7469, %v7501
        %v7561 = vmul.f32 %v7471, %v7505
        %v7562 = vmul.f32 %v7473, %v7501
        %v7563 = vmul.f32 %v7475, %v7505
        %v7564 = vmul.f32 %v7479, %v7501
        %v7565 = vmul.f32 %v7481, %v7505
        %v7566 = vmul.f32 %v7483, %v7501
        %v7567 = vmul.f32 %v7485, %v7505
        %v7568 = vmul.f32 %v7489, %v7501
        %v7569 = vmul.f32 %v7491, %v7505
        %v7570 = vmul.f32 %v7493, %v7501
        %v7571 = vmul.f32 %v7495, %v7505
        %v7573 = vlaneseq
        %v7574 = vshrl.u32 %v7573, 7
        %v7575 = vsub.s32 0, %v7574
        %v7576 = vrot.slane %v6007, %v7575
        %v7577 = vlaneseq
        %v7578 = vshrl.u32 %v7577, 7
        %v7579 = vsub.s32 1, %v7578
        %v7580 = vrot.slane %v6007, %v7579
        %v7583 = vadd.f32 %v7508, %v7576
        %v7584 = vadd.f32 %v7509, %v7580
        %v7585 = vadd.f32 %v7510, %v7576
        %v7586 = vadd.f32 %v7511, %v7580
        %v7587 = vadd.f32 %v7512, %v7576
        %v7588 = vadd.f32 %v7513, %v7580
        %v7589 = vadd.f32 %v7514, %v7576
        %v7590 = vadd.f32 %v7515, %v7580
        %v7591 = vadd.f32 %v7516, %v7576
        %v7592 = vadd.f32 %v7517, %v7580
        %v7593 = vadd.f32 %v7518, %v7576
        %v7594 = vadd.f32 %v7519, %v7580
        %v7595 = vadd.f32 %v7520, %v7576
        %v7596 = vadd.f32 %v7521, %v7580
        %v7597 = vadd.f32 %v7522, %v7576
        %v7598 = vadd.f32 %v7523, %v7580
        %v7599 = vadd.f32 %v7524, %v7576
        %v7600 = vadd.f32 %v7525, %v7580
        %v7601 = vadd.f32 %v7526, %v7576
        %v7602 = vadd.f32 %v7527, %v7580
        %v7603 = vadd.f32 %v7528, %v7576
        %v7604 = vadd.f32 %v7529, %v7580
        %v7605 = vadd.f32 %v7530, %v7576
        %v7606 = vadd.f32 %v7531, %v7580
        %v7607 = vadd.f32 %v7532, %v7576
        %v7608 = vadd.f32 %v7533, %v7580
        %v7609 = vadd.f32 %v7534, %v7576
        %v7610 = vadd.f32 %v7535, %v7580
        %v7611 = vadd.f32 %v7536, %v7576
        %v7612 = vadd.f32 %v7537, %v7580
        %v7613 = vadd.f32 %v7538, %v7576
        %v7614 = vadd.f32 %v7539, %v7580
        %v7615 = vadd.f32 %v7540, %v7576
        %v7616 = vadd.f32 %v7541, %v7580
        %v7617 = vadd.f32 %v7542, %v7576
        %v7618 = vadd.f32 %v7543, %v7580
        %v7619 = vadd.f32 %v7544, %v7576
        %v7620 = vadd.f32 %v7545, %v7580
        %v7621 = vadd.f32 %v7546, %v7576
        %v7622 = vadd.f32 %v7547, %v7580
        %v7623 = vadd.f32 %v7548, %v7576
        %v7624 = vadd.f32 %v7549, %v7580
        %v7625 = vadd.f32 %v7550, %v7576
        %v7626 = vadd.f32 %v7551, %v7580
        %v7627 = vadd.f32 %v7552, %v7576
        %v7628 = vadd.f32 %v7553, %v7580
        %v7629 = vadd.f32 %v7554, %v7576
        %v7630 = vadd.f32 %v7555, %v7580
        %v7631 = vadd.f32 %v7556, %v7576
        %v7632 = vadd.f32 %v7557, %v7580
        %v7633 = vadd.f32 %v7558, %v7576
        %v7634 = vadd.f32 %v7559, %v7580
        %v7635 = vadd.f32 %v7560, %v7576
        %v7636 = vadd.f32 %v7561, %v7580
        %v7637 = vadd.f32 %v7562, %v7576
        %v7638 = vadd.f32 %v7563, %v7580
        %v7639 = vadd.f32 %v7564, %v7576
        %v7640 = vadd.f32 %v7565, %v7580
        %v7641 = vadd.f32 %v7566, %v7576
        %v7642 = vadd.f32 %v7567, %v7580
        %v7643 = vadd.f32 %v7568, %v7576
        %v7644 = vadd.f32 %v7569, %v7580
        %v7645 = vadd.f32 %v7570, %v7576
        %v7646 = vadd.f32 %v7571, %v7580
        %v7647 = vmax.f32 %v7583, 0.0
        %v7648 = vmax.f32 %v7584, 0.0
        %v7649 = vmax.f32 %v7585, 0.0
        %v7650 = vmax.f32 %v7586, 0.0
        %v7651 = vmax.f32 %v7587, 0.0
        %v7652 = vmax.f32 %v7588, 0.0
        %v7653 = vmax.f32 %v7589, 0.0
        %v7654 = vmax.f32 %v7590, 0.0
        %v7655 = vmax.f32 %v7591, 0.0
        %v7656 = vmax.f32 %v7592, 0.0
        %v7657 = vmax.f32 %v7593, 0.0
        %v7658 = vmax.f32 %v7594, 0.0
        %v7659 = vmax.f32 %v7595, 0.0
        %v7660 = vmax.f32 %v7596, 0.0
        %v7661 = vmax.f32 %v7597, 0.0
        %v7662 = vmax.f32 %v7598, 0.0
        %v7663 = vmax.f32 %v7599, 0.0
        %v7664 = vmax.f32 %v7600, 0.0
        %v7665 = vmax.f32 %v7601, 0.0
        %v7666 = vmax.f32 %v7602, 0.0
        %v7667 = vmax.f32 %v7603, 0.0
        %v7668 = vmax.f32 %v7604, 0.0
        %v7669 = vmax.f32 %v7605, 0.0
        %v7670 = vmax.f32 %v7606, 0.0
        %v7671 = vmax.f32 %v7607, 0.0
        %v7672 = vmax.f32 %v7608, 0.0
        %v7673 = vmax.f32 %v7609, 0.0
        %v7674 = vmax.f32 %v7610, 0.0
        %v7675 = vmax.f32 %v7611, 0.0
        %v7676 = vmax.f32 %v7612, 0.0
        %v7677 = vmax.f32 %v7613, 0.0
        %v7678 = vmax.f32 %v7614, 0.0
        %v7679 = vmax.f32 %v7615, 0.0
        %v7680 = vmax.f32 %v7616, 0.0
        %v7681 = vmax.f32 %v7617, 0.0
        %v7682 = vmax.f32 %v7618, 0.0
        %v7683 = vmax.f32 %v7619, 0.0
        %v7684 = vmax.f32 %v7620, 0.0
        %v7685 = vmax.f32 %v7621, 0.0
        %v7686 = vmax.f32 %v7622, 0.0
        %v7687 = vmax.f32 %v7623, 0.0
        %v7688 = vmax.f32 %v7624, 0.0
        %v7689 = vmax.f32 %v7625, 0.0
        %v7690 = vmax.f32 %v7626, 0.0
        %v7691 = vmax.f32 %v7627, 0.0
        %v7692 = vmax.f32 %v7628, 0.0
        %v7693 = vmax.f32 %v7629, 0.0
        %v7694 = vmax.f32 %v7630, 0.0
        %v7695 = vmax.f32 %v7631, 0.0
        %v7696 = vmax.f32 %v7632, 0.0
        %v7697 = vmax.f32 %v7633, 0.0
        %v7698 = vmax.f32 %v7634, 0.0
        %v7699 = vmax.f32 %v7635, 0.0
        %v7700 = vmax.f32 %v7636, 0.0
        %v7701 = vmax.f32 %v7637, 0.0
        %v7702 = vmax.f32 %v7638, 0.0
        %v7703 = vmax.f32 %v7639, 0.0
        %v7704 = vmax.f32 %v7640, 0.0
        %v7705 = vmax.f32 %v7641, 0.0
        %v7706 = vmax.f32 %v7642, 0.0
        %v7707 = vmax.f32 %v7643, 0.0
        %v7708 = vmax.f32 %v7644, 0.0
        %v7709 = vmax.f32 %v7645, 0.0
        %v7710 = vmax.f32 %v7646, 0.0
        %v7711 = vadd.f32 %v7647, %v7649
        %v7712 = vadd.f32 %v7711, %v7651
        %v7713 = vadd.f32 %v7712, %v7653
        %v7714 = vadd.f32 %v7713, %v7655
        %v7715 = vadd.f32 %v7714, %v7657
        %v7716 = vadd.f32 %v7715, %v7659
        %v7717 = vadd.f32 %v7716, %v7661
        %v7718 = vadd.f32 %v7717, %v7663
        %v7719 = vadd.f32 %v7718, %v7665
        %v7720 = vadd.f32 %v7719, %v7667
        %v7721 = vadd.f32 %v7720, %v7669
        %v7722 = vadd.f32 %v7721, %v7671
        %v7723 = vadd.f32 %v7722, %v7673
        %v7724 = vadd.f32 %v7723, %v7675
        %v7725 = vadd.f32 %v7724, %v7677
        %v7726 = vadd.f32 %v7725, %v7679
        %v7727 = vadd.f32 %v7726, %v7681
        %v7728 = vadd.f32 %v7727, %v7683
        %v7729 = vadd.f32 %v7728, %v7685
        %v7730 = vadd.f32 %v7729, %v7687
        %v7731 = vadd.f32 %v7730, %v7689
        %v7732 = vadd.f32 %v7731, %v7691
        %v7733 = vadd.f32 %v7732, %v7693
        %v7734 = vadd.f32 %v7733, %v7695
        %v7735 = vadd.f32 %v7734, %v7697
        %v7736 = vadd.f32 %v7735, %v7699
        %v7737 = vadd.f32 %v7736, %v7701
        %v7738 = vadd.f32 %v7737, %v7703
        %v7739 = vadd.f32 %v7738, %v7705
        %v7740 = vadd.f32 %v7739, %v7707
        %v7741 = vadd.f32 %v7740, %v7709
        %v7742 = vrot.slane %v7741, 4
        %v7743 = vadd.f32 %v7741, %v7742
        %v7744 = vrot.slane %v7743, 2
        %v7745 = vadd.f32 %v7743, %v7744
        %v7746 = vrot.slane %v7745, 1
        %v7747 = vadd.f32 %v7745, %v7746
        %v7748 = vadd.f32 %v7648, %v7650
        %v7749 = vadd.f32 %v7748, %v7652
        %v7750 = vadd.f32 %v7749, %v7654
        %v7751 = vadd.f32 %v7750, %v7656
        %v7752 = vadd.f32 %v7751, %v7658
        %v7753 = vadd.f32 %v7752, %v7660
        %v7754 = vadd.f32 %v7753, %v7662
        %v7755 = vadd.f32 %v7754, %v7664
        %v7756 = vadd.f32 %v7755, %v7666
        %v7757 = vadd.f32 %v7756, %v7668
        %v7758 = vadd.f32 %v7757, %v7670
        %v7759 = vadd.f32 %v7758, %v7672
        %v7760 = vadd.f32 %v7759, %v7674
        %v7761 = vadd.f32 %v7760, %v7676
        %v7762 = vadd.f32 %v7761, %v7678
        %v7763 = vadd.f32 %v7762, %v7680
        %v7764 = vadd.f32 %v7763, %v7682
        %v7765 = vadd.f32 %v7764, %v7684
        %v7766 = vadd.f32 %v7765, %v7686
        %v7767 = vadd.f32 %v7766, %v7688
        %v7768 = vadd.f32 %v7767, %v7690
        %v7769 = vadd.f32 %v7768, %v7692
        %v7770 = vadd.f32 %v7769, %v7694
        %v7771 = vadd.f32 %v7770, %v7696
        %v7772 = vadd.f32 %v7771, %v7698
        %v7773 = vadd.f32 %v7772, %v7700
        %v7774 = vadd.f32 %v7773, %v7702
        %v7775 = vadd.f32 %v7774, %v7704
        %v7776 = vadd.f32 %v7775, %v7706
        %v7777 = vadd.f32 %v7776, %v7708
        %v7778 = vadd.f32 %v7777, %v7710
        %v7779 = vrot.slane %v7778, 4
        %v7780 = vadd.f32 %v7778, %v7779
        %v7781 = vrot.slane %v7780, 2
        %v7782 = vadd.f32 %v7780, %v7781
        %v7783 = vrot.slane %v7782, 1
        %v7784 = vadd.f32 %v7782, %v7783
        %v7785 = vrcp.pop 256.0
        %v7786 = vmul.f32 %v7747, %v7785
        %v7787 = vmul.f32 %v7784, %v7785
        %v7788 = vld [vmem:[%s13] sm:$0xff]
        %v7789 = vld [vmem:[%s13 + $0x8] sm:$0xff]
        %v7790 = vld [vmem:[%s13 + $0x10] sm:$0xff]
        %v7791 = vld [vmem:[%s13 + $0x18] sm:$0xff]
        %v7792 = vld [vmem:[%s13 + $0x20] sm:$0xff]
        %v7793 = vld [vmem:[%s13 + $0x28] sm:$0xff]
        %v7794 = vld [vmem:[%s13 + $0x30] sm:$0xff]
        %v7795 = vld [vmem:[%s13 + $0x38] sm:$0xff]
        %v7796 = vld [vmem:[%s13 + $0x40] sm:$0xff]
        %v7797 = vld [vmem:[%s13 + $0x48] sm:$0xff]
        %v7798 = vld [vmem:[%s13 + $0x50] sm:$0xff]
        %v7799 = vld [vmem:[%s13 + $0x58] sm:$0xff]
        %v7800 = vld [vmem:[%s13 + $0x60] sm:$0xff]
        %v7801 = vld [vmem:[%s13 + $0x68] sm:$0xff]
        %v7802 = vld [vmem:[%s13 + $0x70] sm:$0xff]
        %v7803 = vld [vmem:[%s13 + $0x78] sm:$0xff]
        %v7804 = vld [vmem:[%s13 + $0x80] sm:$0xff]
        %v7805 = vld [vmem:[%s13 + $0x88] sm:$0xff]
        %v7806 = vld [vmem:[%s13 + $0x90] sm:$0xff]
        %v7807 = vld [vmem:[%s13 + $0x98] sm:$0xff]
        %v7808 = vld [vmem:[%s13 + $0xa0] sm:$0xff]
        %v7809 = vld [vmem:[%s13 + $0xa8] sm:$0xff]
        %v7810 = vld [vmem:[%s13 + $0xb0] sm:$0xff]
        %v7811 = vld [vmem:[%s13 + $0xb8] sm:$0xff]
        %v7812 = vld [vmem:[%s13 + $0xc0] sm:$0xff]
        %v7813 = vld [vmem:[%s13 + $0xc8] sm:$0xff]
        %v7814 = vld [vmem:[%s13 + $0xd0] sm:$0xff]
        %v7815 = vld [vmem:[%s13 + $0xd8] sm:$0xff]
        %v7816 = vld [vmem:[%s13 + $0xe0] sm:$0xff]
        %v7817 = vld [vmem:[%s13 + $0xe8] sm:$0xff]
        %v7818 = vld [vmem:[%s13 + $0xf0] sm:$0xff]
        %v7819 = vld [vmem:[%s13 + $0xf8] sm:$0xff]
        %v7820 = vld [vmem:[%s14] sm:$0x1]
        %7821 = vmatprep.subr.mxu0 0.0
        %7822 = vmatpush1.msra.mxu0 %v7788
        %7823 = vmatprep.subr.mxu0 0.0
        %7824 = vmatpush1.msra.mxu0 %v7789
        %7825 = vmatprep.subr.mxu0 0.0
        %7826 = vmatpush1.msra.mxu0 %v7790
        %7827 = vmatprep.subr.mxu0 0.0
        %7828 = vmatpush1.msra.mxu0 %v7791
        %7829 = vmatprep.subr.mxu0 0.0
        %7830 = vmatpush1.msra.mxu0 %v7792
        %7831 = vmatprep.subr.mxu0 0.0
        %7832 = vmatpush1.msra.mxu0 %v7793
        %7833 = vmatprep.subr.mxu0 0.0
        %7834 = vmatpush1.msra.mxu0 %v7794
        %7835 = vmatprep.subr.mxu0 0.0
        %7836 = vmatpush1.msra.mxu0 %v7795
        %7837 = vmatprep.subr.mxu0 0.0
        %7838 = vmatpush1.msra.mxu0 %v7796
        %7839 = vmatprep.subr.mxu0 0.0
        %7840 = vmatpush1.msra.mxu0 %v7797
        %7841 = vmatprep.subr.mxu0 0.0
        %7842 = vmatpush1.msra.mxu0 %v7798
        %7843 = vmatprep.subr.mxu0 0.0
        %7844 = vmatpush1.msra.mxu0 %v7799
        %7845 = vmatprep.subr.mxu0 0.0
        %7846 = vmatpush1.msra.mxu0 %v7800
        %7847 = vmatprep.subr.mxu0 0.0
        %7848 = vmatpush1.msra.mxu0 %v7801
        %7849 = vmatprep.subr.mxu0 0.0
        %7850 = vmatpush1.msra.mxu0 %v7802
        %7851 = vmatprep.subr.mxu0 0.0
        %7852 = vmatpush1.msra.mxu0 %v7803
        %7853 = vmatprep.subr.mxu0 0.0
        %7854 = vmatpush1.msra.mxu0 %v7804
        %7855 = vmatprep.subr.mxu0 0.0
        %7856 = vmatpush1.msra.mxu0 %v7805
        %7857 = vmatprep.subr.mxu0 0.0
        %7858 = vmatpush1.msra.mxu0 %v7806
        %7859 = vmatprep.subr.mxu0 0.0
        %7860 = vmatpush1.msra.mxu0 %v7807
        %7861 = vmatprep.subr.mxu0 0.0
        %7862 = vmatpush1.msra.mxu0 %v7808
        %7863 = vmatprep.subr.mxu0 0.0
        %7864 = vmatpush1.msra.mxu0 %v7809
        %7865 = vmatprep.subr.mxu0 0.0
        %7866 = vmatpush1.msra.mxu0 %v7810
        %7867 = vmatprep.subr.mxu0 0.0
        %7868 = vmatpush1.msra.mxu0 %v7811
        %7869 = vmatprep.subr.mxu0 0.0
        %7870 = vmatpush1.msra.mxu0 %v7812
        %7871 = vmatprep.subr.mxu0 0.0
        %7872 = vmatpush1.msra.mxu0 %v7813
        %7873 = vmatprep.subr.mxu0 0.0
        %7874 = vmatpush1.msra.mxu0 %v7814
        %7875 = vmatprep.subr.mxu0 0.0
        %7876 = vmatpush1.msra.mxu0 %v7815
        %7877 = vmatprep.subr.mxu0 0.0
        %7878 = vmatpush1.msra.mxu0 %v7816
        %7879 = vmatprep.subr.mxu0 0.0
        %7880 = vmatpush1.msra.mxu0 %v7817
        %7881 = vmatprep.subr.mxu0 0.0
        %7882 = vmatpush1.msra.mxu0 %v7818
        %7883 = vmatprep.subr.mxu0 0.0
        %7884 = vmatpush1.msra.mxu0 %v7819
        %7885 = vmatprep.mubr.f32.mxu0 %v7787
        %7886 = vmatmul.mubr.f32.gmra.mrb[0].mxu0 %v7786
        %v7887 = vpop.f32.mrb[0].mxu0
        %v7888 = vadd.f32 %v7820, %v7887
        %v7889 = vpop.f32.mrb[0].mxu0
        %7890 = vdwg.mxu0
        %v7891 = vmax.f32 %v7888, 0.0
        %v7892 = vld [vmem:[%s15] sm:$0xff]
        %v7893 = vld [vmem:[%s15 + $0x8] sm:$0xff]
        %v7894 = vld [vmem:[%s15 + $0x10] sm:$0xff]
        %v7895 = vld [vmem:[%s15 + $0x18] sm:$0xff]
        %v7896 = vld [vmem:[%s15 + $0x20] sm:$0xff]
        %v7897 = vld [vmem:[%s15 + $0x28] sm:$0xff]
        %v7898 = vld [vmem:[%s15 + $0x30] sm:$0xff]
        %v7899 = vld [vmem:[%s15 + $0x38] sm:$0xff]
        %v7900 = vld [vmem:[%s15 + $0x40] sm:$0xff]
        %v7901 = vld [vmem:[%s15 + $0x48] sm:$0xff]
        %v7902 = vld [vmem:[%s15 + $0x50] sm:$0xff]
        %v7903 = vld [vmem:[%s15 + $0x58] sm:$0xff]
        %v7904 = vld [vmem:[%s15 + $0x60] sm:$0xff]
        %v7905 = vld [vmem:[%s15 + $0x68] sm:$0xff]
        %v7906 = vld [vmem:[%s15 + $0x70] sm:$0xff]
        %v7907 = vld [vmem:[%s15 + $0x78] sm:$0xff]
        %v7908 = vld [vmem:[%s16] sm:$0x1]
        %7909 = vmatprep.subr.mxu0 0.0
        %7910 = vmatpush1.msra.mxu0 %v7892
        %7911 = vmatprep.subr.mxu0 0.0
        %7912 = vmatpush1.msra.mxu0 %v7893
        %7913 = vmatprep.subr.mxu0 0.0
        %7914 = vmatpush1.msra.mxu0 %v7894
        %7915 = vmatprep.subr.mxu0 0.0
        %7916 = vmatpush1.msra.mxu0 %v7895
        %7917 = vmatprep.subr.mxu0 0.0
        %7918 = vmatpush1.msra.mxu0 %v7896
        %7919 = vmatprep.subr.mxu0 0.0
        %7920 = vmatpush1.msra.mxu0 %v7897
        %7921 = vmatprep.subr.mxu0 0.0
        %7922 = vmatpush1.msra.mxu0 %v7898
        %7923 = vmatprep.subr.mxu0 0.0
        %7924 = vmatpush1.msra.mxu0 %v7899
        %7925 = vmatprep.subr.mxu0 0.0
        %7926 = vmatpush1.msra.mxu0 %v7900
        %7927 = vmatprep.subr.mxu0 0.0
        %7928 = vmatpush1.msra.mxu0 %v7901
        %7929 = vmatprep.subr.mxu0 0.0
        %7930 = vmatpush1.msra.mxu0 %v7902
        %7931 = vmatprep.subr.mxu0 0.0
        %7932 = vmatpush1.msra.mxu0 %v7903
        %7933 = vmatprep.subr.mxu0 0.0
        %7934 = vmatpush1.msra.mxu0 %v7904
        %7935 = vmatprep.subr.mxu0 0.0
        %7936 = vmatpush1.msra.mxu0 %v7905
        %7937 = vmatprep.subr.mxu0 0.0
        %7938 = vmatpush1.msra.mxu0 %v7906
        %7939 = vmatprep.subr.mxu0 0.0
        %7940 = vmatpush1.msra.mxu0 %v7907
        %7941 = vmatprep.subr.mxu0 0.0
        %7942 = vmatpush1.msra.mxu0 0.0
        %7943 = vmatprep.subr.mxu0 0.0
        %7944 = vmatpush1.msra.mxu0 0.0
        %7945 = vmatprep.subr.mxu0 0.0
        %7946 = vmatpush1.msra.mxu0 0.0
        %7947 = vmatprep.subr.mxu0 0.0
        %7948 = vmatpush1.msra.mxu0 0.0
        %7949 = vmatprep.subr.mxu0 0.0
        %7950 = vmatpush1.msra.mxu0 0.0
        %7951 = vmatprep.subr.mxu0 0.0
        %7952 = vmatpush1.msra.mxu0 0.0
        %7953 = vmatprep.subr.mxu0 0.0
        %7954 = vmatpush1.msra.mxu0 0.0
        %7955 = vmatprep.subr.mxu0 0.0
        %7956 = vmatpush1.msra.mxu0 0.0
        %7957 = vmatprep.subr.mxu0 0.0
        %7958 = vmatpush1.msra.mxu0 0.0
        %7959 = vmatprep.subr.mxu0 0.0
        %7960 = vmatpush1.msra.mxu0 0.0
        %7961 = vmatprep.subr.mxu0 0.0
        %7962 = vmatpush1.msra.mxu0 0.0
        %7963 = vmatprep.subr.mxu0 0.0
        %7964 = vmatpush1.msra.mxu0 0.0
        %7965 = vmatprep.subr.mxu0 0.0
        %7966 = vmatpush1.msra.mxu0 0.0
        %7967 = vmatprep.subr.mxu0 0.0
        %7968 = vmatpush1.msra.mxu0 0.0
        %7969 = vmatprep.subr.mxu0 0.0
        %7970 = vmatpush1.msra.mxu0 0.0
        %7971 = vmatprep.subr.mxu0 0.0
        %7972 = vmatpush1.msra.mxu0 0.0
        %7973 = vmatprep.mubr.f32.mxu0 0.0
        %7974 = vmatmul.mubr.f32.gmra.mrb[0].mxu0 %v7891
        %v7975 = vpop.f32.mrb[0].mxu0
        %v7976 = vadd.f32 %v7908, %v7975
        %v7977 = vpop.f32.mrb[0].mxu0
        %7978 = vdwg.mxu0
        %vm7979 = vcmask 516096
        %7980 = vst.msk [vmem:[%s515] sm:$0x1] %vm7979, %v7976
        %s7981 = sand.u32 %s380, 1
        %s7982 = scalar_lea.sflag [#allocation5], %s7981
        %s7983 = sand.u32 %s380, 1
        %s7984 = scalar_lea.vmem [#allocation4], %s7983
        // Predicated region
        $region85: #{occupancy_map_embedding.1} parent=83 // pred_check
          %p7985 = pneg %p390
        $region86: #{occupancy_map_embedding.1} parent=83 // pred_check_branch
          %7987 = sbr.rel (%p7985) target = $region88
        $region87: #{occupancy_map_embedding.1} parent=83 // pred_region
          %s7989 = ssub.s32 16, 16
          %7990 = vsyncadd %s7982, %s7989
          %s7991 = smul.addr %s31, 16
          %s7992 = scalar_lea.hbm %s17, %s7991
          %s7994 = sshll.u32 %s7984, 4
          %s7995 = int_to_ptr.vmem [resolvable:$true] %s7994
          %7997 = dma.vmem_to_hbm [thread:$0]  %s7995, 16, %s7992, %s7982
        $region88: #{occupancy_map_embedding.1} parent=83 // pred_fallthru
          _
      $region84: #{occupancy_map_embedding.1} parent=5 // pred_fallthru
        _
      %p7998 = scmp.le.s32.totalorder 2, %s26
      // Predicated region
      $region89: #{occupancy_map_embedding.1} parent=5 // pred_check
        %p7999 = pneg %p7998
      $region90: #{occupancy_map_embedding.1} parent=5 // pred_check_branch
        %8001 = sbr.rel (%p7999) target = $region92
      $region91: #{occupancy_map_embedding.1} parent=5 // pred_region
        %s8002 = ssub.s32 %s26, 2
        // Predicated region
        $region93: #{occupancy_map_embedding.1} parent=91 // pred_check
          %p8003 = pneg %p396
        $region94: #{occupancy_map_embedding.1} parent=91 // pred_check_branch
          %8005 = sbr.rel (%p8003) target = $region96
        $region95: #{occupancy_map_embedding.1} parent=91 // pred_region
          %s8006 = sand.u32 %s381, 1
          %s8007 = scalar_lea.sflag [#allocation5], %s8006
          %s8008 = sand.u32 %s381, 1
          %s8009 = scalar_lea.vmem [#allocation4], %s8008
          %8010 = dma.done %s8007, 16
        $region96: #{occupancy_map_embedding.1} parent=91 // pred_fallthru
          _
      $region92: #{occupancy_map_embedding.1} parent=5 // pred_fallthru
        _
    $region6: #{occupancy_map_embedding.1} parent=1 // loop_footer
      %s30 = sadd.s32 1, %s26
    $region7: #{occupancy_map_embedding.1} parent=1 // loop_footer_branch
      %25 = sbr.rel target = $region3
    $region8: #{occupancy_map_embedding.1} parent=1 // loop_exit
      _
    %8011 = vsyncpa [#allocation5], 1
    %s8012 = scalar_lea.sflag [#allocation5], 1
    %8013 = vsyncpa %s8012, 1
  %8014 = vsyncmov [#allocation3]
  %s8015 = vpop.sfrf %8014
  %p8016 = scmp.eq.s32.totalorder %s8015, 0
  %p8017 = pneg %p8016
  %8019 = shalt.err (%p8017)

</llo_original>
